<compile_context>
chip_gen: v5e
topology: v5e:2x2
jax: 0.10.0
libtpu: 0.0.40
codegen_flags: <defaults>
</compile_context>

<pallas_src>
import functools

import jax
import jax.numpy as jnp
from jax.experimental import pallas as pl
from jax.experimental.pallas import tpu as pltpu


# ----------------------------------------------------------------------------
# Fused decoder kernel: one grid step == one batch element, end to end.
# ----------------------------------------------------------------------------
def _decoder_kernel(*refs, h0, w0, stage_cfg):
    f32 = jnp.float32
    bf16 = jnp.bfloat16

    refs = list(refs)
    o_ref = refs.pop()            # output block (1, 3, Hf*Wf)
    x_ref = refs.pop(0)           # latent block (1, latent_ch, h0*w0)
    it = iter(refs)               # weights / constants (VMEM-resident, in order)

    def silu(v):
        return v * jax.nn.sigmoid(v)

    def col_masks(W, N):
        # (1, N) f32 masks zeroing the first / last column of every row.
        w_idx = jax.lax.broadcasted_iota(jnp.int32, (1, N), 1) % W
        not_first = (w_idx != 0).astype(f32)
        not_last = (w_idx != W - 1).astype(f32)
        return not_first, not_last

    def shifted_taps(x, W, masks):
        # x: (C, N) f32.  Returns the 9 zero-padded 3x3-neighbour taps stacked
        # as (9*C, N) bf16.  Each tap is a lane shift with zero fill
        # (slice + concat == roll + boundary mask): exact, O(C*N) data
        # movement only, no MXU work, no (N, N) gather constants.
        C, N = x.shape
        not_first, not_last = masks
        taps = []
        for oy in (-1, 0, 1):
            for ox in (-1, 0, 1):
                s = oy * W + ox           # tap[n] = x[n + s] (zero-padded)
                if s > 0:
                    t = jnp.concatenate(
                        [x[:, s:], jnp.zeros((C, s), f32)], axis=1)
                elif s < 0:
                    t = jnp.concatenate(
                        [jnp.zeros((C, -s), f32), x[:, :N + s]], axis=1)
                else:
                    t = x
                if ox == 1:               # source column W (row wrap) is OOB
                    t = t * not_last
                elif ox == -1:            # source column -1 (row wrap) is OOB
                    t = t * not_first
                taps.append(t)
        return jnp.concatenate(taps, axis=0).astype(bf16)

    def conv3x3(x, w_ref, b_ref, W, masks, pre_silu):
        # One wide-K bf16 MXU matmul: (Cout, 9*Cin) @ (9*Cin, N), f32 accum.
        if pre_silu:
            x = silu(x)
        xs = shifted_taps(x, W, masks)
        out = jnp.dot(w_ref[...], xs, preferred_element_type=f32)
        if b_ref is not None:
            out = out + b_ref[...]
        return out

    # ---- conv_in (1x1): the x.repeat(1, rep_factor, 1, 1) input residual is
    #      folded into the weight host-side, so one dot == conv_in(x) + res.
    x = x_ref[0].astype(f32)                              # (latent_ch, h0*w0)
    w_in_ref, b_in_ref = next(it), next(it)
    h = jnp.dot(w_in_ref[...], x.astype(bf16),
                preferred_element_type=f32) + b_in_ref[...]   # (ch_max, N)

    # ---- upsampling stages --------------------------------------------------
    H, W = h0, w0
    for (_ch_in, ch_out, n_res) in stage_cfg:
        stage_in = h
        masks = col_masks(W, H * W)       # shared by every conv in this stage
        for _ in range(n_res):
            w1_ref, b1_ref = next(it), next(it)
            w2_ref, b2_ref = next(it), next(it)
            t = conv3x3(h, w1_ref, b1_ref, W, masks, pre_silu=True)
            h = conv3x3(t, w2_ref, b2_ref, W, masks, pre_silu=True) + h
        wp_ref, bp_ref, dup_ref, g_ref = next(it), next(it), next(it), next(it)
        # UpBlock 1x1 projection (output channels pre-permuted to plane-major).
        y = jnp.dot(wp_ref[...], h.astype(bf16),
                    preferred_element_type=f32) + bp_ref[...]
        # Fused ChannelToSpace shortcut: channel duplication of the stage input
        # via a small host-side bf16 0/1 matrix (O(C^2*N), not O(N^2)).
        y = y + jnp.dot(dup_ref[...], stage_in.astype(bf16),
                        preferred_element_type=f32)
        # pixel_shuffle(2) (add-before-shuffle fusion): 4 plane scatters with
        # host-side bf16 0/1 matrices.
        # TODO(synk): strided-store / space-to-depth at production resolutions.
        yb = y.astype(bf16)
        up = jnp.dot(yb[0:ch_out, :], g_ref[0], preferred_element_type=f32)
        for p in range(1, 4):
            up = up + jnp.dot(yb[p * ch_out:(p + 1) * ch_out, :], g_ref[p],
                              preferred_element_type=f32)
        h = up                                            # (ch_out, 4*H*W)
        H, W = 2 * H, 2 * W

    # ---- act_out (SiLU) + conv_out (3x3, no bias); (3, Hf*Wf) is lane-dense --
    w_out_ref = next(it)
    masks = col_masks(W, H * W)
    z = conv3x3(h, w_out_ref, None, W, masks, pre_silu=True)
    o_ref[0] = z.astype(o_ref.dtype)


# ----------------------------------------------------------------------------
# Host wrapper: single fused pallas_call, grid over batch (parallel for v7x).
# ----------------------------------------------------------------------------
def decoder_forward(kernel_weights, stage_cfg, x_nchw):
    """x_nchw: (B, latent_ch, h0, w0) -> RGB (B, 3, h0*2^S, w0*2^S), NCHW."""
    B, c_lat, h0, w0 = x_nchw.shape
    n0 = h0 * w0
    scale = 2 ** len(stage_cfg)
    hf, wf = h0 * scale, w0 * scale
    nf = hf * wf
    c_out = kernel_weights[-1].shape[0]           # conv_out GEMM: (3, 9*ch_0)

    x = x_nchw.reshape(B, c_lat, n0)              # channel-major, flat spatial

    # Weights / constants: whole array resident in VMEM, single buffer
    # (no per-grid-step double-buffered re-DMA).
    weight_specs = [pl.BlockSpec(memory_space=pltpu.MemorySpace.VMEM)
                    for _ in kernel_weights]
    in_specs = [pl.BlockSpec((1, c_lat, n0), lambda b: (b, 0, 0))] + weight_specs

    kernel = functools.partial(_decoder_kernel, h0=h0, w0=w0,
                               stage_cfg=stage_cfg)

    out = pl.pallas_call(
        kernel,
        out_shape=jax.ShapeDtypeStruct((B, c_out, nf), jnp.float32),
        grid=(B,),
        in_specs=in_specs,
        out_specs=pl.BlockSpec((1, c_out, nf), lambda b: (b, 0, 0)),
        compiler_params=pltpu.CompilerParams(
            dimension_semantics=("parallel",),
            vmem_limit_bytes=48 * 1024 * 1024,
        ),
    )(x, *kernel_weights)
    return out.reshape(B, c_out, hf, wf)


# ----------------------------------------------------------------------------
# Deterministic parameter construction (weight_norm reparameterization)
# ----------------------------------------------------------------------------
def _wn_effective(v, g):
    norm = jnp.sqrt(jnp.sum(v * v, axis=(1, 2, 3), keepdims=True))
    return g.reshape(-1, 1, 1, 1) * v / norm


def init_conv(key, cout, cin, k, bias=True, scale=0.05):
    kv, kb = jax.random.split(key)
    v = jax.random.normal(kv, (cout, cin, k, k), jnp.float32) * scale
    g = jnp.sqrt(jnp.sum(v * v, axis=(1, 2, 3)))   # weight_norm init: g = ||v||
    w = _wn_effective(v, g)
    b = jax.random.normal(kb, (cout,), jnp.float32) * scale if bias else None
    return w, b


def build_decoder_params(key):
    # Synthetic "ResNetConfig": square sample_size (-> s_to_l is identity),
    # latent_channels=8, ch_0=16, ch_max=64, decoder_blocks_per_stage=[1,1,1].
    latent_channels, ch_0, ch_max = 8, 16, 64
    blocks_per_stage = [1, 1, 1]

    keys = iter(jax.random.split(key, 64))
    conv_in = init_conv(next(keys), ch_max, latent_channels, 1)

    stages = []
    ch = ch_0
    for block_count in reversed(blocks_per_stage[:-1]):
        next_ch = min(ch * 2, ch_max)
        resblocks = [(init_conv(next(keys), next_ch, next_ch, 3),
                      init_conv(next(keys), next_ch, next_ch, 3))
                     for _ in range(block_count)]
        proj = init_conv(next(keys), ch * 4, next_ch, 1)     # UpBlock projection
        stages.append(dict(resblocks=resblocks, proj=proj,
                           ch_in=next_ch, ch_out=ch))
        ch = next_ch
    stages = list(reversed(stages))                           # forward order

    conv_out = init_conv(next(keys), 3, ch_0, 3, bias=False)
    return dict(latent_channels=latent_channels, ch_0=ch_0, ch_max=ch_max,
                conv_in=conv_in, stages=stages, conv_out=conv_out)


# ----------------------------------------------------------------------------
# One-time host-side weight preparation (GEMM layouts, bf16, 0/1 constants)
# ----------------------------------------------------------------------------
def _conv3x3_gemm(w):
    """(Cout, Cin, 3, 3) torch conv weight -> (Cout, 9*Cin) bf16, tap-major
    columns (column block t = dy*3 + dx matches the in-kernel tap stack)."""
    cout, cin = w.shape[0], w.shape[1]
    return jnp.transpose(w, (0, 2, 3, 1)).reshape(cout, 9 * cin).astype(jnp.bfloat16)


def _shuffle_mats(H, W):
    """(4, N, 4N) bf16 0/1 pixel_shuffle(2) plane-scatter matrices, plane
    p = 2*i + j (row offset i, col offset j)."""
    N = H * W
    n = jnp.arange(N)
    h = n // W
    w = n % W
    mats = []
    for p in range(4):
        i, j = p // 2, p % 2
        dst = (2 * h + i) * (2 * W) + (2 * w + j)
        mats.append(jax.nn.one_hot(dst, 4 * N, dtype=jnp.float32))
    return jnp.stack(mats).astype(jnp.bfloat16)


def prepare_kernel_params(params, h0, w0):
    """One-time conversion of torch-layout weights into the GEMM / channel-major
    bf16 layouts and host-side 0/1 constants consumed by the fused kernel."""
    lat = params["latent_channels"]
    ch_max = params["ch_max"]

    w_in, b_in = params["conv_in"]
    w_in2d = w_in.reshape(ch_max, lat)
    # fold `res = x.repeat(1, rep_factor, 1, 1); x = conv_in(x) + res` into the
    # 1x1 weight (exact fold for a 1x1 conv): add the 0/1 channel-repeat matrix.
    rep = jax.nn.one_hot(jnp.arange(ch_max) % lat, lat, dtype=jnp.float32)
    flat = [(w_in2d + rep).astype(jnp.bfloat16), b_in.reshape(-1, 1)]

    stage_cfg = []
    H, W = h0, w0
    for st in params["stages"]:
        ch_in, ch_out = st["ch_in"], st["ch_out"]
        for (w1, b1), (w2, b2) in st["resblocks"]:
            flat += [_conv3x3_gemm(w1), b1.reshape(-1, 1),
                     _conv3x3_gemm(w2), b2.reshape(-1, 1)]
        wp, bp = st["proj"]
        # plane-major channel permutation: q' = p*c_out + c  <->  original
        # q = 4*c + p, so the in-kernel pixel shuffle uses contiguous,
        # sublane-aligned channel slices.
        qp = jnp.arange(4 * ch_out)
        perm = 4 * (qp % ch_out) + qp // ch_out
        flat += [
            wp.reshape(4 * ch_out, ch_in)[perm].astype(jnp.bfloat16),
            bp[perm].reshape(-1, 1),
            # ChannelToSpace shortcut (torch .repeat channel tiling) as a small
            # bf16 0/1 matrix in the same permuted pre-shuffle order.
            jax.nn.one_hot(perm % ch_in, ch_in, dtype=jnp.float32).astype(jnp.bfloat16),
            _shuffle_mats(H, W),
        ]
        stage_cfg.append((ch_in, ch_out, len(st["resblocks"])))
        H, W = 2 * H, 2 * W

    w_out, _ = params["conv_out"]
    flat.append(_conv3x3_gemm(w_out))
    return tuple(flat), tuple(stage_cfg)


if __name__ == "__main__":
    key = jax.random.PRNGKey(0)
    k_x, k_p = jax.random.split(key)

    # Latent input (NCHW, as PyTorch would feed it): (B=2, latent_channels=8, 8, 8)
    x = jax.random.normal(k_x, (2, 8, 8, 8), jnp.float32)

    params = build_decoder_params(k_p)
    kernel_weights, stage_cfg = prepare_kernel_params(params, h0=8, w0=8)  # once

    fwd = jax.jit(decoder_forward, static_argnums=1)
    out = jax.block_until_ready(fwd(kernel_weights, stage_cfg, x))

    assert out.shape == (2, 3, 32, 32), out.shape
    assert bool(jnp.all(jnp.isfinite(out)))
    print("KERNEL_OK")
</pallas_src>

<mosaic_0001>
module attributes {stable_mosaic.version = 11 : i64} {
  func.func @_decoder_kernel(%arg0: i32, %arg1: memref<1x8x64xf32, #tpu.memory_space<vmem>>, %arg2: memref<64x8xbf16, #tpu.memory_space<vmem>>, %arg3: memref<64x1xf32, #tpu.memory_space<vmem>>, %arg4: memref<64x576xbf16, #tpu.memory_space<vmem>>, %arg5: memref<64x1xf32, #tpu.memory_space<vmem>>, %arg6: memref<64x576xbf16, #tpu.memory_space<vmem>>, %arg7: memref<64x1xf32, #tpu.memory_space<vmem>>, %arg8: memref<128x64xbf16, #tpu.memory_space<vmem>>, %arg9: memref<128x1xf32, #tpu.memory_space<vmem>>, %arg10: memref<128x64xbf16, #tpu.memory_space<vmem>>, %arg11: memref<4x64x256xbf16, #tpu.memory_space<vmem>>, %arg12: memref<32x288xbf16, #tpu.memory_space<vmem>>, %arg13: memref<32x1xf32, #tpu.memory_space<vmem>>, %arg14: memref<32x288xbf16, #tpu.memory_space<vmem>>, %arg15: memref<32x1xf32, #tpu.memory_space<vmem>>, %arg16: memref<64x32xbf16, #tpu.memory_space<vmem>>, %arg17: memref<64x1xf32, #tpu.memory_space<vmem>>, %arg18: memref<64x32xbf16, #tpu.memory_space<vmem>>, %arg19: memref<4x256x1024xbf16, #tpu.memory_space<vmem>>, %arg20: memref<3x144xbf16, #tpu.memory_space<vmem>>, %arg21: memref<1x3x1024xf32, #tpu.memory_space<vmem>>) attributes {dimension_semantics = [#tpu.dimension_semantics<parallel>], iteration_bounds = array<i64: 2>, scalar_prefetch = 0 : i64, scratch_operands = 0 : i64, tpu.core_type = #tpu.core_type<tc>, window_params = [{transform_indices = @transform_0, window_bounds = array<i64: 1, 8, 64>}, {pipeline_mode = #tpu.pipeline_mode<synchronous>, transform_indices = @transform_1, window_bounds = array<i64: 64, 8>}, {pipeline_mode = #tpu.pipeline_mode<synchronous>, transform_indices = @transform_2, window_bounds = array<i64: 64, 1>}, {pipeline_mode = #tpu.pipeline_mode<synchronous>, transform_indices = @transform_3, window_bounds = array<i64: 64, 576>}, {pipeline_mode = #tpu.pipeline_mode<synchronous>, transform_indices = @transform_4, window_bounds = array<i64: 64, 1>}, {pipeline_mode = #tpu.pipeline_mode<synchronous>, transform_indices = @transform_5, window_bounds = array<i64: 64, 576>}, {pipeline_mode = #tpu.pipeline_mode<synchronous>, transform_indices = @transform_6, window_bounds = array<i64: 64, 1>}, {pipeline_mode = #tpu.pipeline_mode<synchronous>, transform_indices = @transform_7, window_bounds = array<i64: 128, 64>}, {pipeline_mode = #tpu.pipeline_mode<synchronous>, transform_indices = @transform_8, window_bounds = array<i64: 128, 1>}, {pipeline_mode = #tpu.pipeline_mode<synchronous>, transform_indices = @transform_9, window_bounds = array<i64: 128, 64>}, {pipeline_mode = #tpu.pipeline_mode<synchronous>, transform_indices = @transform_10, window_bounds = array<i64: 4, 64, 256>}, {pipeline_mode = #tpu.pipeline_mode<synchronous>, transform_indices = @transform_11, window_bounds = array<i64: 32, 288>}, {pipeline_mode = #tpu.pipeline_mode<synchronous>, transform_indices = @transform_12, window_bounds = array<i64: 32, 1>}, {pipeline_mode = #tpu.pipeline_mode<synchronous>, transform_indices = @transform_13, window_bounds = array<i64: 32, 288>}, {pipeline_mode = #tpu.pipeline_mode<synchronous>, transform_indices = @transform_14, window_bounds = array<i64: 32, 1>}, {pipeline_mode = #tpu.pipeline_mode<synchronous>, transform_indices = @transform_15, window_bounds = array<i64: 64, 32>}, {pipeline_mode = #tpu.pipeline_mode<synchronous>, transform_indices = @transform_16, window_bounds = array<i64: 64, 1>}, {pipeline_mode = #tpu.pipeline_mode<synchronous>, transform_indices = @transform_17, window_bounds = array<i64: 64, 32>}, {pipeline_mode = #tpu.pipeline_mode<synchronous>, transform_indices = @transform_18, window_bounds = array<i64: 4, 256, 1024>}, {pipeline_mode = #tpu.pipeline_mode<synchronous>, transform_indices = @transform_19, window_bounds = array<i64: 3, 144>}, {transform_indices = @transform_20, window_bounds = array<i64: 1, 3, 1024>}]} {
    %c0 = arith.constant 0 : index
    %c0_0 = arith.constant 0 : index
    %c0_1 = arith.constant 0 : index
    %0 = vector.load %arg1[%c0, %c0_0, %c0_1] : memref<1x8x64xf32, #tpu.memory_space<vmem>>, vector<1x8x64xf32>
    %1 = vector.shape_cast %0 : vector<1x8x64xf32> to vector<8x64xf32>
    %c0_2 = arith.constant 0 : index
    %c0_3 = arith.constant 0 : index
    %2 = vector.load %arg2[%c0_2, %c0_3] : memref<64x8xbf16, #tpu.memory_space<vmem>>, vector<64x8xbf16>
    %3 = arith.truncf %1 : vector<8x64xf32> to vector<8x64xbf16>
    %cst = arith.constant dense<0.000000e+00> : vector<64x64xf32>
    %4 = tpu.matmul %2, %3, %cst {dimension_numbers = #tpu.dot_dimension_numbers<[1], [0], [0], [1], [0, 0, 1, 1], [], []>} : vector<64x8xbf16>, vector<8x64xbf16>, vector<64x64xf32> -> vector<64x64xf32>
    %c0_4 = arith.constant 0 : index
    %c0_5 = arith.constant 0 : index
    %5 = vector.load %arg3[%c0_4, %c0_5] : memref<64x1xf32, #tpu.memory_space<vmem>>, vector<64x1xf32>
    %6 = vector.broadcast %5 : vector<64x1xf32> to vector<64x64xf32>
    %7 = arith.addf %4, %6 : vector<64x64xf32>
    %8 = tpu.iota {dimensions = array<i32: 1>} : vector<1x64xi32>
    %c8_i32 = arith.constant 8 : i32
    %c0_i32 = arith.constant 0 : i32
    %9 = arith.cmpi eq, %c8_i32, %c0_i32 : i32
    %c1_i32 = arith.constant 1 : i32
    %10 = arith.select %9, %c1_i32, %c8_i32 : i32
    %11 = vector.broadcast %10 : i32 to vector<1x64xi32>
    %12 = arith.remsi %8, %11 : vector<1x64xi32>
    %c0_i32_6 = arith.constant 0 : i32
    %13 = vector.broadcast %c0_i32_6 : i32 to vector<1x64xi32>
    %14 = arith.cmpi ne, %12, %13 : vector<1x64xi32>
    %c0_i32_7 = arith.constant 0 : i32
    %15 = vector.broadcast %c0_i32_7 : i32 to vector<1x64xi32>
    %16 = arith.cmpi slt, %12, %15 : vector<1x64xi32>
    %c0_i32_8 = arith.constant 0 : i32
    %17 = arith.cmpi slt, %10, %c0_i32_8 : i32
    %18 = vector.broadcast %17 : i1 to vector<1x64xi1>
    %19 = vector.broadcast %18 : vector<1x64xi1> to vector<1x64xi1>
    %20 = arith.xori %16, %19 : vector<1x64xi1>
    %21 = arith.andi %20, %14 : vector<1x64xi1>
    %22 = vector.broadcast %10 : i32 to vector<1x64xi32>
    %23 = arith.addi %12, %22 : vector<1x64xi32>
    %24 = arith.select %21, %23, %12 : vector<1x64xi1>, vector<1x64xi32>
    %c0_i32_9 = arith.constant 0 : i32
    %25 = vector.broadcast %c0_i32_9 : i32 to vector<1x64xi32>
    %26 = arith.cmpi ne, %24, %25 : vector<1x64xi32>
    %27 = arith.extui %26 : vector<1x64xi1> to vector<1x64xi32>
    %28 = arith.sitofp %27 : vector<1x64xi32> to vector<1x64xf32>
    %c7_i32 = arith.constant 7 : i32
    %29 = vector.broadcast %c7_i32 : i32 to vector<1x64xi32>
    %30 = arith.cmpi ne, %24, %29 : vector<1x64xi32>
    %31 = arith.extui %30 : vector<1x64xi1> to vector<1x64xi32>
    %32 = arith.sitofp %31 : vector<1x64xi32> to vector<1x64xf32>
    %33 = arith.negf %7 : vector<64x64xf32>
    %34 = math.exp %33 : vector<64x64xf32>
    %cst_10 = arith.constant 1.000000e+00 : f32
    %35 = vector.broadcast %cst_10 : f32 to vector<64x64xf32>
    %36 = arith.addf %35, %34 : vector<64x64xf32>
    %37 = arith.divf %35, %36 : vector<64x64xf32>
    %38 = arith.mulf %7, %37 : vector<64x64xf32>
    %cst_11 = arith.constant 0.000000e+00 : f32
    %39 = vector.broadcast %cst_11 : f32 to vector<64x9xf32>
    %40 = vector.extract_strided_slice %38 {offsets = [0, 0], sizes = [64, 55], strides = [1, 1]} : vector<64x64xf32> to vector<64x55xf32>
    %41 = tpu.concatenate %39, %40 in 1 : vector<64x9xf32>, vector<64x55xf32> -> vector<64x64xf32>
    %42 = vector.broadcast %28 : vector<1x64xf32> to vector<64x64xf32>
    %43 = arith.mulf %41, %42 : vector<64x64xf32>
    %cst_12 = arith.constant 0.000000e+00 : f32
    %44 = vector.broadcast %cst_12 : f32 to vector<64x8xf32>
    %45 = vector.extract_strided_slice %38 {offsets = [0, 0], sizes = [64, 56], strides = [1, 1]} : vector<64x64xf32> to vector<64x56xf32>
    %46 = tpu.concatenate %44, %45 in 1 : vector<64x8xf32>, vector<64x56xf32> -> vector<64x64xf32>
    %cst_13 = arith.constant 0.000000e+00 : f32
    %47 = vector.broadcast %cst_13 : f32 to vector<64x7xf32>
    %48 = vector.extract_strided_slice %38 {offsets = [0, 0], sizes = [64, 57], strides = [1, 1]} : vector<64x64xf32> to vector<64x57xf32>
    %49 = tpu.concatenate %47, %48 in 1 : vector<64x7xf32>, vector<64x57xf32> -> vector<64x64xf32>
    %50 = vector.broadcast %32 : vector<1x64xf32> to vector<64x64xf32>
    %51 = arith.mulf %49, %50 : vector<64x64xf32>
    %cst_14 = arith.constant 0.000000e+00 : f32
    %52 = vector.broadcast %cst_14 : f32 to vector<64x1xf32>
    %53 = vector.extract_strided_slice %38 {offsets = [0, 0], sizes = [64, 63], strides = [1, 1]} : vector<64x64xf32> to vector<64x63xf32>
    %54 = tpu.concatenate %52, %53 in 1 : vector<64x1xf32>, vector<64x63xf32> -> vector<64x64xf32>
    %55 = vector.broadcast %28 : vector<1x64xf32> to vector<64x64xf32>
    %56 = arith.mulf %54, %55 : vector<64x64xf32>
    %57 = vector.extract_strided_slice %38 {offsets = [0, 1], sizes = [64, 63], strides = [1, 1]} : vector<64x64xf32> to vector<64x63xf32>
    %cst_15 = arith.constant 0.000000e+00 : f32
    %58 = vector.broadcast %cst_15 : f32 to vector<64x1xf32>
    %59 = tpu.concatenate %57, %58 in 1 : vector<64x63xf32>, vector<64x1xf32> -> vector<64x64xf32>
    %60 = vector.broadcast %32 : vector<1x64xf32> to vector<64x64xf32>
    %61 = arith.mulf %59, %60 : vector<64x64xf32>
    %62 = vector.extract_strided_slice %38 {offsets = [0, 7], sizes = [64, 57], strides = [1, 1]} : vector<64x64xf32> to vector<64x57xf32>
    %cst_16 = arith.constant 0.000000e+00 : f32
    %63 = vector.broadcast %cst_16 : f32 to vector<64x7xf32>
    %64 = tpu.concatenate %62, %63 in 1 : vector<64x57xf32>, vector<64x7xf32> -> vector<64x64xf32>
    %65 = vector.broadcast %28 : vector<1x64xf32> to vector<64x64xf32>
    %66 = arith.mulf %64, %65 : vector<64x64xf32>
    %67 = vector.extract_strided_slice %38 {offsets = [0, 8], sizes = [64, 56], strides = [1, 1]} : vector<64x64xf32> to vector<64x56xf32>
    %cst_17 = arith.constant 0.000000e+00 : f32
    %68 = vector.broadcast %cst_17 : f32 to vector<64x8xf32>
    %69 = tpu.concatenate %67, %68 in 1 : vector<64x56xf32>, vector<64x8xf32> -> vector<64x64xf32>
    %70 = vector.extract_strided_slice %38 {offsets = [0, 9], sizes = [64, 55], strides = [1, 1]} : vector<64x64xf32> to vector<64x55xf32>
    %cst_18 = arith.constant 0.000000e+00 : f32
    %71 = vector.broadcast %cst_18 : f32 to vector<64x9xf32>
    %72 = tpu.concatenate %70, %71 in 1 : vector<64x55xf32>, vector<64x9xf32> -> vector<64x64xf32>
    %73 = vector.broadcast %32 : vector<1x64xf32> to vector<64x64xf32>
    %74 = arith.mulf %72, %73 : vector<64x64xf32>
    %75 = tpu.concatenate %43, %46, %51, %56, %38, %61, %66, %69, %74 in 0 : vector<64x64xf32>, vector<64x64xf32>, vector<64x64xf32>, vector<64x64xf32>, vector<64x64xf32>, vector<64x64xf32>, vector<64x64xf32>, vector<64x64xf32>, vector<64x64xf32> -> vector<576x64xf32>
    %76 = arith.truncf %75 : vector<576x64xf32> to vector<576x64xbf16>
    %c0_19 = arith.constant 0 : index
    %c0_20 = arith.constant 0 : index
    %77 = vector.load %arg4[%c0_19, %c0_20] : memref<64x576xbf16, #tpu.memory_space<vmem>>, vector<64x576xbf16>
    %cst_21 = arith.constant dense<0.000000e+00> : vector<64x64xf32>
    %78 = tpu.matmul %77, %76, %cst_21 {dimension_numbers = #tpu.dot_dimension_numbers<[1], [0], [0], [1], [0, 0, 1, 1], [], []>} : vector<64x576xbf16>, vector<576x64xbf16>, vector<64x64xf32> -> vector<64x64xf32>
    %c0_22 = arith.constant 0 : index
    %c0_23 = arith.constant 0 : index
    %79 = vector.load %arg5[%c0_22, %c0_23] : memref<64x1xf32, #tpu.memory_space<vmem>>, vector<64x1xf32>
    %80 = vector.broadcast %79 : vector<64x1xf32> to vector<64x64xf32>
    %81 = arith.addf %78, %80 : vector<64x64xf32>
    %82 = arith.negf %81 : vector<64x64xf32>
    %83 = math.exp %82 : vector<64x64xf32>
    %cst_24 = arith.constant 1.000000e+00 : f32
    %84 = vector.broadcast %cst_24 : f32 to vector<64x64xf32>
    %85 = arith.addf %84, %83 : vector<64x64xf32>
    %86 = arith.divf %84, %85 : vector<64x64xf32>
    %87 = arith.mulf %81, %86 : vector<64x64xf32>
    %cst_25 = arith.constant 0.000000e+00 : f32
    %88 = vector.broadcast %cst_25 : f32 to vector<64x9xf32>
    %89 = vector.extract_strided_slice %87 {offsets = [0, 0], sizes = [64, 55], strides = [1, 1]} : vector<64x64xf32> to vector<64x55xf32>
    %90 = tpu.concatenate %88, %89 in 1 : vector<64x9xf32>, vector<64x55xf32> -> vector<64x64xf32>
    %91 = vector.broadcast %28 : vector<1x64xf32> to vector<64x64xf32>
    %92 = arith.mulf %90, %91 : vector<64x64xf32>
    %cst_26 = arith.constant 0.000000e+00 : f32
    %93 = vector.broadcast %cst_26 : f32 to vector<64x8xf32>
    %94 = vector.extract_strided_slice %87 {offsets = [0, 0], sizes = [64, 56], strides = [1, 1]} : vector<64x64xf32> to vector<64x56xf32>
    %95 = tpu.concatenate %93, %94 in 1 : vector<64x8xf32>, vector<64x56xf32> -> vector<64x64xf32>
    %cst_27 = arith.constant 0.000000e+00 : f32
    %96 = vector.broadcast %cst_27 : f32 to vector<64x7xf32>
    %97 = vector.extract_strided_slice %87 {offsets = [0, 0], sizes = [64, 57], strides = [1, 1]} : vector<64x64xf32> to vector<64x57xf32>
    %98 = tpu.concatenate %96, %97 in 1 : vector<64x7xf32>, vector<64x57xf32> -> vector<64x64xf32>
    %99 = vector.broadcast %32 : vector<1x64xf32> to vector<64x64xf32>
    %100 = arith.mulf %98, %99 : vector<64x64xf32>
    %cst_28 = arith.constant 0.000000e+00 : f32
    %101 = vector.broadcast %cst_28 : f32 to vector<64x1xf32>
    %102 = vector.extract_strided_slice %87 {offsets = [0, 0], sizes = [64, 63], strides = [1, 1]} : vector<64x64xf32> to vector<64x63xf32>
    %103 = tpu.concatenate %101, %102 in 1 : vector<64x1xf32>, vector<64x63xf32> -> vector<64x64xf32>
    %104 = vector.broadcast %28 : vector<1x64xf32> to vector<64x64xf32>
    %105 = arith.mulf %103, %104 : vector<64x64xf32>
    %106 = vector.extract_strided_slice %87 {offsets = [0, 1], sizes = [64, 63], strides = [1, 1]} : vector<64x64xf32> to vector<64x63xf32>
    %cst_29 = arith.constant 0.000000e+00 : f32
    %107 = vector.broadcast %cst_29 : f32 to vector<64x1xf32>
    %108 = tpu.concatenate %106, %107 in 1 : vector<64x63xf32>, vector<64x1xf32> -> vector<64x64xf32>
    %109 = vector.broadcast %32 : vector<1x64xf32> to vector<64x64xf32>
    %110 = arith.mulf %108, %109 : vector<64x64xf32>
    %111 = vector.extract_strided_slice %87 {offsets = [0, 7], sizes = [64, 57], strides = [1, 1]} : vector<64x64xf32> to vector<64x57xf32>
    %cst_30 = arith.constant 0.000000e+00 : f32
    %112 = vector.broadcast %cst_30 : f32 to vector<64x7xf32>
    %113 = tpu.concatenate %111, %112 in 1 : vector<64x57xf32>, vector<64x7xf32> -> vector<64x64xf32>
    %114 = vector.broadcast %28 : vector<1x64xf32> to vector<64x64xf32>
    %115 = arith.mulf %113, %114 : vector<64x64xf32>
    %116 = vector.extract_strided_slice %87 {offsets = [0, 8], sizes = [64, 56], strides = [1, 1]} : vector<64x64xf32> to vector<64x56xf32>
    %cst_31 = arith.constant 0.000000e+00 : f32
    %117 = vector.broadcast %cst_31 : f32 to vector<64x8xf32>
    %118 = tpu.concatenate %116, %117 in 1 : vector<64x56xf32>, vector<64x8xf32> -> vector<64x64xf32>
    %119 = vector.extract_strided_slice %87 {offsets = [0, 9], sizes = [64, 55], strides = [1, 1]} : vector<64x64xf32> to vector<64x55xf32>
    %cst_32 = arith.constant 0.000000e+00 : f32
    %120 = vector.broadcast %cst_32 : f32 to vector<64x9xf32>
    %121 = tpu.concatenate %119, %120 in 1 : vector<64x55xf32>, vector<64x9xf32> -> vector<64x64xf32>
    %122 = vector.broadcast %32 : vector<1x64xf32> to vector<64x64xf32>
    %123 = arith.mulf %121, %122 : vector<64x64xf32>
    %124 = tpu.concatenate %92, %95, %100, %105, %87, %110, %115, %118, %123 in 0 : vector<64x64xf32>, vector<64x64xf32>, vector<64x64xf32>, vector<64x64xf32>, vector<64x64xf32>, vector<64x64xf32>, vector<64x64xf32>, vector<64x64xf32>, vector<64x64xf32> -> vector<576x64xf32>
    %125 = arith.truncf %124 : vector<576x64xf32> to vector<576x64xbf16>
    %c0_33 = arith.constant 0 : index
    %c0_34 = arith.constant 0 : index
    %126 = vector.load %arg6[%c0_33, %c0_34] : memref<64x576xbf16, #tpu.memory_space<vmem>>, vector<64x576xbf16>
    %cst_35 = arith.constant dense<0.000000e+00> : vector<64x64xf32>
    %127 = tpu.matmul %126, %125, %cst_35 {dimension_numbers = #tpu.dot_dimension_numbers<[1], [0], [0], [1], [0, 0, 1, 1], [], []>} : vector<64x576xbf16>, vector<576x64xbf16>, vector<64x64xf32> -> vector<64x64xf32>
    %c0_36 = arith.constant 0 : index
    %c0_37 = arith.constant 0 : index
    %128 = vector.load %arg7[%c0_36, %c0_37] : memref<64x1xf32, #tpu.memory_space<vmem>>, vector<64x1xf32>
    %129 = vector.broadcast %128 : vector<64x1xf32> to vector<64x64xf32>
    %130 = arith.addf %127, %129 : vector<64x64xf32>
    %131 = arith.addf %130, %7 : vector<64x64xf32>
    %c0_38 = arith.constant 0 : index
    %c0_39 = arith.constant 0 : index
    %132 = vector.load %arg8[%c0_38, %c0_39] : memref<128x64xbf16, #tpu.memory_space<vmem>>, vector<128x64xbf16>
    %133 = arith.truncf %131 : vector<64x64xf32> to vector<64x64xbf16>
    %cst_40 = arith.constant dense<0.000000e+00> : vector<128x64xf32>
    %134 = tpu.matmul %132, %133, %cst_40 {dimension_numbers = #tpu.dot_dimension_numbers<[1], [0], [0], [1], [0, 0, 1, 1], [], []>} : vector<128x64xbf16>, vector<64x64xbf16>, vector<128x64xf32> -> vector<128x64xf32>
    %c0_41 = arith.constant 0 : index
    %c0_42 = arith.constant 0 : index
    %135 = vector.load %arg9[%c0_41, %c0_42] : memref<128x1xf32, #tpu.memory_space<vmem>>, vector<128x1xf32>
    %136 = vector.broadcast %135 : vector<128x1xf32> to vector<128x64xf32>
    %137 = arith.addf %134, %136 : vector<128x64xf32>
    %c0_43 = arith.constant 0 : index
    %c0_44 = arith.constant 0 : index
    %138 = vector.load %arg10[%c0_43, %c0_44] : memref<128x64xbf16, #tpu.memory_space<vmem>>, vector<128x64xbf16>
    %139 = arith.truncf %7 : vector<64x64xf32> to vector<64x64xbf16>
    %cst_45 = arith.constant dense<0.000000e+00> : vector<128x64xf32>
    %140 = tpu.matmul %138, %139, %cst_45 {dimension_numbers = #tpu.dot_dimension_numbers<[1], [0], [0], [1], [0, 0, 1, 1], [], []>} : vector<128x64xbf16>, vector<64x64xbf16>, vector<128x64xf32> -> vector<128x64xf32>
    %141 = arith.addf %137, %140 : vector<128x64xf32>
    %142 = arith.truncf %141 : vector<128x64xf32> to vector<128x64xbf16>
    %143 = vector.extract_strided_slice %142 {offsets = [0, 0], sizes = [32, 64], strides = [1, 1]} : vector<128x64xbf16> to vector<32x64xbf16>
    %c0_46 = arith.constant 0 : index
    %c0_47 = arith.constant 0 : index
    %c0_48 = arith.constant 0 : index
    %144 = vector.load %arg11[%c0_46, %c0_47, %c0_48] : memref<4x64x256xbf16, #tpu.memory_space<vmem>>, vector<1x64x256xbf16>
    %145 = vector.shape_cast %144 : vector<1x64x256xbf16> to vector<64x256xbf16>
    %cst_49 = arith.constant dense<0.000000e+00> : vector<32x256xf32>
    %146 = tpu.matmul %143, %145, %cst_49 {dimension_numbers = #tpu.dot_dimension_numbers<[1], [0], [0], [1], [0, 0, 1, 1], [], []>} : vector<32x64xbf16>, vector<64x256xbf16>, vector<32x256xf32> -> vector<32x256xf32>
    %147 = vector.extract_strided_slice %142 {offsets = [32, 0], sizes = [32, 64], strides = [1, 1]} : vector<128x64xbf16> to vector<32x64xbf16>
    %c1 = arith.constant 1 : index
    %c0_50 = arith.constant 0 : index
    %c0_51 = arith.constant 0 : index
    %148 = vector.load %arg11[%c1, %c0_50, %c0_51] : memref<4x64x256xbf16, #tpu.memory_space<vmem>>, vector<1x64x256xbf16>
    %149 = vector.shape_cast %148 : vector<1x64x256xbf16> to vector<64x256xbf16>
    %cst_52 = arith.constant dense<0.000000e+00> : vector<32x256xf32>
    %150 = tpu.matmul %147, %149, %cst_52 {dimension_numbers = #tpu.dot_dimension_numbers<[1], [0], [0], [1], [0, 0, 1, 1], [], []>} : vector<32x64xbf16>, vector<64x256xbf16>, vector<32x256xf32> -> vector<32x256xf32>
    %151 = arith.addf %146, %150 : vector<32x256xf32>
    %152 = vector.extract_strided_slice %142 {offsets = [64, 0], sizes = [32, 64], strides = [1, 1]} : vector<128x64xbf16> to vector<32x64xbf16>
    %c2 = arith.constant 2 : index
    %c0_53 = arith.constant 0 : index
    %c0_54 = arith.constant 0 : index
    %153 = vector.load %arg11[%c2, %c0_53, %c0_54] : memref<4x64x256xbf16, #tpu.memory_space<vmem>>, vector<1x64x256xbf16>
    %154 = vector.shape_cast %153 : vector<1x64x256xbf16> to vector<64x256xbf16>
    %cst_55 = arith.constant dense<0.000000e+00> : vector<32x256xf32>
    %155 = tpu.matmul %152, %154, %cst_55 {dimension_numbers = #tpu.dot_dimension_numbers<[1], [0], [0], [1], [0, 0, 1, 1], [], []>} : vector<32x64xbf16>, vector<64x256xbf16>, vector<32x256xf32> -> vector<32x256xf32>
    %156 = arith.addf %151, %155 : vector<32x256xf32>
    %157 = vector.extract_strided_slice %142 {offsets = [96, 0], sizes = [32, 64], strides = [1, 1]} : vector<128x64xbf16> to vector<32x64xbf16>
    %c3 = arith.constant 3 : index
    %c0_56 = arith.constant 0 : index
    %c0_57 = arith.constant 0 : index
    %158 = vector.load %arg11[%c3, %c0_56, %c0_57] : memref<4x64x256xbf16, #tpu.memory_space<vmem>>, vector<1x64x256xbf16>
    %159 = vector.shape_cast %158 : vector<1x64x256xbf16> to vector<64x256xbf16>
    %cst_58 = arith.constant dense<0.000000e+00> : vector<32x256xf32>
    %160 = tpu.matmul %157, %159, %cst_58 {dimension_numbers = #tpu.dot_dimension_numbers<[1], [0], [0], [1], [0, 0, 1, 1], [], []>} : vector<32x64xbf16>, vector<64x256xbf16>, vector<32x256xf32> -> vector<32x256xf32>
    %161 = arith.addf %156, %160 : vector<32x256xf32>
    %162 = tpu.iota {dimensions = array<i32: 1>} : vector<1x256xi32>
    %c16_i32 = arith.constant 16 : i32
    %c0_i32_59 = arith.constant 0 : i32
    %163 = arith.cmpi eq, %c16_i32, %c0_i32_59 : i32
    %c1_i32_60 = arith.constant 1 : i32
    %164 = arith.select %163, %c1_i32_60, %c16_i32 : i32
    %165 = vector.broadcast %164 : i32 to vector<1x256xi32>
    %166 = arith.remsi %162, %165 : vector<1x256xi32>
    %c0_i32_61 = arith.constant 0 : i32
    %167 = vector.broadcast %c0_i32_61 : i32 to vector<1x256xi32>
    %168 = arith.cmpi ne, %166, %167 : vector<1x256xi32>
    %c0_i32_62 = arith.constant 0 : i32
    %169 = vector.broadcast %c0_i32_62 : i32 to vector<1x256xi32>
    %170 = arith.cmpi slt, %166, %169 : vector<1x256xi32>
    %c0_i32_63 = arith.constant 0 : i32
    %171 = arith.cmpi slt, %164, %c0_i32_63 : i32
    %172 = vector.broadcast %171 : i1 to vector<1x256xi1>
    %173 = vector.broadcast %172 : vector<1x256xi1> to vector<1x256xi1>
    %174 = arith.xori %170, %173 : vector<1x256xi1>
    %175 = arith.andi %174, %168 : vector<1x256xi1>
    %176 = vector.broadcast %164 : i32 to vector<1x256xi32>
    %177 = arith.addi %166, %176 : vector<1x256xi32>
    %178 = arith.select %175, %177, %166 : vector<1x256xi1>, vector<1x256xi32>
    %c0_i32_64 = arith.constant 0 : i32
    %179 = vector.broadcast %c0_i32_64 : i32 to vector<1x256xi32>
    %180 = arith.cmpi ne, %178, %179 : vector<1x256xi32>
    %181 = arith.extui %180 : vector<1x256xi1> to vector<1x256xi32>
    %182 = arith.sitofp %181 : vector<1x256xi32> to vector<1x256xf32>
    %c15_i32 = arith.constant 15 : i32
    %183 = vector.broadcast %c15_i32 : i32 to vector<1x256xi32>
    %184 = arith.cmpi ne, %178, %183 : vector<1x256xi32>
    %185 = arith.extui %184 : vector<1x256xi1> to vector<1x256xi32>
    %186 = arith.sitofp %185 : vector<1x256xi32> to vector<1x256xf32>
    %187 = arith.negf %161 : vector<32x256xf32>
    %188 = math.exp %187 : vector<32x256xf32>
    %cst_65 = arith.constant 1.000000e+00 : f32
    %189 = vector.broadcast %cst_65 : f32 to vector<32x256xf32>
    %190 = arith.addf %189, %188 : vector<32x256xf32>
    %191 = arith.divf %189, %190 : vector<32x256xf32>
    %192 = arith.mulf %161, %191 : vector<32x256xf32>
    %cst_66 = arith.constant 0.000000e+00 : f32
    %193 = vector.broadcast %cst_66 : f32 to vector<32x17xf32>
    %194 = vector.extract_strided_slice %192 {offsets = [0, 0], sizes = [32, 239], strides = [1, 1]} : vector<32x256xf32> to vector<32x239xf32>
    %195 = tpu.concatenate %193, %194 in 1 : vector<32x17xf32>, vector<32x239xf32> -> vector<32x256xf32>
    %196 = vector.broadcast %182 : vector<1x256xf32> to vector<32x256xf32>
    %197 = arith.mulf %195, %196 : vector<32x256xf32>
    %cst_67 = arith.constant 0.000000e+00 : f32
    %198 = vector.broadcast %cst_67 : f32 to vector<32x16xf32>
    %199 = vector.extract_strided_slice %192 {offsets = [0, 0], sizes = [32, 240], strides = [1, 1]} : vector<32x256xf32> to vector<32x240xf32>
    %200 = tpu.concatenate %198, %199 in 1 : vector<32x16xf32>, vector<32x240xf32> -> vector<32x256xf32>
    %cst_68 = arith.constant 0.000000e+00 : f32
    %201 = vector.broadcast %cst_68 : f32 to vector<32x15xf32>
    %202 = vector.extract_strided_slice %192 {offsets = [0, 0], sizes = [32, 241], strides = [1, 1]} : vector<32x256xf32> to vector<32x241xf32>
    %203 = tpu.concatenate %201, %202 in 1 : vector<32x15xf32>, vector<32x241xf32> -> vector<32x256xf32>
    %204 = vector.broadcast %186 : vector<1x256xf32> to vector<32x256xf32>
    %205 = arith.mulf %203, %204 : vector<32x256xf32>
    %cst_69 = arith.constant 0.000000e+00 : f32
    %206 = vector.broadcast %cst_69 : f32 to vector<32x1xf32>
    %207 = vector.extract_strided_slice %192 {offsets = [0, 0], sizes = [32, 255], strides = [1, 1]} : vector<32x256xf32> to vector<32x255xf32>
    %208 = tpu.concatenate %206, %207 in 1 : vector<32x1xf32>, vector<32x255xf32> -> vector<32x256xf32>
    %209 = vector.broadcast %182 : vector<1x256xf32> to vector<32x256xf32>
    %210 = arith.mulf %208, %209 : vector<32x256xf32>
    %211 = vector.extract_strided_slice %192 {offsets = [0, 1], sizes = [32, 255], strides = [1, 1]} : vector<32x256xf32> to vector<32x255xf32>
    %cst_70 = arith.constant 0.000000e+00 : f32
    %212 = vector.broadcast %cst_70 : f32 to vector<32x1xf32>
    %213 = tpu.concatenate %211, %212 in 1 : vector<32x255xf32>, vector<32x1xf32> -> vector<32x256xf32>
    %214 = vector.broadcast %186 : vector<1x256xf32> to vector<32x256xf32>
    %215 = arith.mulf %213, %214 : vector<32x256xf32>
    %216 = vector.extract_strided_slice %192 {offsets = [0, 15], sizes = [32, 241], strides = [1, 1]} : vector<32x256xf32> to vector<32x241xf32>
    %cst_71 = arith.constant 0.000000e+00 : f32
    %217 = vector.broadcast %cst_71 : f32 to vector<32x15xf32>
    %218 = tpu.concatenate %216, %217 in 1 : vector<32x241xf32>, vector<32x15xf32> -> vector<32x256xf32>
    %219 = vector.broadcast %182 : vector<1x256xf32> to vector<32x256xf32>
    %220 = arith.mulf %218, %219 : vector<32x256xf32>
    %221 = vector.extract_strided_slice %192 {offsets = [0, 16], sizes = [32, 240], strides = [1, 1]} : vector<32x256xf32> to vector<32x240xf32>
    %cst_72 = arith.constant 0.000000e+00 : f32
    %222 = vector.broadcast %cst_72 : f32 to vector<32x16xf32>
    %223 = tpu.concatenate %221, %222 in 1 : vector<32x240xf32>, vector<32x16xf32> -> vector<32x256xf32>
    %224 = vector.extract_strided_slice %192 {offsets = [0, 17], sizes = [32, 239], strides = [1, 1]} : vector<32x256xf32> to vector<32x239xf32>
    %cst_73 = arith.constant 0.000000e+00 : f32
    %225 = vector.broadcast %cst_73 : f32 to vector<32x17xf32>
    %226 = tpu.concatenate %224, %225 in 1 : vector<32x239xf32>, vector<32x17xf32> -> vector<32x256xf32>
    %227 = vector.broadcast %186 : vector<1x256xf32> to vector<32x256xf32>
    %228 = arith.mulf %226, %227 : vector<32x256xf32>
    %229 = tpu.concatenate %197, %200, %205, %210, %192, %215, %220, %223, %228 in 0 : vector<32x256xf32>, vector<32x256xf32>, vector<32x256xf32>, vector<32x256xf32>, vector<32x256xf32>, vector<32x256xf32>, vector<32x256xf32>, vector<32x256xf32>, vector<32x256xf32> -> vector<288x256xf32>
    %230 = arith.truncf %229 : vector<288x256xf32> to vector<288x256xbf16>
    %c0_74 = arith.constant 0 : index
    %c0_75 = arith.constant 0 : index
    %231 = vector.load %arg12[%c0_74, %c0_75] : memref<32x288xbf16, #tpu.memory_space<vmem>>, vector<32x288xbf16>
    %cst_76 = arith.constant dense<0.000000e+00> : vector<32x256xf32>
    %232 = tpu.matmul %231, %230, %cst_76 {dimension_numbers = #tpu.dot_dimension_numbers<[1], [0], [0], [1], [0, 0, 1, 1], [], []>} : vector<32x288xbf16>, vector<288x256xbf16>, vector<32x256xf32> -> vector<32x256xf32>
    %c0_77 = arith.constant 0 : index
    %c0_78 = arith.constant 0 : index
    %233 = vector.load %arg13[%c0_77, %c0_78] : memref<32x1xf32, #tpu.memory_space<vmem>>, vector<32x1xf32>
    %234 = vector.broadcast %233 : vector<32x1xf32> to vector<32x256xf32>
    %235 = arith.addf %232, %234 : vector<32x256xf32>
    %236 = arith.negf %235 : vector<32x256xf32>
    %237 = math.exp %236 : vector<32x256xf32>
    %cst_79 = arith.constant 1.000000e+00 : f32
    %238 = vector.broadcast %cst_79 : f32 to vector<32x256xf32>
    %239 = arith.addf %238, %237 : vector<32x256xf32>
    %240 = arith.divf %238, %239 : vector<32x256xf32>
    %241 = arith.mulf %235, %240 : vector<32x256xf32>
    %cst_80 = arith.constant 0.000000e+00 : f32
    %242 = vector.broadcast %cst_80 : f32 to vector<32x17xf32>
    %243 = vector.extract_strided_slice %241 {offsets = [0, 0], sizes = [32, 239], strides = [1, 1]} : vector<32x256xf32> to vector<32x239xf32>
    %244 = tpu.concatenate %242, %243 in 1 : vector<32x17xf32>, vector<32x239xf32> -> vector<32x256xf32>
    %245 = vector.broadcast %182 : vector<1x256xf32> to vector<32x256xf32>
    %246 = arith.mulf %244, %245 : vector<32x256xf32>
    %cst_81 = arith.constant 0.000000e+00 : f32
    %247 = vector.broadcast %cst_81 : f32 to vector<32x16xf32>
    %248 = vector.extract_strided_slice %241 {offsets = [0, 0], sizes = [32, 240], strides = [1, 1]} : vector<32x256xf32> to vector<32x240xf32>
    %249 = tpu.concatenate %247, %248 in 1 : vector<32x16xf32>, vector<32x240xf32> -> vector<32x256xf32>
    %cst_82 = arith.constant 0.000000e+00 : f32
    %250 = vector.broadcast %cst_82 : f32 to vector<32x15xf32>
    %251 = vector.extract_strided_slice %241 {offsets = [0, 0], sizes = [32, 241], strides = [1, 1]} : vector<32x256xf32> to vector<32x241xf32>
    %252 = tpu.concatenate %250, %251 in 1 : vector<32x15xf32>, vector<32x241xf32> -> vector<32x256xf32>
    %253 = vector.broadcast %186 : vector<1x256xf32> to vector<32x256xf32>
    %254 = arith.mulf %252, %253 : vector<32x256xf32>
    %cst_83 = arith.constant 0.000000e+00 : f32
    %255 = vector.broadcast %cst_83 : f32 to vector<32x1xf32>
    %256 = vector.extract_strided_slice %241 {offsets = [0, 0], sizes = [32, 255], strides = [1, 1]} : vector<32x256xf32> to vector<32x255xf32>
    %257 = tpu.concatenate %255, %256 in 1 : vector<32x1xf32>, vector<32x255xf32> -> vector<32x256xf32>
    %258 = vector.broadcast %182 : vector<1x256xf32> to vector<32x256xf32>
    %259 = arith.mulf %257, %258 : vector<32x256xf32>
    %260 = vector.extract_strided_slice %241 {offsets = [0, 1], sizes = [32, 255], strides = [1, 1]} : vector<32x256xf32> to vector<32x255xf32>
    %cst_84 = arith.constant 0.000000e+00 : f32
    %261 = vector.broadcast %cst_84 : f32 to vector<32x1xf32>
    %262 = tpu.concatenate %260, %261 in 1 : vector<32x255xf32>, vector<32x1xf32> -> vector<32x256xf32>
    %263 = vector.broadcast %186 : vector<1x256xf32> to vector<32x256xf32>
    %264 = arith.mulf %262, %263 : vector<32x256xf32>
    %265 = vector.extract_strided_slice %241 {offsets = [0, 15], sizes = [32, 241], strides = [1, 1]} : vector<32x256xf32> to vector<32x241xf32>
    %cst_85 = arith.constant 0.000000e+00 : f32
    %266 = vector.broadcast %cst_85 : f32 to vector<32x15xf32>
    %267 = tpu.concatenate %265, %266 in 1 : vector<32x241xf32>, vector<32x15xf32> -> vector<32x256xf32>
    %268 = vector.broadcast %182 : vector<1x256xf32> to vector<32x256xf32>
    %269 = arith.mulf %267, %268 : vector<32x256xf32>
    %270 = vector.extract_strided_slice %241 {offsets = [0, 16], sizes = [32, 240], strides = [1, 1]} : vector<32x256xf32> to vector<32x240xf32>
    %cst_86 = arith.constant 0.000000e+00 : f32
    %271 = vector.broadcast %cst_86 : f32 to vector<32x16xf32>
    %272 = tpu.concatenate %270, %271 in 1 : vector<32x240xf32>, vector<32x16xf32> -> vector<32x256xf32>
    %273 = vector.extract_strided_slice %241 {offsets = [0, 17], sizes = [32, 239], strides = [1, 1]} : vector<32x256xf32> to vector<32x239xf32>
    %cst_87 = arith.constant 0.000000e+00 : f32
    %274 = vector.broadcast %cst_87 : f32 to vector<32x17xf32>
    %275 = tpu.concatenate %273, %274 in 1 : vector<32x239xf32>, vector<32x17xf32> -> vector<32x256xf32>
    %276 = vector.broadcast %186 : vector<1x256xf32> to vector<32x256xf32>
    %277 = arith.mulf %275, %276 : vector<32x256xf32>
    %278 = tpu.concatenate %246, %249, %254, %259, %241, %264, %269, %272, %277 in 0 : vector<32x256xf32>, vector<32x256xf32>, vector<32x256xf32>, vector<32x256xf32>, vector<32x256xf32>, vector<32x256xf32>, vector<32x256xf32>, vector<32x256xf32>, vector<32x256xf32> -> vector<288x256xf32>
    %279 = arith.truncf %278 : vector<288x256xf32> to vector<288x256xbf16>
    %c0_88 = arith.constant 0 : index
    %c0_89 = arith.constant 0 : index
    %280 = vector.load %arg14[%c0_88, %c0_89] : memref<32x288xbf16, #tpu.memory_space<vmem>>, vector<32x288xbf16>
    %cst_90 = arith.constant dense<0.000000e+00> : vector<32x256xf32>
    %281 = tpu.matmul %280, %279, %cst_90 {dimension_numbers = #tpu.dot_dimension_numbers<[1], [0], [0], [1], [0, 0, 1, 1], [], []>} : vector<32x288xbf16>, vector<288x256xbf16>, vector<32x256xf32> -> vector<32x256xf32>
    %c0_91 = arith.constant 0 : index
    %c0_92 = arith.constant 0 : index
    %282 = vector.load %arg15[%c0_91, %c0_92] : memref<32x1xf32, #tpu.memory_space<vmem>>, vector<32x1xf32>
    %283 = vector.broadcast %282 : vector<32x1xf32> to vector<32x256xf32>
    %284 = arith.addf %281, %283 : vector<32x256xf32>
    %285 = arith.addf %284, %161 : vector<32x256xf32>
    %c0_93 = arith.constant 0 : index
    %c0_94 = arith.constant 0 : index
    %286 = vector.load %arg16[%c0_93, %c0_94] : memref<64x32xbf16, #tpu.memory_space<vmem>>, vector<64x32xbf16>
    %287 = arith.truncf %285 : vector<32x256xf32> to vector<32x256xbf16>
    %cst_95 = arith.constant dense<0.000000e+00> : vector<64x256xf32>
    %288 = tpu.matmul %286, %287, %cst_95 {dimension_numbers = #tpu.dot_dimension_numbers<[1], [0], [0], [1], [0, 0, 1, 1], [], []>} : vector<64x32xbf16>, vector<32x256xbf16>, vector<64x256xf32> -> vector<64x256xf32>
    %c0_96 = arith.constant 0 : index
    %c0_97 = arith.constant 0 : index
    %289 = vector.load %arg17[%c0_96, %c0_97] : memref<64x1xf32, #tpu.memory_space<vmem>>, vector<64x1xf32>
    %290 = vector.broadcast %289 : vector<64x1xf32> to vector<64x256xf32>
    %291 = arith.addf %288, %290 : vector<64x256xf32>
    %c0_98 = arith.constant 0 : index
    %c0_99 = arith.constant 0 : index
    %292 = vector.load %arg18[%c0_98, %c0_99] : memref<64x32xbf16, #tpu.memory_space<vmem>>, vector<64x32xbf16>
    %293 = arith.truncf %161 : vector<32x256xf32> to vector<32x256xbf16>
    %cst_100 = arith.constant dense<0.000000e+00> : vector<64x256xf32>
    %294 = tpu.matmul %292, %293, %cst_100 {dimension_numbers = #tpu.dot_dimension_numbers<[1], [0], [0], [1], [0, 0, 1, 1], [], []>} : vector<64x32xbf16>, vector<32x256xbf16>, vector<64x256xf32> -> vector<64x256xf32>
    %295 = arith.addf %291, %294 : vector<64x256xf32>
    %296 = arith.truncf %295 : vector<64x256xf32> to vector<64x256xbf16>
    %297 = vector.extract_strided_slice %296 {offsets = [0, 0], sizes = [16, 256], strides = [1, 1]} : vector<64x256xbf16> to vector<16x256xbf16>
    %c0_101 = arith.constant 0 : index
    %c0_102 = arith.constant 0 : index
    %c0_103 = arith.constant 0 : index
    %298 = vector.load %arg19[%c0_101, %c0_102, %c0_103] : memref<4x256x1024xbf16, #tpu.memory_space<vmem>>, vector<1x256x1024xbf16>
    %299 = vector.shape_cast %298 : vector<1x256x1024xbf16> to vector<256x1024xbf16>
    %cst_104 = arith.constant dense<0.000000e+00> : vector<16x1024xf32>
    %300 = tpu.matmul %297, %299, %cst_104 {dimension_numbers = #tpu.dot_dimension_numbers<[1], [0], [0], [1], [0, 0, 1, 1], [], []>} : vector<16x256xbf16>, vector<256x1024xbf16>, vector<16x1024xf32> -> vector<16x1024xf32>
    %301 = vector.extract_strided_slice %296 {offsets = [16, 0], sizes = [16, 256], strides = [1, 1]} : vector<64x256xbf16> to vector<16x256xbf16>
    %c1_105 = arith.constant 1 : index
    %c0_106 = arith.constant 0 : index
    %c0_107 = arith.constant 0 : index
    %302 = vector.load %arg19[%c1_105, %c0_106, %c0_107] : memref<4x256x1024xbf16, #tpu.memory_space<vmem>>, vector<1x256x1024xbf16>
    %303 = vector.shape_cast %302 : vector<1x256x1024xbf16> to vector<256x1024xbf16>
    %cst_108 = arith.constant dense<0.000000e+00> : vector<16x1024xf32>
    %304 = tpu.matmul %301, %303, %cst_108 {dimension_numbers = #tpu.dot_dimension_numbers<[1], [0], [0], [1], [0, 0, 1, 1], [], []>} : vector<16x256xbf16>, vector<256x1024xbf16>, vector<16x1024xf32> -> vector<16x1024xf32>
    %305 = arith.addf %300, %304 : vector<16x1024xf32>
    %306 = vector.extract_strided_slice %296 {offsets = [32, 0], sizes = [16, 256], strides = [1, 1]} : vector<64x256xbf16> to vector<16x256xbf16>
    %c2_109 = arith.constant 2 : index
    %c0_110 = arith.constant 0 : index
    %c0_111 = arith.constant 0 : index
    %307 = vector.load %arg19[%c2_109, %c0_110, %c0_111] : memref<4x256x1024xbf16, #tpu.memory_space<vmem>>, vector<1x256x1024xbf16>
    %308 = vector.shape_cast %307 : vector<1x256x1024xbf16> to vector<256x1024xbf16>
    %cst_112 = arith.constant dense<0.000000e+00> : vector<16x1024xf32>
    %309 = tpu.matmul %306, %308, %cst_112 {dimension_numbers = #tpu.dot_dimension_numbers<[1], [0], [0], [1], [0, 0, 1, 1], [], []>} : vector<16x256xbf16>, vector<256x1024xbf16>, vector<16x1024xf32> -> vector<16x1024xf32>
    %310 = arith.addf %305, %309 : vector<16x1024xf32>
    %311 = vector.extract_strided_slice %296 {offsets = [48, 0], sizes = [16, 256], strides = [1, 1]} : vector<64x256xbf16> to vector<16x256xbf16>
    %c3_113 = arith.constant 3 : index
    %c0_114 = arith.constant 0 : index
    %c0_115 = arith.constant 0 : index
    %312 = vector.load %arg19[%c3_113, %c0_114, %c0_115] : memref<4x256x1024xbf16, #tpu.memory_space<vmem>>, vector<1x256x1024xbf16>
    %313 = vector.shape_cast %312 : vector<1x256x1024xbf16> to vector<256x1024xbf16>
    %cst_116 = arith.constant dense<0.000000e+00> : vector<16x1024xf32>
    %314 = tpu.matmul %311, %313, %cst_116 {dimension_numbers = #tpu.dot_dimension_numbers<[1], [0], [0], [1], [0, 0, 1, 1], [], []>} : vector<16x256xbf16>, vector<256x1024xbf16>, vector<16x1024xf32> -> vector<16x1024xf32>
    %315 = arith.addf %310, %314 : vector<16x1024xf32>
    %316 = tpu.iota {dimensions = array<i32: 1>} : vector<1x1024xi32>
    %c32_i32 = arith.constant 32 : i32
    %c0_i32_117 = arith.constant 0 : i32
    %317 = arith.cmpi eq, %c32_i32, %c0_i32_117 : i32
    %c1_i32_118 = arith.constant 1 : i32
    %318 = arith.select %317, %c1_i32_118, %c32_i32 : i32
    %319 = vector.broadcast %318 : i32 to vector<1x1024xi32>
    %320 = arith.remsi %316, %319 : vector<1x1024xi32>
    %c0_i32_119 = arith.constant 0 : i32
    %321 = vector.broadcast %c0_i32_119 : i32 to vector<1x1024xi32>
    %322 = arith.cmpi ne, %320, %321 : vector<1x1024xi32>
    %c0_i32_120 = arith.constant 0 : i32
    %323 = vector.broadcast %c0_i32_120 : i32 to vector<1x1024xi32>
    %324 = arith.cmpi slt, %320, %323 : vector<1x1024xi32>
    %c0_i32_121 = arith.constant 0 : i32
    %325 = arith.cmpi slt, %318, %c0_i32_121 : i32
    %326 = vector.broadcast %325 : i1 to vector<1x1024xi1>
    %327 = vector.broadcast %326 : vector<1x1024xi1> to vector<1x1024xi1>
    %328 = arith.xori %324, %327 : vector<1x1024xi1>
    %329 = arith.andi %328, %322 : vector<1x1024xi1>
    %330 = vector.broadcast %318 : i32 to vector<1x1024xi32>
    %331 = arith.addi %320, %330 : vector<1x1024xi32>
    %332 = arith.select %329, %331, %320 : vector<1x1024xi1>, vector<1x1024xi32>
    %c0_i32_122 = arith.constant 0 : i32
    %333 = vector.broadcast %c0_i32_122 : i32 to vector<1x1024xi32>
    %334 = arith.cmpi ne, %332, %333 : vector<1x1024xi32>
    %335 = arith.extui %334 : vector<1x1024xi1> to vector<1x1024xi32>
    %336 = arith.sitofp %335 : vector<1x1024xi32> to vector<1x1024xf32>
    %c31_i32 = arith.constant 31 : i32
    %337 = vector.broadcast %c31_i32 : i32 to vector<1x1024xi32>
    %338 = arith.cmpi ne, %332, %337 : vector<1x1024xi32>
    %339 = arith.extui %338 : vector<1x1024xi1> to vector<1x1024xi32>
    %340 = arith.sitofp %339 : vector<1x1024xi32> to vector<1x1024xf32>
    %341 = arith.negf %315 : vector<16x1024xf32>
    %342 = math.exp %341 : vector<16x1024xf32>
    %cst_123 = arith.constant 1.000000e+00 : f32
    %343 = vector.broadcast %cst_123 : f32 to vector<16x1024xf32>
    %344 = arith.addf %343, %342 : vector<16x1024xf32>
    %345 = arith.divf %343, %344 : vector<16x1024xf32>
    %346 = arith.mulf %315, %345 : vector<16x1024xf32>
    %cst_124 = arith.constant 0.000000e+00 : f32
    %347 = vector.broadcast %cst_124 : f32 to vector<16x33xf32>
    %348 = vector.extract_strided_slice %346 {offsets = [0, 0], sizes = [16, 991], strides = [1, 1]} : vector<16x1024xf32> to vector<16x991xf32>
    %349 = tpu.concatenate %347, %348 in 1 : vector<16x33xf32>, vector<16x991xf32> -> vector<16x1024xf32>
    %350 = vector.broadcast %336 : vector<1x1024xf32> to vector<16x1024xf32>
    %351 = arith.mulf %349, %350 : vector<16x1024xf32>
    %cst_125 = arith.constant 0.000000e+00 : f32
    %352 = vector.broadcast %cst_125 : f32 to vector<16x32xf32>
    %353 = vector.extract_strided_slice %346 {offsets = [0, 0], sizes = [16, 992], strides = [1, 1]} : vector<16x1024xf32> to vector<16x992xf32>
    %354 = tpu.concatenate %352, %353 in 1 : vector<16x32xf32>, vector<16x992xf32> -> vector<16x1024xf32>
    %cst_126 = arith.constant 0.000000e+00 : f32
    %355 = vector.broadcast %cst_126 : f32 to vector<16x31xf32>
    %356 = vector.extract_strided_slice %346 {offsets = [0, 0], sizes = [16, 993], strides = [1, 1]} : vector<16x1024xf32> to vector<16x993xf32>
    %357 = tpu.concatenate %355, %356 in 1 : vector<16x31xf32>, vector<16x993xf32> -> vector<16x1024xf32>
    %358 = vector.broadcast %340 : vector<1x1024xf32> to vector<16x1024xf32>
    %359 = arith.mulf %357, %358 : vector<16x1024xf32>
    %cst_127 = arith.constant 0.000000e+00 : f32
    %360 = vector.broadcast %cst_127 : f32 to vector<16x1xf32>
    %361 = vector.extract_strided_slice %346 {offsets = [0, 0], sizes = [16, 1023], strides = [1, 1]} : vector<16x1024xf32> to vector<16x1023xf32>
    %362 = tpu.concatenate %360, %361 in 1 : vector<16x1xf32>, vector<16x1023xf32> -> vector<16x1024xf32>
    %363 = vector.broadcast %336 : vector<1x1024xf32> to vector<16x1024xf32>
    %364 = arith.mulf %362, %363 : vector<16x1024xf32>
    %365 = vector.extract_strided_slice %346 {offsets = [0, 1], sizes = [16, 1023], strides = [1, 1]} : vector<16x1024xf32> to vector<16x1023xf32>
    %cst_128 = arith.constant 0.000000e+00 : f32
    %366 = vector.broadcast %cst_128 : f32 to vector<16x1xf32>
    %367 = tpu.concatenate %365, %366 in 1 : vector<16x1023xf32>, vector<16x1xf32> -> vector<16x1024xf32>
    %368 = vector.broadcast %340 : vector<1x1024xf32> to vector<16x1024xf32>
    %369 = arith.mulf %367, %368 : vector<16x1024xf32>
    %370 = vector.extract_strided_slice %346 {offsets = [0, 31], sizes = [16, 993], strides = [1, 1]} : vector<16x1024xf32> to vector<16x993xf32>
    %cst_129 = arith.constant 0.000000e+00 : f32
    %371 = vector.broadcast %cst_129 : f32 to vector<16x31xf32>
    %372 = tpu.concatenate %370, %371 in 1 : vector<16x993xf32>, vector<16x31xf32> -> vector<16x1024xf32>
    %373 = vector.broadcast %336 : vector<1x1024xf32> to vector<16x1024xf32>
    %374 = arith.mulf %372, %373 : vector<16x1024xf32>
    %375 = vector.extract_strided_slice %346 {offsets = [0, 32], sizes = [16, 992], strides = [1, 1]} : vector<16x1024xf32> to vector<16x992xf32>
    %cst_130 = arith.constant 0.000000e+00 : f32
    %376 = vector.broadcast %cst_130 : f32 to vector<16x32xf32>
    %377 = tpu.concatenate %375, %376 in 1 : vector<16x992xf32>, vector<16x32xf32> -> vector<16x1024xf32>
    %378 = vector.extract_strided_slice %346 {offsets = [0, 33], sizes = [16, 991], strides = [1, 1]} : vector<16x1024xf32> to vector<16x991xf32>
    %cst_131 = arith.constant 0.000000e+00 : f32
    %379 = vector.broadcast %cst_131 : f32 to vector<16x33xf32>
    %380 = tpu.concatenate %378, %379 in 1 : vector<16x991xf32>, vector<16x33xf32> -> vector<16x1024xf32>
    %381 = vector.broadcast %340 : vector<1x1024xf32> to vector<16x1024xf32>
    %382 = arith.mulf %380, %381 : vector<16x1024xf32>
    %383 = tpu.concatenate %351, %354, %359, %364, %346, %369, %374, %377, %382 in 0 : vector<16x1024xf32>, vector<16x1024xf32>, vector<16x1024xf32>, vector<16x1024xf32>, vector<16x1024xf32>, vector<16x1024xf32>, vector<16x1024xf32>, vector<16x1024xf32>, vector<16x1024xf32> -> vector<144x1024xf32>
    %384 = arith.truncf %383 : vector<144x1024xf32> to vector<144x1024xbf16>
    %c0_132 = arith.constant 0 : index
    %c0_133 = arith.constant 0 : index
    %385 = vector.load %arg20[%c0_132, %c0_133] : memref<3x144xbf16, #tpu.memory_space<vmem>>, vector<3x144xbf16>
    %cst_134 = arith.constant dense<0.000000e+00> : vector<3x1024xf32>
    %386 = tpu.matmul %385, %384, %cst_134 {dimension_numbers = #tpu.dot_dimension_numbers<[1], [0], [0], [1], [0, 0, 1, 1], [], []>} : vector<3x144xbf16>, vector<144x1024xbf16>, vector<3x1024xf32> -> vector<3x1024xf32>
    %c0_135 = arith.constant 0 : index
    %c0_136 = arith.constant 0 : index
    %c0_137 = arith.constant 0 : index
    %387 = vector.load %arg21[%c0_135, %c0_136, %c0_137] : memref<1x3x1024xf32, #tpu.memory_space<vmem>>, vector<1x3x1024xf32>
    %388 = vector.shape_cast %387 : vector<1x3x1024xf32> to vector<3x1024xf32>
    %389 = vector.shape_cast %386 : vector<3x1024xf32> to vector<1x3x1024xf32>
    tpu.vector_store %arg21[%c0_135, %c0_136, %c0_137], %389 {strides = array<i32>} : memref<1x3x1024xf32, #tpu.memory_space<vmem>>, vector<1x3x1024xf32>,
    return
  }
  func.func @transform_0(%arg0: i32) -> (i32, i32, i32) {
    %c0_i32 = arith.constant 0 : i32
    %c0_i32_0 = arith.constant 0 : i32
    %c0_i32_1 = arith.constant 0 : i32
    return %arg0, %c0_i32, %c0_i32_0 : i32, i32, i32
  }
  func.func @transform_1(%arg0: i32) -> (i32, i32) {
    %c0_i32 = arith.constant 0 : i32
    %c0_i32_0 = arith.constant 0 : i32
    %c0_i32_1 = arith.constant 0 : i32
    return %c0_i32, %c0_i32_0 : i32, i32
  }
  func.func @transform_2(%arg0: i32) -> (i32, i32) {
    %c0_i32 = arith.constant 0 : i32
    %c0_i32_0 = arith.constant 0 : i32
    %c0_i32_1 = arith.constant 0 : i32
    return %c0_i32, %c0_i32_0 : i32, i32
  }
  func.func @transform_3(%arg0: i32) -> (i32, i32) {
    %c0_i32 = arith.constant 0 : i32
    %c0_i32_0 = arith.constant 0 : i32
    %c0_i32_1 = arith.constant 0 : i32
    return %c0_i32, %c0_i32_0 : i32, i32
  }
  func.func @transform_4(%arg0: i32) -> (i32, i32) {
    %c0_i32 = arith.constant 0 : i32
    %c0_i32_0 = arith.constant 0 : i32
    %c0_i32_1 = arith.constant 0 : i32
    return %c0_i32, %c0_i32_0 : i32, i32
  }
  func.func @transform_5(%arg0: i32) -> (i32, i32) {
    %c0_i32 = arith.constant 0 : i32
    %c0_i32_0 = arith.constant 0 : i32
    %c0_i32_1 = arith.constant 0 : i32
    return %c0_i32, %c0_i32_0 : i32, i32
  }
  func.func @transform_6(%arg0: i32) -> (i32, i32) {
    %c0_i32 = arith.constant 0 : i32
    %c0_i32_0 = arith.constant 0 : i32
    %c0_i32_1 = arith.constant 0 : i32
    return %c0_i32, %c0_i32_0 : i32, i32
  }
  func.func @transform_7(%arg0: i32) -> (i32, i32) {
    %c0_i32 = arith.constant 0 : i32
    %c0_i32_0 = arith.constant 0 : i32
    %c0_i32_1 = arith.constant 0 : i32
    return %c0_i32, %c0_i32_0 : i32, i32
  }
  func.func @transform_8(%arg0: i32) -> (i32, i32) {
    %c0_i32 = arith.constant 0 : i32
    %c0_i32_0 = arith.constant 0 : i32
    %c0_i32_1 = arith.constant 0 : i32
    return %c0_i32, %c0_i32_0 : i32, i32
  }
  func.func @transform_9(%arg0: i32) -> (i32, i32) {
    %c0_i32 = arith.constant 0 : i32
    %c0_i32_0 = arith.constant 0 : i32
    %c0_i32_1 = arith.constant 0 : i32
    return %c0_i32, %c0_i32_0 : i32, i32
  }
  func.func @transform_10(%arg0: i32) -> (i32, i32, i32) {
    %c0_i32 = arith.constant 0 : i32
    %c0_i32_0 = arith.constant 0 : i32
    %c0_i32_1 = arith.constant 0 : i32
    %c0_i32_2 = arith.constant 0 : i32
    return %c0_i32, %c0_i32_0, %c0_i32_1 : i32, i32, i32
  }
  func.func @transform_11(%arg0: i32) -> (i32, i32) {
    %c0_i32 = arith.constant 0 : i32
    %c0_i32_0 = arith.constant 0 : i32
    %c0_i32_1 = arith.constant 0 : i32
    return %c0_i32, %c0_i32_0 : i32, i32
  }
  func.func @transform_12(%arg0: i32) -> (i32, i32) {
    %c0_i32 = arith.constant 0 : i32
    %c0_i32_0 = arith.constant 0 : i32
    %c0_i32_1 = arith.constant 0 : i32
    return %c0_i32, %c0_i32_0 : i32, i32
  }
  func.func @transform_13(%arg0: i32) -> (i32, i32) {
    %c0_i32 = arith.constant 0 : i32
    %c0_i32_0 = arith.constant 0 : i32
    %c0_i32_1 = arith.constant 0 : i32
    return %c0_i32, %c0_i32_0 : i32, i32
  }
  func.func @transform_14(%arg0: i32) -> (i32, i32) {
    %c0_i32 = arith.constant 0 : i32
    %c0_i32_0 = arith.constant 0 : i32
    %c0_i32_1 = arith.constant 0 : i32
    return %c0_i32, %c0_i32_0 : i32, i32
  }
  func.func @transform_15(%arg0: i32) -> (i32, i32) {
    %c0_i32 = arith.constant 0 : i32
    %c0_i32_0 = arith.constant 0 : i32
    %c0_i32_1 = arith.constant 0 : i32
    return %c0_i32, %c0_i32_0 : i32, i32
  }
  func.func @transform_16(%arg0: i32) -> (i32, i32) {
    %c0_i32 = arith.constant 0 : i32
    %c0_i32_0 = arith.constant 0 : i32
    %c0_i32_1 = arith.constant 0 : i32
    return %c0_i32, %c0_i32_0 : i32, i32
  }
  func.func @transform_17(%arg0: i32) -> (i32, i32) {
    %c0_i32 = arith.constant 0 : i32
    %c0_i32_0 = arith.constant 0 : i32
    %c0_i32_1 = arith.constant 0 : i32
    return %c0_i32, %c0_i32_0 : i32, i32
  }
  func.func @transform_18(%arg0: i32) -> (i32, i32, i32) {
    %c0_i32 = arith.constant 0 : i32
    %c0_i32_0 = arith.constant 0 : i32
    %c0_i32_1 = arith.constant 0 : i32
    %c0_i32_2 = arith.constant 0 : i32
    return %c0_i32, %c0_i32_0, %c0_i32_1 : i32, i32, i32
  }
  func.func @transform_19(%arg0: i32) -> (i32, i32) {
    %c0_i32 = arith.constant 0 : i32
    %c0_i32_0 = arith.constant 0 : i32
    %c0_i32_1 = arith.constant 0 : i32
    return %c0_i32, %c0_i32_0 : i32, i32
  }
  func.func @transform_20(%arg0: i32) -> (i32, i32, i32) {
    %c0_i32 = arith.constant 0 : i32
    %c0_i32_0 = arith.constant 0 : i32
    %c0_i32_1 = arith.constant 0 : i32
    return %arg0, %c0_i32, %c0_i32_0 : i32, i32, i32
  }
}

</mosaic_0001>

<llo_original>
// kernel: decoder_forward.1
$region0: #{decoder_forward.1}
  #allocation0 [shape = 'u32[]', space=smem, size = 0x4, offset = 0x4, fixed_abs, tag = 'smem constant byte address 0x4 - core index']
  #allocation1 [shape = 'u32[72,128]{1,0:T(1,128)}', space=vmem, size = 0x9000, scoped, tag = 'internal scratch']
  %s0 = inlined_call_operand.vmem [shape: f32[2,8,64], index: 0, kind: input, shape index: {}]
  %s1 = inlined_call_operand.vmem [shape: bf16[64,8], index: 1, kind: input, shape index: {}]
  %s2 = inlined_call_operand.vmem [shape: f32[64,1], index: 2, kind: input, shape index: {}]
  %s3 = inlined_call_operand.hbm [shape: bf16[64,576], index: 3, kind: input, shape index: {}]
  %s4 = inlined_call_operand.vmem [shape: f32[64,1], index: 4, kind: input, shape index: {}]
  %s5 = inlined_call_operand.hbm [shape: bf16[64,576], index: 5, kind: input, shape index: {}]
  %s6 = inlined_call_operand.vmem [shape: f32[64,1], index: 6, kind: input, shape index: {}]
  %s7 = inlined_call_operand.vmem [shape: bf16[128,64], index: 7, kind: input, shape index: {}]
  %s8 = inlined_call_operand.vmem [shape: f32[128,1], index: 8, kind: input, shape index: {}]
  %s9 = inlined_call_operand.vmem [shape: bf16[128,64], index: 9, kind: input, shape index: {}]
  %s10 = inlined_call_operand.hbm [shape: bf16[4,64,256], index: 10, kind: input, shape index: {}]
  %s11 = inlined_call_operand.hbm [shape: bf16[32,288], index: 11, kind: input, shape index: {}]
  %s12 = inlined_call_operand.vmem [shape: f32[32,1], index: 12, kind: input, shape index: {}]
  %s13 = inlined_call_operand.hbm [shape: bf16[32,288], index: 13, kind: input, shape index: {}]
  %s14 = inlined_call_operand.vmem [shape: f32[32,1], index: 14, kind: input, shape index: {}]
  %s15 = inlined_call_operand.vmem [shape: bf16[64,32], index: 15, kind: input, shape index: {}]
  %s16 = inlined_call_operand.vmem [shape: f32[64,1], index: 16, kind: input, shape index: {}]
  %s17 = inlined_call_operand.vmem [shape: bf16[64,32], index: 17, kind: input, shape index: {}]
  %s18 = inlined_call_operand.hbm [shape: bf16[4,256,1024], index: 18, kind: input, shape index: {}]
  %s19 = inlined_call_operand.hbm [shape: bf16[3,144], index: 19, kind: input, shape index: {}]
  %s20 = inlined_call_operand.vmem [shape: f32[2,3,1024], index: 20, kind: output, shape index: {}]
  %s21 = sld [smem:[#allocation0]]
  $region141: #{decoder_forward.1} parent=0
    _
  %s23 = ssub.s32 1, %s21
  %s24 = scalar_select 0, %s23, %s21
  $region1: #{decoder_forward.1} parent=0
    #allocation2 [shape = 'u8[81920]{0}', space=vmem, size = 0x14000, scoped, tag = 'input window, operand 3, single buffered']
    #allocation3 [shape = 's32[2]{0}', space=sflag, size = 0x8, scoped, tag = 'scoped memory for decoder_forward.1']
    #allocation4 [shape = 'u8[81920]{0}', space=vmem, size = 0x14000, scoped, tag = 'input window, operand 5, single buffered']
    #allocation5 [shape = 's32[1]{0}', space=sflag, size = 0x4, scoped, tag = 'scoped memory for decoder_forward.1']
    #allocation6 [shape = 'u8[131072]{0}', space=vmem, size = 0x20000, scoped, tag = 'input window, operand 10, single buffered']
    #allocation7 [shape = 'u8[24576]{0}', space=vmem, size = 0x6000, scoped, tag = 'input window, operand 11, single buffered']
    #allocation8 [shape = 's32[1]{0}', space=sflag, size = 0x4, scoped, tag = 'scoped memory for decoder_forward.1']
    #allocation9 [shape = 'u8[24576]{0}', space=vmem, size = 0x6000, scoped, tag = 'input window, operand 13, single buffered']
    #allocation10 [shape = 'u8[2097152]{0}', space=vmem, size = 0x200000, scoped, tag = 'input window, operand 18, single buffered']
    #allocation11 [shape = 's32[1]{0}', space=sflag, size = 0x4, scoped, tag = 'scoped memory for decoder_forward.1']
    #allocation12 [shape = 'u8[2048]{0}', space=vmem, size = 0x800, scoped, tag = 'input window, operand 19, single buffered']
    %25 = vsyncpa [#allocation3], 0
    %26 = vsyncpa [#allocation5], 0
    %27 = vsyncpa [#allocation8], 0
    %28 = vsyncpa [#allocation11], 0
    loop: start=0, step=1, limit=4
    $region2: #{decoder_forward.1} parent=1 // loop_pre_header
      _
    $region3: #{decoder_forward.1} parent=1 // loop_header
      %s30 = sphi 0, %s34
      %p31 = scmp.ge.s32.totalorder %s30, 4
      %s40 = sphi 0, %s42
      %s43 = sphi 0, %s40
      %s44 = sphi 0, %s43
      %s60 = sphi 0, %s44
      %s64 = sphi 0, %s64
      %s66 = sphi 0, %s64
      %s67 = sphi 0, %s66
      %s81 = sphi 0, %s67
      %s85 = sphi 0, %s85
      %s87 = sphi 0, %s85
      %s88 = sphi 0, %s87
      %s102 = sphi 0, %s88
      %s106 = sphi 0, %s106
      %s108 = sphi 0, %s106
      %s109 = sphi 0, %s108
      %s123 = sphi 0, %s109
      %s127 = sphi 0, %s127
      %s129 = sphi 0, %s127
      %s130 = sphi 0, %s129
      %s144 = sphi 0, %s130
      %s148 = sphi 0, %s148
      %s150 = sphi 0, %s148
      %s151 = sphi 0, %s150
      %s165 = sphi 0, %s151
      %s169 = sphi 0, %s169
      %s171 = sphi 0, %s169
      %s172 = sphi 0, %s171
      %s186 = sphi 0, %s172
      %s190 = sphi 0, %s190
      %s192 = sphi 0, %s190
      %s193 = sphi 0, %s192
      %s207 = sphi 0, %s193
      %s211 = sphi 0, %s211
      %s213 = sphi 0, %s211
      %s214 = sphi 0, %s213
      %s228 = sphi 0, %s214
      %s232 = sphi 0, %s232
      %s234 = sphi 0, %s232
      %s235 = sphi 0, %s234
      %s249 = sphi 0, %s235
      %s253 = sphi 0, %s253
      %s255 = sphi 0, %s253
      %s256 = sphi 0, %s255
      %s270 = sphi 0, %s256
      %s274 = sphi 0, %s274
      %s276 = sphi 0, %s274
      %s277 = sphi 0, %s276
      %s291 = sphi 0, %s277
      %s295 = sphi 0, %s295
      %s297 = sphi 0, %s295
      %s298 = sphi 0, %s297
      %s312 = sphi 0, %s298
      %s316 = sphi 0, %s316
      %s318 = sphi 0, %s316
      %s319 = sphi 0, %s318
      %s333 = sphi 0, %s319
      %s337 = sphi 0, %s337
      %s339 = sphi 0, %s337
      %s340 = sphi 0, %s339
      %s354 = sphi 0, %s340
      %s358 = sphi 0, %s358
      %s360 = sphi 0, %s358
      %s361 = sphi 0, %s360
      %s375 = sphi 0, %s361
      %s379 = sphi 0, %s379
      %s381 = sphi 0, %s379
      %s382 = sphi 0, %s381
      %s396 = sphi 0, %s382
      %s400 = sphi 0, %s400
      %s402 = sphi 0, %s400
      %s403 = sphi 0, %s402
      %s417 = sphi 0, %s403
      %s421 = sphi 0, %s421
      %s423 = sphi 0, %s421
      %s424 = sphi 0, %s423
      %s438 = sphi 0, %s424
      %s442 = sphi 0, %s442
      %s444 = sphi 0, %s442
      %s445 = sphi 0, %s444
      %s459 = sphi 0, %s445
      %s465 = sphi 0, %s467
      %s468 = sphi 0, %s465
      %s469 = sphi 0, %s468
      %s485 = sphi 0, %s469
    $region4: #{decoder_forward.1} parent=1 // loop_header_branch
      %33 = sbr.rel (%p31) target = $region8
    $region5: #{decoder_forward.1} parent=1 // loop_body
      %s35 = ssub.s32 %s30, 1
      %s36 = ssub.s32 %s30, 2
      %s37 = sadd.s32 %s30, 1
      %s38 = ssub.s32 %s30, %s37
      %p39 = scmp.eq.s32.totalorder %s38, 0
      %s41 = sadd.s32 %s40, 1
      %s42 = scalar_select %p39, %s40, %s41
      %p45 = pneg %p39
      %p46 = scmp.eq.s32.totalorder %s30, 1
      %p47 = por %p45, %p46
      %p48 = scmp.ne.s32.totalorder %s40, %s43
      %p49 = scmp.eq.s32.totalorder %s30, 0
      %p50 = por %p48, %p49
      %p51 = scmp.ne.s32.totalorder %s40, %s43
      %p52 = scmp.eq.s32.totalorder %s35, 1
      %p53 = por %p51, %p52
      %p54 = scmp.ne.s32.totalorder %s43, %s44
      %p55 = scmp.eq.s32.totalorder %s35, 0
      %p56 = por %p54, %p55
      %p57 = scmp.ne.s32.totalorder %s43, %s44
      %p58 = scmp.eq.s32.totalorder %s36, 1
      %p59 = por %p57, %p58
      %p61 = scmp.ne.s32.totalorder %s44, %s60
      %p62 = scmp.eq.s32.totalorder %s36, 0
      %p63 = por %p61, %p62
      %s65 = sadd.s32 %s64, 1
      %p68 = scmp.eq.s32.totalorder %s30, 1
      %p69 = scmp.ne.s32.totalorder %s64, %s66
      %p70 = scmp.eq.s32.totalorder %s30, 0
      %p71 = por %p69, %p70
      %p72 = scmp.ne.s32.totalorder %s64, %s66
      %p73 = scmp.eq.s32.totalorder %s35, 1
      %p74 = por %p72, %p73
      %p75 = scmp.ne.s32.totalorder %s66, %s67
      %p76 = scmp.eq.s32.totalorder %s35, 0
      %p77 = por %p75, %p76
      %p78 = scmp.ne.s32.totalorder %s66, %s67
      %p79 = scmp.eq.s32.totalorder %s36, 1
      %p80 = por %p78, %p79
      %p82 = scmp.ne.s32.totalorder %s67, %s81
      %p83 = scmp.eq.s32.totalorder %s36, 0
      %p84 = por %p82, %p83
      %s86 = sadd.s32 %s85, 1
      %p89 = scmp.eq.s32.totalorder %s30, 1
      %p90 = scmp.ne.s32.totalorder %s85, %s87
      %p91 = scmp.eq.s32.totalorder %s30, 0
      %p92 = por %p90, %p91
      %p93 = scmp.ne.s32.totalorder %s85, %s87
      %p94 = scmp.eq.s32.totalorder %s35, 1
      %p95 = por %p93, %p94
      %p96 = scmp.ne.s32.totalorder %s87, %s88
      %p97 = scmp.eq.s32.totalorder %s35, 0
      %p98 = por %p96, %p97
      %p99 = scmp.ne.s32.totalorder %s87, %s88
      %p100 = scmp.eq.s32.totalorder %s36, 1
      %p101 = por %p99, %p100
      %p103 = scmp.ne.s32.totalorder %s88, %s102
      %p104 = scmp.eq.s32.totalorder %s36, 0
      %p105 = por %p103, %p104
      %s107 = sadd.s32 %s106, 1
      %p110 = scmp.eq.s32.totalorder %s30, 1
      %p111 = scmp.ne.s32.totalorder %s106, %s108
      %p112 = scmp.eq.s32.totalorder %s30, 0
      %p113 = por %p111, %p112
      %p114 = scmp.ne.s32.totalorder %s106, %s108
      %p115 = scmp.eq.s32.totalorder %s35, 1
      %p116 = por %p114, %p115
      %p117 = scmp.ne.s32.totalorder %s108, %s109
      %p118 = scmp.eq.s32.totalorder %s35, 0
      %p119 = por %p117, %p118
      %p120 = scmp.ne.s32.totalorder %s108, %s109
      %p121 = scmp.eq.s32.totalorder %s36, 1
      %p122 = por %p120, %p121
      %p124 = scmp.ne.s32.totalorder %s109, %s123
      %p125 = scmp.eq.s32.totalorder %s36, 0
      %p126 = por %p124, %p125
      %s128 = sadd.s32 %s127, 1
      %p131 = scmp.eq.s32.totalorder %s30, 1
      %p132 = scmp.ne.s32.totalorder %s127, %s129
      %p133 = scmp.eq.s32.totalorder %s30, 0
      %p134 = por %p132, %p133
      %p135 = scmp.ne.s32.totalorder %s127, %s129
      %p136 = scmp.eq.s32.totalorder %s35, 1
      %p137 = por %p135, %p136
      %p138 = scmp.ne.s32.totalorder %s129, %s130
      %p139 = scmp.eq.s32.totalorder %s35, 0
      %p140 = por %p138, %p139
      %p141 = scmp.ne.s32.totalorder %s129, %s130
      %p142 = scmp.eq.s32.totalorder %s36, 1
      %p143 = por %p141, %p142
      %p145 = scmp.ne.s32.totalorder %s130, %s144
      %p146 = scmp.eq.s32.totalorder %s36, 0
      %p147 = por %p145, %p146
      %s149 = sadd.s32 %s148, 1
      %p152 = scmp.eq.s32.totalorder %s30, 1
      %p153 = scmp.ne.s32.totalorder %s148, %s150
      %p154 = scmp.eq.s32.totalorder %s30, 0
      %p155 = por %p153, %p154
      %p156 = scmp.ne.s32.totalorder %s148, %s150
      %p157 = scmp.eq.s32.totalorder %s35, 1
      %p158 = por %p156, %p157
      %p159 = scmp.ne.s32.totalorder %s150, %s151
      %p160 = scmp.eq.s32.totalorder %s35, 0
      %p161 = por %p159, %p160
      %p162 = scmp.ne.s32.totalorder %s150, %s151
      %p163 = scmp.eq.s32.totalorder %s36, 1
      %p164 = por %p162, %p163
      %p166 = scmp.ne.s32.totalorder %s151, %s165
      %p167 = scmp.eq.s32.totalorder %s36, 0
      %p168 = por %p166, %p167
      %s170 = sadd.s32 %s169, 1
      %p173 = scmp.eq.s32.totalorder %s30, 1
      %p174 = scmp.ne.s32.totalorder %s169, %s171
      %p175 = scmp.eq.s32.totalorder %s30, 0
      %p176 = por %p174, %p175
      %p177 = scmp.ne.s32.totalorder %s169, %s171
      %p178 = scmp.eq.s32.totalorder %s35, 1
      %p179 = por %p177, %p178
      %p180 = scmp.ne.s32.totalorder %s171, %s172
      %p181 = scmp.eq.s32.totalorder %s35, 0
      %p182 = por %p180, %p181
      %p183 = scmp.ne.s32.totalorder %s171, %s172
      %p184 = scmp.eq.s32.totalorder %s36, 1
      %p185 = por %p183, %p184
      %p187 = scmp.ne.s32.totalorder %s172, %s186
      %p188 = scmp.eq.s32.totalorder %s36, 0
      %p189 = por %p187, %p188
      %s191 = sadd.s32 %s190, 1
      %p194 = scmp.eq.s32.totalorder %s30, 1
      %p195 = scmp.ne.s32.totalorder %s190, %s192
      %p196 = scmp.eq.s32.totalorder %s30, 0
      %p197 = por %p195, %p196
      %p198 = scmp.ne.s32.totalorder %s190, %s192
      %p199 = scmp.eq.s32.totalorder %s35, 1
      %p200 = por %p198, %p199
      %p201 = scmp.ne.s32.totalorder %s192, %s193
      %p202 = scmp.eq.s32.totalorder %s35, 0
      %p203 = por %p201, %p202
      %p204 = scmp.ne.s32.totalorder %s192, %s193
      %p205 = scmp.eq.s32.totalorder %s36, 1
      %p206 = por %p204, %p205
      %p208 = scmp.ne.s32.totalorder %s193, %s207
      %p209 = scmp.eq.s32.totalorder %s36, 0
      %p210 = por %p208, %p209
      %s212 = sadd.s32 %s211, 1
      %p215 = scmp.eq.s32.totalorder %s30, 1
      %p216 = scmp.ne.s32.totalorder %s211, %s213
      %p217 = scmp.eq.s32.totalorder %s30, 0
      %p218 = por %p216, %p217
      %p219 = scmp.ne.s32.totalorder %s211, %s213
      %p220 = scmp.eq.s32.totalorder %s35, 1
      %p221 = por %p219, %p220
      %p222 = scmp.ne.s32.totalorder %s213, %s214
      %p223 = scmp.eq.s32.totalorder %s35, 0
      %p224 = por %p222, %p223
      %p225 = scmp.ne.s32.totalorder %s213, %s214
      %p226 = scmp.eq.s32.totalorder %s36, 1
      %p227 = por %p225, %p226
      %p229 = scmp.ne.s32.totalorder %s214, %s228
      %p230 = scmp.eq.s32.totalorder %s36, 0
      %p231 = por %p229, %p230
      %s233 = sadd.s32 %s232, 1
      %p236 = scmp.eq.s32.totalorder %s30, 1
      %p237 = scmp.ne.s32.totalorder %s232, %s234
      %p238 = scmp.eq.s32.totalorder %s30, 0
      %p239 = por %p237, %p238
      %p240 = scmp.ne.s32.totalorder %s232, %s234
      %p241 = scmp.eq.s32.totalorder %s35, 1
      %p242 = por %p240, %p241
      %p243 = scmp.ne.s32.totalorder %s234, %s235
      %p244 = scmp.eq.s32.totalorder %s35, 0
      %p245 = por %p243, %p244
      %p246 = scmp.ne.s32.totalorder %s234, %s235
      %p247 = scmp.eq.s32.totalorder %s36, 1
      %p248 = por %p246, %p247
      %p250 = scmp.ne.s32.totalorder %s235, %s249
      %p251 = scmp.eq.s32.totalorder %s36, 0
      %p252 = por %p250, %p251
      %s254 = sadd.s32 %s253, 1
      %p257 = scmp.eq.s32.totalorder %s30, 1
      %p258 = scmp.ne.s32.totalorder %s253, %s255
      %p259 = scmp.eq.s32.totalorder %s30, 0
      %p260 = por %p258, %p259
      %p261 = scmp.ne.s32.totalorder %s253, %s255
      %p262 = scmp.eq.s32.totalorder %s35, 1
      %p263 = por %p261, %p262
      %p264 = scmp.ne.s32.totalorder %s255, %s256
      %p265 = scmp.eq.s32.totalorder %s35, 0
      %p266 = por %p264, %p265
      %p267 = scmp.ne.s32.totalorder %s255, %s256
      %p268 = scmp.eq.s32.totalorder %s36, 1
      %p269 = por %p267, %p268
      %p271 = scmp.ne.s32.totalorder %s256, %s270
      %p272 = scmp.eq.s32.totalorder %s36, 0
      %p273 = por %p271, %p272
      %s275 = sadd.s32 %s274, 1
      %p278 = scmp.eq.s32.totalorder %s30, 1
      %p279 = scmp.ne.s32.totalorder %s274, %s276
      %p280 = scmp.eq.s32.totalorder %s30, 0
      %p281 = por %p279, %p280
      %p282 = scmp.ne.s32.totalorder %s274, %s276
      %p283 = scmp.eq.s32.totalorder %s35, 1
      %p284 = por %p282, %p283
      %p285 = scmp.ne.s32.totalorder %s276, %s277
      %p286 = scmp.eq.s32.totalorder %s35, 0
      %p287 = por %p285, %p286
      %p288 = scmp.ne.s32.totalorder %s276, %s277
      %p289 = scmp.eq.s32.totalorder %s36, 1
      %p290 = por %p288, %p289
      %p292 = scmp.ne.s32.totalorder %s277, %s291
      %p293 = scmp.eq.s32.totalorder %s36, 0
      %p294 = por %p292, %p293
      %s296 = sadd.s32 %s295, 1
      %p299 = scmp.eq.s32.totalorder %s30, 1
      %p300 = scmp.ne.s32.totalorder %s295, %s297
      %p301 = scmp.eq.s32.totalorder %s30, 0
      %p302 = por %p300, %p301
      %p303 = scmp.ne.s32.totalorder %s295, %s297
      %p304 = scmp.eq.s32.totalorder %s35, 1
      %p305 = por %p303, %p304
      %p306 = scmp.ne.s32.totalorder %s297, %s298
      %p307 = scmp.eq.s32.totalorder %s35, 0
      %p308 = por %p306, %p307
      %p309 = scmp.ne.s32.totalorder %s297, %s298
      %p310 = scmp.eq.s32.totalorder %s36, 1
      %p311 = por %p309, %p310
      %p313 = scmp.ne.s32.totalorder %s298, %s312
      %p314 = scmp.eq.s32.totalorder %s36, 0
      %p315 = por %p313, %p314
      %s317 = sadd.s32 %s316, 1
      %p320 = scmp.eq.s32.totalorder %s30, 1
      %p321 = scmp.ne.s32.totalorder %s316, %s318
      %p322 = scmp.eq.s32.totalorder %s30, 0
      %p323 = por %p321, %p322
      %p324 = scmp.ne.s32.totalorder %s316, %s318
      %p325 = scmp.eq.s32.totalorder %s35, 1
      %p326 = por %p324, %p325
      %p327 = scmp.ne.s32.totalorder %s318, %s319
      %p328 = scmp.eq.s32.totalorder %s35, 0
      %p329 = por %p327, %p328
      %p330 = scmp.ne.s32.totalorder %s318, %s319
      %p331 = scmp.eq.s32.totalorder %s36, 1
      %p332 = por %p330, %p331
      %p334 = scmp.ne.s32.totalorder %s319, %s333
      %p335 = scmp.eq.s32.totalorder %s36, 0
      %p336 = por %p334, %p335
      %s338 = sadd.s32 %s337, 1
      %p341 = scmp.eq.s32.totalorder %s30, 1
      %p342 = scmp.ne.s32.totalorder %s337, %s339
      %p343 = scmp.eq.s32.totalorder %s30, 0
      %p344 = por %p342, %p343
      %p345 = scmp.ne.s32.totalorder %s337, %s339
      %p346 = scmp.eq.s32.totalorder %s35, 1
      %p347 = por %p345, %p346
      %p348 = scmp.ne.s32.totalorder %s339, %s340
      %p349 = scmp.eq.s32.totalorder %s35, 0
      %p350 = por %p348, %p349
      %p351 = scmp.ne.s32.totalorder %s339, %s340
      %p352 = scmp.eq.s32.totalorder %s36, 1
      %p353 = por %p351, %p352
      %p355 = scmp.ne.s32.totalorder %s340, %s354
      %p356 = scmp.eq.s32.totalorder %s36, 0
      %p357 = por %p355, %p356
      %s359 = sadd.s32 %s358, 1
      %p362 = scmp.eq.s32.totalorder %s30, 1
      %p363 = scmp.ne.s32.totalorder %s358, %s360
      %p364 = scmp.eq.s32.totalorder %s30, 0
      %p365 = por %p363, %p364
      %p366 = scmp.ne.s32.totalorder %s358, %s360
      %p367 = scmp.eq.s32.totalorder %s35, 1
      %p368 = por %p366, %p367
      %p369 = scmp.ne.s32.totalorder %s360, %s361
      %p370 = scmp.eq.s32.totalorder %s35, 0
      %p371 = por %p369, %p370
      %p372 = scmp.ne.s32.totalorder %s360, %s361
      %p373 = scmp.eq.s32.totalorder %s36, 1
      %p374 = por %p372, %p373
      %p376 = scmp.ne.s32.totalorder %s361, %s375
      %p377 = scmp.eq.s32.totalorder %s36, 0
      %p378 = por %p376, %p377
      %s380 = sadd.s32 %s379, 1
      %p383 = scmp.eq.s32.totalorder %s30, 1
      %p384 = scmp.ne.s32.totalorder %s379, %s381
      %p385 = scmp.eq.s32.totalorder %s30, 0
      %p386 = por %p384, %p385
      %p387 = scmp.ne.s32.totalorder %s379, %s381
      %p388 = scmp.eq.s32.totalorder %s35, 1
      %p389 = por %p387, %p388
      %p390 = scmp.ne.s32.totalorder %s381, %s382
      %p391 = scmp.eq.s32.totalorder %s35, 0
      %p392 = por %p390, %p391
      %p393 = scmp.ne.s32.totalorder %s381, %s382
      %p394 = scmp.eq.s32.totalorder %s36, 1
      %p395 = por %p393, %p394
      %p397 = scmp.ne.s32.totalorder %s382, %s396
      %p398 = scmp.eq.s32.totalorder %s36, 0
      %p399 = por %p397, %p398
      %s401 = sadd.s32 %s400, 1
      %p404 = scmp.eq.s32.totalorder %s30, 1
      %p405 = scmp.ne.s32.totalorder %s400, %s402
      %p406 = scmp.eq.s32.totalorder %s30, 0
      %p407 = por %p405, %p406
      %p408 = scmp.ne.s32.totalorder %s400, %s402
      %p409 = scmp.eq.s32.totalorder %s35, 1
      %p410 = por %p408, %p409
      %p411 = scmp.ne.s32.totalorder %s402, %s403
      %p412 = scmp.eq.s32.totalorder %s35, 0
      %p413 = por %p411, %p412
      %p414 = scmp.ne.s32.totalorder %s402, %s403
      %p415 = scmp.eq.s32.totalorder %s36, 1
      %p416 = por %p414, %p415
      %p418 = scmp.ne.s32.totalorder %s403, %s417
      %p419 = scmp.eq.s32.totalorder %s36, 0
      %p420 = por %p418, %p419
      %s422 = sadd.s32 %s421, 1
      %p425 = scmp.eq.s32.totalorder %s30, 1
      %p426 = scmp.ne.s32.totalorder %s421, %s423
      %p427 = scmp.eq.s32.totalorder %s30, 0
      %p428 = por %p426, %p427
      %p429 = scmp.ne.s32.totalorder %s421, %s423
      %p430 = scmp.eq.s32.totalorder %s35, 1
      %p431 = por %p429, %p430
      %p432 = scmp.ne.s32.totalorder %s423, %s424
      %p433 = scmp.eq.s32.totalorder %s35, 0
      %p434 = por %p432, %p433
      %p435 = scmp.ne.s32.totalorder %s423, %s424
      %p436 = scmp.eq.s32.totalorder %s36, 1
      %p437 = por %p435, %p436
      %p439 = scmp.ne.s32.totalorder %s424, %s438
      %p440 = scmp.eq.s32.totalorder %s36, 0
      %p441 = por %p439, %p440
      %s443 = sadd.s32 %s442, 1
      %p446 = scmp.eq.s32.totalorder %s30, 1
      %p447 = scmp.ne.s32.totalorder %s442, %s444
      %p448 = scmp.eq.s32.totalorder %s30, 0
      %p449 = por %p447, %p448
      %p450 = scmp.ne.s32.totalorder %s442, %s444
      %p451 = scmp.eq.s32.totalorder %s35, 1
      %p452 = por %p450, %p451
      %p453 = scmp.ne.s32.totalorder %s444, %s445
      %p454 = scmp.eq.s32.totalorder %s35, 0
      %p455 = por %p453, %p454
      %p456 = scmp.ne.s32.totalorder %s444, %s445
      %p457 = scmp.eq.s32.totalorder %s36, 1
      %p458 = por %p456, %p457
      %p460 = scmp.ne.s32.totalorder %s445, %s459
      %p461 = scmp.eq.s32.totalorder %s36, 0
      %p462 = por %p460, %p461
      %s463 = ssub.s32 %s30, %s37
      %p464 = scmp.eq.s32.totalorder %s463, 0
      %s466 = sadd.s32 %s465, 1
      %s467 = scalar_select %p464, %s465, %s466
      %p470 = pneg %p464
      %p471 = scmp.eq.s32.totalorder %s30, 1
      %p472 = por %p470, %p471
      %p473 = scmp.ne.s32.totalorder %s465, %s468
      %p474 = scmp.eq.s32.totalorder %s30, 0
      %p475 = por %p473, %p474
      %p476 = scmp.ne.s32.totalorder %s465, %s468
      %p477 = scmp.eq.s32.totalorder %s35, 1
      %p478 = por %p476, %p477
      %p479 = scmp.ne.s32.totalorder %s468, %s469
      %p480 = scmp.eq.s32.totalorder %s35, 0
      %p481 = por %p479, %p480
      %p482 = scmp.ne.s32.totalorder %s468, %s469
      %p483 = scmp.eq.s32.totalorder %s36, 1
      %p484 = por %p482, %p483
      %p486 = scmp.ne.s32.totalorder %s469, %s485
      %p487 = scmp.eq.s32.totalorder %s36, 0
      %p488 = por %p486, %p487
      %p489 = scmp.le.s32.totalorder 1, %s30
      %p490 = scmp.lt.s32.totalorder %s30, 3
      %p491 = pnand %p489, %p490
      %p492 = pneg %p491
      // Predicated region
      $region9: #{decoder_forward.1} parent=5 // pred_check
        _
      $region10: #{decoder_forward.1} parent=5 // pred_check_branch
        %494 = sbr.rel (%p491) target = $region12
      $region11: #{decoder_forward.1} parent=5 // pred_region
        %s495 = ssub.s32 %s30, 1
        // Predicated region
        $region13: #{decoder_forward.1} parent=11 // pred_check
          %p496 = pneg %p77
        $region14: #{decoder_forward.1} parent=11 // pred_check_branch
          %498 = sbr.rel (%p496) target = $region16
        $region15: #{decoder_forward.1} parent=11 // pred_region
          _
        $region16: #{decoder_forward.1} parent=11 // pred_fallthru
          _
        // Predicated region
        $region17: #{decoder_forward.1} parent=11 // pred_check
          %p499 = pneg %p98
        $region18: #{decoder_forward.1} parent=11 // pred_check_branch
          %501 = sbr.rel (%p499) target = $region20
        $region19: #{decoder_forward.1} parent=11 // pred_region
          _
        $region20: #{decoder_forward.1} parent=11 // pred_fallthru
          _
        // Predicated region
        $region21: #{decoder_forward.1} parent=11 // pred_check
          %p502 = pneg %p119
        $region22: #{decoder_forward.1} parent=11 // pred_check_branch
          %504 = sbr.rel (%p502) target = $region24
        $region23: #{decoder_forward.1} parent=11 // pred_region
          %506 = vsyncadd [#allocation3], 0
          %s507 = sshll.u32 %s3, 4
          %s508 = int_to_ptr.hbm [resolvable:$true] %s507
          %s509 = sshll.u32 [#allocation2], 4
          %s510 = int_to_ptr.vmem [resolvable:$true] %s509
          %515 = dma.hbm_to_vmem [thread:$0]  %s508, 2560, %s510, [#allocation3], 320, 320, 20
        $region24: #{decoder_forward.1} parent=11 // pred_fallthru
          _
        // Predicated region
        $region25: #{decoder_forward.1} parent=11 // pred_check
          %p516 = pneg %p140
        $region26: #{decoder_forward.1} parent=11 // pred_check_branch
          %518 = sbr.rel (%p516) target = $region28
        $region27: #{decoder_forward.1} parent=11 // pred_region
          _
        $region28: #{decoder_forward.1} parent=11 // pred_fallthru
          _
        // Predicated region
        $region29: #{decoder_forward.1} parent=11 // pred_check
          %p519 = pneg %p161
        $region30: #{decoder_forward.1} parent=11 // pred_check_branch
          %521 = sbr.rel (%p519) target = $region32
        $region31: #{decoder_forward.1} parent=11 // pred_region
          %523 = vsyncadd [#allocation5], 0
          %s524 = sshll.u32 %s5, 4
          %s525 = int_to_ptr.hbm [resolvable:$true] %s524
          %s526 = sshll.u32 [#allocation4], 4
          %s527 = int_to_ptr.vmem [resolvable:$true] %s526
          %532 = dma.hbm_to_vmem [thread:$0]  %s525, 2560, %s527, [#allocation5], 320, 320, 20
        $region32: #{decoder_forward.1} parent=11 // pred_fallthru
          _
        // Predicated region
        $region33: #{decoder_forward.1} parent=11 // pred_check
          %p533 = pneg %p182
        $region34: #{decoder_forward.1} parent=11 // pred_check_branch
          %535 = sbr.rel (%p533) target = $region36
        $region35: #{decoder_forward.1} parent=11 // pred_region
          _
        $region36: #{decoder_forward.1} parent=11 // pred_fallthru
          _
        // Predicated region
        $region37: #{decoder_forward.1} parent=11 // pred_check
          %p536 = pneg %p203
        $region38: #{decoder_forward.1} parent=11 // pred_check_branch
          %538 = sbr.rel (%p536) target = $region40
        $region39: #{decoder_forward.1} parent=11 // pred_region
          _
        $region40: #{decoder_forward.1} parent=11 // pred_fallthru
          _
        // Predicated region
        $region41: #{decoder_forward.1} parent=11 // pred_check
          %p539 = pneg %p224
        $region42: #{decoder_forward.1} parent=11 // pred_check_branch
          %541 = sbr.rel (%p539) target = $region44
        $region43: #{decoder_forward.1} parent=11 // pred_region
          _
        $region44: #{decoder_forward.1} parent=11 // pred_fallthru
          _
        // Predicated region
        $region45: #{decoder_forward.1} parent=11 // pred_check
          %p542 = pneg %p245
        $region46: #{decoder_forward.1} parent=11 // pred_check_branch
          %544 = sbr.rel (%p542) target = $region48
        $region47: #{decoder_forward.1} parent=11 // pred_region
          _
        $region48: #{decoder_forward.1} parent=11 // pred_fallthru
          _
        // Predicated region
        $region49: #{decoder_forward.1} parent=11 // pred_check
          %p545 = pneg %p266
        $region50: #{decoder_forward.1} parent=11 // pred_check_branch
          %547 = sbr.rel (%p545) target = $region52
        $region51: #{decoder_forward.1} parent=11 // pred_region
          %549 = vsyncadd [#allocation5], 0
          %s550 = sshll.u32 %s10, 4
          %s551 = int_to_ptr.hbm [resolvable:$true] %s550
          %s552 = sshll.u32 [#allocation6], 4
          %s553 = int_to_ptr.vmem [resolvable:$true] %s552
          %558 = dma.hbm_to_vmem [thread:$0]  %s551, 4096, %s553, [#allocation5], 128, 128, 8
        $region52: #{decoder_forward.1} parent=11 // pred_fallthru
          _
        // Predicated region
        $region53: #{decoder_forward.1} parent=11 // pred_check
          %p559 = pneg %p287
        $region54: #{decoder_forward.1} parent=11 // pred_check_branch
          %561 = sbr.rel (%p559) target = $region56
        $region55: #{decoder_forward.1} parent=11 // pred_region
          %563 = vsyncadd [#allocation8], 0
          %s564 = sshll.u32 %s11, 4
          %s565 = int_to_ptr.hbm [resolvable:$true] %s564
          %s566 = sshll.u32 [#allocation7], 4
          %s567 = int_to_ptr.vmem [resolvable:$true] %s566
          %572 = dma.hbm_to_vmem [thread:$0]  %s565, 768, %s567, [#allocation8], 192, 192, 12
        $region56: #{decoder_forward.1} parent=11 // pred_fallthru
          _
        // Predicated region
        $region57: #{decoder_forward.1} parent=11 // pred_check
          %p573 = pneg %p308
        $region58: #{decoder_forward.1} parent=11 // pred_check_branch
          %575 = sbr.rel (%p573) target = $region60
        $region59: #{decoder_forward.1} parent=11 // pred_region
          _
        $region60: #{decoder_forward.1} parent=11 // pred_fallthru
          _
        // Predicated region
        $region61: #{decoder_forward.1} parent=11 // pred_check
          %p576 = pneg %p329
        $region62: #{decoder_forward.1} parent=11 // pred_check_branch
          %578 = sbr.rel (%p576) target = $region64
        $region63: #{decoder_forward.1} parent=11 // pred_region
          %580 = vsyncadd [#allocation8], 0
          %s581 = sshll.u32 %s13, 4
          %s582 = int_to_ptr.hbm [resolvable:$true] %s581
          %s583 = sshll.u32 [#allocation9], 4
          %s584 = int_to_ptr.vmem [resolvable:$true] %s583
          %589 = dma.hbm_to_vmem [thread:$0]  %s582, 768, %s584, [#allocation8], 192, 192, 12
        $region64: #{decoder_forward.1} parent=11 // pred_fallthru
          _
        // Predicated region
        $region65: #{decoder_forward.1} parent=11 // pred_check
          %p590 = pneg %p350
        $region66: #{decoder_forward.1} parent=11 // pred_check_branch
          %592 = sbr.rel (%p590) target = $region68
        $region67: #{decoder_forward.1} parent=11 // pred_region
          _
        $region68: #{decoder_forward.1} parent=11 // pred_fallthru
          _
        // Predicated region
        $region69: #{decoder_forward.1} parent=11 // pred_check
          %p593 = pneg %p371
        $region70: #{decoder_forward.1} parent=11 // pred_check_branch
          %595 = sbr.rel (%p593) target = $region72
        $region71: #{decoder_forward.1} parent=11 // pred_region
          _
        $region72: #{decoder_forward.1} parent=11 // pred_fallthru
          _
        // Predicated region
        $region73: #{decoder_forward.1} parent=11 // pred_check
          %p596 = pneg %p392
        $region74: #{decoder_forward.1} parent=11 // pred_check_branch
          %598 = sbr.rel (%p596) target = $region76
        $region75: #{decoder_forward.1} parent=11 // pred_region
          _
        $region76: #{decoder_forward.1} parent=11 // pred_fallthru
          _
        // Predicated region
        $region77: #{decoder_forward.1} parent=11 // pred_check
          %p599 = pneg %p413
        $region78: #{decoder_forward.1} parent=11 // pred_check_branch
          %601 = sbr.rel (%p599) target = $region80
        $region79: #{decoder_forward.1} parent=11 // pred_region
          _
        $region80: #{decoder_forward.1} parent=11 // pred_fallthru
          _
        // Predicated region
        $region81: #{decoder_forward.1} parent=11 // pred_check
          %p602 = pneg %p434
        $region82: #{decoder_forward.1} parent=11 // pred_check_branch
          %604 = sbr.rel (%p602) target = $region84
        $region83: #{decoder_forward.1} parent=11 // pred_region
          %606 = vsyncadd [#allocation11], 0
          %s607 = sshll.u32 %s18, 4
          %s608 = int_to_ptr.hbm [resolvable:$true] %s607
          %s609 = sshll.u32 [#allocation10], 4
          %s610 = int_to_ptr.vmem [resolvable:$true] %s609
          %615 = dma.hbm_to_vmem [thread:$0]  %s608, 65536, %s610, [#allocation11], 512, 512, 32
        $region84: #{decoder_forward.1} parent=11 // pred_fallthru
          _
        // Predicated region
        $region85: #{decoder_forward.1} parent=11 // pred_check
          %p616 = pneg %p455
        $region86: #{decoder_forward.1} parent=11 // pred_check_branch
          %618 = sbr.rel (%p616) target = $region88
        $region87: #{decoder_forward.1} parent=11 // pred_region
          %620 = vsyncadd [#allocation11], 0
          %s622 = sshll.u32 %s19, 4
          %s623 = int_to_ptr.hbm [resolvable:$true] %s622
          %s624 = sshll.u32 [#allocation12], 4
          %s625 = int_to_ptr.vmem [resolvable:$true] %s624
          %627 = dma.hbm_to_vmem [thread:$0]  %s623, 64, %s625, [#allocation11]
        $region88: #{decoder_forward.1} parent=11 // pred_fallthru
          _
      $region12: #{decoder_forward.1} parent=5 // pred_fallthru
        _
      %p628 = scmp.lt.s32.totalorder %s30, 2
      // Predicated region
      $region89: #{decoder_forward.1} parent=5 // pred_check
        %p629 = pneg %p628
      $region90: #{decoder_forward.1} parent=5 // pred_check_branch
        %631 = sbr.rel (%p629) target = $region92
      $region91: #{decoder_forward.1} parent=5 // pred_region
        // Predicated region
        $region93: #{decoder_forward.1} parent=91 // pred_check
          %p632 = pneg %p50
        $region94: #{decoder_forward.1} parent=91 // pred_check_branch
          %634 = sbr.rel (%p632) target = $region96
        $region95: #{decoder_forward.1} parent=91 // pred_region
          %p635 = scmp.lt.s32.totalorder %s30, 1
          %s636 = scalar_select %p635, %s30, 1
          %s637 = smul.addr %s636, 8
          %s638 = scalar_lea.vmem %s0, %s637
        $region96: #{decoder_forward.1} parent=91 // pred_fallthru
          _
      $region92: #{decoder_forward.1} parent=5 // pred_fallthru
        _
      %p639 = scmp.le.s32.totalorder 1, %s30
      %p640 = scmp.lt.s32.totalorder %s30, 3
      %p641 = pnand %p639, %p640
      %p642 = pneg %p641
      // Predicated region
      $region97: #{decoder_forward.1} parent=5 // pred_check
        _
      $region98: #{decoder_forward.1} parent=5 // pred_check_branch
        %644 = sbr.rel (%p641) target = $region100
      $region99: #{decoder_forward.1} parent=5 // pred_region
        %s645 = ssub.s32 %s30, 1
        // Predicated region
        $region101: #{decoder_forward.1} parent=99 // pred_check
          %p646 = pneg %p119
        $region102: #{decoder_forward.1} parent=99 // pred_check_branch
          %648 = sbr.rel (%p646) target = $region104
        $region103: #{decoder_forward.1} parent=99 // pred_region
          %650 = dma.done [#allocation3], 2560
        $region104: #{decoder_forward.1} parent=99 // pred_fallthru
          _
        // Predicated region
        $region105: #{decoder_forward.1} parent=99 // pred_check
          %p651 = pneg %p161
        $region106: #{decoder_forward.1} parent=99 // pred_check_branch
          %653 = sbr.rel (%p651) target = $region108
        $region107: #{decoder_forward.1} parent=99 // pred_region
          %655 = dma.done [#allocation5], 2560
        $region108: #{decoder_forward.1} parent=99 // pred_fallthru
          _
        // Predicated region
        $region109: #{decoder_forward.1} parent=99 // pred_check
          %p656 = pneg %p266
        $region110: #{decoder_forward.1} parent=99 // pred_check_branch
          %658 = sbr.rel (%p656) target = $region112
        $region111: #{decoder_forward.1} parent=99 // pred_region
          %660 = dma.done [#allocation5], 4096
        $region112: #{decoder_forward.1} parent=99 // pred_fallthru
          _
        // Predicated region
        $region113: #{decoder_forward.1} parent=99 // pred_check
          %p661 = pneg %p287
        $region114: #{decoder_forward.1} parent=99 // pred_check_branch
          %663 = sbr.rel (%p661) target = $region116
        $region115: #{decoder_forward.1} parent=99 // pred_region
          %665 = dma.done [#allocation8], 768
        $region116: #{decoder_forward.1} parent=99 // pred_fallthru
          _
        // Predicated region
        $region117: #{decoder_forward.1} parent=99 // pred_check
          %p666 = pneg %p329
        $region118: #{decoder_forward.1} parent=99 // pred_check_branch
          %668 = sbr.rel (%p666) target = $region120
        $region119: #{decoder_forward.1} parent=99 // pred_region
          %670 = dma.done [#allocation8], 768
        $region120: #{decoder_forward.1} parent=99 // pred_fallthru
          _
        // Predicated region
        $region121: #{decoder_forward.1} parent=99 // pred_check
          %p671 = pneg %p434
        $region122: #{decoder_forward.1} parent=99 // pred_check_branch
          %673 = sbr.rel (%p671) target = $region124
        $region123: #{decoder_forward.1} parent=99 // pred_region
          %675 = dma.done [#allocation11], 65536
        $region124: #{decoder_forward.1} parent=99 // pred_fallthru
          _
        // Predicated region
        $region125: #{decoder_forward.1} parent=99 // pred_check
          %p676 = pneg %p455
        $region126: #{decoder_forward.1} parent=99 // pred_check_branch
          %678 = sbr.rel (%p676) target = $region128
        $region127: #{decoder_forward.1} parent=99 // pred_region
          %680 = dma.done [#allocation11], 64
        $region128: #{decoder_forward.1} parent=99 // pred_fallthru
          _
        %p681 = scmp.lt.s32.totalorder %s35, 1
        %s682 = scalar_select %p681, %s35, 1
        %s683 = smul.addr %s682, 8
        %s684 = scalar_lea.vmem %s0, %s683
        %p685 = pneg %p56
        %p686 = pneg %p53
        %p687 = pneg %p77
        %p688 = pneg %p74
        %p689 = pneg %p98
        %p690 = pneg %p95
        %p691 = pneg %p119
        %p692 = pneg %p116
        %p693 = pneg %p140
        %p694 = pneg %p137
        %p695 = pneg %p161
        %p696 = pneg %p158
        %p697 = pneg %p182
        %p698 = pneg %p179
        %p699 = pneg %p203
        %p700 = pneg %p200
        %p701 = pneg %p224
        %p702 = pneg %p221
        %p703 = pneg %p245
        %p704 = pneg %p242
        %p705 = pneg %p266
        %p706 = pneg %p263
        %p707 = pneg %p287
        %p708 = pneg %p284
        %p709 = pneg %p308
        %p710 = pneg %p305
        %p711 = pneg %p329
        %p712 = pneg %p326
        %p713 = pneg %p350
        %p714 = pneg %p347
        %p715 = pneg %p371
        %p716 = pneg %p368
        %p717 = pneg %p392
        %p718 = pneg %p389
        %p719 = pneg %p413
        %p720 = pneg %p410
        %p721 = pneg %p434
        %p722 = pneg %p431
        %p723 = pneg %p455
        %p724 = pneg %p452
        %p725 = pneg %p481
        %p726 = pneg %p478
        %p727 = scmp.lt.s32.totalorder %s35, 1
        %s728 = scalar_select %p727, %s35, 1
        %s729 = smul.addr %s728, 8
        %s730 = smul.addr %s729, 4
        %s731 = scalar_lea.vmem %s20, %s730
        %p732 = scmp.lt.s32.totalorder %s35, 1
        %s733 = scalar_select %p732, %s35, 1
        %s734 = smul.addr %s733, 8
        %s735 = scalar_lea.vmem %s0, %s734
        %p736 = scmp.lt.s32.totalorder %s35, 1
        %s737 = scalar_select %p736, %s35, 1
        %s738 = smul.addr %s737, 8
        %s739 = smul.addr %s738, 4
        %s740 = scalar_lea.vmem %s20, %s739
        %v742 = vld [vmem:[%s735] sm:$0xff]
        %v743 = vld [vmem:[%s1] sm:$0xf]
        %v744 = vld [vmem:[%s1 + $0x4] sm:$0xf]
        %v745 = vld [vmem:[%s1 + $0x8] sm:$0xf]
        %v746 = vld [vmem:[%s1 + $0xc] sm:$0xf]
        %v747 = vld [vmem:[%s1 + $0x10] sm:$0xf]
        %v748 = vld [vmem:[%s1 + $0x14] sm:$0xf]
        %v749 = vld [vmem:[%s1 + $0x18] sm:$0xf]
        %v750 = vld [vmem:[%s1 + $0x1c] sm:$0xf]
        %v751 = vpack.c.bf16 %v742, %v742
        %v752 = vld [vmem:[%s2] sm:$0xff]
        %v753 = vld [vmem:[%s2 + $0x8] sm:$0xff]
        %v754 = vld [vmem:[%s2 + $0x10] sm:$0xff]
        %v755 = vld [vmem:[%s2 + $0x18] sm:$0xff]
        %v756 = vld [vmem:[%s2 + $0x20] sm:$0xff]
        %v757 = vld [vmem:[%s2 + $0x28] sm:$0xff]
        %v758 = vld [vmem:[%s2 + $0x30] sm:$0xff]
        %v759 = vld [vmem:[%s2 + $0x38] sm:$0xff]
        %761 = vset.pattern.permute.xlu0 0
        %762 = vperm.xlu0 %761, %v752
        %v763 = vpop.permute.xlu0 %762
        %766 = vset.pattern.permute.xlu0 0
        %767 = vperm.xlu0 %766, %v753
        %v768 = vpop.permute.xlu0 %767
        %771 = vset.pattern.permute.xlu0 0
        %772 = vperm.xlu0 %771, %v754
        %v773 = vpop.permute.xlu0 %772
        %776 = vset.pattern.permute.xlu0 0
        %777 = vperm.xlu0 %776, %v755
        %v778 = vpop.permute.xlu0 %777
        %781 = vset.pattern.permute.xlu0 0
        %782 = vperm.xlu0 %781, %v756
        %v783 = vpop.permute.xlu0 %782
        %786 = vset.pattern.permute.xlu0 0
        %787 = vperm.xlu0 %786, %v757
        %v788 = vpop.permute.xlu0 %787
        %791 = vset.pattern.permute.xlu0 0
        %792 = vperm.xlu0 %791, %v758
        %v793 = vpop.permute.xlu0 %792
        %796 = vset.pattern.permute.xlu0 0
        %797 = vperm.xlu0 %796, %v759
        %v798 = vpop.permute.xlu0 %797
        %v808 = vunpack.c.l.b16 %v743
        %v809 = vunpack.c.l.b16 %v744
        %v810 = vunpack.c.l.b16 %v745
        %v811 = vunpack.c.l.b16 %v746
        %v812 = vunpack.c.l.b16 %v747
        %v813 = vunpack.c.l.b16 %v748
        %v814 = vunpack.c.l.b16 %v749
        %v815 = vunpack.c.l.b16 %v750
        %v816 = vpack.c.b16 %v809, %v808
        %v817 = vpack.c.b16 %v811, %v810
        %v818 = vpack.c.b16 %v813, %v812
        %v819 = vpack.c.b16 %v815, %v814
        %vm820 = vcmask 64512
        %v822 = vsel %vm820, %v816, 0
        %v825 = vsel %vm820, %v817, 0
        %v828 = vsel %vm820, %v818, 0
        %v831 = vsel %vm820, %v819, 0
        %vm833 = vcmask 1043456
        %v835 = vsel %vm833, %v751, 0
        %837 = vmatpush.bf16.msra.mxu0 0
        %838 = vmatpush.bf16.msra.mxu0 0
        %839 = vmatpush.bf16.msra.mxu0 0
        %840 = vmatpush.bf16.msra.mxu0 0
        %841 = vmatpush.bf16.msra.mxu0 0
        %842 = vmatpush.bf16.msra.mxu0 0
        %843 = vmatpush.bf16.msra.mxu0 0
        %844 = vmatpush.bf16.msra.mxu0 %v835
        %845 = vmatmul.bf16.gmra.mxu0 %v822
        %v846 = vpop.f32.mrf.mxu0
        %v847 = vadd.f32 %v763, %v846
        %v848 = vpop.f32.mrf.mxu0
        %v849 = vadd.f32 %v768, %v848
        %850 = vmatmul.bf16.gmra.mxu0 %v825
        %v851 = vpop.f32.mrf.mxu0
        %v852 = vadd.f32 %v773, %v851
        %v853 = vpop.f32.mrf.mxu0
        %v854 = vadd.f32 %v778, %v853
        %855 = vmatmul.bf16.gmra.mxu0 %v828
        %v856 = vpop.f32.mrf.mxu0
        %v857 = vadd.f32 %v783, %v856
        %v858 = vpop.f32.mrf.mxu0
        %v859 = vadd.f32 %v788, %v858
        %860 = vmatmul.bf16.gmra.mxu0 %v831
        %v861 = vpop.f32.mrf.mxu0
        %v862 = vadd.f32 %v793, %v861
        %v863 = vpop.f32.mrf.mxu0
        %v864 = vadd.f32 %v798, %v863
        %865 = vdwg.mxu0
        %v866 = vlaneseq
        %v867 = vand.u32 %v866, 127
        %vm868 = vcmp.lt.s32.totalorder %v867, 0
        %v869 = vsub.s32 0, %v867
        %v870 = vsel %vm868, %v869, %v867
        %v871 = vshrl.u32 %v870, 3
        %v872 = vand.u32 %v870, 7
        %v873 = vsub.s32 0, %v872
        %v874 = vsel %vm868, %v873, %v872
        %vm875 = vcmp.ne.s32.totalorder %v874, 0
        %vm876 = vcmp.lt.s32.totalorder %v874, 0
        %vm877 = vmand %vm876, %vm875
        %v878 = vadd.s32 %v874, 8
        %v879 = vsel %vm877, %v878, %v874
        %vm880 = vcmp.ne.s32.totalorder %v879, 0
        %v881 = vsel %vm880, 1, 0
        %v882 = vcvt.s32.f32 %v881
        %vm883 = vcmp.ne.s32.totalorder %v879, 7
        %v884 = vsel %vm883, 1, 0
        %v885 = vcvt.s32.f32 %v884
        %v886 = vxor.u32 %v847, 2147483648
        %v887 = vxor.u32 %v849, 2147483648
        %v888 = vxor.u32 %v852, 2147483648
        %v889 = vxor.u32 %v854, 2147483648
        %v890 = vxor.u32 %v857, 2147483648
        %v891 = vxor.u32 %v859, 2147483648
        %v892 = vxor.u32 %v862, 2147483648
        %v893 = vxor.u32 %v864, 2147483648
        %v894 = vmul.f32 %v886, 1.442695
        %v895 = vpow.pop %v894
        %v896 = vmul.f32 %v887, 1.442695
        %v897 = vpow.pop %v896
        %v898 = vmul.f32 %v888, 1.442695
        %v899 = vpow.pop %v898
        %v900 = vmul.f32 %v889, 1.442695
        %v901 = vpow.pop %v900
        %v902 = vmul.f32 %v890, 1.442695
        %v903 = vpow.pop %v902
        %v904 = vmul.f32 %v891, 1.442695
        %v905 = vpow.pop %v904
        %v906 = vmul.f32 %v892, 1.442695
        %v907 = vpow.pop %v906
        %v908 = vmul.f32 %v893, 1.442695
        %v909 = vpow.pop %v908
        %v910 = vadd.f32 %v895, 1.0
        %v911 = vadd.f32 %v897, 1.0
        %v912 = vadd.f32 %v899, 1.0
        %v913 = vadd.f32 %v901, 1.0
        %v914 = vadd.f32 %v903, 1.0
        %v915 = vadd.f32 %v905, 1.0
        %v916 = vadd.f32 %v907, 1.0
        %v917 = vadd.f32 %v909, 1.0
        %v918 = vrcp.pop %v910
        %v919 = vmul.f32 %v910, %v918
        %v920 = vsub.f32 1.0, %v919
        %v921 = vmul.f32 %v918, %v920
        %v922 = vadd.f32 %v918, %v921
        %vm923 = vweird.f32 %v910
        %vm924 = vweird.f32 %v918
        %vm925 = vmor %vm923, %vm924
        %v926 = vsel %vm925, %v918, %v922
        %v927 = vand.u32 2147483647, %v910
        %vm928 = vcmp.eq.f32.partialorder %v927, 8.507059e+37
        %v929 = vand.u32 %v910, 2147483648
        %v930 = vor.u32 1.1754944e-38, %v929
        %v931 = vsel %vm928, %v930, %v926
        %v932 = vmul.f32 1.0, %v931
        %v933 = vrcp.pop %v911
        %v934 = vmul.f32 %v911, %v933
        %v935 = vsub.f32 1.0, %v934
        %v936 = vmul.f32 %v933, %v935
        %v937 = vadd.f32 %v933, %v936
        %vm938 = vweird.f32 %v911
        %vm939 = vweird.f32 %v933
        %vm940 = vmor %vm938, %vm939
        %v941 = vsel %vm940, %v933, %v937
        %v942 = vand.u32 2147483647, %v911
        %vm943 = vcmp.eq.f32.partialorder %v942, 8.507059e+37
        %v944 = vand.u32 %v911, 2147483648
        %v945 = vor.u32 1.1754944e-38, %v944
        %v946 = vsel %vm943, %v945, %v941
        %v947 = vmul.f32 1.0, %v946
        %v948 = vrcp.pop %v912
        %v949 = vmul.f32 %v912, %v948
        %v950 = vsub.f32 1.0, %v949
        %v951 = vmul.f32 %v948, %v950
        %v952 = vadd.f32 %v948, %v951
        %vm953 = vweird.f32 %v912
        %vm954 = vweird.f32 %v948
        %vm955 = vmor %vm953, %vm954
        %v956 = vsel %vm955, %v948, %v952
        %v957 = vand.u32 2147483647, %v912
        %vm958 = vcmp.eq.f32.partialorder %v957, 8.507059e+37
        %v959 = vand.u32 %v912, 2147483648
        %v960 = vor.u32 1.1754944e-38, %v959
        %v961 = vsel %vm958, %v960, %v956
        %v962 = vmul.f32 1.0, %v961
        %v963 = vrcp.pop %v913
        %v964 = vmul.f32 %v913, %v963
        %v965 = vsub.f32 1.0, %v964
        %v966 = vmul.f32 %v963, %v965
        %v967 = vadd.f32 %v963, %v966
        %vm968 = vweird.f32 %v913
        %vm969 = vweird.f32 %v963
        %vm970 = vmor %vm968, %vm969
        %v971 = vsel %vm970, %v963, %v967
        %v972 = vand.u32 2147483647, %v913
        %vm973 = vcmp.eq.f32.partialorder %v972, 8.507059e+37
        %v974 = vand.u32 %v913, 2147483648
        %v975 = vor.u32 1.1754944e-38, %v974
        %v976 = vsel %vm973, %v975, %v971
        %v977 = vmul.f32 1.0, %v976
        %v978 = vrcp.pop %v914
        %v979 = vmul.f32 %v914, %v978
        %v980 = vsub.f32 1.0, %v979
        %v981 = vmul.f32 %v978, %v980
        %v982 = vadd.f32 %v978, %v981
        %vm983 = vweird.f32 %v914
        %vm984 = vweird.f32 %v978
        %vm985 = vmor %vm983, %vm984
        %v986 = vsel %vm985, %v978, %v982
        %v987 = vand.u32 2147483647, %v914
        %vm988 = vcmp.eq.f32.partialorder %v987, 8.507059e+37
        %v989 = vand.u32 %v914, 2147483648
        %v990 = vor.u32 1.1754944e-38, %v989
        %v991 = vsel %vm988, %v990, %v986
        %v992 = vmul.f32 1.0, %v991
        %v993 = vrcp.pop %v915
        %v994 = vmul.f32 %v915, %v993
        %v995 = vsub.f32 1.0, %v994
        %v996 = vmul.f32 %v993, %v995
        %v997 = vadd.f32 %v993, %v996
        %vm998 = vweird.f32 %v915
        %vm999 = vweird.f32 %v993
        %vm1000 = vmor %vm998, %vm999
        %v1001 = vsel %vm1000, %v993, %v997
        %v1002 = vand.u32 2147483647, %v915
        %vm1003 = vcmp.eq.f32.partialorder %v1002, 8.507059e+37
        %v1004 = vand.u32 %v915, 2147483648
        %v1005 = vor.u32 1.1754944e-38, %v1004
        %v1006 = vsel %vm1003, %v1005, %v1001
        %v1007 = vmul.f32 1.0, %v1006
        %v1008 = vrcp.pop %v916
        %v1009 = vmul.f32 %v916, %v1008
        %v1010 = vsub.f32 1.0, %v1009
        %v1011 = vmul.f32 %v1008, %v1010
        %v1012 = vadd.f32 %v1008, %v1011
        %vm1013 = vweird.f32 %v916
        %vm1014 = vweird.f32 %v1008
        %vm1015 = vmor %vm1013, %vm1014
        %v1016 = vsel %vm1015, %v1008, %v1012
        %v1017 = vand.u32 2147483647, %v916
        %vm1018 = vcmp.eq.f32.partialorder %v1017, 8.507059e+37
        %v1019 = vand.u32 %v916, 2147483648
        %v1020 = vor.u32 1.1754944e-38, %v1019
        %v1021 = vsel %vm1018, %v1020, %v1016
        %v1022 = vmul.f32 1.0, %v1021
        %v1023 = vrcp.pop %v917
        %v1024 = vmul.f32 %v917, %v1023
        %v1025 = vsub.f32 1.0, %v1024
        %v1026 = vmul.f32 %v1023, %v1025
        %v1027 = vadd.f32 %v1023, %v1026
        %vm1028 = vweird.f32 %v917
        %vm1029 = vweird.f32 %v1023
        %vm1030 = vmor %vm1028, %vm1029
        %v1031 = vsel %vm1030, %v1023, %v1027
        %v1032 = vand.u32 2147483647, %v917
        %vm1033 = vcmp.eq.f32.partialorder %v1032, 8.507059e+37
        %v1034 = vand.u32 %v917, 2147483648
        %v1035 = vor.u32 1.1754944e-38, %v1034
        %v1036 = vsel %vm1033, %v1035, %v1031
        %v1037 = vmul.f32 1.0, %v1036
        %v1038 = vmul.f32 %v847, %v932
        %v1039 = vmul.f32 %v849, %v947
        %v1040 = vmul.f32 %v852, %v962
        %v1041 = vmul.f32 %v854, %v977
        %v1042 = vmul.f32 %v857, %v992
        %v1043 = vmul.f32 %v859, %v1007
        %v1044 = vmul.f32 %v862, %v1022
        %v1045 = vmul.f32 %v864, %v1037
        %1054 = vrot.lane.b32.xlu0 %v1038, 9
        %v1055 = vpop.permute.xlu0 %1054
        %1056 = vrot.lane.b32.xlu0 %v1039, 9
        %v1057 = vpop.permute.xlu0 %1056
        %1058 = vrot.lane.b32.xlu0 %v1040, 9
        %v1059 = vpop.permute.xlu0 %1058
        %1060 = vrot.lane.b32.xlu0 %v1041, 9
        %v1061 = vpop.permute.xlu0 %1060
        %1062 = vrot.lane.b32.xlu0 %v1042, 9
        %v1063 = vpop.permute.xlu0 %1062
        %1064 = vrot.lane.b32.xlu0 %v1043, 9
        %v1065 = vpop.permute.xlu0 %1064
        %1066 = vrot.lane.b32.xlu0 %v1044, 9
        %v1067 = vpop.permute.xlu0 %1066
        %1068 = vrot.lane.b32.xlu0 %v1045, 9
        %v1069 = vpop.permute.xlu0 %1068
        %vm1078 = vcmask 72704
        %v1079 = vsel %vm1078, 0.0, %v1055
        %v1080 = vsel %vm1078, 0.0, %v1057
        %v1081 = vsel %vm1078, 0.0, %v1059
        %v1082 = vsel %vm1078, 0.0, %v1061
        %v1083 = vsel %vm1078, 0.0, %v1063
        %v1084 = vsel %vm1078, 0.0, %v1065
        %v1085 = vsel %vm1078, 0.0, %v1067
        %v1086 = vsel %vm1078, 0.0, %v1069
        %v1087 = vmul.f32 %v1079, %v882
        %v1088 = vmul.f32 %v1080, %v882
        %v1089 = vmul.f32 %v1081, %v882
        %v1090 = vmul.f32 %v1082, %v882
        %v1091 = vmul.f32 %v1083, %v882
        %v1092 = vmul.f32 %v1084, %v882
        %v1093 = vmul.f32 %v1085, %v882
        %v1094 = vmul.f32 %v1086, %v882
        %1095 = vrot.lane.b32.xlu0 %v1038, 8
        %v1096 = vpop.permute.xlu0 %1095
        %1097 = vrot.lane.b32.xlu0 %v1039, 8
        %v1098 = vpop.permute.xlu0 %1097
        %1099 = vrot.lane.b32.xlu0 %v1040, 8
        %v1100 = vpop.permute.xlu0 %1099
        %1101 = vrot.lane.b32.xlu0 %v1041, 8
        %v1102 = vpop.permute.xlu0 %1101
        %1103 = vrot.lane.b32.xlu0 %v1042, 8
        %v1104 = vpop.permute.xlu0 %1103
        %1105 = vrot.lane.b32.xlu0 %v1043, 8
        %v1106 = vpop.permute.xlu0 %1105
        %1107 = vrot.lane.b32.xlu0 %v1044, 8
        %v1108 = vpop.permute.xlu0 %1107
        %1109 = vrot.lane.b32.xlu0 %v1045, 8
        %v1110 = vpop.permute.xlu0 %1109
        %v1119 = vsel %vm820, 0.0, %v1096
        %v1120 = vsel %vm820, 0.0, %v1098
        %v1121 = vsel %vm820, 0.0, %v1100
        %v1122 = vsel %vm820, 0.0, %v1102
        %v1123 = vsel %vm820, 0.0, %v1104
        %v1124 = vsel %vm820, 0.0, %v1106
        %v1125 = vsel %vm820, 0.0, %v1108
        %v1126 = vsel %vm820, 0.0, %v1110
        %1127 = vrot.lane.b32.xlu0 %v1038, 7
        %v1128 = vpop.permute.xlu0 %1127
        %1129 = vrot.lane.b32.xlu0 %v1039, 7
        %v1130 = vpop.permute.xlu0 %1129
        %1131 = vrot.lane.b32.xlu0 %v1040, 7
        %v1132 = vpop.permute.xlu0 %1131
        %1133 = vrot.lane.b32.xlu0 %v1041, 7
        %v1134 = vpop.permute.xlu0 %1133
        %1135 = vrot.lane.b32.xlu0 %v1042, 7
        %v1136 = vpop.permute.xlu0 %1135
        %1137 = vrot.lane.b32.xlu0 %v1043, 7
        %v1138 = vpop.permute.xlu0 %1137
        %1139 = vrot.lane.b32.xlu0 %v1044, 7
        %v1140 = vpop.permute.xlu0 %1139
        %1141 = vrot.lane.b32.xlu0 %v1045, 7
        %v1142 = vpop.permute.xlu0 %1141
        %vm1151 = vcmask 56320
        %v1152 = vsel %vm1151, 0.0, %v1128
        %v1153 = vsel %vm1151, 0.0, %v1130
        %v1154 = vsel %vm1151, 0.0, %v1132
        %v1155 = vsel %vm1151, 0.0, %v1134
        %v1156 = vsel %vm1151, 0.0, %v1136
        %v1157 = vsel %vm1151, 0.0, %v1138
        %v1158 = vsel %vm1151, 0.0, %v1140
        %v1159 = vsel %vm1151, 0.0, %v1142
        %v1160 = vmul.f32 %v1152, %v885
        %v1161 = vmul.f32 %v1153, %v885
        %v1162 = vmul.f32 %v1154, %v885
        %v1163 = vmul.f32 %v1155, %v885
        %v1164 = vmul.f32 %v1156, %v885
        %v1165 = vmul.f32 %v1157, %v885
        %v1166 = vmul.f32 %v1158, %v885
        %v1167 = vmul.f32 %v1159, %v885
        %1168 = vrot.lane.b32.xlu0 %v1038, 1
        %v1169 = vpop.permute.xlu0 %1168
        %1170 = vrot.lane.b32.xlu0 %v1039, 1
        %v1171 = vpop.permute.xlu0 %1170
        %1172 = vrot.lane.b32.xlu0 %v1040, 1
        %v1173 = vpop.permute.xlu0 %1172
        %1174 = vrot.lane.b32.xlu0 %v1041, 1
        %v1175 = vpop.permute.xlu0 %1174
        %1176 = vrot.lane.b32.xlu0 %v1042, 1
        %v1177 = vpop.permute.xlu0 %1176
        %1178 = vrot.lane.b32.xlu0 %v1043, 1
        %v1179 = vpop.permute.xlu0 %1178
        %1180 = vrot.lane.b32.xlu0 %v1044, 1
        %v1181 = vpop.permute.xlu0 %1180
        %1182 = vrot.lane.b32.xlu0 %v1045, 1
        %v1183 = vpop.permute.xlu0 %1182
        %vm1192 = vcmask 7168
        %v1193 = vsel %vm1192, 0.0, %v1169
        %v1194 = vsel %vm1192, 0.0, %v1171
        %v1195 = vsel %vm1192, 0.0, %v1173
        %v1196 = vsel %vm1192, 0.0, %v1175
        %v1197 = vsel %vm1192, 0.0, %v1177
        %v1198 = vsel %vm1192, 0.0, %v1179
        %v1199 = vsel %vm1192, 0.0, %v1181
        %v1200 = vsel %vm1192, 0.0, %v1183
        %v1201 = vmul.f32 %v1193, %v882
        %v1202 = vmul.f32 %v1194, %v882
        %v1203 = vmul.f32 %v1195, %v882
        %v1204 = vmul.f32 %v1196, %v882
        %v1205 = vmul.f32 %v1197, %v882
        %v1206 = vmul.f32 %v1198, %v882
        %v1207 = vmul.f32 %v1199, %v882
        %v1208 = vmul.f32 %v1200, %v882
        %1209 = vrot.lane.b32.xlu0 %v1038, 127
        %v1210 = vpop.permute.xlu0 %1209
        %1211 = vrot.lane.b32.xlu0 %v1039, 127
        %v1212 = vpop.permute.xlu0 %1211
        %1213 = vrot.lane.b32.xlu0 %v1040, 127
        %v1214 = vpop.permute.xlu0 %1213
        %1215 = vrot.lane.b32.xlu0 %v1041, 127
        %v1216 = vpop.permute.xlu0 %1215
        %1217 = vrot.lane.b32.xlu0 %v1042, 127
        %v1218 = vpop.permute.xlu0 %1217
        %1219 = vrot.lane.b32.xlu0 %v1043, 127
        %v1220 = vpop.permute.xlu0 %1219
        %1221 = vrot.lane.b32.xlu0 %v1044, 127
        %v1222 = vpop.permute.xlu0 %1221
        %1223 = vrot.lane.b32.xlu0 %v1045, 127
        %v1224 = vpop.permute.xlu0 %1223
        %vm1233 = vcmask 515072
        %v1234 = vsel %vm1233, %v1210, 0.0
        %v1235 = vsel %vm1233, %v1212, 0.0
        %v1236 = vsel %vm1233, %v1214, 0.0
        %v1237 = vsel %vm1233, %v1216, 0.0
        %v1238 = vsel %vm1233, %v1218, 0.0
        %v1239 = vsel %vm1233, %v1220, 0.0
        %v1240 = vsel %vm1233, %v1222, 0.0
        %v1241 = vsel %vm1233, %v1224, 0.0
        %v1242 = vmul.f32 %v1234, %v885
        %v1243 = vmul.f32 %v1235, %v885
        %v1244 = vmul.f32 %v1236, %v885
        %v1245 = vmul.f32 %v1237, %v885
        %v1246 = vmul.f32 %v1238, %v885
        %v1247 = vmul.f32 %v1239, %v885
        %v1248 = vmul.f32 %v1240, %v885
        %v1249 = vmul.f32 %v1241, %v885
        %1250 = vrot.lane.b32.xlu0 %v1038, 121
        %v1251 = vpop.permute.xlu0 %1250
        %1252 = vrot.lane.b32.xlu0 %v1039, 121
        %v1253 = vpop.permute.xlu0 %1252
        %1254 = vrot.lane.b32.xlu0 %v1040, 121
        %v1255 = vpop.permute.xlu0 %1254
        %1256 = vrot.lane.b32.xlu0 %v1041, 121
        %v1257 = vpop.permute.xlu0 %1256
        %1258 = vrot.lane.b32.xlu0 %v1042, 121
        %v1259 = vpop.permute.xlu0 %1258
        %1260 = vrot.lane.b32.xlu0 %v1043, 121
        %v1261 = vpop.permute.xlu0 %1260
        %1262 = vrot.lane.b32.xlu0 %v1044, 121
        %v1263 = vpop.permute.xlu0 %1262
        %1264 = vrot.lane.b32.xlu0 %v1045, 121
        %v1265 = vpop.permute.xlu0 %1264
        %vm1274 = vcmask 465920
        %v1275 = vsel %vm1274, %v1251, 0.0
        %v1276 = vsel %vm1274, %v1253, 0.0
        %v1277 = vsel %vm1274, %v1255, 0.0
        %v1278 = vsel %vm1274, %v1257, 0.0
        %v1279 = vsel %vm1274, %v1259, 0.0
        %v1280 = vsel %vm1274, %v1261, 0.0
        %v1281 = vsel %vm1274, %v1263, 0.0
        %v1282 = vsel %vm1274, %v1265, 0.0
        %v1283 = vmul.f32 %v1275, %v882
        %v1284 = vmul.f32 %v1276, %v882
        %v1285 = vmul.f32 %v1277, %v882
        %v1286 = vmul.f32 %v1278, %v882
        %v1287 = vmul.f32 %v1279, %v882
        %v1288 = vmul.f32 %v1280, %v882
        %v1289 = vmul.f32 %v1281, %v882
        %v1290 = vmul.f32 %v1282, %v882
        %1291 = vrot.lane.b32.xlu0 %v1038, 120
        %v1292 = vpop.permute.xlu0 %1291
        %1293 = vrot.lane.b32.xlu0 %v1039, 120
        %v1294 = vpop.permute.xlu0 %1293
        %1295 = vrot.lane.b32.xlu0 %v1040, 120
        %v1296 = vpop.permute.xlu0 %1295
        %1297 = vrot.lane.b32.xlu0 %v1041, 120
        %v1298 = vpop.permute.xlu0 %1297
        %1299 = vrot.lane.b32.xlu0 %v1042, 120
        %v1300 = vpop.permute.xlu0 %1299
        %1301 = vrot.lane.b32.xlu0 %v1043, 120
        %v1302 = vpop.permute.xlu0 %1301
        %1303 = vrot.lane.b32.xlu0 %v1044, 120
        %v1304 = vpop.permute.xlu0 %1303
        %1305 = vrot.lane.b32.xlu0 %v1045, 120
        %v1306 = vpop.permute.xlu0 %1305
        %vm1315 = vcmask 457728
        %v1316 = vsel %vm1315, %v1292, 0.0
        %v1317 = vsel %vm1315, %v1294, 0.0
        %v1318 = vsel %vm1315, %v1296, 0.0
        %v1319 = vsel %vm1315, %v1298, 0.0
        %v1320 = vsel %vm1315, %v1300, 0.0
        %v1321 = vsel %vm1315, %v1302, 0.0
        %v1322 = vsel %vm1315, %v1304, 0.0
        %v1323 = vsel %vm1315, %v1306, 0.0
        %1324 = vrot.lane.b32.xlu0 %v1038, 119
        %v1325 = vpop.permute.xlu0 %1324
        %1326 = vrot.lane.b32.xlu0 %v1039, 119
        %v1327 = vpop.permute.xlu0 %1326
        %1328 = vrot.lane.b32.xlu0 %v1040, 119
        %v1329 = vpop.permute.xlu0 %1328
        %1330 = vrot.lane.b32.xlu0 %v1041, 119
        %v1331 = vpop.permute.xlu0 %1330
        %1332 = vrot.lane.b32.xlu0 %v1042, 119
        %v1333 = vpop.permute.xlu0 %1332
        %1334 = vrot.lane.b32.xlu0 %v1043, 119
        %v1335 = vpop.permute.xlu0 %1334
        %1336 = vrot.lane.b32.xlu0 %v1044, 119
        %v1337 = vpop.permute.xlu0 %1336
        %1338 = vrot.lane.b32.xlu0 %v1045, 119
        %v1339 = vpop.permute.xlu0 %1338
        %vm1348 = vcmask 449536
        %v1349 = vsel %vm1348, %v1325, 0.0
        %v1350 = vsel %vm1348, %v1327, 0.0
        %v1351 = vsel %vm1348, %v1329, 0.0
        %v1352 = vsel %vm1348, %v1331, 0.0
        %v1353 = vsel %vm1348, %v1333, 0.0
        %v1354 = vsel %vm1348, %v1335, 0.0
        %v1355 = vsel %vm1348, %v1337, 0.0
        %v1356 = vsel %vm1348, %v1339, 0.0
        %v1357 = vmul.f32 %v1349, %v885
        %v1358 = vmul.f32 %v1350, %v885
        %v1359 = vmul.f32 %v1351, %v885
        %v1360 = vmul.f32 %v1352, %v885
        %v1361 = vmul.f32 %v1353, %v885
        %v1362 = vmul.f32 %v1354, %v885
        %v1363 = vmul.f32 %v1355, %v885
        %v1364 = vmul.f32 %v1356, %v885
        %v1365 = vpack.c.bf16 %v1088, %v1087
        %v1366 = vpack.c.bf16 %v1090, %v1089
        %v1367 = vpack.c.bf16 %v1092, %v1091
        %v1368 = vpack.c.bf16 %v1094, %v1093
        %v1369 = vpack.c.bf16 %v1120, %v1119
        %v1370 = vpack.c.bf16 %v1122, %v1121
        %v1371 = vpack.c.bf16 %v1124, %v1123
        %v1372 = vpack.c.bf16 %v1126, %v1125
        %v1373 = vpack.c.bf16 %v1161, %v1160
        %v1374 = vpack.c.bf16 %v1163, %v1162
        %v1375 = vpack.c.bf16 %v1165, %v1164
        %v1376 = vpack.c.bf16 %v1167, %v1166
        %v1377 = vpack.c.bf16 %v1202, %v1201
        %v1378 = vpack.c.bf16 %v1204, %v1203
        %v1379 = vpack.c.bf16 %v1206, %v1205
        %v1380 = vpack.c.bf16 %v1208, %v1207
        %v1381 = vpack.c.bf16 %v1039, %v1038
        %v1382 = vpack.c.bf16 %v1041, %v1040
        %v1383 = vpack.c.bf16 %v1043, %v1042
        %v1384 = vpack.c.bf16 %v1045, %v1044
        %v1385 = vpack.c.bf16 %v1243, %v1242
        %v1386 = vpack.c.bf16 %v1245, %v1244
        %v1387 = vpack.c.bf16 %v1247, %v1246
        %v1388 = vpack.c.bf16 %v1249, %v1248
        %v1389 = vpack.c.bf16 %v1284, %v1283
        %v1390 = vpack.c.bf16 %v1286, %v1285
        %v1391 = vpack.c.bf16 %v1288, %v1287
        %v1392 = vpack.c.bf16 %v1290, %v1289
        %v1393 = vpack.c.bf16 %v1317, %v1316
        %v1394 = vpack.c.bf16 %v1319, %v1318
        %v1395 = vpack.c.bf16 %v1321, %v1320
        %v1396 = vpack.c.bf16 %v1323, %v1322
        %v1397 = vpack.c.bf16 %v1358, %v1357
        %v1398 = vpack.c.bf16 %v1360, %v1359
        %v1399 = vpack.c.bf16 %v1362, %v1361
        %v1400 = vpack.c.bf16 %v1364, %v1363
        %v1401 = vld [vmem:[#allocation2] sm:$0xff]
        %v1402 = vld [vmem:[#allocation2 + $0x8] sm:$0xff]
        %v1403 = vld [vmem:[#allocation2 + $0x10] sm:$0xf]
        %v1404 = vld [vmem:[#allocation2 + $0x14] sm:$0xff]
        %v1405 = vld [vmem:[#allocation2 + $0x1c] sm:$0xff]
        %v1406 = vld [vmem:[#allocation2 + $0x24] sm:$0xf]
        %v1407 = vld [vmem:[#allocation2 + $0x28] sm:$0xff]
        %v1408 = vld [vmem:[#allocation2 + $0x30] sm:$0xff]
        %v1409 = vld [vmem:[#allocation2 + $0x38] sm:$0xf]
        %v1410 = vld [vmem:[#allocation2 + $0x3c] sm:$0xff]
        %v1411 = vld [vmem:[#allocation2 + $0x44] sm:$0xff]
        %v1412 = vld [vmem:[#allocation2 + $0x4c] sm:$0xf]
        %v1413 = vld [vmem:[#allocation2 + $0x50] sm:$0xff]
        %v1414 = vld [vmem:[#allocation2 + $0x58] sm:$0xff]
        %v1415 = vld [vmem:[#allocation2 + $0x60] sm:$0xf]
        %v1416 = vld [vmem:[#allocation2 + $0x64] sm:$0xff]
        %v1417 = vld [vmem:[#allocation2 + $0x6c] sm:$0xff]
        %v1418 = vld [vmem:[#allocation2 + $0x74] sm:$0xf]
        %v1419 = vld [vmem:[#allocation2 + $0x78] sm:$0xff]
        %v1420 = vld [vmem:[#allocation2 + $0x80] sm:$0xff]
        %v1421 = vld [vmem:[#allocation2 + $0x88] sm:$0xf]
        %v1422 = vld [vmem:[#allocation2 + $0x8c] sm:$0xff]
        %v1423 = vld [vmem:[#allocation2 + $0x94] sm:$0xff]
        %v1424 = vld [vmem:[#allocation2 + $0x9c] sm:$0xf]
        %v1425 = vld [vmem:[%s4] sm:$0xff]
        %v1426 = vld [vmem:[%s4 + $0x8] sm:$0xff]
        %v1427 = vld [vmem:[%s4 + $0x10] sm:$0xff]
        %v1428 = vld [vmem:[%s4 + $0x18] sm:$0xff]
        %v1429 = vld [vmem:[%s4 + $0x20] sm:$0xff]
        %v1430 = vld [vmem:[%s4 + $0x28] sm:$0xff]
        %v1431 = vld [vmem:[%s4 + $0x30] sm:$0xff]
        %v1432 = vld [vmem:[%s4 + $0x38] sm:$0xff]
        %1434 = vset.pattern.permute.xlu0 0
        %1435 = vperm.xlu0 %1434, %v1425
        %v1436 = vpop.permute.xlu0 %1435
        %1439 = vset.pattern.permute.xlu0 0
        %1440 = vperm.xlu0 %1439, %v1426
        %v1441 = vpop.permute.xlu0 %1440
        %1444 = vset.pattern.permute.xlu0 0
        %1445 = vperm.xlu0 %1444, %v1427
        %v1446 = vpop.permute.xlu0 %1445
        %1449 = vset.pattern.permute.xlu0 0
        %1450 = vperm.xlu0 %1449, %v1428
        %v1451 = vpop.permute.xlu0 %1450
        %1454 = vset.pattern.permute.xlu0 0
        %1455 = vperm.xlu0 %1454, %v1429
        %v1456 = vpop.permute.xlu0 %1455
        %1459 = vset.pattern.permute.xlu0 0
        %1460 = vperm.xlu0 %1459, %v1430
        %v1461 = vpop.permute.xlu0 %1460
        %1464 = vset.pattern.permute.xlu0 0
        %1465 = vperm.xlu0 %1464, %v1431
        %v1466 = vpop.permute.xlu0 %1465
        %1469 = vset.pattern.permute.xlu0 0
        %1470 = vperm.xlu0 %1469, %v1432
        %v1471 = vpop.permute.xlu0 %1470
        %v1497 = vunpack.c.l.b16 %v1401
        %v1498 = vunpack.c.h.b16 %v1401
        %v1499 = vunpack.c.l.b16 %v1402
        %v1500 = vunpack.c.h.b16 %v1402
        %v1501 = vunpack.c.l.b16 %v1403
        %v1502 = vunpack.c.l.b16 %v1404
        %v1503 = vunpack.c.h.b16 %v1404
        %v1504 = vunpack.c.l.b16 %v1405
        %v1505 = vunpack.c.h.b16 %v1405
        %v1506 = vunpack.c.l.b16 %v1406
        %v1507 = vunpack.c.l.b16 %v1407
        %v1508 = vunpack.c.h.b16 %v1407
        %v1509 = vunpack.c.l.b16 %v1408
        %v1510 = vunpack.c.h.b16 %v1408
        %v1511 = vunpack.c.l.b16 %v1409
        %v1512 = vunpack.c.l.b16 %v1410
        %v1513 = vunpack.c.h.b16 %v1410
        %v1514 = vunpack.c.l.b16 %v1411
        %v1515 = vunpack.c.h.b16 %v1411
        %v1516 = vunpack.c.l.b16 %v1412
        %v1517 = vunpack.c.l.b16 %v1413
        %v1518 = vunpack.c.h.b16 %v1413
        %v1519 = vunpack.c.l.b16 %v1414
        %v1520 = vunpack.c.h.b16 %v1414
        %v1521 = vunpack.c.l.b16 %v1415
        %v1522 = vunpack.c.l.b16 %v1416
        %v1523 = vunpack.c.h.b16 %v1416
        %v1524 = vunpack.c.l.b16 %v1417
        %v1525 = vunpack.c.h.b16 %v1417
        %v1526 = vunpack.c.l.b16 %v1418
        %v1527 = vunpack.c.l.b16 %v1419
        %v1528 = vunpack.c.h.b16 %v1419
        %v1529 = vunpack.c.l.b16 %v1420
        %v1530 = vunpack.c.h.b16 %v1420
        %v1531 = vunpack.c.l.b16 %v1421
        %v1532 = vunpack.c.l.b16 %v1422
        %v1533 = vunpack.c.h.b16 %v1422
        %v1534 = vunpack.c.l.b16 %v1423
        %v1535 = vunpack.c.h.b16 %v1423
        %v1536 = vunpack.c.l.b16 %v1424
        %v1537 = vpack.c.b16 %v1502, %v1497
        %v1538 = vpack.c.b16 %v1503, %v1498
        %v1539 = vpack.c.b16 %v1504, %v1499
        %v1540 = vpack.c.b16 %v1505, %v1500
        %v1541 = vpack.c.b16 %v1506, %v1501
        %v1542 = vpack.c.b16 %v1512, %v1507
        %v1543 = vpack.c.b16 %v1513, %v1508
        %v1544 = vpack.c.b16 %v1514, %v1509
        %v1545 = vpack.c.b16 %v1515, %v1510
        %v1546 = vpack.c.b16 %v1516, %v1511
        %v1547 = vpack.c.b16 %v1522, %v1517
        %v1548 = vpack.c.b16 %v1523, %v1518
        %v1549 = vpack.c.b16 %v1524, %v1519
        %v1550 = vpack.c.b16 %v1525, %v1520
        %v1551 = vpack.c.b16 %v1526, %v1521
        %v1552 = vpack.c.b16 %v1532, %v1527
        %v1553 = vpack.c.b16 %v1533, %v1528
        %v1554 = vpack.c.b16 %v1534, %v1529
        %v1555 = vpack.c.b16 %v1535, %v1530
        %v1556 = vpack.c.b16 %v1536, %v1531
        %vm1573 = vcmask 523264
        %v1575 = vsel %vm1573, %v1541, 0
        %v1578 = vsel %vm1573, %v1546, 0
        %v1581 = vsel %vm1573, %v1551, 0
        %v1584 = vsel %vm1573, %v1556, 0
        %1586 = vmatpush.bf16.msra.mxu0 %v1372
        %1587 = vmatpush.bf16.msra.mxu0 %v1371
        %1588 = vmatpush.bf16.msra.mxu0 %v1370
        %1589 = vmatpush.bf16.msra.mxu0 %v1369
        %1590 = vmatpush.bf16.msra.mxu0 %v1368
        %1591 = vmatpush.bf16.msra.mxu0 %v1367
        %1592 = vmatpush.bf16.msra.mxu0 %v1366
        %1593 = vmatpush.bf16.msra.mxu0 %v1365
        %1594 = vmatmul.bf16.gmra.mxu0 %v1537
        %v1595 = vpop.f32.mrf.mxu0
        %v1596 = vadd.f32 %v1436, %v1595
        %v1597 = vpop.f32.mrf.mxu0
        %v1598 = vadd.f32 %v1441, %v1597
        %1599 = vmatmul.bf16.gmra.mxu0 %v1542
        %v1600 = vpop.f32.mrf.mxu0
        %v1601 = vadd.f32 %v1446, %v1600
        %v1602 = vpop.f32.mrf.mxu0
        %v1603 = vadd.f32 %v1451, %v1602
        %1604 = vmatmul.bf16.gmra.mxu0 %v1547
        %v1605 = vpop.f32.mrf.mxu0
        %v1606 = vadd.f32 %v1456, %v1605
        %v1607 = vpop.f32.mrf.mxu0
        %v1608 = vadd.f32 %v1461, %v1607
        %1609 = vmatmul.bf16.gmra.mxu0 %v1552
        %v1610 = vpop.f32.mrf.mxu0
        %v1611 = vadd.f32 %v1466, %v1610
        %v1612 = vpop.f32.mrf.mxu0
        %v1613 = vadd.f32 %v1471, %v1612
        %1614 = vdwg.mxu0
        %1615 = vmatpush.bf16.msra.mxu0 %v1380
        %1616 = vmatpush.bf16.msra.mxu0 %v1379
        %1617 = vmatpush.bf16.msra.mxu0 %v1378
        %1618 = vmatpush.bf16.msra.mxu0 %v1377
        %1619 = vmatpush.bf16.msra.mxu0 %v1376
        %1620 = vmatpush.bf16.msra.mxu0 %v1375
        %1621 = vmatpush.bf16.msra.mxu0 %v1374
        %1622 = vmatpush.bf16.msra.mxu0 %v1373
        %1623 = vmatmul.bf16.gmra.mxu0 %v1538
        %v1624 = vpop.f32.mrf.mxu0
        %v1625 = vadd.f32 %v1596, %v1624
        %v1626 = vpop.f32.mrf.mxu0
        %v1627 = vadd.f32 %v1598, %v1626
        %1628 = vmatmul.bf16.gmra.mxu0 %v1543
        %v1629 = vpop.f32.mrf.mxu0
        %v1630 = vadd.f32 %v1601, %v1629
        %v1631 = vpop.f32.mrf.mxu0
        %v1632 = vadd.f32 %v1603, %v1631
        %1633 = vmatmul.bf16.gmra.mxu0 %v1548
        %v1634 = vpop.f32.mrf.mxu0
        %v1635 = vadd.f32 %v1606, %v1634
        %v1636 = vpop.f32.mrf.mxu0
        %v1637 = vadd.f32 %v1608, %v1636
        %1638 = vmatmul.bf16.gmra.mxu0 %v1553
        %v1639 = vpop.f32.mrf.mxu0
        %v1640 = vadd.f32 %v1611, %v1639
        %v1641 = vpop.f32.mrf.mxu0
        %v1642 = vadd.f32 %v1613, %v1641
        %1643 = vdwg.mxu0
        %1644 = vmatpush.bf16.msra.mxu0 %v1388
        %1645 = vmatpush.bf16.msra.mxu0 %v1387
        %1646 = vmatpush.bf16.msra.mxu0 %v1386
        %1647 = vmatpush.bf16.msra.mxu0 %v1385
        %1648 = vmatpush.bf16.msra.mxu0 %v1384
        %1649 = vmatpush.bf16.msra.mxu0 %v1383
        %1650 = vmatpush.bf16.msra.mxu0 %v1382
        %1651 = vmatpush.bf16.msra.mxu0 %v1381
        %1652 = vmatmul.bf16.gmra.mxu0 %v1539
        %v1653 = vpop.f32.mrf.mxu0
        %v1654 = vadd.f32 %v1625, %v1653
        %v1655 = vpop.f32.mrf.mxu0
        %v1656 = vadd.f32 %v1627, %v1655
        %1657 = vmatmul.bf16.gmra.mxu0 %v1544
        %v1658 = vpop.f32.mrf.mxu0
        %v1659 = vadd.f32 %v1630, %v1658
        %v1660 = vpop.f32.mrf.mxu0
        %v1661 = vadd.f32 %v1632, %v1660
        %1662 = vmatmul.bf16.gmra.mxu0 %v1549
        %v1663 = vpop.f32.mrf.mxu0
        %v1664 = vadd.f32 %v1635, %v1663
        %v1665 = vpop.f32.mrf.mxu0
        %v1666 = vadd.f32 %v1637, %v1665
        %1667 = vmatmul.bf16.gmra.mxu0 %v1554
        %v1668 = vpop.f32.mrf.mxu0
        %v1669 = vadd.f32 %v1640, %v1668
        %v1670 = vpop.f32.mrf.mxu0
        %v1671 = vadd.f32 %v1642, %v1670
        %1672 = vdwg.mxu0
        %1673 = vmatpush.bf16.msra.mxu0 %v1396
        %1674 = vmatpush.bf16.msra.mxu0 %v1395
        %1675 = vmatpush.bf16.msra.mxu0 %v1394
        %1676 = vmatpush.bf16.msra.mxu0 %v1393
        %1677 = vmatpush.bf16.msra.mxu0 %v1392
        %1678 = vmatpush.bf16.msra.mxu0 %v1391
        %1679 = vmatpush.bf16.msra.mxu0 %v1390
        %1680 = vmatpush.bf16.msra.mxu0 %v1389
        %1681 = vmatmul.bf16.gmra.mxu0 %v1540
        %v1682 = vpop.f32.mrf.mxu0
        %v1683 = vadd.f32 %v1654, %v1682
        %v1684 = vpop.f32.mrf.mxu0
        %v1685 = vadd.f32 %v1656, %v1684
        %1686 = vmatmul.bf16.gmra.mxu0 %v1545
        %v1687 = vpop.f32.mrf.mxu0
        %v1688 = vadd.f32 %v1659, %v1687
        %v1689 = vpop.f32.mrf.mxu0
        %v1690 = vadd.f32 %v1661, %v1689
        %1691 = vmatmul.bf16.gmra.mxu0 %v1550
        %v1692 = vpop.f32.mrf.mxu0
        %v1693 = vadd.f32 %v1664, %v1692
        %v1694 = vpop.f32.mrf.mxu0
        %v1695 = vadd.f32 %v1666, %v1694
        %1696 = vmatmul.bf16.gmra.mxu0 %v1555
        %v1697 = vpop.f32.mrf.mxu0
        %v1698 = vadd.f32 %v1669, %v1697
        %v1699 = vpop.f32.mrf.mxu0
        %v1700 = vadd.f32 %v1671, %v1699
        %1701 = vdwg.mxu0
        %1702 = vmatpush.bf16.msra.mxu0 0
        %1703 = vmatpush.bf16.msra.mxu0 0
        %1704 = vmatpush.bf16.msra.mxu0 0
        %1705 = vmatpush.bf16.msra.mxu0 0
        %1706 = vmatpush.bf16.msra.mxu0 %v1400
        %1707 = vmatpush.bf16.msra.mxu0 %v1399
        %1708 = vmatpush.bf16.msra.mxu0 %v1398
        %1709 = vmatpush.bf16.msra.mxu0 %v1397
        %1710 = vmatmul.bf16.gmra.mxu0 %v1575
        %v1711 = vpop.f32.mrf.mxu0
        %v1712 = vadd.f32 %v1683, %v1711
        %v1713 = vpop.f32.mrf.mxu0
        %v1714 = vadd.f32 %v1685, %v1713
        %1715 = vmatmul.bf16.gmra.mxu0 %v1578
        %v1716 = vpop.f32.mrf.mxu0
        %v1717 = vadd.f32 %v1688, %v1716
        %v1718 = vpop.f32.mrf.mxu0
        %v1719 = vadd.f32 %v1690, %v1718
        %1720 = vmatmul.bf16.gmra.mxu0 %v1581
        %v1721 = vpop.f32.mrf.mxu0
        %v1722 = vadd.f32 %v1693, %v1721
        %v1723 = vpop.f32.mrf.mxu0
        %v1724 = vadd.f32 %v1695, %v1723
        %1725 = vmatmul.bf16.gmra.mxu0 %v1584
        %v1726 = vpop.f32.mrf.mxu0
        %v1727 = vadd.f32 %v1698, %v1726
        %v1728 = vpop.f32.mrf.mxu0
        %v1729 = vadd.f32 %v1700, %v1728
        %1730 = vdwg.mxu0
        %v1731 = vxor.u32 %v1712, 2147483648
        %v1732 = vxor.u32 %v1714, 2147483648
        %v1733 = vxor.u32 %v1717, 2147483648
        %v1734 = vxor.u32 %v1719, 2147483648
        %v1735 = vxor.u32 %v1722, 2147483648
        %v1736 = vxor.u32 %v1724, 2147483648
        %v1737 = vxor.u32 %v1727, 2147483648
        %v1738 = vxor.u32 %v1729, 2147483648
        %v1739 = vmul.f32 %v1731, 1.442695
        %v1740 = vpow.pop %v1739
        %v1741 = vmul.f32 %v1732, 1.442695
        %v1742 = vpow.pop %v1741
        %v1743 = vmul.f32 %v1733, 1.442695
        %v1744 = vpow.pop %v1743
        %v1745 = vmul.f32 %v1734, 1.442695
        %v1746 = vpow.pop %v1745
        %v1747 = vmul.f32 %v1735, 1.442695
        %v1748 = vpow.pop %v1747
        %v1749 = vmul.f32 %v1736, 1.442695
        %v1750 = vpow.pop %v1749
        %v1751 = vmul.f32 %v1737, 1.442695
        %v1752 = vpow.pop %v1751
        %v1753 = vmul.f32 %v1738, 1.442695
        %v1754 = vpow.pop %v1753
        %v1755 = vadd.f32 %v1740, 1.0
        %v1756 = vadd.f32 %v1742, 1.0
        %v1757 = vadd.f32 %v1744, 1.0
        %v1758 = vadd.f32 %v1746, 1.0
        %v1759 = vadd.f32 %v1748, 1.0
        %v1760 = vadd.f32 %v1750, 1.0
        %v1761 = vadd.f32 %v1752, 1.0
        %v1762 = vadd.f32 %v1754, 1.0
        %v1763 = vrcp.pop %v1755
        %v1764 = vmul.f32 %v1755, %v1763
        %v1765 = vsub.f32 1.0, %v1764
        %v1766 = vmul.f32 %v1763, %v1765
        %v1767 = vadd.f32 %v1763, %v1766
        %vm1768 = vweird.f32 %v1755
        %vm1769 = vweird.f32 %v1763
        %vm1770 = vmor %vm1768, %vm1769
        %v1771 = vsel %vm1770, %v1763, %v1767
        %v1772 = vand.u32 2147483647, %v1755
        %vm1773 = vcmp.eq.f32.partialorder %v1772, 8.507059e+37
        %v1774 = vand.u32 %v1755, 2147483648
        %v1775 = vor.u32 1.1754944e-38, %v1774
        %v1776 = vsel %vm1773, %v1775, %v1771
        %v1777 = vmul.f32 1.0, %v1776
        %v1778 = vrcp.pop %v1756
        %v1779 = vmul.f32 %v1756, %v1778
        %v1780 = vsub.f32 1.0, %v1779
        %v1781 = vmul.f32 %v1778, %v1780
        %v1782 = vadd.f32 %v1778, %v1781
        %vm1783 = vweird.f32 %v1756
        %vm1784 = vweird.f32 %v1778
        %vm1785 = vmor %vm1783, %vm1784
        %v1786 = vsel %vm1785, %v1778, %v1782
        %v1787 = vand.u32 2147483647, %v1756
        %vm1788 = vcmp.eq.f32.partialorder %v1787, 8.507059e+37
        %v1789 = vand.u32 %v1756, 2147483648
        %v1790 = vor.u32 1.1754944e-38, %v1789
        %v1791 = vsel %vm1788, %v1790, %v1786
        %v1792 = vmul.f32 1.0, %v1791
        %v1793 = vrcp.pop %v1757
        %v1794 = vmul.f32 %v1757, %v1793
        %v1795 = vsub.f32 1.0, %v1794
        %v1796 = vmul.f32 %v1793, %v1795
        %v1797 = vadd.f32 %v1793, %v1796
        %vm1798 = vweird.f32 %v1757
        %vm1799 = vweird.f32 %v1793
        %vm1800 = vmor %vm1798, %vm1799
        %v1801 = vsel %vm1800, %v1793, %v1797
        %v1802 = vand.u32 2147483647, %v1757
        %vm1803 = vcmp.eq.f32.partialorder %v1802, 8.507059e+37
        %v1804 = vand.u32 %v1757, 2147483648
        %v1805 = vor.u32 1.1754944e-38, %v1804
        %v1806 = vsel %vm1803, %v1805, %v1801
        %v1807 = vmul.f32 1.0, %v1806
        %v1808 = vrcp.pop %v1758
        %v1809 = vmul.f32 %v1758, %v1808
        %v1810 = vsub.f32 1.0, %v1809
        %v1811 = vmul.f32 %v1808, %v1810
        %v1812 = vadd.f32 %v1808, %v1811
        %vm1813 = vweird.f32 %v1758
        %vm1814 = vweird.f32 %v1808
        %vm1815 = vmor %vm1813, %vm1814
        %v1816 = vsel %vm1815, %v1808, %v1812
        %v1817 = vand.u32 2147483647, %v1758
        %vm1818 = vcmp.eq.f32.partialorder %v1817, 8.507059e+37
        %v1819 = vand.u32 %v1758, 2147483648
        %v1820 = vor.u32 1.1754944e-38, %v1819
        %v1821 = vsel %vm1818, %v1820, %v1816
        %v1822 = vmul.f32 1.0, %v1821
        %v1823 = vrcp.pop %v1759
        %v1824 = vmul.f32 %v1759, %v1823
        %v1825 = vsub.f32 1.0, %v1824
        %v1826 = vmul.f32 %v1823, %v1825
        %v1827 = vadd.f32 %v1823, %v1826
        %vm1828 = vweird.f32 %v1759
        %vm1829 = vweird.f32 %v1823
        %vm1830 = vmor %vm1828, %vm1829
        %v1831 = vsel %vm1830, %v1823, %v1827
        %v1832 = vand.u32 2147483647, %v1759
        %vm1833 = vcmp.eq.f32.partialorder %v1832, 8.507059e+37
        %v1834 = vand.u32 %v1759, 2147483648
        %v1835 = vor.u32 1.1754944e-38, %v1834
        %v1836 = vsel %vm1833, %v1835, %v1831
        %v1837 = vmul.f32 1.0, %v1836
        %v1838 = vrcp.pop %v1760
        %v1839 = vmul.f32 %v1760, %v1838
        %v1840 = vsub.f32 1.0, %v1839
        %v1841 = vmul.f32 %v1838, %v1840
        %v1842 = vadd.f32 %v1838, %v1841
        %vm1843 = vweird.f32 %v1760
        %vm1844 = vweird.f32 %v1838
        %vm1845 = vmor %vm1843, %vm1844
        %v1846 = vsel %vm1845, %v1838, %v1842
        %v1847 = vand.u32 2147483647, %v1760
        %vm1848 = vcmp.eq.f32.partialorder %v1847, 8.507059e+37
        %v1849 = vand.u32 %v1760, 2147483648
        %v1850 = vor.u32 1.1754944e-38, %v1849
        %v1851 = vsel %vm1848, %v1850, %v1846
        %v1852 = vmul.f32 1.0, %v1851
        %v1853 = vrcp.pop %v1761
        %v1854 = vmul.f32 %v1761, %v1853
        %v1855 = vsub.f32 1.0, %v1854
        %v1856 = vmul.f32 %v1853, %v1855
        %v1857 = vadd.f32 %v1853, %v1856
        %vm1858 = vweird.f32 %v1761
        %vm1859 = vweird.f32 %v1853
        %vm1860 = vmor %vm1858, %vm1859
        %v1861 = vsel %vm1860, %v1853, %v1857
        %v1862 = vand.u32 2147483647, %v1761
        %vm1863 = vcmp.eq.f32.partialorder %v1862, 8.507059e+37
        %v1864 = vand.u32 %v1761, 2147483648
        %v1865 = vor.u32 1.1754944e-38, %v1864
        %v1866 = vsel %vm1863, %v1865, %v1861
        %v1867 = vmul.f32 1.0, %v1866
        %v1868 = vrcp.pop %v1762
        %v1869 = vmul.f32 %v1762, %v1868
        %v1870 = vsub.f32 1.0, %v1869
        %v1871 = vmul.f32 %v1868, %v1870
        %v1872 = vadd.f32 %v1868, %v1871
        %vm1873 = vweird.f32 %v1762
        %vm1874 = vweird.f32 %v1868
        %vm1875 = vmor %vm1873, %vm1874
        %v1876 = vsel %vm1875, %v1868, %v1872
        %v1877 = vand.u32 2147483647, %v1762
        %vm1878 = vcmp.eq.f32.partialorder %v1877, 8.507059e+37
        %v1879 = vand.u32 %v1762, 2147483648
        %v1880 = vor.u32 1.1754944e-38, %v1879
        %v1881 = vsel %vm1878, %v1880, %v1876
        %v1882 = vmul.f32 1.0, %v1881
        %v1883 = vmul.f32 %v1712, %v1777
        %v1884 = vmul.f32 %v1714, %v1792
        %v1885 = vmul.f32 %v1717, %v1807
        %v1886 = vmul.f32 %v1719, %v1822
        %v1887 = vmul.f32 %v1722, %v1837
        %v1888 = vmul.f32 %v1724, %v1852
        %v1889 = vmul.f32 %v1727, %v1867
        %v1890 = vmul.f32 %v1729, %v1882
        %1899 = vrot.lane.b32.xlu0 %v1883, 9
        %v1900 = vpop.permute.xlu0 %1899
        %1901 = vrot.lane.b32.xlu0 %v1884, 9
        %v1902 = vpop.permute.xlu0 %1901
        %1903 = vrot.lane.b32.xlu0 %v1885, 9
        %v1904 = vpop.permute.xlu0 %1903
        %1905 = vrot.lane.b32.xlu0 %v1886, 9
        %v1906 = vpop.permute.xlu0 %1905
        %1907 = vrot.lane.b32.xlu0 %v1887, 9
        %v1908 = vpop.permute.xlu0 %1907
        %1909 = vrot.lane.b32.xlu0 %v1888, 9
        %v1910 = vpop.permute.xlu0 %1909
        %1911 = vrot.lane.b32.xlu0 %v1889, 9
        %v1912 = vpop.permute.xlu0 %1911
        %1913 = vrot.lane.b32.xlu0 %v1890, 9
        %v1914 = vpop.permute.xlu0 %1913
        %v1923 = vsel %vm1078, 0.0, %v1900
        %v1924 = vsel %vm1078, 0.0, %v1902
        %v1925 = vsel %vm1078, 0.0, %v1904
        %v1926 = vsel %vm1078, 0.0, %v1906
        %v1927 = vsel %vm1078, 0.0, %v1908
        %v1928 = vsel %vm1078, 0.0, %v1910
        %v1929 = vsel %vm1078, 0.0, %v1912
        %v1930 = vsel %vm1078, 0.0, %v1914
        %v1931 = vmul.f32 %v1923, %v882
        %v1932 = vmul.f32 %v1924, %v882
        %v1933 = vmul.f32 %v1925, %v882
        %v1934 = vmul.f32 %v1926, %v882
        %v1935 = vmul.f32 %v1927, %v882
        %v1936 = vmul.f32 %v1928, %v882
        %v1937 = vmul.f32 %v1929, %v882
        %v1938 = vmul.f32 %v1930, %v882
        %1939 = vrot.lane.b32.xlu0 %v1883, 8
        %v1940 = vpop.permute.xlu0 %1939
        %1941 = vrot.lane.b32.xlu0 %v1884, 8
        %v1942 = vpop.permute.xlu0 %1941
        %1943 = vrot.lane.b32.xlu0 %v1885, 8
        %v1944 = vpop.permute.xlu0 %1943
        %1945 = vrot.lane.b32.xlu0 %v1886, 8
        %v1946 = vpop.permute.xlu0 %1945
        %1947 = vrot.lane.b32.xlu0 %v1887, 8
        %v1948 = vpop.permute.xlu0 %1947
        %1949 = vrot.lane.b32.xlu0 %v1888, 8
        %v1950 = vpop.permute.xlu0 %1949
        %1951 = vrot.lane.b32.xlu0 %v1889, 8
        %v1952 = vpop.permute.xlu0 %1951
        %1953 = vrot.lane.b32.xlu0 %v1890, 8
        %v1954 = vpop.permute.xlu0 %1953
        %v1963 = vsel %vm820, 0.0, %v1940
        %v1964 = vsel %vm820, 0.0, %v1942
        %v1965 = vsel %vm820, 0.0, %v1944
        %v1966 = vsel %vm820, 0.0, %v1946
        %v1967 = vsel %vm820, 0.0, %v1948
        %v1968 = vsel %vm820, 0.0, %v1950
        %v1969 = vsel %vm820, 0.0, %v1952
        %v1970 = vsel %vm820, 0.0, %v1954
        %1971 = vrot.lane.b32.xlu0 %v1883, 7
        %v1972 = vpop.permute.xlu0 %1971
        %1973 = vrot.lane.b32.xlu0 %v1884, 7
        %v1974 = vpop.permute.xlu0 %1973
        %1975 = vrot.lane.b32.xlu0 %v1885, 7
        %v1976 = vpop.permute.xlu0 %1975
        %1977 = vrot.lane.b32.xlu0 %v1886, 7
        %v1978 = vpop.permute.xlu0 %1977
        %1979 = vrot.lane.b32.xlu0 %v1887, 7
        %v1980 = vpop.permute.xlu0 %1979
        %1981 = vrot.lane.b32.xlu0 %v1888, 7
        %v1982 = vpop.permute.xlu0 %1981
        %1983 = vrot.lane.b32.xlu0 %v1889, 7
        %v1984 = vpop.permute.xlu0 %1983
        %1985 = vrot.lane.b32.xlu0 %v1890, 7
        %v1986 = vpop.permute.xlu0 %1985
        %v1995 = vsel %vm1151, 0.0, %v1972
        %v1996 = vsel %vm1151, 0.0, %v1974
        %v1997 = vsel %vm1151, 0.0, %v1976
        %v1998 = vsel %vm1151, 0.0, %v1978
        %v1999 = vsel %vm1151, 0.0, %v1980
        %v2000 = vsel %vm1151, 0.0, %v1982
        %v2001 = vsel %vm1151, 0.0, %v1984
        %v2002 = vsel %vm1151, 0.0, %v1986
        %v2003 = vmul.f32 %v1995, %v885
        %v2004 = vmul.f32 %v1996, %v885
        %v2005 = vmul.f32 %v1997, %v885
        %v2006 = vmul.f32 %v1998, %v885
        %v2007 = vmul.f32 %v1999, %v885
        %v2008 = vmul.f32 %v2000, %v885
        %v2009 = vmul.f32 %v2001, %v885
        %v2010 = vmul.f32 %v2002, %v885
        %2011 = vrot.lane.b32.xlu0 %v1883, 1
        %v2012 = vpop.permute.xlu0 %2011
        %2013 = vrot.lane.b32.xlu0 %v1884, 1
        %v2014 = vpop.permute.xlu0 %2013
        %2015 = vrot.lane.b32.xlu0 %v1885, 1
        %v2016 = vpop.permute.xlu0 %2015
        %2017 = vrot.lane.b32.xlu0 %v1886, 1
        %v2018 = vpop.permute.xlu0 %2017
        %2019 = vrot.lane.b32.xlu0 %v1887, 1
        %v2020 = vpop.permute.xlu0 %2019
        %2021 = vrot.lane.b32.xlu0 %v1888, 1
        %v2022 = vpop.permute.xlu0 %2021
        %2023 = vrot.lane.b32.xlu0 %v1889, 1
        %v2024 = vpop.permute.xlu0 %2023
        %2025 = vrot.lane.b32.xlu0 %v1890, 1
        %v2026 = vpop.permute.xlu0 %2025
        %v2035 = vsel %vm1192, 0.0, %v2012
        %v2036 = vsel %vm1192, 0.0, %v2014
        %v2037 = vsel %vm1192, 0.0, %v2016
        %v2038 = vsel %vm1192, 0.0, %v2018
        %v2039 = vsel %vm1192, 0.0, %v2020
        %v2040 = vsel %vm1192, 0.0, %v2022
        %v2041 = vsel %vm1192, 0.0, %v2024
        %v2042 = vsel %vm1192, 0.0, %v2026
        %v2043 = vmul.f32 %v2035, %v882
        %v2044 = vmul.f32 %v2036, %v882
        %v2045 = vmul.f32 %v2037, %v882
        %v2046 = vmul.f32 %v2038, %v882
        %v2047 = vmul.f32 %v2039, %v882
        %v2048 = vmul.f32 %v2040, %v882
        %v2049 = vmul.f32 %v2041, %v882
        %v2050 = vmul.f32 %v2042, %v882
        %2051 = vrot.lane.b32.xlu0 %v1883, 127
        %v2052 = vpop.permute.xlu0 %2051
        %2053 = vrot.lane.b32.xlu0 %v1884, 127
        %v2054 = vpop.permute.xlu0 %2053
        %2055 = vrot.lane.b32.xlu0 %v1885, 127
        %v2056 = vpop.permute.xlu0 %2055
        %2057 = vrot.lane.b32.xlu0 %v1886, 127
        %v2058 = vpop.permute.xlu0 %2057
        %2059 = vrot.lane.b32.xlu0 %v1887, 127
        %v2060 = vpop.permute.xlu0 %2059
        %2061 = vrot.lane.b32.xlu0 %v1888, 127
        %v2062 = vpop.permute.xlu0 %2061
        %2063 = vrot.lane.b32.xlu0 %v1889, 127
        %v2064 = vpop.permute.xlu0 %2063
        %2065 = vrot.lane.b32.xlu0 %v1890, 127
        %v2066 = vpop.permute.xlu0 %2065
        %v2075 = vsel %vm1233, %v2052, 0.0
        %v2076 = vsel %vm1233, %v2054, 0.0
        %v2077 = vsel %vm1233, %v2056, 0.0
        %v2078 = vsel %vm1233, %v2058, 0.0
        %v2079 = vsel %vm1233, %v2060, 0.0
        %v2080 = vsel %vm1233, %v2062, 0.0
        %v2081 = vsel %vm1233, %v2064, 0.0
        %v2082 = vsel %vm1233, %v2066, 0.0
        %v2083 = vmul.f32 %v2075, %v885
        %v2084 = vmul.f32 %v2076, %v885
        %v2085 = vmul.f32 %v2077, %v885
        %v2086 = vmul.f32 %v2078, %v885
        %v2087 = vmul.f32 %v2079, %v885
        %v2088 = vmul.f32 %v2080, %v885
        %v2089 = vmul.f32 %v2081, %v885
        %v2090 = vmul.f32 %v2082, %v885
        %2091 = vrot.lane.b32.xlu0 %v1883, 121
        %v2092 = vpop.permute.xlu0 %2091
        %2093 = vrot.lane.b32.xlu0 %v1884, 121
        %v2094 = vpop.permute.xlu0 %2093
        %2095 = vrot.lane.b32.xlu0 %v1885, 121
        %v2096 = vpop.permute.xlu0 %2095
        %2097 = vrot.lane.b32.xlu0 %v1886, 121
        %v2098 = vpop.permute.xlu0 %2097
        %2099 = vrot.lane.b32.xlu0 %v1887, 121
        %v2100 = vpop.permute.xlu0 %2099
        %2101 = vrot.lane.b32.xlu0 %v1888, 121
        %v2102 = vpop.permute.xlu0 %2101
        %2103 = vrot.lane.b32.xlu0 %v1889, 121
        %v2104 = vpop.permute.xlu0 %2103
        %2105 = vrot.lane.b32.xlu0 %v1890, 121
        %v2106 = vpop.permute.xlu0 %2105
        %v2115 = vsel %vm1274, %v2092, 0.0
        %v2116 = vsel %vm1274, %v2094, 0.0
        %v2117 = vsel %vm1274, %v2096, 0.0
        %v2118 = vsel %vm1274, %v2098, 0.0
        %v2119 = vsel %vm1274, %v2100, 0.0
        %v2120 = vsel %vm1274, %v2102, 0.0
        %v2121 = vsel %vm1274, %v2104, 0.0
        %v2122 = vsel %vm1274, %v2106, 0.0
        %v2123 = vmul.f32 %v2115, %v882
        %v2124 = vmul.f32 %v2116, %v882
        %v2125 = vmul.f32 %v2117, %v882
        %v2126 = vmul.f32 %v2118, %v882
        %v2127 = vmul.f32 %v2119, %v882
        %v2128 = vmul.f32 %v2120, %v882
        %v2129 = vmul.f32 %v2121, %v882
        %v2130 = vmul.f32 %v2122, %v882
        %2131 = vrot.lane.b32.xlu0 %v1883, 120
        %v2132 = vpop.permute.xlu0 %2131
        %2133 = vrot.lane.b32.xlu0 %v1884, 120
        %v2134 = vpop.permute.xlu0 %2133
        %2135 = vrot.lane.b32.xlu0 %v1885, 120
        %v2136 = vpop.permute.xlu0 %2135
        %2137 = vrot.lane.b32.xlu0 %v1886, 120
        %v2138 = vpop.permute.xlu0 %2137
        %2139 = vrot.lane.b32.xlu0 %v1887, 120
        %v2140 = vpop.permute.xlu0 %2139
        %2141 = vrot.lane.b32.xlu0 %v1888, 120
        %v2142 = vpop.permute.xlu0 %2141
        %2143 = vrot.lane.b32.xlu0 %v1889, 120
        %v2144 = vpop.permute.xlu0 %2143
        %2145 = vrot.lane.b32.xlu0 %v1890, 120
        %v2146 = vpop.permute.xlu0 %2145
        %v2155 = vsel %vm1315, %v2132, 0.0
        %v2156 = vsel %vm1315, %v2134, 0.0
        %v2157 = vsel %vm1315, %v2136, 0.0
        %v2158 = vsel %vm1315, %v2138, 0.0
        %v2159 = vsel %vm1315, %v2140, 0.0
        %v2160 = vsel %vm1315, %v2142, 0.0
        %v2161 = vsel %vm1315, %v2144, 0.0
        %v2162 = vsel %vm1315, %v2146, 0.0
        %2163 = vrot.lane.b32.xlu0 %v1883, 119
        %v2164 = vpop.permute.xlu0 %2163
        %2165 = vrot.lane.b32.xlu0 %v1884, 119
        %v2166 = vpop.permute.xlu0 %2165
        %2167 = vrot.lane.b32.xlu0 %v1885, 119
        %v2168 = vpop.permute.xlu0 %2167
        %2169 = vrot.lane.b32.xlu0 %v1886, 119
        %v2170 = vpop.permute.xlu0 %2169
        %2171 = vrot.lane.b32.xlu0 %v1887, 119
        %v2172 = vpop.permute.xlu0 %2171
        %2173 = vrot.lane.b32.xlu0 %v1888, 119
        %v2174 = vpop.permute.xlu0 %2173
        %2175 = vrot.lane.b32.xlu0 %v1889, 119
        %v2176 = vpop.permute.xlu0 %2175
        %2177 = vrot.lane.b32.xlu0 %v1890, 119
        %v2178 = vpop.permute.xlu0 %2177
        %v2187 = vsel %vm1348, %v2164, 0.0
        %v2188 = vsel %vm1348, %v2166, 0.0
        %v2189 = vsel %vm1348, %v2168, 0.0
        %v2190 = vsel %vm1348, %v2170, 0.0
        %v2191 = vsel %vm1348, %v2172, 0.0
        %v2192 = vsel %vm1348, %v2174, 0.0
        %v2193 = vsel %vm1348, %v2176, 0.0
        %v2194 = vsel %vm1348, %v2178, 0.0
        %v2195 = vmul.f32 %v2187, %v885
        %v2196 = vmul.f32 %v2188, %v885
        %v2197 = vmul.f32 %v2189, %v885
        %v2198 = vmul.f32 %v2190, %v885
        %v2199 = vmul.f32 %v2191, %v885
        %v2200 = vmul.f32 %v2192, %v885
        %v2201 = vmul.f32 %v2193, %v885
        %v2202 = vmul.f32 %v2194, %v885
        %v2203 = vpack.c.bf16 %v1932, %v1931
        %v2204 = vpack.c.bf16 %v1934, %v1933
        %v2205 = vpack.c.bf16 %v1936, %v1935
        %v2206 = vpack.c.bf16 %v1938, %v1937
        %v2207 = vpack.c.bf16 %v1964, %v1963
        %v2208 = vpack.c.bf16 %v1966, %v1965
        %v2209 = vpack.c.bf16 %v1968, %v1967
        %v2210 = vpack.c.bf16 %v1970, %v1969
        %v2211 = vpack.c.bf16 %v2004, %v2003
        %v2212 = vpack.c.bf16 %v2006, %v2005
        %v2213 = vpack.c.bf16 %v2008, %v2007
        %v2214 = vpack.c.bf16 %v2010, %v2009
        %v2215 = vpack.c.bf16 %v2044, %v2043
        %v2216 = vpack.c.bf16 %v2046, %v2045
        %v2217 = vpack.c.bf16 %v2048, %v2047
        %v2218 = vpack.c.bf16 %v2050, %v2049
        %v2219 = vpack.c.bf16 %v1884, %v1883
        %v2220 = vpack.c.bf16 %v1886, %v1885
        %v2221 = vpack.c.bf16 %v1888, %v1887
        %v2222 = vpack.c.bf16 %v1890, %v1889
        %v2223 = vpack.c.bf16 %v2084, %v2083
        %v2224 = vpack.c.bf16 %v2086, %v2085
        %v2225 = vpack.c.bf16 %v2088, %v2087
        %v2226 = vpack.c.bf16 %v2090, %v2089
        %v2227 = vpack.c.bf16 %v2124, %v2123
        %v2228 = vpack.c.bf16 %v2126, %v2125
        %v2229 = vpack.c.bf16 %v2128, %v2127
        %v2230 = vpack.c.bf16 %v2130, %v2129
        %v2231 = vpack.c.bf16 %v2156, %v2155
        %v2232 = vpack.c.bf16 %v2158, %v2157
        %v2233 = vpack.c.bf16 %v2160, %v2159
        %v2234 = vpack.c.bf16 %v2162, %v2161
        %v2235 = vpack.c.bf16 %v2196, %v2195
        %v2236 = vpack.c.bf16 %v2198, %v2197
        %v2237 = vpack.c.bf16 %v2200, %v2199
        %v2238 = vpack.c.bf16 %v2202, %v2201
        %v2239 = vld [vmem:[#allocation4] sm:$0xff]
        %v2240 = vld [vmem:[#allocation4 + $0x8] sm:$0xff]
        %v2241 = vld [vmem:[#allocation4 + $0x10] sm:$0xf]
        %v2242 = vld [vmem:[#allocation4 + $0x14] sm:$0xff]
        %v2243 = vld [vmem:[#allocation4 + $0x1c] sm:$0xff]
        %v2244 = vld [vmem:[#allocation4 + $0x24] sm:$0xf]
        %v2245 = vld [vmem:[#allocation4 + $0x28] sm:$0xff]
        %v2246 = vld [vmem:[#allocation4 + $0x30] sm:$0xff]
        %v2247 = vld [vmem:[#allocation4 + $0x38] sm:$0xf]
        %v2248 = vld [vmem:[#allocation4 + $0x3c] sm:$0xff]
        %v2249 = vld [vmem:[#allocation4 + $0x44] sm:$0xff]
        %v2250 = vld [vmem:[#allocation4 + $0x4c] sm:$0xf]
        %v2251 = vld [vmem:[#allocation4 + $0x50] sm:$0xff]
        %v2252 = vld [vmem:[#allocation4 + $0x58] sm:$0xff]
        %v2253 = vld [vmem:[#allocation4 + $0x60] sm:$0xf]
        %v2254 = vld [vmem:[#allocation4 + $0x64] sm:$0xff]
        %v2255 = vld [vmem:[#allocation4 + $0x6c] sm:$0xff]
        %v2256 = vld [vmem:[#allocation4 + $0x74] sm:$0xf]
        %v2257 = vld [vmem:[#allocation4 + $0x78] sm:$0xff]
        %v2258 = vld [vmem:[#allocation4 + $0x80] sm:$0xff]
        %v2259 = vld [vmem:[#allocation4 + $0x88] sm:$0xf]
        %v2260 = vld [vmem:[#allocation4 + $0x8c] sm:$0xff]
        %v2261 = vld [vmem:[#allocation4 + $0x94] sm:$0xff]
        %v2262 = vld [vmem:[#allocation4 + $0x9c] sm:$0xf]
        %v2263 = vld [vmem:[%s6] sm:$0xff]
        %v2264 = vld [vmem:[%s6 + $0x8] sm:$0xff]
        %v2265 = vld [vmem:[%s6 + $0x10] sm:$0xff]
        %v2266 = vld [vmem:[%s6 + $0x18] sm:$0xff]
        %v2267 = vld [vmem:[%s6 + $0x20] sm:$0xff]
        %v2268 = vld [vmem:[%s6 + $0x28] sm:$0xff]
        %v2269 = vld [vmem:[%s6 + $0x30] sm:$0xff]
        %v2270 = vld [vmem:[%s6 + $0x38] sm:$0xff]
        %2272 = vset.pattern.permute.xlu0 0
        %2273 = vperm.xlu0 %2272, %v2263
        %v2274 = vpop.permute.xlu0 %2273
        %2277 = vset.pattern.permute.xlu0 0
        %2278 = vperm.xlu0 %2277, %v2264
        %v2279 = vpop.permute.xlu0 %2278
        %2282 = vset.pattern.permute.xlu0 0
        %2283 = vperm.xlu0 %2282, %v2265
        %v2284 = vpop.permute.xlu0 %2283
        %2287 = vset.pattern.permute.xlu0 0
        %2288 = vperm.xlu0 %2287, %v2266
        %v2289 = vpop.permute.xlu0 %2288
        %2292 = vset.pattern.permute.xlu0 0
        %2293 = vperm.xlu0 %2292, %v2267
        %v2294 = vpop.permute.xlu0 %2293
        %2297 = vset.pattern.permute.xlu0 0
        %2298 = vperm.xlu0 %2297, %v2268
        %v2299 = vpop.permute.xlu0 %2298
        %2302 = vset.pattern.permute.xlu0 0
        %2303 = vperm.xlu0 %2302, %v2269
        %v2304 = vpop.permute.xlu0 %2303
        %2307 = vset.pattern.permute.xlu0 0
        %2308 = vperm.xlu0 %2307, %v2270
        %v2309 = vpop.permute.xlu0 %2308
        %v2335 = vunpack.c.l.b16 %v2239
        %v2336 = vunpack.c.h.b16 %v2239
        %v2337 = vunpack.c.l.b16 %v2240
        %v2338 = vunpack.c.h.b16 %v2240
        %v2339 = vunpack.c.l.b16 %v2241
        %v2340 = vunpack.c.l.b16 %v2242
        %v2341 = vunpack.c.h.b16 %v2242
        %v2342 = vunpack.c.l.b16 %v2243
        %v2343 = vunpack.c.h.b16 %v2243
        %v2344 = vunpack.c.l.b16 %v2244
        %v2345 = vunpack.c.l.b16 %v2245
        %v2346 = vunpack.c.h.b16 %v2245
        %v2347 = vunpack.c.l.b16 %v2246
        %v2348 = vunpack.c.h.b16 %v2246
        %v2349 = vunpack.c.l.b16 %v2247
        %v2350 = vunpack.c.l.b16 %v2248
        %v2351 = vunpack.c.h.b16 %v2248
        %v2352 = vunpack.c.l.b16 %v2249
        %v2353 = vunpack.c.h.b16 %v2249
        %v2354 = vunpack.c.l.b16 %v2250
        %v2355 = vunpack.c.l.b16 %v2251
        %v2356 = vunpack.c.h.b16 %v2251
        %v2357 = vunpack.c.l.b16 %v2252
        %v2358 = vunpack.c.h.b16 %v2252
        %v2359 = vunpack.c.l.b16 %v2253
        %v2360 = vunpack.c.l.b16 %v2254
        %v2361 = vunpack.c.h.b16 %v2254
        %v2362 = vunpack.c.l.b16 %v2255
        %v2363 = vunpack.c.h.b16 %v2255
        %v2364 = vunpack.c.l.b16 %v2256
        %v2365 = vunpack.c.l.b16 %v2257
        %v2366 = vunpack.c.h.b16 %v2257
        %v2367 = vunpack.c.l.b16 %v2258
        %v2368 = vunpack.c.h.b16 %v2258
        %v2369 = vunpack.c.l.b16 %v2259
        %v2370 = vunpack.c.l.b16 %v2260
        %v2371 = vunpack.c.h.b16 %v2260
        %v2372 = vunpack.c.l.b16 %v2261
        %v2373 = vunpack.c.h.b16 %v2261
        %v2374 = vunpack.c.l.b16 %v2262
        %v2375 = vpack.c.b16 %v2340, %v2335
        %v2376 = vpack.c.b16 %v2341, %v2336
        %v2377 = vpack.c.b16 %v2342, %v2337
        %v2378 = vpack.c.b16 %v2343, %v2338
        %v2379 = vpack.c.b16 %v2344, %v2339
        %v2380 = vpack.c.b16 %v2350, %v2345
        %v2381 = vpack.c.b16 %v2351, %v2346
        %v2382 = vpack.c.b16 %v2352, %v2347
        %v2383 = vpack.c.b16 %v2353, %v2348
        %v2384 = vpack.c.b16 %v2354, %v2349
        %v2385 = vpack.c.b16 %v2360, %v2355
        %v2386 = vpack.c.b16 %v2361, %v2356
        %v2387 = vpack.c.b16 %v2362, %v2357
        %v2388 = vpack.c.b16 %v2363, %v2358
        %v2389 = vpack.c.b16 %v2364, %v2359
        %v2390 = vpack.c.b16 %v2370, %v2365
        %v2391 = vpack.c.b16 %v2371, %v2366
        %v2392 = vpack.c.b16 %v2372, %v2367
        %v2393 = vpack.c.b16 %v2373, %v2368
        %v2394 = vpack.c.b16 %v2374, %v2369
        %v2412 = vsel %vm1573, %v2379, 0
        %v2415 = vsel %vm1573, %v2384, 0
        %v2418 = vsel %vm1573, %v2389, 0
        %v2421 = vsel %vm1573, %v2394, 0
        %2423 = vmatpush.bf16.msra.mxu0 %v2210
        %2424 = vmatpush.bf16.msra.mxu0 %v2209
        %2425 = vmatpush.bf16.msra.mxu0 %v2208
        %2426 = vmatpush.bf16.msra.mxu0 %v2207
        %2427 = vmatpush.bf16.msra.mxu0 %v2206
        %2428 = vmatpush.bf16.msra.mxu0 %v2205
        %2429 = vmatpush.bf16.msra.mxu0 %v2204
        %2430 = vmatpush.bf16.msra.mxu0 %v2203
        %2431 = vmatmul.bf16.gmra.mxu0 %v2375
        %v2432 = vpop.f32.mrf.mxu0
        %v2433 = vadd.f32 %v2274, %v2432
        %v2434 = vpop.f32.mrf.mxu0
        %v2435 = vadd.f32 %v2279, %v2434
        %2436 = vmatmul.bf16.gmra.mxu0 %v2380
        %v2437 = vpop.f32.mrf.mxu0
        %v2438 = vadd.f32 %v2284, %v2437
        %v2439 = vpop.f32.mrf.mxu0
        %v2440 = vadd.f32 %v2289, %v2439
        %2441 = vmatmul.bf16.gmra.mxu0 %v2385
        %v2442 = vpop.f32.mrf.mxu0
        %v2443 = vadd.f32 %v2294, %v2442
        %v2444 = vpop.f32.mrf.mxu0
        %v2445 = vadd.f32 %v2299, %v2444
        %2446 = vmatmul.bf16.gmra.mxu0 %v2390
        %v2447 = vpop.f32.mrf.mxu0
        %v2448 = vadd.f32 %v2304, %v2447
        %v2449 = vpop.f32.mrf.mxu0
        %v2450 = vadd.f32 %v2309, %v2449
        %2451 = vdwg.mxu0
        %2452 = vmatpush.bf16.msra.mxu0 %v2218
        %2453 = vmatpush.bf16.msra.mxu0 %v2217
        %2454 = vmatpush.bf16.msra.mxu0 %v2216
        %2455 = vmatpush.bf16.msra.mxu0 %v2215
        %2456 = vmatpush.bf16.msra.mxu0 %v2214
        %2457 = vmatpush.bf16.msra.mxu0 %v2213
        %2458 = vmatpush.bf16.msra.mxu0 %v2212
        %2459 = vmatpush.bf16.msra.mxu0 %v2211
        %2460 = vmatmul.bf16.gmra.mxu0 %v2376
        %v2461 = vpop.f32.mrf.mxu0
        %v2462 = vadd.f32 %v2433, %v2461
        %v2463 = vpop.f32.mrf.mxu0
        %v2464 = vadd.f32 %v2435, %v2463
        %2465 = vmatmul.bf16.gmra.mxu0 %v2381
        %v2466 = vpop.f32.mrf.mxu0
        %v2467 = vadd.f32 %v2438, %v2466
        %v2468 = vpop.f32.mrf.mxu0
        %v2469 = vadd.f32 %v2440, %v2468
        %2470 = vmatmul.bf16.gmra.mxu0 %v2386
        %v2471 = vpop.f32.mrf.mxu0
        %v2472 = vadd.f32 %v2443, %v2471
        %v2473 = vpop.f32.mrf.mxu0
        %v2474 = vadd.f32 %v2445, %v2473
        %2475 = vmatmul.bf16.gmra.mxu0 %v2391
        %v2476 = vpop.f32.mrf.mxu0
        %v2477 = vadd.f32 %v2448, %v2476
        %v2478 = vpop.f32.mrf.mxu0
        %v2479 = vadd.f32 %v2450, %v2478
        %2480 = vdwg.mxu0
        %2481 = vmatpush.bf16.msra.mxu0 %v2226
        %2482 = vmatpush.bf16.msra.mxu0 %v2225
        %2483 = vmatpush.bf16.msra.mxu0 %v2224
        %2484 = vmatpush.bf16.msra.mxu0 %v2223
        %2485 = vmatpush.bf16.msra.mxu0 %v2222
        %2486 = vmatpush.bf16.msra.mxu0 %v2221
        %2487 = vmatpush.bf16.msra.mxu0 %v2220
        %2488 = vmatpush.bf16.msra.mxu0 %v2219
        %2489 = vmatmul.bf16.gmra.mxu0 %v2377
        %v2490 = vpop.f32.mrf.mxu0
        %v2491 = vadd.f32 %v2462, %v2490
        %v2492 = vpop.f32.mrf.mxu0
        %v2493 = vadd.f32 %v2464, %v2492
        %2494 = vmatmul.bf16.gmra.mxu0 %v2382
        %v2495 = vpop.f32.mrf.mxu0
        %v2496 = vadd.f32 %v2467, %v2495
        %v2497 = vpop.f32.mrf.mxu0
        %v2498 = vadd.f32 %v2469, %v2497
        %2499 = vmatmul.bf16.gmra.mxu0 %v2387
        %v2500 = vpop.f32.mrf.mxu0
        %v2501 = vadd.f32 %v2472, %v2500
        %v2502 = vpop.f32.mrf.mxu0
        %v2503 = vadd.f32 %v2474, %v2502
        %2504 = vmatmul.bf16.gmra.mxu0 %v2392
        %v2505 = vpop.f32.mrf.mxu0
        %v2506 = vadd.f32 %v2477, %v2505
        %v2507 = vpop.f32.mrf.mxu0
        %v2508 = vadd.f32 %v2479, %v2507
        %2509 = vdwg.mxu0
        %2510 = vmatpush.bf16.msra.mxu0 %v2234
        %2511 = vmatpush.bf16.msra.mxu0 %v2233
        %2512 = vmatpush.bf16.msra.mxu0 %v2232
        %2513 = vmatpush.bf16.msra.mxu0 %v2231
        %2514 = vmatpush.bf16.msra.mxu0 %v2230
        %2515 = vmatpush.bf16.msra.mxu0 %v2229
        %2516 = vmatpush.bf16.msra.mxu0 %v2228
        %2517 = vmatpush.bf16.msra.mxu0 %v2227
        %2518 = vmatmul.bf16.gmra.mxu0 %v2378
        %v2519 = vpop.f32.mrf.mxu0
        %v2520 = vadd.f32 %v2491, %v2519
        %v2521 = vpop.f32.mrf.mxu0
        %v2522 = vadd.f32 %v2493, %v2521
        %2523 = vmatmul.bf16.gmra.mxu0 %v2383
        %v2524 = vpop.f32.mrf.mxu0
        %v2525 = vadd.f32 %v2496, %v2524
        %v2526 = vpop.f32.mrf.mxu0
        %v2527 = vadd.f32 %v2498, %v2526
        %2528 = vmatmul.bf16.gmra.mxu0 %v2388
        %v2529 = vpop.f32.mrf.mxu0
        %v2530 = vadd.f32 %v2501, %v2529
        %v2531 = vpop.f32.mrf.mxu0
        %v2532 = vadd.f32 %v2503, %v2531
        %2533 = vmatmul.bf16.gmra.mxu0 %v2393
        %v2534 = vpop.f32.mrf.mxu0
        %v2535 = vadd.f32 %v2506, %v2534
        %v2536 = vpop.f32.mrf.mxu0
        %v2537 = vadd.f32 %v2508, %v2536
        %2538 = vdwg.mxu0
        %2539 = vmatpush.bf16.msra.mxu0 0
        %2540 = vmatpush.bf16.msra.mxu0 0
        %2541 = vmatpush.bf16.msra.mxu0 0
        %2542 = vmatpush.bf16.msra.mxu0 0
        %2543 = vmatpush.bf16.msra.mxu0 %v2238
        %2544 = vmatpush.bf16.msra.mxu0 %v2237
        %2545 = vmatpush.bf16.msra.mxu0 %v2236
        %2546 = vmatpush.bf16.msra.mxu0 %v2235
        %2547 = vmatmul.bf16.gmra.mxu0 %v2412
        %v2548 = vpop.f32.mrf.mxu0
        %v2549 = vadd.f32 %v2520, %v2548
        %v2550 = vpop.f32.mrf.mxu0
        %v2551 = vadd.f32 %v2522, %v2550
        %2552 = vmatmul.bf16.gmra.mxu0 %v2415
        %v2553 = vpop.f32.mrf.mxu0
        %v2554 = vadd.f32 %v2525, %v2553
        %v2555 = vpop.f32.mrf.mxu0
        %v2556 = vadd.f32 %v2527, %v2555
        %2557 = vmatmul.bf16.gmra.mxu0 %v2418
        %v2558 = vpop.f32.mrf.mxu0
        %v2559 = vadd.f32 %v2530, %v2558
        %v2560 = vpop.f32.mrf.mxu0
        %v2561 = vadd.f32 %v2532, %v2560
        %2562 = vmatmul.bf16.gmra.mxu0 %v2421
        %v2563 = vpop.f32.mrf.mxu0
        %v2564 = vadd.f32 %v2535, %v2563
        %v2565 = vpop.f32.mrf.mxu0
        %v2566 = vadd.f32 %v2537, %v2565
        %2567 = vdwg.mxu0
        %v2568 = vadd.f32 %v2549, %v847
        %v2569 = vadd.f32 %v2551, %v849
        %v2570 = vadd.f32 %v2554, %v852
        %v2571 = vadd.f32 %v2556, %v854
        %v2572 = vadd.f32 %v2559, %v857
        %v2573 = vadd.f32 %v2561, %v859
        %v2574 = vadd.f32 %v2564, %v862
        %v2575 = vadd.f32 %v2566, %v864
        %v2576 = vld [vmem:[%s7] sm:$0xf]
        %v2577 = vld [vmem:[%s7 + $0x4] sm:$0xf]
        %v2578 = vld [vmem:[%s7 + $0x8] sm:$0xf]
        %v2579 = vld [vmem:[%s7 + $0xc] sm:$0xf]
        %v2580 = vld [vmem:[%s7 + $0x10] sm:$0xf]
        %v2581 = vld [vmem:[%s7 + $0x14] sm:$0xf]
        %v2582 = vld [vmem:[%s7 + $0x18] sm:$0xf]
        %v2583 = vld [vmem:[%s7 + $0x1c] sm:$0xf]
        %v2584 = vld [vmem:[%s7 + $0x20] sm:$0xf]
        %v2585 = vld [vmem:[%s7 + $0x24] sm:$0xf]
        %v2586 = vld [vmem:[%s7 + $0x28] sm:$0xf]
        %v2587 = vld [vmem:[%s7 + $0x2c] sm:$0xf]
        %v2588 = vld [vmem:[%s7 + $0x30] sm:$0xf]
        %v2589 = vld [vmem:[%s7 + $0x34] sm:$0xf]
        %v2590 = vld [vmem:[%s7 + $0x38] sm:$0xf]
        %v2591 = vld [vmem:[%s7 + $0x3c] sm:$0xf]
        %v2592 = vpack.c.bf16 %v2569, %v2568
        %v2593 = vpack.c.bf16 %v2571, %v2570
        %v2594 = vpack.c.bf16 %v2573, %v2572
        %v2595 = vpack.c.bf16 %v2575, %v2574
        %v2596 = vld [vmem:[%s8] sm:$0xff]
        %v2597 = vld [vmem:[%s8 + $0x8] sm:$0xff]
        %v2598 = vld [vmem:[%s8 + $0x10] sm:$0xff]
        %v2599 = vld [vmem:[%s8 + $0x18] sm:$0xff]
        %v2600 = vld [vmem:[%s8 + $0x20] sm:$0xff]
        %v2601 = vld [vmem:[%s8 + $0x28] sm:$0xff]
        %v2602 = vld [vmem:[%s8 + $0x30] sm:$0xff]
        %v2603 = vld [vmem:[%s8 + $0x38] sm:$0xff]
        %v2604 = vld [vmem:[%s8 + $0x40] sm:$0xff]
        %v2605 = vld [vmem:[%s8 + $0x48] sm:$0xff]
        %v2606 = vld [vmem:[%s8 + $0x50] sm:$0xff]
        %v2607 = vld [vmem:[%s8 + $0x58] sm:$0xff]
        %v2608 = vld [vmem:[%s8 + $0x60] sm:$0xff]
        %v2609 = vld [vmem:[%s8 + $0x68] sm:$0xff]
        %v2610 = vld [vmem:[%s8 + $0x70] sm:$0xff]
        %v2611 = vld [vmem:[%s8 + $0x78] sm:$0xff]
        %2613 = vset.pattern.permute.xlu0 0
        %2614 = vperm.xlu0 %2613, %v2596
        %v2615 = vpop.permute.xlu0 %2614
        %2618 = vset.pattern.permute.xlu0 0
        %2619 = vperm.xlu0 %2618, %v2597
        %v2620 = vpop.permute.xlu0 %2619
        %2623 = vset.pattern.permute.xlu0 0
        %2624 = vperm.xlu0 %2623, %v2598
        %v2625 = vpop.permute.xlu0 %2624
        %2628 = vset.pattern.permute.xlu0 0
        %2629 = vperm.xlu0 %2628, %v2599
        %v2630 = vpop.permute.xlu0 %2629
        %2633 = vset.pattern.permute.xlu0 0
        %2634 = vperm.xlu0 %2633, %v2600
        %v2635 = vpop.permute.xlu0 %2634
        %2638 = vset.pattern.permute.xlu0 0
        %2639 = vperm.xlu0 %2638, %v2601
        %v2640 = vpop.permute.xlu0 %2639
        %2643 = vset.pattern.permute.xlu0 0
        %2644 = vperm.xlu0 %2643, %v2602
        %v2645 = vpop.permute.xlu0 %2644
        %2648 = vset.pattern.permute.xlu0 0
        %2649 = vperm.xlu0 %2648, %v2603
        %v2650 = vpop.permute.xlu0 %2649
        %2653 = vset.pattern.permute.xlu0 0
        %2654 = vperm.xlu0 %2653, %v2604
        %v2655 = vpop.permute.xlu0 %2654
        %2658 = vset.pattern.permute.xlu0 0
        %2659 = vperm.xlu0 %2658, %v2605
        %v2660 = vpop.permute.xlu0 %2659
        %2663 = vset.pattern.permute.xlu0 0
        %2664 = vperm.xlu0 %2663, %v2606
        %v2665 = vpop.permute.xlu0 %2664
        %2668 = vset.pattern.permute.xlu0 0
        %2669 = vperm.xlu0 %2668, %v2607
        %v2670 = vpop.permute.xlu0 %2669
        %2673 = vset.pattern.permute.xlu0 0
        %2674 = vperm.xlu0 %2673, %v2608
        %v2675 = vpop.permute.xlu0 %2674
        %2678 = vset.pattern.permute.xlu0 0
        %2679 = vperm.xlu0 %2678, %v2609
        %v2680 = vpop.permute.xlu0 %2679
        %2683 = vset.pattern.permute.xlu0 0
        %2684 = vperm.xlu0 %2683, %v2610
        %v2685 = vpop.permute.xlu0 %2684
        %2688 = vset.pattern.permute.xlu0 0
        %2689 = vperm.xlu0 %2688, %v2611
        %v2690 = vpop.permute.xlu0 %2689
        %v2708 = vunpack.c.l.b16 %v2576
        %v2709 = vunpack.c.l.b16 %v2577
        %v2710 = vunpack.c.l.b16 %v2578
        %v2711 = vunpack.c.l.b16 %v2579
        %v2712 = vunpack.c.l.b16 %v2580
        %v2713 = vunpack.c.l.b16 %v2581
        %v2714 = vunpack.c.l.b16 %v2582
        %v2715 = vunpack.c.l.b16 %v2583
        %v2716 = vunpack.c.l.b16 %v2584
        %v2717 = vunpack.c.l.b16 %v2585
        %v2718 = vunpack.c.l.b16 %v2586
        %v2719 = vunpack.c.l.b16 %v2587
        %v2720 = vunpack.c.l.b16 %v2588
        %v2721 = vunpack.c.l.b16 %v2589
        %v2722 = vunpack.c.l.b16 %v2590
        %v2723 = vunpack.c.l.b16 %v2591
        %v2724 = vpack.c.b16 %v2709, %v2708
        %v2725 = vpack.c.b16 %v2711, %v2710
        %v2726 = vpack.c.b16 %v2713, %v2712
        %v2727 = vpack.c.b16 %v2715, %v2714
        %v2728 = vpack.c.b16 %v2717, %v2716
        %v2729 = vpack.c.b16 %v2719, %v2718
        %v2730 = vpack.c.b16 %v2721, %v2720
        %v2731 = vpack.c.b16 %v2723, %v2722
        %v2733 = vsel %vm1573, %v2724, 0
        %v2736 = vsel %vm1573, %v2725, 0
        %v2739 = vsel %vm1573, %v2726, 0
        %v2742 = vsel %vm1573, %v2727, 0
        %v2745 = vsel %vm1573, %v2728, 0
        %v2748 = vsel %vm1573, %v2729, 0
        %v2751 = vsel %vm1573, %v2730, 0
        %v2754 = vsel %vm1573, %v2731, 0
        %2756 = vmatpush.bf16.msra.mxu0 0
        %2757 = vmatpush.bf16.msra.mxu0 0
        %2758 = vmatpush.bf16.msra.mxu0 0
        %2759 = vmatpush.bf16.msra.mxu0 0
        %2760 = vmatpush.bf16.msra.mxu0 %v2595
        %2761 = vmatpush.bf16.msra.mxu0 %v2594
        %2762 = vmatpush.bf16.msra.mxu0 %v2593
        %2763 = vmatpush.bf16.msra.mxu0 %v2592
        %2764 = vmatmul.bf16.gmra.mxu0 %v2733
        %v2765 = vpop.f32.mrf.mxu0
        %v2766 = vadd.f32 %v2615, %v2765
        %v2767 = vpop.f32.mrf.mxu0
        %v2768 = vadd.f32 %v2620, %v2767
        %2769 = vmatmul.bf16.gmra.mxu0 %v2736
        %v2770 = vpop.f32.mrf.mxu0
        %v2771 = vadd.f32 %v2625, %v2770
        %v2772 = vpop.f32.mrf.mxu0
        %v2773 = vadd.f32 %v2630, %v2772
        %2774 = vmatmul.bf16.gmra.mxu0 %v2739
        %v2775 = vpop.f32.mrf.mxu0
        %v2776 = vadd.f32 %v2635, %v2775
        %v2777 = vpop.f32.mrf.mxu0
        %v2778 = vadd.f32 %v2640, %v2777
        %2779 = vmatmul.bf16.gmra.mxu0 %v2742
        %v2780 = vpop.f32.mrf.mxu0
        %v2781 = vadd.f32 %v2645, %v2780
        %v2782 = vpop.f32.mrf.mxu0
        %v2783 = vadd.f32 %v2650, %v2782
        %2784 = vmatmul.bf16.gmra.mxu0 %v2745
        %v2785 = vpop.f32.mrf.mxu0
        %v2786 = vadd.f32 %v2655, %v2785
        %v2787 = vpop.f32.mrf.mxu0
        %v2788 = vadd.f32 %v2660, %v2787
        %2789 = vmatmul.bf16.gmra.mxu0 %v2748
        %v2790 = vpop.f32.mrf.mxu0
        %v2791 = vadd.f32 %v2665, %v2790
        %v2792 = vpop.f32.mrf.mxu0
        %v2793 = vadd.f32 %v2670, %v2792
        %2794 = vmatmul.bf16.gmra.mxu0 %v2751
        %v2795 = vpop.f32.mrf.mxu0
        %v2796 = vadd.f32 %v2675, %v2795
        %v2797 = vpop.f32.mrf.mxu0
        %v2798 = vadd.f32 %v2680, %v2797
        %2799 = vmatmul.bf16.gmra.mxu0 %v2754
        %v2800 = vpop.f32.mrf.mxu0
        %v2801 = vadd.f32 %v2685, %v2800
        %v2802 = vpop.f32.mrf.mxu0
        %v2803 = vadd.f32 %v2690, %v2802
        %2804 = vdwg.mxu0
        %v2805 = vld [vmem:[%s9] sm:$0xf]
        %v2806 = vld [vmem:[%s9 + $0x4] sm:$0xf]
        %v2807 = vld [vmem:[%s9 + $0x8] sm:$0xf]
        %v2808 = vld [vmem:[%s9 + $0xc] sm:$0xf]
        %v2809 = vld [vmem:[%s9 + $0x10] sm:$0xf]
        %v2810 = vld [vmem:[%s9 + $0x14] sm:$0xf]
        %v2811 = vld [vmem:[%s9 + $0x18] sm:$0xf]
        %v2812 = vld [vmem:[%s9 + $0x1c] sm:$0xf]
        %v2813 = vld [vmem:[%s9 + $0x20] sm:$0xf]
        %v2814 = vld [vmem:[%s9 + $0x24] sm:$0xf]
        %v2815 = vld [vmem:[%s9 + $0x28] sm:$0xf]
        %v2816 = vld [vmem:[%s9 + $0x2c] sm:$0xf]
        %v2817 = vld [vmem:[%s9 + $0x30] sm:$0xf]
        %v2818 = vld [vmem:[%s9 + $0x34] sm:$0xf]
        %v2819 = vld [vmem:[%s9 + $0x38] sm:$0xf]
        %v2820 = vld [vmem:[%s9 + $0x3c] sm:$0xf]
        %v2821 = vpack.c.bf16 %v849, %v847
        %v2822 = vpack.c.bf16 %v854, %v852
        %v2823 = vpack.c.bf16 %v859, %v857
        %v2824 = vpack.c.bf16 %v864, %v862
        %v2841 = vunpack.c.l.b16 %v2805
        %v2842 = vunpack.c.l.b16 %v2806
        %v2843 = vunpack.c.l.b16 %v2807
        %v2844 = vunpack.c.l.b16 %v2808
        %v2845 = vunpack.c.l.b16 %v2809
        %v2846 = vunpack.c.l.b16 %v2810
        %v2847 = vunpack.c.l.b16 %v2811
        %v2848 = vunpack.c.l.b16 %v2812
        %v2849 = vunpack.c.l.b16 %v2813
        %v2850 = vunpack.c.l.b16 %v2814
        %v2851 = vunpack.c.l.b16 %v2815
        %v2852 = vunpack.c.l.b16 %v2816
        %v2853 = vunpack.c.l.b16 %v2817
        %v2854 = vunpack.c.l.b16 %v2818
        %v2855 = vunpack.c.l.b16 %v2819
        %v2856 = vunpack.c.l.b16 %v2820
        %v2857 = vpack.c.b16 %v2842, %v2841
        %v2858 = vpack.c.b16 %v2844, %v2843
        %v2859 = vpack.c.b16 %v2846, %v2845
        %v2860 = vpack.c.b16 %v2848, %v2847
        %v2861 = vpack.c.b16 %v2850, %v2849
        %v2862 = vpack.c.b16 %v2852, %v2851
        %v2863 = vpack.c.b16 %v2854, %v2853
        %v2864 = vpack.c.b16 %v2856, %v2855
        %v2866 = vsel %vm1573, %v2857, 0
        %v2869 = vsel %vm1573, %v2858, 0
        %v2872 = vsel %vm1573, %v2859, 0
        %v2875 = vsel %vm1573, %v2860, 0
        %v2878 = vsel %vm1573, %v2861, 0
        %v2881 = vsel %vm1573, %v2862, 0
        %v2884 = vsel %vm1573, %v2863, 0
        %v2887 = vsel %vm1573, %v2864, 0
        %2889 = vmatpush.bf16.msra.mxu0 0
        %2890 = vmatpush.bf16.msra.mxu0 0
        %2891 = vmatpush.bf16.msra.mxu0 0
        %2892 = vmatpush.bf16.msra.mxu0 0
        %2893 = vmatpush.bf16.msra.mxu0 %v2824
        %2894 = vmatpush.bf16.msra.mxu0 %v2823
        %2895 = vmatpush.bf16.msra.mxu0 %v2822
        %2896 = vmatpush.bf16.msra.mxu0 %v2821
        %2897 = vmatmul.bf16.gmra.mxu0 %v2866
        %v2898 = vpop.f32.mrf.mxu0
        %v2899 = vadd.f32 0.0, %v2898
        %v2900 = vpop.f32.mrf.mxu0
        %v2901 = vadd.f32 0.0, %v2900
        %2902 = vmatmul.bf16.gmra.mxu0 %v2869
        %v2903 = vpop.f32.mrf.mxu0
        %v2904 = vadd.f32 0.0, %v2903
        %v2905 = vpop.f32.mrf.mxu0
        %v2906 = vadd.f32 0.0, %v2905
        %2907 = vmatmul.bf16.gmra.mxu0 %v2872
        %v2908 = vpop.f32.mrf.mxu0
        %v2909 = vadd.f32 0.0, %v2908
        %v2910 = vpop.f32.mrf.mxu0
        %v2911 = vadd.f32 0.0, %v2910
        %2912 = vmatmul.bf16.gmra.mxu0 %v2875
        %v2913 = vpop.f32.mrf.mxu0
        %v2914 = vadd.f32 0.0, %v2913
        %v2915 = vpop.f32.mrf.mxu0
        %v2916 = vadd.f32 0.0, %v2915
        %2917 = vmatmul.bf16.gmra.mxu0 %v2878
        %v2918 = vpop.f32.mrf.mxu0
        %v2919 = vadd.f32 0.0, %v2918
        %v2920 = vpop.f32.mrf.mxu0
        %v2921 = vadd.f32 0.0, %v2920
        %2922 = vmatmul.bf16.gmra.mxu0 %v2881
        %v2923 = vpop.f32.mrf.mxu0
        %v2924 = vadd.f32 0.0, %v2923
        %v2925 = vpop.f32.mrf.mxu0
        %v2926 = vadd.f32 0.0, %v2925
        %2927 = vmatmul.bf16.gmra.mxu0 %v2884
        %v2928 = vpop.f32.mrf.mxu0
        %v2929 = vadd.f32 0.0, %v2928
        %v2930 = vpop.f32.mrf.mxu0
        %v2931 = vadd.f32 0.0, %v2930
        %2932 = vmatmul.bf16.gmra.mxu0 %v2887
        %v2933 = vpop.f32.mrf.mxu0
        %v2934 = vadd.f32 0.0, %v2933
        %v2935 = vpop.f32.mrf.mxu0
        %v2936 = vadd.f32 0.0, %v2935
        %2937 = vdwg.mxu0
        %v2938 = vadd.f32 %v2766, %v2899
        %v2939 = vadd.f32 %v2768, %v2901
        %v2940 = vadd.f32 %v2771, %v2904
        %v2941 = vadd.f32 %v2773, %v2906
        %v2942 = vadd.f32 %v2776, %v2909
        %v2943 = vadd.f32 %v2778, %v2911
        %v2944 = vadd.f32 %v2781, %v2914
        %v2945 = vadd.f32 %v2783, %v2916
        %v2946 = vadd.f32 %v2786, %v2919
        %v2947 = vadd.f32 %v2788, %v2921
        %v2948 = vadd.f32 %v2791, %v2924
        %v2949 = vadd.f32 %v2793, %v2926
        %v2950 = vadd.f32 %v2796, %v2929
        %v2951 = vadd.f32 %v2798, %v2931
        %v2952 = vadd.f32 %v2801, %v2934
        %v2953 = vadd.f32 %v2803, %v2936
        %v2954 = vpack.c.bf16 %v2938, %v2938
        %v2955 = vpack.c.bf16 %v2939, %v2939
        %v2956 = vpack.c.bf16 %v2940, %v2940
        %v2957 = vpack.c.bf16 %v2941, %v2941
        %v2958 = vpack.c.bf16 %v2942, %v2942
        %v2959 = vpack.c.bf16 %v2943, %v2943
        %v2960 = vpack.c.bf16 %v2944, %v2944
        %v2961 = vpack.c.bf16 %v2945, %v2945
        %v2962 = vpack.c.bf16 %v2946, %v2946
        %v2963 = vpack.c.bf16 %v2947, %v2947
        %v2964 = vpack.c.bf16 %v2948, %v2948
        %v2965 = vpack.c.bf16 %v2949, %v2949
        %v2966 = vpack.c.bf16 %v2950, %v2950
        %v2967 = vpack.c.bf16 %v2951, %v2951
        %v2968 = vpack.c.bf16 %v2952, %v2952
        %v2969 = vpack.c.bf16 %v2953, %v2953
        %v2970 = vld [vmem:[#allocation6] sm:$0xff]
        %v2971 = vld [vmem:[#allocation6 + $0x8] sm:$0xff]
        %v2972 = vld [vmem:[#allocation6 + $0x10] sm:$0xff]
        %v2973 = vld [vmem:[#allocation6 + $0x18] sm:$0xff]
        %v2974 = vld [vmem:[#allocation6 + $0x20] sm:$0xff]
        %v2975 = vld [vmem:[#allocation6 + $0x28] sm:$0xff]
        %v2976 = vld [vmem:[#allocation6 + $0x30] sm:$0xff]
        %v2977 = vld [vmem:[#allocation6 + $0x38] sm:$0xff]
        %s2978 = scalar_lea.vmem [#allocation6], 64
        %v2979 = vld [vmem:[%s2978] sm:$0xff]
        %v2980 = vld [vmem:[%s2978 + $0x8] sm:$0xff]
        %v2981 = vld [vmem:[%s2978 + $0x10] sm:$0xff]
        %v2982 = vld [vmem:[%s2978 + $0x18] sm:$0xff]
        %v2983 = vld [vmem:[%s2978 + $0x20] sm:$0xff]
        %v2984 = vld [vmem:[%s2978 + $0x28] sm:$0xff]
        %v2985 = vld [vmem:[%s2978 + $0x30] sm:$0xff]
        %v2986 = vld [vmem:[%s2978 + $0x38] sm:$0xff]
        %v2991 = vunpack.c.l.b16 %v2958
        %v2992 = vunpack.c.l.b16 %v2959
        %v2993 = vunpack.c.l.b16 %v2960
        %v2994 = vunpack.c.l.b16 %v2961
        %v2995 = vpack.c.b16 %v2992, %v2991
        %v2996 = vpack.c.b16 %v2994, %v2993
        %v3005 = vunpack.c.l.b16 %v2979
        %v3006 = vunpack.c.h.b16 %v2979
        %v3007 = vunpack.c.l.b16 %v2980
        %v3008 = vunpack.c.h.b16 %v2980
        %v3009 = vunpack.c.l.b16 %v2981
        %v3010 = vunpack.c.h.b16 %v2981
        %v3011 = vunpack.c.l.b16 %v2982
        %v3012 = vunpack.c.h.b16 %v2982
        %v3013 = vunpack.c.l.b16 %v2983
        %v3014 = vunpack.c.h.b16 %v2983
        %v3015 = vunpack.c.l.b16 %v2984
        %v3016 = vunpack.c.h.b16 %v2984
        %v3017 = vunpack.c.l.b16 %v2985
        %v3018 = vunpack.c.h.b16 %v2985
        %v3019 = vunpack.c.l.b16 %v2986
        %v3020 = vunpack.c.h.b16 %v2986
        %v3021 = vpack.c.b16 %v3007, %v3005
        %v3022 = vpack.c.b16 %v3008, %v3006
        %v3023 = vpack.c.b16 %v3011, %v3009
        %v3024 = vpack.c.b16 %v3012, %v3010
        %v3025 = vpack.c.b16 %v3015, %v3013
        %v3026 = vpack.c.b16 %v3016, %v3014
        %v3027 = vpack.c.b16 %v3019, %v3017
        %v3028 = vpack.c.b16 %v3020, %v3018
        %v3038 = vsel %vm1573, %v2995, 0
        %v3041 = vsel %vm1573, %v2996, 0
        %3043 = vmatpush.bf16.msra.mxu0 0
        %3044 = vmatpush.bf16.msra.mxu0 0
        %3045 = vmatpush.bf16.msra.mxu0 0
        %3046 = vmatpush.bf16.msra.mxu0 0
        %3047 = vmatpush.bf16.msra.mxu0 %v3027
        %3048 = vmatpush.bf16.msra.mxu0 %v3025
        %3049 = vmatpush.bf16.msra.mxu0 %v3023
        %3050 = vmatpush.bf16.msra.mxu0 %v3021
        %3051 = vmatmul.bf16.gmra.mxu0 %v3038
        %v3052 = vpop.f32.mrf.mxu0
        %v3053 = vadd.f32 0.0, %v3052
        %v3054 = vpop.f32.mrf.mxu0
        %v3055 = vadd.f32 0.0, %v3054
        %3056 = vmatmul.bf16.gmra.mxu0 %v3041
        %v3057 = vpop.f32.mrf.mxu0
        %v3058 = vadd.f32 0.0, %v3057
        %v3059 = vpop.f32.mrf.mxu0
        %v3060 = vadd.f32 0.0, %v3059
        %3061 = vdwg.mxu0
        %3062 = vmatpush.bf16.msra.mxu0 0
        %3063 = vmatpush.bf16.msra.mxu0 0
        %3064 = vmatpush.bf16.msra.mxu0 0
        %3065 = vmatpush.bf16.msra.mxu0 0
        %3066 = vmatpush.bf16.msra.mxu0 %v3028
        %3067 = vmatpush.bf16.msra.mxu0 %v3026
        %3068 = vmatpush.bf16.msra.mxu0 %v3024
        %3069 = vmatpush.bf16.msra.mxu0 %v3022
        %3070 = vmatmul.bf16.gmra.mxu0 %v3038
        %v3071 = vpop.f32.mrf.mxu0
        %v3072 = vadd.f32 0.0, %v3071
        %v3073 = vpop.f32.mrf.mxu0
        %v3074 = vadd.f32 0.0, %v3073
        %3075 = vmatmul.bf16.gmra.mxu0 %v3041
        %v3076 = vpop.f32.mrf.mxu0
        %v3077 = vadd.f32 0.0, %v3076
        %v3078 = vpop.f32.mrf.mxu0
        %v3079 = vadd.f32 0.0, %v3078
        %3080 = vdwg.mxu0
        %v3085 = vunpack.c.l.b16 %v2954
        %v3086 = vunpack.c.l.b16 %v2955
        %v3087 = vunpack.c.l.b16 %v2956
        %v3088 = vunpack.c.l.b16 %v2957
        %v3089 = vpack.c.b16 %v3086, %v3085
        %v3090 = vpack.c.b16 %v3088, %v3087
        %v3099 = vunpack.c.l.b16 %v2970
        %v3100 = vunpack.c.h.b16 %v2970
        %v3101 = vunpack.c.l.b16 %v2971
        %v3102 = vunpack.c.h.b16 %v2971
        %v3103 = vunpack.c.l.b16 %v2972
        %v3104 = vunpack.c.h.b16 %v2972
        %v3105 = vunpack.c.l.b16 %v2973
        %v3106 = vunpack.c.h.b16 %v2973
        %v3107 = vunpack.c.l.b16 %v2974
        %v3108 = vunpack.c.h.b16 %v2974
        %v3109 = vunpack.c.l.b16 %v2975
        %v3110 = vunpack.c.h.b16 %v2975
        %v3111 = vunpack.c.l.b16 %v2976
        %v3112 = vunpack.c.h.b16 %v2976
        %v3113 = vunpack.c.l.b16 %v2977
        %v3114 = vunpack.c.h.b16 %v2977
        %v3115 = vpack.c.b16 %v3101, %v3099
        %v3116 = vpack.c.b16 %v3102, %v3100
        %v3117 = vpack.c.b16 %v3105, %v3103
        %v3118 = vpack.c.b16 %v3106, %v3104
        %v3119 = vpack.c.b16 %v3109, %v3107
        %v3120 = vpack.c.b16 %v3110, %v3108
        %v3121 = vpack.c.b16 %v3113, %v3111
        %v3122 = vpack.c.b16 %v3114, %v3112
        %v3132 = vsel %vm1573, %v3089, 0
        %v3135 = vsel %vm1573, %v3090, 0
        %3137 = vmatpush.bf16.msra.mxu0 0
        %3138 = vmatpush.bf16.msra.mxu0 0
        %3139 = vmatpush.bf16.msra.mxu0 0
        %3140 = vmatpush.bf16.msra.mxu0 0
        %3141 = vmatpush.bf16.msra.mxu0 %v3121
        %3142 = vmatpush.bf16.msra.mxu0 %v3119
        %3143 = vmatpush.bf16.msra.mxu0 %v3117
        %3144 = vmatpush.bf16.msra.mxu0 %v3115
        %3145 = vmatmul.bf16.gmra.mxu0 %v3132
        %v3146 = vpop.f32.mrf.mxu0
        %v3147 = vadd.f32 %v3053, %v3146
        %v3148 = vpop.f32.mrf.mxu0
        %v3149 = vadd.f32 %v3055, %v3148
        %3150 = vmatmul.bf16.gmra.mxu0 %v3135
        %v3151 = vpop.f32.mrf.mxu0
        %v3152 = vadd.f32 %v3058, %v3151
        %v3153 = vpop.f32.mrf.mxu0
        %v3154 = vadd.f32 %v3060, %v3153
        %3155 = vdwg.mxu0
        %3156 = vmatpush.bf16.msra.mxu0 0
        %3157 = vmatpush.bf16.msra.mxu0 0
        %3158 = vmatpush.bf16.msra.mxu0 0
        %3159 = vmatpush.bf16.msra.mxu0 0
        %3160 = vmatpush.bf16.msra.mxu0 %v3122
        %3161 = vmatpush.bf16.msra.mxu0 %v3120
        %3162 = vmatpush.bf16.msra.mxu0 %v3118
        %3163 = vmatpush.bf16.msra.mxu0 %v3116
        %3164 = vmatmul.bf16.gmra.mxu0 %v3132
        %v3165 = vpop.f32.mrf.mxu0
        %v3166 = vadd.f32 %v3072, %v3165
        %v3167 = vpop.f32.mrf.mxu0
        %v3168 = vadd.f32 %v3074, %v3167
        %3169 = vmatmul.bf16.gmra.mxu0 %v3135
        %v3170 = vpop.f32.mrf.mxu0
        %v3171 = vadd.f32 %v3077, %v3170
        %v3172 = vpop.f32.mrf.mxu0
        %v3173 = vadd.f32 %v3079, %v3172
        %3174 = vdwg.mxu0
        %s3175 = scalar_lea.vmem [#allocation6], 128
        %v3176 = vld [vmem:[%s3175] sm:$0xff]
        %v3177 = vld [vmem:[%s3175 + $0x8] sm:$0xff]
        %v3178 = vld [vmem:[%s3175 + $0x10] sm:$0xff]
        %v3179 = vld [vmem:[%s3175 + $0x18] sm:$0xff]
        %v3180 = vld [vmem:[%s3175 + $0x20] sm:$0xff]
        %v3181 = vld [vmem:[%s3175 + $0x28] sm:$0xff]
        %v3182 = vld [vmem:[%s3175 + $0x30] sm:$0xff]
        %v3183 = vld [vmem:[%s3175 + $0x38] sm:$0xff]
        %v3188 = vunpack.c.l.b16 %v2962
        %v3189 = vunpack.c.l.b16 %v2963
        %v3190 = vunpack.c.l.b16 %v2964
        %v3191 = vunpack.c.l.b16 %v2965
        %v3192 = vpack.c.b16 %v3189, %v3188
        %v3193 = vpack.c.b16 %v3191, %v3190
        %v3202 = vunpack.c.l.b16 %v3176
        %v3203 = vunpack.c.h.b16 %v3176
        %v3204 = vunpack.c.l.b16 %v3177
        %v3205 = vunpack.c.h.b16 %v3177
        %v3206 = vunpack.c.l.b16 %v3178
        %v3207 = vunpack.c.h.b16 %v3178
        %v3208 = vunpack.c.l.b16 %v3179
        %v3209 = vunpack.c.h.b16 %v3179
        %v3210 = vunpack.c.l.b16 %v3180
        %v3211 = vunpack.c.h.b16 %v3180
        %v3212 = vunpack.c.l.b16 %v3181
        %v3213 = vunpack.c.h.b16 %v3181
        %v3214 = vunpack.c.l.b16 %v3182
        %v3215 = vunpack.c.h.b16 %v3182
        %v3216 = vunpack.c.l.b16 %v3183
        %v3217 = vunpack.c.h.b16 %v3183
        %v3218 = vpack.c.b16 %v3204, %v3202
        %v3219 = vpack.c.b16 %v3205, %v3203
        %v3220 = vpack.c.b16 %v3208, %v3206
        %v3221 = vpack.c.b16 %v3209, %v3207
        %v3222 = vpack.c.b16 %v3212, %v3210
        %v3223 = vpack.c.b16 %v3213, %v3211
        %v3224 = vpack.c.b16 %v3216, %v3214
        %v3225 = vpack.c.b16 %v3217, %v3215
        %v3235 = vsel %vm1573, %v3192, 0
        %v3238 = vsel %vm1573, %v3193, 0
        %3240 = vmatpush.bf16.msra.mxu0 0
        %3241 = vmatpush.bf16.msra.mxu0 0
        %3242 = vmatpush.bf16.msra.mxu0 0
        %3243 = vmatpush.bf16.msra.mxu0 0
        %3244 = vmatpush.bf16.msra.mxu0 %v3224
        %3245 = vmatpush.bf16.msra.mxu0 %v3222
        %3246 = vmatpush.bf16.msra.mxu0 %v3220
        %3247 = vmatpush.bf16.msra.mxu0 %v3218
        %3248 = vmatmul.bf16.gmra.mxu0 %v3235
        %v3249 = vpop.f32.mrf.mxu0
        %v3250 = vadd.f32 0.0, %v3249
        %v3251 = vpop.f32.mrf.mxu0
        %v3252 = vadd.f32 0.0, %v3251
        %3253 = vmatmul.bf16.gmra.mxu0 %v3238
        %v3254 = vpop.f32.mrf.mxu0
        %v3255 = vadd.f32 0.0, %v3254
        %v3256 = vpop.f32.mrf.mxu0
        %v3257 = vadd.f32 0.0, %v3256
        %3258 = vdwg.mxu0
        %3259 = vmatpush.bf16.msra.mxu0 0
        %3260 = vmatpush.bf16.msra.mxu0 0
        %3261 = vmatpush.bf16.msra.mxu0 0
        %3262 = vmatpush.bf16.msra.mxu0 0
        %3263 = vmatpush.bf16.msra.mxu0 %v3225
        %3264 = vmatpush.bf16.msra.mxu0 %v3223
        %3265 = vmatpush.bf16.msra.mxu0 %v3221
        %3266 = vmatpush.bf16.msra.mxu0 %v3219
        %3267 = vmatmul.bf16.gmra.mxu0 %v3235
        %v3268 = vpop.f32.mrf.mxu0
        %v3269 = vadd.f32 0.0, %v3268
        %v3270 = vpop.f32.mrf.mxu0
        %v3271 = vadd.f32 0.0, %v3270
        %3272 = vmatmul.bf16.gmra.mxu0 %v3238
        %v3273 = vpop.f32.mrf.mxu0
        %v3274 = vadd.f32 0.0, %v3273
        %v3275 = vpop.f32.mrf.mxu0
        %v3276 = vadd.f32 0.0, %v3275
        %3277 = vdwg.mxu0
        %v3278 = vadd.f32 %v3147, %v3250
        %v3279 = vadd.f32 %v3166, %v3269
        %v3280 = vadd.f32 %v3149, %v3252
        %v3281 = vadd.f32 %v3168, %v3271
        %v3282 = vadd.f32 %v3152, %v3255
        %v3283 = vadd.f32 %v3171, %v3274
        %v3284 = vadd.f32 %v3154, %v3257
        %v3285 = vadd.f32 %v3173, %v3276
        %s3286 = scalar_lea.vmem [#allocation6], 192
        %v3287 = vld [vmem:[%s3286] sm:$0xff]
        %v3288 = vld [vmem:[%s3286 + $0x8] sm:$0xff]
        %v3289 = vld [vmem:[%s3286 + $0x10] sm:$0xff]
        %v3290 = vld [vmem:[%s3286 + $0x18] sm:$0xff]
        %v3291 = vld [vmem:[%s3286 + $0x20] sm:$0xff]
        %v3292 = vld [vmem:[%s3286 + $0x28] sm:$0xff]
        %v3293 = vld [vmem:[%s3286 + $0x30] sm:$0xff]
        %v3294 = vld [vmem:[%s3286 + $0x38] sm:$0xff]
        %v3299 = vunpack.c.l.b16 %v2966
        %v3300 = vunpack.c.l.b16 %v2967
        %v3301 = vunpack.c.l.b16 %v2968
        %v3302 = vunpack.c.l.b16 %v2969
        %v3303 = vpack.c.b16 %v3300, %v3299
        %v3304 = vpack.c.b16 %v3302, %v3301
        %v3313 = vunpack.c.l.b16 %v3287
        %v3314 = vunpack.c.h.b16 %v3287
        %v3315 = vunpack.c.l.b16 %v3288
        %v3316 = vunpack.c.h.b16 %v3288
        %v3317 = vunpack.c.l.b16 %v3289
        %v3318 = vunpack.c.h.b16 %v3289
        %v3319 = vunpack.c.l.b16 %v3290
        %v3320 = vunpack.c.h.b16 %v3290
        %v3321 = vunpack.c.l.b16 %v3291
        %v3322 = vunpack.c.h.b16 %v3291
        %v3323 = vunpack.c.l.b16 %v3292
        %v3324 = vunpack.c.h.b16 %v3292
        %v3325 = vunpack.c.l.b16 %v3293
        %v3326 = vunpack.c.h.b16 %v3293
        %v3327 = vunpack.c.l.b16 %v3294
        %v3328 = vunpack.c.h.b16 %v3294
        %v3329 = vpack.c.b16 %v3315, %v3313
        %v3330 = vpack.c.b16 %v3316, %v3314
        %v3331 = vpack.c.b16 %v3319, %v3317
        %v3332 = vpack.c.b16 %v3320, %v3318
        %v3333 = vpack.c.b16 %v3323, %v3321
        %v3334 = vpack.c.b16 %v3324, %v3322
        %v3335 = vpack.c.b16 %v3327, %v3325
        %v3336 = vpack.c.b16 %v3328, %v3326
        %v3346 = vsel %vm1573, %v3303, 0
        %v3349 = vsel %vm1573, %v3304, 0
        %3351 = vmatpush.bf16.msra.mxu0 0
        %3352 = vmatpush.bf16.msra.mxu0 0
        %3353 = vmatpush.bf16.msra.mxu0 0
        %3354 = vmatpush.bf16.msra.mxu0 0
        %3355 = vmatpush.bf16.msra.mxu0 %v3335
        %3356 = vmatpush.bf16.msra.mxu0 %v3333
        %3357 = vmatpush.bf16.msra.mxu0 %v3331
        %3358 = vmatpush.bf16.msra.mxu0 %v3329
        %3359 = vmatmul.bf16.gmra.mxu0 %v3346
        %v3360 = vpop.f32.mrf.mxu0
        %v3361 = vadd.f32 0.0, %v3360
        %v3362 = vpop.f32.mrf.mxu0
        %v3363 = vadd.f32 0.0, %v3362
        %3364 = vmatmul.bf16.gmra.mxu0 %v3349
        %v3365 = vpop.f32.mrf.mxu0
        %v3366 = vadd.f32 0.0, %v3365
        %v3367 = vpop.f32.mrf.mxu0
        %v3368 = vadd.f32 0.0, %v3367
        %3369 = vdwg.mxu0
        %3370 = vmatpush.bf16.msra.mxu0 0
        %3371 = vmatpush.bf16.msra.mxu0 0
        %3372 = vmatpush.bf16.msra.mxu0 0
        %3373 = vmatpush.bf16.msra.mxu0 0
        %3374 = vmatpush.bf16.msra.mxu0 %v3336
        %3375 = vmatpush.bf16.msra.mxu0 %v3334
        %3376 = vmatpush.bf16.msra.mxu0 %v3332
        %3377 = vmatpush.bf16.msra.mxu0 %v3330
        %3378 = vmatmul.bf16.gmra.mxu0 %v3346
        %v3379 = vpop.f32.mrf.mxu0
        %v3380 = vadd.f32 0.0, %v3379
        %v3381 = vpop.f32.mrf.mxu0
        %v3382 = vadd.f32 0.0, %v3381
        %3383 = vmatmul.bf16.gmra.mxu0 %v3349
        %v3384 = vpop.f32.mrf.mxu0
        %v3385 = vadd.f32 0.0, %v3384
        %v3386 = vpop.f32.mrf.mxu0
        %v3387 = vadd.f32 0.0, %v3386
        %3388 = vdwg.mxu0
        %v3389 = vadd.f32 %v3278, %v3361
        %v3390 = vadd.f32 %v3279, %v3380
        %v3391 = vadd.f32 %v3280, %v3363
        %v3392 = vadd.f32 %v3281, %v3382
        %v3393 = vadd.f32 %v3282, %v3366
        %v3394 = vadd.f32 %v3283, %v3385
        %v3395 = vadd.f32 %v3284, %v3368
        %v3396 = vadd.f32 %v3285, %v3387
        %v3397 = vadd.s32 %v867, 128
        %vm3398 = vcmp.lt.s32.totalorder %v867, 0
        %v3399 = vsub.s32 0, %v867
        %v3400 = vsel %vm3398, %v3399, %v867
        %v3401 = vshrl.u32 %v3400, 4
        %v3402 = vand.u32 %v3400, 15
        %v3403 = vsub.s32 0, %v3402
        %v3404 = vsel %vm3398, %v3403, %v3402
        %vm3405 = vcmp.lt.s32.totalorder %v3397, 0
        %v3406 = vsub.s32 0, %v3397
        %v3407 = vsel %vm3405, %v3406, %v3397
        %v3408 = vshrl.u32 %v3407, 4
        %v3409 = vand.u32 %v3407, 15
        %v3410 = vsub.s32 0, %v3409
        %v3411 = vsel %vm3405, %v3410, %v3409
        %vm3412 = vcmp.ne.s32.totalorder %v3404, 0
        %vm3413 = vcmp.ne.s32.totalorder %v3411, 0
        %vm3414 = vcmp.lt.s32.totalorder %v3404, 0
        %vm3415 = vcmp.lt.s32.totalorder %v3411, 0
        %vm3416 = vmand %vm3414, %vm3412
        %vm3417 = vmand %vm3415, %vm3413
        %v3418 = vadd.s32 %v3404, 16
        %v3419 = vadd.s32 %v3411, 16
        %v3420 = vsel %vm3416, %v3418, %v3404
        %v3421 = vsel %vm3417, %v3419, %v3411
        %vm3422 = vcmp.ne.s32.totalorder %v3420, 0
        %vm3423 = vcmp.ne.s32.totalorder %v3421, 0
        %v3424 = vsel %vm3422, 1, 0
        %v3425 = vsel %vm3423, 1, 0
        %v3426 = vcvt.s32.f32 %v3424
        %v3427 = vcvt.s32.f32 %v3425
        %vm3428 = vcmp.ne.s32.totalorder %v3420, 15
        %vm3429 = vcmp.ne.s32.totalorder %v3421, 15
        %v3430 = vsel %vm3428, 1, 0
        %v3431 = vsel %vm3429, 1, 0
        %v3432 = vcvt.s32.f32 %v3430
        %v3433 = vcvt.s32.f32 %v3431
        %v3434 = vxor.u32 %v3389, 2147483648
        %v3435 = vxor.u32 %v3390, 2147483648
        %v3436 = vxor.u32 %v3391, 2147483648
        %v3437 = vxor.u32 %v3392, 2147483648
        %v3438 = vxor.u32 %v3393, 2147483648
        %v3439 = vxor.u32 %v3394, 2147483648
        %v3440 = vxor.u32 %v3395, 2147483648
        %v3441 = vxor.u32 %v3396, 2147483648
        %v3442 = vmul.f32 %v3434, 1.442695
        %v3443 = vpow.pop %v3442
        %v3444 = vmul.f32 %v3435, 1.442695
        %v3445 = vpow.pop %v3444
        %v3446 = vmul.f32 %v3436, 1.442695
        %v3447 = vpow.pop %v3446
        %v3448 = vmul.f32 %v3437, 1.442695
        %v3449 = vpow.pop %v3448
        %v3450 = vmul.f32 %v3438, 1.442695
        %v3451 = vpow.pop %v3450
        %v3452 = vmul.f32 %v3439, 1.442695
        %v3453 = vpow.pop %v3452
        %v3454 = vmul.f32 %v3440, 1.442695
        %v3455 = vpow.pop %v3454
        %v3456 = vmul.f32 %v3441, 1.442695
        %v3457 = vpow.pop %v3456
        %v3458 = vadd.f32 %v3443, 1.0
        %v3459 = vadd.f32 %v3445, 1.0
        %v3460 = vadd.f32 %v3447, 1.0
        %v3461 = vadd.f32 %v3449, 1.0
        %v3462 = vadd.f32 %v3451, 1.0
        %v3463 = vadd.f32 %v3453, 1.0
        %v3464 = vadd.f32 %v3455, 1.0
        %v3465 = vadd.f32 %v3457, 1.0
        %v3466 = vrcp.pop %v3458
        %v3467 = vmul.f32 %v3458, %v3466
        %v3468 = vsub.f32 1.0, %v3467
        %v3469 = vmul.f32 %v3466, %v3468
        %v3470 = vadd.f32 %v3466, %v3469
        %vm3471 = vweird.f32 %v3458
        %vm3472 = vweird.f32 %v3466
        %vm3473 = vmor %vm3471, %vm3472
        %v3474 = vsel %vm3473, %v3466, %v3470
        %v3475 = vand.u32 2147483647, %v3458
        %vm3476 = vcmp.eq.f32.partialorder %v3475, 8.507059e+37
        %v3477 = vand.u32 %v3458, 2147483648
        %v3478 = vor.u32 1.1754944e-38, %v3477
        %v3479 = vsel %vm3476, %v3478, %v3474
        %v3480 = vmul.f32 1.0, %v3479
        %v3481 = vrcp.pop %v3459
        %v3482 = vmul.f32 %v3459, %v3481
        %v3483 = vsub.f32 1.0, %v3482
        %v3484 = vmul.f32 %v3481, %v3483
        %v3485 = vadd.f32 %v3481, %v3484
        %vm3486 = vweird.f32 %v3459
        %vm3487 = vweird.f32 %v3481
        %vm3488 = vmor %vm3486, %vm3487
        %v3489 = vsel %vm3488, %v3481, %v3485
        %v3490 = vand.u32 2147483647, %v3459
        %vm3491 = vcmp.eq.f32.partialorder %v3490, 8.507059e+37
        %v3492 = vand.u32 %v3459, 2147483648
        %v3493 = vor.u32 1.1754944e-38, %v3492
        %v3494 = vsel %vm3491, %v3493, %v3489
        %v3495 = vmul.f32 1.0, %v3494
        %v3496 = vrcp.pop %v3460
        %v3497 = vmul.f32 %v3460, %v3496
        %v3498 = vsub.f32 1.0, %v3497
        %v3499 = vmul.f32 %v3496, %v3498
        %v3500 = vadd.f32 %v3496, %v3499
        %vm3501 = vweird.f32 %v3460
        %vm3502 = vweird.f32 %v3496
        %vm3503 = vmor %vm3501, %vm3502
        %v3504 = vsel %vm3503, %v3496, %v3500
        %v3505 = vand.u32 2147483647, %v3460
        %vm3506 = vcmp.eq.f32.partialorder %v3505, 8.507059e+37
        %v3507 = vand.u32 %v3460, 2147483648
        %v3508 = vor.u32 1.1754944e-38, %v3507
        %v3509 = vsel %vm3506, %v3508, %v3504
        %v3510 = vmul.f32 1.0, %v3509
        %v3511 = vrcp.pop %v3461
        %v3512 = vmul.f32 %v3461, %v3511
        %v3513 = vsub.f32 1.0, %v3512
        %v3514 = vmul.f32 %v3511, %v3513
        %v3515 = vadd.f32 %v3511, %v3514
        %vm3516 = vweird.f32 %v3461
        %vm3517 = vweird.f32 %v3511
        %vm3518 = vmor %vm3516, %vm3517
        %v3519 = vsel %vm3518, %v3511, %v3515
        %v3520 = vand.u32 2147483647, %v3461
        %vm3521 = vcmp.eq.f32.partialorder %v3520, 8.507059e+37
        %v3522 = vand.u32 %v3461, 2147483648
        %v3523 = vor.u32 1.1754944e-38, %v3522
        %v3524 = vsel %vm3521, %v3523, %v3519
        %v3525 = vmul.f32 1.0, %v3524
        %v3526 = vrcp.pop %v3462
        %v3527 = vmul.f32 %v3462, %v3526
        %v3528 = vsub.f32 1.0, %v3527
        %v3529 = vmul.f32 %v3526, %v3528
        %v3530 = vadd.f32 %v3526, %v3529
        %vm3531 = vweird.f32 %v3462
        %vm3532 = vweird.f32 %v3526
        %vm3533 = vmor %vm3531, %vm3532
        %v3534 = vsel %vm3533, %v3526, %v3530
        %v3535 = vand.u32 2147483647, %v3462
        %vm3536 = vcmp.eq.f32.partialorder %v3535, 8.507059e+37
        %v3537 = vand.u32 %v3462, 2147483648
        %v3538 = vor.u32 1.1754944e-38, %v3537
        %v3539 = vsel %vm3536, %v3538, %v3534
        %v3540 = vmul.f32 1.0, %v3539
        %v3541 = vrcp.pop %v3463
        %v3542 = vmul.f32 %v3463, %v3541
        %v3543 = vsub.f32 1.0, %v3542
        %v3544 = vmul.f32 %v3541, %v3543
        %v3545 = vadd.f32 %v3541, %v3544
        %vm3546 = vweird.f32 %v3463
        %vm3547 = vweird.f32 %v3541
        %vm3548 = vmor %vm3546, %vm3547
        %v3549 = vsel %vm3548, %v3541, %v3545
        %v3550 = vand.u32 2147483647, %v3463
        %vm3551 = vcmp.eq.f32.partialorder %v3550, 8.507059e+37
        %v3552 = vand.u32 %v3463, 2147483648
        %v3553 = vor.u32 1.1754944e-38, %v3552
        %v3554 = vsel %vm3551, %v3553, %v3549
        %v3555 = vmul.f32 1.0, %v3554
        %v3556 = vrcp.pop %v3464
        %v3557 = vmul.f32 %v3464, %v3556
        %v3558 = vsub.f32 1.0, %v3557
        %v3559 = vmul.f32 %v3556, %v3558
        %v3560 = vadd.f32 %v3556, %v3559
        %vm3561 = vweird.f32 %v3464
        %vm3562 = vweird.f32 %v3556
        %vm3563 = vmor %vm3561, %vm3562
        %v3564 = vsel %vm3563, %v3556, %v3560
        %v3565 = vand.u32 2147483647, %v3464
        %vm3566 = vcmp.eq.f32.partialorder %v3565, 8.507059e+37
        %v3567 = vand.u32 %v3464, 2147483648
        %v3568 = vor.u32 1.1754944e-38, %v3567
        %v3569 = vsel %vm3566, %v3568, %v3564
        %v3570 = vmul.f32 1.0, %v3569
        %v3571 = vrcp.pop %v3465
        %v3572 = vmul.f32 %v3465, %v3571
        %v3573 = vsub.f32 1.0, %v3572
        %v3574 = vmul.f32 %v3571, %v3573
        %v3575 = vadd.f32 %v3571, %v3574
        %vm3576 = vweird.f32 %v3465
        %vm3577 = vweird.f32 %v3571
        %vm3578 = vmor %vm3576, %vm3577
        %v3579 = vsel %vm3578, %v3571, %v3575
        %v3580 = vand.u32 2147483647, %v3465
        %vm3581 = vcmp.eq.f32.partialorder %v3580, 8.507059e+37
        %v3582 = vand.u32 %v3465, 2147483648
        %v3583 = vor.u32 1.1754944e-38, %v3582
        %v3584 = vsel %vm3581, %v3583, %v3579
        %v3585 = vmul.f32 1.0, %v3584
        %v3586 = vmul.f32 %v3389, %v3480
        %v3587 = vmul.f32 %v3390, %v3495
        %v3588 = vmul.f32 %v3391, %v3510
        %v3589 = vmul.f32 %v3392, %v3525
        %v3590 = vmul.f32 %v3393, %v3540
        %v3591 = vmul.f32 %v3394, %v3555
        %v3592 = vmul.f32 %v3395, %v3570
        %v3593 = vmul.f32 %v3396, %v3585
        %3602 = vrot.lane.b32.xlu0 %v3586, 17
        %v3603 = vpop.permute.xlu0 %3602
        %3604 = vrot.lane.b32.xlu0 %v3587, 17
        %v3605 = vpop.permute.xlu0 %3604
        %3606 = vrot.lane.b32.xlu0 %v3588, 17
        %v3607 = vpop.permute.xlu0 %3606
        %3608 = vrot.lane.b32.xlu0 %v3589, 17
        %v3609 = vpop.permute.xlu0 %3608
        %3610 = vrot.lane.b32.xlu0 %v3590, 17
        %v3611 = vpop.permute.xlu0 %3610
        %3612 = vrot.lane.b32.xlu0 %v3591, 17
        %v3613 = vpop.permute.xlu0 %3612
        %3614 = vrot.lane.b32.xlu0 %v3592, 17
        %v3615 = vpop.permute.xlu0 %3614
        %3616 = vrot.lane.b32.xlu0 %v3593, 17
        %v3617 = vpop.permute.xlu0 %3616
        %vm3618 = vcmask 138240
        %v3619 = vsel %vm3618, %v3603, %v3605
        %v3620 = vsel %vm3618, %v3607, %v3609
        %v3621 = vsel %vm3618, %v3611, %v3613
        %v3622 = vsel %vm3618, %v3615, %v3617
        %v3631 = vsel %vm3618, 0.0, %v3603
        %v3632 = vsel %vm3618, 0.0, %v3607
        %v3633 = vsel %vm3618, 0.0, %v3611
        %v3634 = vsel %vm3618, 0.0, %v3615
        %v3635 = vmul.f32 %v3631, %v3426
        %v3636 = vmul.f32 %v3619, %v3427
        %v3637 = vmul.f32 %v3632, %v3426
        %v3638 = vmul.f32 %v3620, %v3427
        %v3639 = vmul.f32 %v3633, %v3426
        %v3640 = vmul.f32 %v3621, %v3427
        %v3641 = vmul.f32 %v3634, %v3426
        %v3642 = vmul.f32 %v3622, %v3427
        %3643 = vrot.lane.b32.xlu0 %v3586, 16
        %v3644 = vpop.permute.xlu0 %3643
        %3645 = vrot.lane.b32.xlu0 %v3587, 16
        %v3646 = vpop.permute.xlu0 %3645
        %3647 = vrot.lane.b32.xlu0 %v3588, 16
        %v3648 = vpop.permute.xlu0 %3647
        %3649 = vrot.lane.b32.xlu0 %v3589, 16
        %v3650 = vpop.permute.xlu0 %3649
        %3651 = vrot.lane.b32.xlu0 %v3590, 16
        %v3652 = vpop.permute.xlu0 %3651
        %3653 = vrot.lane.b32.xlu0 %v3591, 16
        %v3654 = vpop.permute.xlu0 %3653
        %3655 = vrot.lane.b32.xlu0 %v3592, 16
        %v3656 = vpop.permute.xlu0 %3655
        %3657 = vrot.lane.b32.xlu0 %v3593, 16
        %v3658 = vpop.permute.xlu0 %3657
        %vm3659 = vcmask 130048
        %v3660 = vsel %vm3659, %v3644, %v3646
        %v3661 = vsel %vm3659, %v3648, %v3650
        %v3662 = vsel %vm3659, %v3652, %v3654
        %v3663 = vsel %vm3659, %v3656, %v3658
        %v3672 = vsel %vm3659, 0.0, %v3644
        %v3673 = vsel %vm3659, 0.0, %v3648
        %v3674 = vsel %vm3659, 0.0, %v3652
        %v3675 = vsel %vm3659, 0.0, %v3656
        %3676 = vrot.lane.b32.xlu0 %v3586, 15
        %v3677 = vpop.permute.xlu0 %3676
        %3678 = vrot.lane.b32.xlu0 %v3587, 15
        %v3679 = vpop.permute.xlu0 %3678
        %3680 = vrot.lane.b32.xlu0 %v3588, 15
        %v3681 = vpop.permute.xlu0 %3680
        %3682 = vrot.lane.b32.xlu0 %v3589, 15
        %v3683 = vpop.permute.xlu0 %3682
        %3684 = vrot.lane.b32.xlu0 %v3590, 15
        %v3685 = vpop.permute.xlu0 %3684
        %3686 = vrot.lane.b32.xlu0 %v3591, 15
        %v3687 = vpop.permute.xlu0 %3686
        %3688 = vrot.lane.b32.xlu0 %v3592, 15
        %v3689 = vpop.permute.xlu0 %3688
        %3690 = vrot.lane.b32.xlu0 %v3593, 15
        %v3691 = vpop.permute.xlu0 %3690
        %vm3692 = vcmask 121856
        %v3693 = vsel %vm3692, %v3677, %v3679
        %v3694 = vsel %vm3692, %v3681, %v3683
        %v3695 = vsel %vm3692, %v3685, %v3687
        %v3696 = vsel %vm3692, %v3689, %v3691
        %v3705 = vsel %vm3692, 0.0, %v3677
        %v3706 = vsel %vm3692, 0.0, %v3681
        %v3707 = vsel %vm3692, 0.0, %v3685
        %v3708 = vsel %vm3692, 0.0, %v3689
        %v3709 = vmul.f32 %v3705, %v3432
        %v3710 = vmul.f32 %v3693, %v3433
        %v3711 = vmul.f32 %v3706, %v3432
        %v3712 = vmul.f32 %v3694, %v3433
        %v3713 = vmul.f32 %v3707, %v3432
        %v3714 = vmul.f32 %v3695, %v3433
        %v3715 = vmul.f32 %v3708, %v3432
        %v3716 = vmul.f32 %v3696, %v3433
        %3717 = vrot.lane.b32.xlu0 %v3586, 1
        %v3718 = vpop.permute.xlu0 %3717
        %3719 = vrot.lane.b32.xlu0 %v3587, 1
        %v3720 = vpop.permute.xlu0 %3719
        %3721 = vrot.lane.b32.xlu0 %v3588, 1
        %v3722 = vpop.permute.xlu0 %3721
        %3723 = vrot.lane.b32.xlu0 %v3589, 1
        %v3724 = vpop.permute.xlu0 %3723
        %3725 = vrot.lane.b32.xlu0 %v3590, 1
        %v3726 = vpop.permute.xlu0 %3725
        %3727 = vrot.lane.b32.xlu0 %v3591, 1
        %v3728 = vpop.permute.xlu0 %3727
        %3729 = vrot.lane.b32.xlu0 %v3592, 1
        %v3730 = vpop.permute.xlu0 %3729
        %3731 = vrot.lane.b32.xlu0 %v3593, 1
        %v3732 = vpop.permute.xlu0 %3731
        %v3733 = vsel %vm1192, %v3718, %v3720
        %v3734 = vsel %vm1192, %v3722, %v3724
        %v3735 = vsel %vm1192, %v3726, %v3728
        %v3736 = vsel %vm1192, %v3730, %v3732
        %v3745 = vsel %vm1192, 0.0, %v3718
        %v3746 = vsel %vm1192, 0.0, %v3722
        %v3747 = vsel %vm1192, 0.0, %v3726
        %v3748 = vsel %vm1192, 0.0, %v3730
        %v3749 = vmul.f32 %v3745, %v3426
        %v3750 = vmul.f32 %v3733, %v3427
        %v3751 = vmul.f32 %v3746, %v3426
        %v3752 = vmul.f32 %v3734, %v3427
        %v3753 = vmul.f32 %v3747, %v3426
        %v3754 = vmul.f32 %v3735, %v3427
        %v3755 = vmul.f32 %v3748, %v3426
        %v3756 = vmul.f32 %v3736, %v3427
        %3757 = vrot.lane.b32.xlu0 %v3586, 127
        %v3758 = vpop.permute.xlu0 %3757
        %3759 = vrot.lane.b32.xlu0 %v3587, 127
        %v3760 = vpop.permute.xlu0 %3759
        %3761 = vrot.lane.b32.xlu0 %v3588, 127
        %v3762 = vpop.permute.xlu0 %3761
        %3763 = vrot.lane.b32.xlu0 %v3589, 127
        %v3764 = vpop.permute.xlu0 %3763
        %3765 = vrot.lane.b32.xlu0 %v3590, 127
        %v3766 = vpop.permute.xlu0 %3765
        %3767 = vrot.lane.b32.xlu0 %v3591, 127
        %v3768 = vpop.permute.xlu0 %3767
        %3769 = vrot.lane.b32.xlu0 %v3592, 127
        %v3770 = vpop.permute.xlu0 %3769
        %3771 = vrot.lane.b32.xlu0 %v3593, 127
        %v3772 = vpop.permute.xlu0 %3771
        %vm3773 = vcmask 1039360
        %v3774 = vsel %vm3773, %v3758, %v3760
        %v3775 = vsel %vm3773, %v3762, %v3764
        %v3776 = vsel %vm3773, %v3766, %v3768
        %v3777 = vsel %vm3773, %v3770, %v3772
        %v3786 = vsel %vm3773, %v3760, 0.0
        %v3787 = vsel %vm3773, %v3764, 0.0
        %v3788 = vsel %vm3773, %v3768, 0.0
        %v3789 = vsel %vm3773, %v3772, 0.0
        %v3790 = vmul.f32 %v3774, %v3432
        %v3791 = vmul.f32 %v3786, %v3433
        %v3792 = vmul.f32 %v3775, %v3432
        %v3793 = vmul.f32 %v3787, %v3433
        %v3794 = vmul.f32 %v3776, %v3432
        %v3795 = vmul.f32 %v3788, %v3433
        %v3796 = vmul.f32 %v3777, %v3432
        %v3797 = vmul.f32 %v3789, %v3433
        %3798 = vrot.lane.b32.xlu0 %v3586, 113
        %v3799 = vpop.permute.xlu0 %3798
        %3800 = vrot.lane.b32.xlu0 %v3587, 113
        %v3801 = vpop.permute.xlu0 %3800
        %3802 = vrot.lane.b32.xlu0 %v3588, 113
        %v3803 = vpop.permute.xlu0 %3802
        %3804 = vrot.lane.b32.xlu0 %v3589, 113
        %v3805 = vpop.permute.xlu0 %3804
        %3806 = vrot.lane.b32.xlu0 %v3590, 113
        %v3807 = vpop.permute.xlu0 %3806
        %3808 = vrot.lane.b32.xlu0 %v3591, 113
        %v3809 = vpop.permute.xlu0 %3808
        %3810 = vrot.lane.b32.xlu0 %v3592, 113
        %v3811 = vpop.permute.xlu0 %3810
        %3812 = vrot.lane.b32.xlu0 %v3593, 113
        %v3813 = vpop.permute.xlu0 %3812
        %vm3814 = vcmask 924672
        %v3815 = vsel %vm3814, %v3799, %v3801
        %v3816 = vsel %vm3814, %v3803, %v3805
        %v3817 = vsel %vm3814, %v3807, %v3809
        %v3818 = vsel %vm3814, %v3811, %v3813
        %v3827 = vsel %vm3814, %v3801, 0.0
        %v3828 = vsel %vm3814, %v3805, 0.0
        %v3829 = vsel %vm3814, %v3809, 0.0
        %v3830 = vsel %vm3814, %v3813, 0.0
        %v3831 = vmul.f32 %v3815, %v3426
        %v3832 = vmul.f32 %v3827, %v3427
        %v3833 = vmul.f32 %v3816, %v3426
        %v3834 = vmul.f32 %v3828, %v3427
        %v3835 = vmul.f32 %v3817, %v3426
        %v3836 = vmul.f32 %v3829, %v3427
        %v3837 = vmul.f32 %v3818, %v3426
        %v3838 = vmul.f32 %v3830, %v3427
        %3839 = vrot.lane.b32.xlu0 %v3586, 112
        %v3840 = vpop.permute.xlu0 %3839
        %3841 = vrot.lane.b32.xlu0 %v3587, 112
        %v3842 = vpop.permute.xlu0 %3841
        %3843 = vrot.lane.b32.xlu0 %v3588, 112
        %v3844 = vpop.permute.xlu0 %3843
        %3845 = vrot.lane.b32.xlu0 %v3589, 112
        %v3846 = vpop.permute.xlu0 %3845
        %3847 = vrot.lane.b32.xlu0 %v3590, 112
        %v3848 = vpop.permute.xlu0 %3847
        %3849 = vrot.lane.b32.xlu0 %v3591, 112
        %v3850 = vpop.permute.xlu0 %3849
        %3851 = vrot.lane.b32.xlu0 %v3592, 112
        %v3852 = vpop.permute.xlu0 %3851
        %3853 = vrot.lane.b32.xlu0 %v3593, 112
        %v3854 = vpop.permute.xlu0 %3853
        %vm3855 = vcmask 916480
        %v3856 = vsel %vm3855, %v3840, %v3842
        %v3857 = vsel %vm3855, %v3844, %v3846
        %v3858 = vsel %vm3855, %v3848, %v3850
        %v3859 = vsel %vm3855, %v3852, %v3854
        %v3868 = vsel %vm3855, %v3842, 0.0
        %v3869 = vsel %vm3855, %v3846, 0.0
        %v3870 = vsel %vm3855, %v3850, 0.0
        %v3871 = vsel %vm3855, %v3854, 0.0
        %3872 = vrot.lane.b32.xlu0 %v3586, 111
        %v3873 = vpop.permute.xlu0 %3872
        %3874 = vrot.lane.b32.xlu0 %v3587, 111
        %v3875 = vpop.permute.xlu0 %3874
        %3876 = vrot.lane.b32.xlu0 %v3588, 111
        %v3877 = vpop.permute.xlu0 %3876
        %3878 = vrot.lane.b32.xlu0 %v3589, 111
        %v3879 = vpop.permute.xlu0 %3878
        %3880 = vrot.lane.b32.xlu0 %v3590, 111
        %v3881 = vpop.permute.xlu0 %3880
        %3882 = vrot.lane.b32.xlu0 %v3591, 111
        %v3883 = vpop.permute.xlu0 %3882
        %3884 = vrot.lane.b32.xlu0 %v3592, 111
        %v3885 = vpop.permute.xlu0 %3884
        %3886 = vrot.lane.b32.xlu0 %v3593, 111
        %v3887 = vpop.permute.xlu0 %3886
        %vm3888 = vcmask 908288
        %v3889 = vsel %vm3888, %v3873, %v3875
        %v3890 = vsel %vm3888, %v3877, %v3879
        %v3891 = vsel %vm3888, %v3881, %v3883
        %v3892 = vsel %vm3888, %v3885, %v3887
        %v3901 = vsel %vm3888, %v3875, 0.0
        %v3902 = vsel %vm3888, %v3879, 0.0
        %v3903 = vsel %vm3888, %v3883, 0.0
        %v3904 = vsel %vm3888, %v3887, 0.0
        %v3905 = vmul.f32 %v3889, %v3432
        %v3906 = vmul.f32 %v3901, %v3433
        %v3907 = vmul.f32 %v3890, %v3432
        %v3908 = vmul.f32 %v3902, %v3433
        %v3909 = vmul.f32 %v3891, %v3432
        %v3910 = vmul.f32 %v3903, %v3433
        %v3911 = vmul.f32 %v3892, %v3432
        %v3912 = vmul.f32 %v3904, %v3433
        %v3913 = vpack.c.bf16 %v3637, %v3635
        %v3914 = vpack.c.bf16 %v3638, %v3636
        %v3915 = vpack.c.bf16 %v3641, %v3639
        %v3916 = vpack.c.bf16 %v3642, %v3640
        %v3917 = vpack.c.bf16 %v3673, %v3672
        %v3918 = vpack.c.bf16 %v3661, %v3660
        %v3919 = vpack.c.bf16 %v3675, %v3674
        %v3920 = vpack.c.bf16 %v3663, %v3662
        %v3921 = vpack.c.bf16 %v3711, %v3709
        %v3922 = vpack.c.bf16 %v3712, %v3710
        %v3923 = vpack.c.bf16 %v3715, %v3713
        %v3924 = vpack.c.bf16 %v3716, %v3714
        %v3925 = vpack.c.bf16 %v3751, %v3749
        %v3926 = vpack.c.bf16 %v3752, %v3750
        %v3927 = vpack.c.bf16 %v3755, %v3753
        %v3928 = vpack.c.bf16 %v3756, %v3754
        %v3929 = vpack.c.bf16 %v3588, %v3586
        %v3930 = vpack.c.bf16 %v3589, %v3587
        %v3931 = vpack.c.bf16 %v3592, %v3590
        %v3932 = vpack.c.bf16 %v3593, %v3591
        %v3933 = vpack.c.bf16 %v3792, %v3790
        %v3934 = vpack.c.bf16 %v3793, %v3791
        %v3935 = vpack.c.bf16 %v3796, %v3794
        %v3936 = vpack.c.bf16 %v3797, %v3795
        %v3937 = vpack.c.bf16 %v3833, %v3831
        %v3938 = vpack.c.bf16 %v3834, %v3832
        %v3939 = vpack.c.bf16 %v3837, %v3835
        %v3940 = vpack.c.bf16 %v3838, %v3836
        %v3941 = vpack.c.bf16 %v3857, %v3856
        %v3942 = vpack.c.bf16 %v3869, %v3868
        %v3943 = vpack.c.bf16 %v3859, %v3858
        %v3944 = vpack.c.bf16 %v3871, %v3870
        %v3945 = vpack.c.bf16 %v3907, %v3905
        %v3946 = vpack.c.bf16 %v3908, %v3906
        %v3947 = vpack.c.bf16 %v3911, %v3909
        %v3948 = vpack.c.bf16 %v3912, %v3910
        %v3949 = vld [vmem:[#allocation7] sm:$0xff]
        %v3950 = vld [vmem:[#allocation7 + $0x8] sm:$0xf]
        %v3951 = vld [vmem:[#allocation7 + $0xc] sm:$0xff]
        %v3952 = vld [vmem:[#allocation7 + $0x14] sm:$0xf]
        %v3953 = vld [vmem:[#allocation7 + $0x18] sm:$0xff]
        %v3954 = vld [vmem:[#allocation7 + $0x20] sm:$0xf]
        %v3955 = vld [vmem:[#allocation7 + $0x24] sm:$0xff]
        %v3956 = vld [vmem:[#allocation7 + $0x2c] sm:$0xf]
        %v3957 = vld [vmem:[%s12] sm:$0xff]
        %v3958 = vld [vmem:[%s12 + $0x8] sm:$0xff]
        %v3959 = vld [vmem:[%s12 + $0x10] sm:$0xff]
        %v3960 = vld [vmem:[%s12 + $0x18] sm:$0xff]
        %3962 = vset.pattern.permute.xlu0 0
        %3963 = vperm.xlu0 %3962, %v3957
        %v3964 = vpop.permute.xlu0 %3963
        %3967 = vset.pattern.permute.xlu0 0
        %3968 = vperm.xlu0 %3967, %v3958
        %v3969 = vpop.permute.xlu0 %3968
        %3972 = vset.pattern.permute.xlu0 0
        %3973 = vperm.xlu0 %3972, %v3959
        %v3974 = vpop.permute.xlu0 %3973
        %3977 = vset.pattern.permute.xlu0 0
        %3978 = vperm.xlu0 %3977, %v3960
        %v3979 = vpop.permute.xlu0 %3978
        %v3989 = vunpack.c.l.b16 %v3949
        %v3990 = vunpack.c.h.b16 %v3949
        %v3991 = vunpack.c.l.b16 %v3950
        %v3992 = vunpack.c.l.b16 %v3951
        %v3993 = vunpack.c.h.b16 %v3951
        %v3994 = vunpack.c.l.b16 %v3952
        %v3995 = vunpack.c.l.b16 %v3953
        %v3996 = vunpack.c.h.b16 %v3953
        %v3997 = vunpack.c.l.b16 %v3954
        %v3998 = vunpack.c.l.b16 %v3955
        %v3999 = vunpack.c.h.b16 %v3955
        %v4000 = vunpack.c.l.b16 %v3956
        %v4001 = vpack.c.b16 %v3992, %v3989
        %v4002 = vpack.c.b16 %v3993, %v3990
        %v4003 = vpack.c.b16 %v3994, %v3991
        %v4004 = vpack.c.b16 %v3998, %v3995
        %v4005 = vpack.c.b16 %v3999, %v3996
        %v4006 = vpack.c.b16 %v4000, %v3997
        %vm4011 = vcmask 261120
        %v4013 = vsel %vm4011, %v4003, 0
        %v4016 = vsel %vm4011, %v4006, 0
        %4018 = vmatpush.bf16.msra.mxu0 %v3927
        %4019 = vmatpush.bf16.msra.mxu0 %v3925
        %4020 = vmatpush.bf16.msra.mxu0 %v3923
        %4021 = vmatpush.bf16.msra.mxu0 %v3921
        %4022 = vmatpush.bf16.msra.mxu0 %v3919
        %4023 = vmatpush.bf16.msra.mxu0 %v3917
        %4024 = vmatpush.bf16.msra.mxu0 %v3915
        %4025 = vmatpush.bf16.msra.mxu0 %v3913
        %4026 = vmatmul.bf16.gmra.mxu0 %v4001
        %v4027 = vpop.f32.mrf.mxu0
        %v4028 = vadd.f32 %v3964, %v4027
        %v4029 = vpop.f32.mrf.mxu0
        %v4030 = vadd.f32 %v3969, %v4029
        %4031 = vmatmul.bf16.gmra.mxu0 %v4004
        %v4032 = vpop.f32.mrf.mxu0
        %v4033 = vadd.f32 %v3974, %v4032
        %v4034 = vpop.f32.mrf.mxu0
        %v4035 = vadd.f32 %v3979, %v4034
        %4036 = vdwg.mxu0
        %4037 = vmatpush.bf16.msra.mxu0 %v3943
        %4038 = vmatpush.bf16.msra.mxu0 %v3941
        %4039 = vmatpush.bf16.msra.mxu0 %v3939
        %4040 = vmatpush.bf16.msra.mxu0 %v3937
        %4041 = vmatpush.bf16.msra.mxu0 %v3935
        %4042 = vmatpush.bf16.msra.mxu0 %v3933
        %4043 = vmatpush.bf16.msra.mxu0 %v3931
        %4044 = vmatpush.bf16.msra.mxu0 %v3929
        %4045 = vmatmul.bf16.gmra.mxu0 %v4002
        %v4046 = vpop.f32.mrf.mxu0
        %v4047 = vadd.f32 %v4028, %v4046
        %v4048 = vpop.f32.mrf.mxu0
        %v4049 = vadd.f32 %v4030, %v4048
        %4050 = vmatmul.bf16.gmra.mxu0 %v4005
        %v4051 = vpop.f32.mrf.mxu0
        %v4052 = vadd.f32 %v4033, %v4051
        %v4053 = vpop.f32.mrf.mxu0
        %v4054 = vadd.f32 %v4035, %v4053
        %4055 = vdwg.mxu0
        %4056 = vmatpush.bf16.msra.mxu0 0
        %4057 = vmatpush.bf16.msra.mxu0 0
        %4058 = vmatpush.bf16.msra.mxu0 0
        %4059 = vmatpush.bf16.msra.mxu0 0
        %4060 = vmatpush.bf16.msra.mxu0 0
        %4061 = vmatpush.bf16.msra.mxu0 0
        %4062 = vmatpush.bf16.msra.mxu0 %v3947
        %4063 = vmatpush.bf16.msra.mxu0 %v3945
        %4064 = vmatmul.bf16.gmra.mxu0 %v4013
        %v4065 = vpop.f32.mrf.mxu0
        %v4066 = vadd.f32 %v4047, %v4065
        %v4067 = vpop.f32.mrf.mxu0
        %v4068 = vadd.f32 %v4049, %v4067
        %4069 = vmatmul.bf16.gmra.mxu0 %v4016
        %v4070 = vpop.f32.mrf.mxu0
        %v4071 = vadd.f32 %v4052, %v4070
        %v4072 = vpop.f32.mrf.mxu0
        %v4073 = vadd.f32 %v4054, %v4072
        %4074 = vdwg.mxu0
        %4075 = vmatpush.bf16.msra.mxu0 %v3928
        %4076 = vmatpush.bf16.msra.mxu0 %v3926
        %4077 = vmatpush.bf16.msra.mxu0 %v3924
        %4078 = vmatpush.bf16.msra.mxu0 %v3922
        %4079 = vmatpush.bf16.msra.mxu0 %v3920
        %4080 = vmatpush.bf16.msra.mxu0 %v3918
        %4081 = vmatpush.bf16.msra.mxu0 %v3916
        %4082 = vmatpush.bf16.msra.mxu0 %v3914
        %4083 = vmatmul.bf16.gmra.mxu0 %v4001
        %v4084 = vpop.f32.mrf.mxu0
        %v4085 = vadd.f32 %v3964, %v4084
        %v4086 = vpop.f32.mrf.mxu0
        %v4087 = vadd.f32 %v3969, %v4086
        %4088 = vmatmul.bf16.gmra.mxu0 %v4004
        %v4089 = vpop.f32.mrf.mxu0
        %v4090 = vadd.f32 %v3974, %v4089
        %v4091 = vpop.f32.mrf.mxu0
        %v4092 = vadd.f32 %v3979, %v4091
        %4093 = vdwg.mxu0
        %4094 = vmatpush.bf16.msra.mxu0 %v3944
        %4095 = vmatpush.bf16.msra.mxu0 %v3942
        %4096 = vmatpush.bf16.msra.mxu0 %v3940
        %4097 = vmatpush.bf16.msra.mxu0 %v3938
        %4098 = vmatpush.bf16.msra.mxu0 %v3936
        %4099 = vmatpush.bf16.msra.mxu0 %v3934
        %4100 = vmatpush.bf16.msra.mxu0 %v3932
        %4101 = vmatpush.bf16.msra.mxu0 %v3930
        %4102 = vmatmul.bf16.gmra.mxu0 %v4002
        %v4103 = vpop.f32.mrf.mxu0
        %v4104 = vadd.f32 %v4085, %v4103
        %v4105 = vpop.f32.mrf.mxu0
        %v4106 = vadd.f32 %v4087, %v4105
        %4107 = vmatmul.bf16.gmra.mxu0 %v4005
        %v4108 = vpop.f32.mrf.mxu0
        %v4109 = vadd.f32 %v4090, %v4108
        %v4110 = vpop.f32.mrf.mxu0
        %v4111 = vadd.f32 %v4092, %v4110
        %4112 = vdwg.mxu0
        %4113 = vmatpush.bf16.msra.mxu0 0
        %4114 = vmatpush.bf16.msra.mxu0 0
        %4115 = vmatpush.bf16.msra.mxu0 0
        %4116 = vmatpush.bf16.msra.mxu0 0
        %4117 = vmatpush.bf16.msra.mxu0 0
        %4118 = vmatpush.bf16.msra.mxu0 0
        %4119 = vmatpush.bf16.msra.mxu0 %v3948
        %4120 = vmatpush.bf16.msra.mxu0 %v3946
        %4121 = vmatmul.bf16.gmra.mxu0 %v4013
        %v4122 = vpop.f32.mrf.mxu0
        %v4123 = vadd.f32 %v4104, %v4122
        %v4124 = vpop.f32.mrf.mxu0
        %v4125 = vadd.f32 %v4106, %v4124
        %4126 = vmatmul.bf16.gmra.mxu0 %v4016
        %v4127 = vpop.f32.mrf.mxu0
        %v4128 = vadd.f32 %v4109, %v4127
        %v4129 = vpop.f32.mrf.mxu0
        %v4130 = vadd.f32 %v4111, %v4129
        %4131 = vdwg.mxu0
        %v4132 = vxor.u32 %v4066, 2147483648
        %v4133 = vxor.u32 %v4123, 2147483648
        %v4134 = vxor.u32 %v4068, 2147483648
        %v4135 = vxor.u32 %v4125, 2147483648
        %v4136 = vxor.u32 %v4071, 2147483648
        %v4137 = vxor.u32 %v4128, 2147483648
        %v4138 = vxor.u32 %v4073, 2147483648
        %v4139 = vxor.u32 %v4130, 2147483648
        %v4140 = vmul.f32 %v4132, 1.442695
        %v4141 = vpow.pop %v4140
        %v4142 = vmul.f32 %v4133, 1.442695
        %v4143 = vpow.pop %v4142
        %v4144 = vmul.f32 %v4134, 1.442695
        %v4145 = vpow.pop %v4144
        %v4146 = vmul.f32 %v4135, 1.442695
        %v4147 = vpow.pop %v4146
        %v4148 = vmul.f32 %v4136, 1.442695
        %v4149 = vpow.pop %v4148
        %v4150 = vmul.f32 %v4137, 1.442695
        %v4151 = vpow.pop %v4150
        %v4152 = vmul.f32 %v4138, 1.442695
        %v4153 = vpow.pop %v4152
        %v4154 = vmul.f32 %v4139, 1.442695
        %v4155 = vpow.pop %v4154
        %v4156 = vadd.f32 %v4141, 1.0
        %v4157 = vadd.f32 %v4143, 1.0
        %v4158 = vadd.f32 %v4145, 1.0
        %v4159 = vadd.f32 %v4147, 1.0
        %v4160 = vadd.f32 %v4149, 1.0
        %v4161 = vadd.f32 %v4151, 1.0
        %v4162 = vadd.f32 %v4153, 1.0
        %v4163 = vadd.f32 %v4155, 1.0
        %v4164 = vrcp.pop %v4156
        %v4165 = vmul.f32 %v4156, %v4164
        %v4166 = vsub.f32 1.0, %v4165
        %v4167 = vmul.f32 %v4164, %v4166
        %v4168 = vadd.f32 %v4164, %v4167
        %vm4169 = vweird.f32 %v4156
        %vm4170 = vweird.f32 %v4164
        %vm4171 = vmor %vm4169, %vm4170
        %v4172 = vsel %vm4171, %v4164, %v4168
        %v4173 = vand.u32 2147483647, %v4156
        %vm4174 = vcmp.eq.f32.partialorder %v4173, 8.507059e+37
        %v4175 = vand.u32 %v4156, 2147483648
        %v4176 = vor.u32 1.1754944e-38, %v4175
        %v4177 = vsel %vm4174, %v4176, %v4172
        %v4178 = vmul.f32 1.0, %v4177
        %v4179 = vrcp.pop %v4157
        %v4180 = vmul.f32 %v4157, %v4179
        %v4181 = vsub.f32 1.0, %v4180
        %v4182 = vmul.f32 %v4179, %v4181
        %v4183 = vadd.f32 %v4179, %v4182
        %vm4184 = vweird.f32 %v4157
        %vm4185 = vweird.f32 %v4179
        %vm4186 = vmor %vm4184, %vm4185
        %v4187 = vsel %vm4186, %v4179, %v4183
        %v4188 = vand.u32 2147483647, %v4157
        %vm4189 = vcmp.eq.f32.partialorder %v4188, 8.507059e+37
        %v4190 = vand.u32 %v4157, 2147483648
        %v4191 = vor.u32 1.1754944e-38, %v4190
        %v4192 = vsel %vm4189, %v4191, %v4187
        %v4193 = vmul.f32 1.0, %v4192
        %v4194 = vrcp.pop %v4158
        %v4195 = vmul.f32 %v4158, %v4194
        %v4196 = vsub.f32 1.0, %v4195
        %v4197 = vmul.f32 %v4194, %v4196
        %v4198 = vadd.f32 %v4194, %v4197
        %vm4199 = vweird.f32 %v4158
        %vm4200 = vweird.f32 %v4194
        %vm4201 = vmor %vm4199, %vm4200
        %v4202 = vsel %vm4201, %v4194, %v4198
        %v4203 = vand.u32 2147483647, %v4158
        %vm4204 = vcmp.eq.f32.partialorder %v4203, 8.507059e+37
        %v4205 = vand.u32 %v4158, 2147483648
        %v4206 = vor.u32 1.1754944e-38, %v4205
        %v4207 = vsel %vm4204, %v4206, %v4202
        %v4208 = vmul.f32 1.0, %v4207
        %v4209 = vrcp.pop %v4159
        %v4210 = vmul.f32 %v4159, %v4209
        %v4211 = vsub.f32 1.0, %v4210
        %v4212 = vmul.f32 %v4209, %v4211
        %v4213 = vadd.f32 %v4209, %v4212
        %vm4214 = vweird.f32 %v4159
        %vm4215 = vweird.f32 %v4209
        %vm4216 = vmor %vm4214, %vm4215
        %v4217 = vsel %vm4216, %v4209, %v4213
        %v4218 = vand.u32 2147483647, %v4159
        %vm4219 = vcmp.eq.f32.partialorder %v4218, 8.507059e+37
        %v4220 = vand.u32 %v4159, 2147483648
        %v4221 = vor.u32 1.1754944e-38, %v4220
        %v4222 = vsel %vm4219, %v4221, %v4217
        %v4223 = vmul.f32 1.0, %v4222
        %v4224 = vrcp.pop %v4160
        %v4225 = vmul.f32 %v4160, %v4224
        %v4226 = vsub.f32 1.0, %v4225
        %v4227 = vmul.f32 %v4224, %v4226
        %v4228 = vadd.f32 %v4224, %v4227
        %vm4229 = vweird.f32 %v4160
        %vm4230 = vweird.f32 %v4224
        %vm4231 = vmor %vm4229, %vm4230
        %v4232 = vsel %vm4231, %v4224, %v4228
        %v4233 = vand.u32 2147483647, %v4160
        %vm4234 = vcmp.eq.f32.partialorder %v4233, 8.507059e+37
        %v4235 = vand.u32 %v4160, 2147483648
        %v4236 = vor.u32 1.1754944e-38, %v4235
        %v4237 = vsel %vm4234, %v4236, %v4232
        %v4238 = vmul.f32 1.0, %v4237
        %v4239 = vrcp.pop %v4161
        %v4240 = vmul.f32 %v4161, %v4239
        %v4241 = vsub.f32 1.0, %v4240
        %v4242 = vmul.f32 %v4239, %v4241
        %v4243 = vadd.f32 %v4239, %v4242
        %vm4244 = vweird.f32 %v4161
        %vm4245 = vweird.f32 %v4239
        %vm4246 = vmor %vm4244, %vm4245
        %v4247 = vsel %vm4246, %v4239, %v4243
        %v4248 = vand.u32 2147483647, %v4161
        %vm4249 = vcmp.eq.f32.partialorder %v4248, 8.507059e+37
        %v4250 = vand.u32 %v4161, 2147483648
        %v4251 = vor.u32 1.1754944e-38, %v4250
        %v4252 = vsel %vm4249, %v4251, %v4247
        %v4253 = vmul.f32 1.0, %v4252
        %v4254 = vrcp.pop %v4162
        %v4255 = vmul.f32 %v4162, %v4254
        %v4256 = vsub.f32 1.0, %v4255
        %v4257 = vmul.f32 %v4254, %v4256
        %v4258 = vadd.f32 %v4254, %v4257
        %vm4259 = vweird.f32 %v4162
        %vm4260 = vweird.f32 %v4254
        %vm4261 = vmor %vm4259, %vm4260
        %v4262 = vsel %vm4261, %v4254, %v4258
        %v4263 = vand.u32 2147483647, %v4162
        %vm4264 = vcmp.eq.f32.partialorder %v4263, 8.507059e+37
        %v4265 = vand.u32 %v4162, 2147483648
        %v4266 = vor.u32 1.1754944e-38, %v4265
        %v4267 = vsel %vm4264, %v4266, %v4262
        %v4268 = vmul.f32 1.0, %v4267
        %v4269 = vrcp.pop %v4163
        %v4270 = vmul.f32 %v4163, %v4269
        %v4271 = vsub.f32 1.0, %v4270
        %v4272 = vmul.f32 %v4269, %v4271
        %v4273 = vadd.f32 %v4269, %v4272
        %vm4274 = vweird.f32 %v4163
        %vm4275 = vweird.f32 %v4269
        %vm4276 = vmor %vm4274, %vm4275
        %v4277 = vsel %vm4276, %v4269, %v4273
        %v4278 = vand.u32 2147483647, %v4163
        %vm4279 = vcmp.eq.f32.partialorder %v4278, 8.507059e+37
        %v4280 = vand.u32 %v4163, 2147483648
        %v4281 = vor.u32 1.1754944e-38, %v4280
        %v4282 = vsel %vm4279, %v4281, %v4277
        %v4283 = vmul.f32 1.0, %v4282
        %v4284 = vmul.f32 %v4066, %v4178
        %v4285 = vmul.f32 %v4123, %v4193
        %v4286 = vmul.f32 %v4068, %v4208
        %v4287 = vmul.f32 %v4125, %v4223
        %v4288 = vmul.f32 %v4071, %v4238
        %v4289 = vmul.f32 %v4128, %v4253
        %v4290 = vmul.f32 %v4073, %v4268
        %v4291 = vmul.f32 %v4130, %v4283
        %4300 = vrot.lane.b32.xlu0 %v4284, 17
        %v4301 = vpop.permute.xlu0 %4300
        %4302 = vrot.lane.b32.xlu0 %v4285, 17
        %v4303 = vpop.permute.xlu0 %4302
        %4304 = vrot.lane.b32.xlu0 %v4286, 17
        %v4305 = vpop.permute.xlu0 %4304
        %4306 = vrot.lane.b32.xlu0 %v4287, 17
        %v4307 = vpop.permute.xlu0 %4306
        %4308 = vrot.lane.b32.xlu0 %v4288, 17
        %v4309 = vpop.permute.xlu0 %4308
        %4310 = vrot.lane.b32.xlu0 %v4289, 17
        %v4311 = vpop.permute.xlu0 %4310
        %4312 = vrot.lane.b32.xlu0 %v4290, 17
        %v4313 = vpop.permute.xlu0 %4312
        %4314 = vrot.lane.b32.xlu0 %v4291, 17
        %v4315 = vpop.permute.xlu0 %4314
        %v4316 = vsel %vm3618, %v4301, %v4303
        %v4317 = vsel %vm3618, %v4305, %v4307
        %v4318 = vsel %vm3618, %v4309, %v4311
        %v4319 = vsel %vm3618, %v4313, %v4315
        %v4328 = vsel %vm3618, 0.0, %v4301
        %v4329 = vsel %vm3618, 0.0, %v4305
        %v4330 = vsel %vm3618, 0.0, %v4309
        %v4331 = vsel %vm3618, 0.0, %v4313
        %v4332 = vmul.f32 %v4328, %v3426
        %v4333 = vmul.f32 %v4316, %v3427
        %v4334 = vmul.f32 %v4329, %v3426
        %v4335 = vmul.f32 %v4317, %v3427
        %v4336 = vmul.f32 %v4330, %v3426
        %v4337 = vmul.f32 %v4318, %v3427
        %v4338 = vmul.f32 %v4331, %v3426
        %v4339 = vmul.f32 %v4319, %v3427
        %4340 = vrot.lane.b32.xlu0 %v4284, 16
        %v4341 = vpop.permute.xlu0 %4340
        %4342 = vrot.lane.b32.xlu0 %v4285, 16
        %v4343 = vpop.permute.xlu0 %4342
        %4344 = vrot.lane.b32.xlu0 %v4286, 16
        %v4345 = vpop.permute.xlu0 %4344
        %4346 = vrot.lane.b32.xlu0 %v4287, 16
        %v4347 = vpop.permute.xlu0 %4346
        %4348 = vrot.lane.b32.xlu0 %v4288, 16
        %v4349 = vpop.permute.xlu0 %4348
        %4350 = vrot.lane.b32.xlu0 %v4289, 16
        %v4351 = vpop.permute.xlu0 %4350
        %4352 = vrot.lane.b32.xlu0 %v4290, 16
        %v4353 = vpop.permute.xlu0 %4352
        %4354 = vrot.lane.b32.xlu0 %v4291, 16
        %v4355 = vpop.permute.xlu0 %4354
        %v4356 = vsel %vm3659, %v4341, %v4343
        %v4357 = vsel %vm3659, %v4345, %v4347
        %v4358 = vsel %vm3659, %v4349, %v4351
        %v4359 = vsel %vm3659, %v4353, %v4355
        %v4368 = vsel %vm3659, 0.0, %v4341
        %v4369 = vsel %vm3659, 0.0, %v4345
        %v4370 = vsel %vm3659, 0.0, %v4349
        %v4371 = vsel %vm3659, 0.0, %v4353
        %4372 = vrot.lane.b32.xlu0 %v4284, 15
        %v4373 = vpop.permute.xlu0 %4372
        %4374 = vrot.lane.b32.xlu0 %v4285, 15
        %v4375 = vpop.permute.xlu0 %4374
        %4376 = vrot.lane.b32.xlu0 %v4286, 15
        %v4377 = vpop.permute.xlu0 %4376
        %4378 = vrot.lane.b32.xlu0 %v4287, 15
        %v4379 = vpop.permute.xlu0 %4378
        %4380 = vrot.lane.b32.xlu0 %v4288, 15
        %v4381 = vpop.permute.xlu0 %4380
        %4382 = vrot.lane.b32.xlu0 %v4289, 15
        %v4383 = vpop.permute.xlu0 %4382
        %4384 = vrot.lane.b32.xlu0 %v4290, 15
        %v4385 = vpop.permute.xlu0 %4384
        %4386 = vrot.lane.b32.xlu0 %v4291, 15
        %v4387 = vpop.permute.xlu0 %4386
        %v4388 = vsel %vm3692, %v4373, %v4375
        %v4389 = vsel %vm3692, %v4377, %v4379
        %v4390 = vsel %vm3692, %v4381, %v4383
        %v4391 = vsel %vm3692, %v4385, %v4387
        %v4400 = vsel %vm3692, 0.0, %v4373
        %v4401 = vsel %vm3692, 0.0, %v4377
        %v4402 = vsel %vm3692, 0.0, %v4381
        %v4403 = vsel %vm3692, 0.0, %v4385
        %v4404 = vmul.f32 %v4400, %v3432
        %v4405 = vmul.f32 %v4388, %v3433
        %v4406 = vmul.f32 %v4401, %v3432
        %v4407 = vmul.f32 %v4389, %v3433
        %v4408 = vmul.f32 %v4402, %v3432
        %v4409 = vmul.f32 %v4390, %v3433
        %v4410 = vmul.f32 %v4403, %v3432
        %v4411 = vmul.f32 %v4391, %v3433
        %4412 = vrot.lane.b32.xlu0 %v4284, 1
        %v4413 = vpop.permute.xlu0 %4412
        %4414 = vrot.lane.b32.xlu0 %v4285, 1
        %v4415 = vpop.permute.xlu0 %4414
        %4416 = vrot.lane.b32.xlu0 %v4286, 1
        %v4417 = vpop.permute.xlu0 %4416
        %4418 = vrot.lane.b32.xlu0 %v4287, 1
        %v4419 = vpop.permute.xlu0 %4418
        %4420 = vrot.lane.b32.xlu0 %v4288, 1
        %v4421 = vpop.permute.xlu0 %4420
        %4422 = vrot.lane.b32.xlu0 %v4289, 1
        %v4423 = vpop.permute.xlu0 %4422
        %4424 = vrot.lane.b32.xlu0 %v4290, 1
        %v4425 = vpop.permute.xlu0 %4424
        %4426 = vrot.lane.b32.xlu0 %v4291, 1
        %v4427 = vpop.permute.xlu0 %4426
        %v4428 = vsel %vm1192, %v4413, %v4415
        %v4429 = vsel %vm1192, %v4417, %v4419
        %v4430 = vsel %vm1192, %v4421, %v4423
        %v4431 = vsel %vm1192, %v4425, %v4427
        %v4440 = vsel %vm1192, 0.0, %v4413
        %v4441 = vsel %vm1192, 0.0, %v4417
        %v4442 = vsel %vm1192, 0.0, %v4421
        %v4443 = vsel %vm1192, 0.0, %v4425
        %v4444 = vmul.f32 %v4440, %v3426
        %v4445 = vmul.f32 %v4428, %v3427
        %v4446 = vmul.f32 %v4441, %v3426
        %v4447 = vmul.f32 %v4429, %v3427
        %v4448 = vmul.f32 %v4442, %v3426
        %v4449 = vmul.f32 %v4430, %v3427
        %v4450 = vmul.f32 %v4443, %v3426
        %v4451 = vmul.f32 %v4431, %v3427
        %4452 = vrot.lane.b32.xlu0 %v4284, 127
        %v4453 = vpop.permute.xlu0 %4452
        %4454 = vrot.lane.b32.xlu0 %v4285, 127
        %v4455 = vpop.permute.xlu0 %4454
        %4456 = vrot.lane.b32.xlu0 %v4286, 127
        %v4457 = vpop.permute.xlu0 %4456
        %4458 = vrot.lane.b32.xlu0 %v4287, 127
        %v4459 = vpop.permute.xlu0 %4458
        %4460 = vrot.lane.b32.xlu0 %v4288, 127
        %v4461 = vpop.permute.xlu0 %4460
        %4462 = vrot.lane.b32.xlu0 %v4289, 127
        %v4463 = vpop.permute.xlu0 %4462
        %4464 = vrot.lane.b32.xlu0 %v4290, 127
        %v4465 = vpop.permute.xlu0 %4464
        %4466 = vrot.lane.b32.xlu0 %v4291, 127
        %v4467 = vpop.permute.xlu0 %4466
        %v4468 = vsel %vm3773, %v4453, %v4455
        %v4469 = vsel %vm3773, %v4457, %v4459
        %v4470 = vsel %vm3773, %v4461, %v4463
        %v4471 = vsel %vm3773, %v4465, %v4467
        %v4480 = vsel %vm3773, %v4455, 0.0
        %v4481 = vsel %vm3773, %v4459, 0.0
        %v4482 = vsel %vm3773, %v4463, 0.0
        %v4483 = vsel %vm3773, %v4467, 0.0
        %v4484 = vmul.f32 %v4468, %v3432
        %v4485 = vmul.f32 %v4480, %v3433
        %v4486 = vmul.f32 %v4469, %v3432
        %v4487 = vmul.f32 %v4481, %v3433
        %v4488 = vmul.f32 %v4470, %v3432
        %v4489 = vmul.f32 %v4482, %v3433
        %v4490 = vmul.f32 %v4471, %v3432
        %v4491 = vmul.f32 %v4483, %v3433
        %4492 = vrot.lane.b32.xlu0 %v4284, 113
        %v4493 = vpop.permute.xlu0 %4492
        %4494 = vrot.lane.b32.xlu0 %v4285, 113
        %v4495 = vpop.permute.xlu0 %4494
        %4496 = vrot.lane.b32.xlu0 %v4286, 113
        %v4497 = vpop.permute.xlu0 %4496
        %4498 = vrot.lane.b32.xlu0 %v4287, 113
        %v4499 = vpop.permute.xlu0 %4498
        %4500 = vrot.lane.b32.xlu0 %v4288, 113
        %v4501 = vpop.permute.xlu0 %4500
        %4502 = vrot.lane.b32.xlu0 %v4289, 113
        %v4503 = vpop.permute.xlu0 %4502
        %4504 = vrot.lane.b32.xlu0 %v4290, 113
        %v4505 = vpop.permute.xlu0 %4504
        %4506 = vrot.lane.b32.xlu0 %v4291, 113
        %v4507 = vpop.permute.xlu0 %4506
        %v4508 = vsel %vm3814, %v4493, %v4495
        %v4509 = vsel %vm3814, %v4497, %v4499
        %v4510 = vsel %vm3814, %v4501, %v4503
        %v4511 = vsel %vm3814, %v4505, %v4507
        %v4520 = vsel %vm3814, %v4495, 0.0
        %v4521 = vsel %vm3814, %v4499, 0.0
        %v4522 = vsel %vm3814, %v4503, 0.0
        %v4523 = vsel %vm3814, %v4507, 0.0
        %v4524 = vmul.f32 %v4508, %v3426
        %v4525 = vmul.f32 %v4520, %v3427
        %v4526 = vmul.f32 %v4509, %v3426
        %v4527 = vmul.f32 %v4521, %v3427
        %v4528 = vmul.f32 %v4510, %v3426
        %v4529 = vmul.f32 %v4522, %v3427
        %v4530 = vmul.f32 %v4511, %v3426
        %v4531 = vmul.f32 %v4523, %v3427
        %4532 = vrot.lane.b32.xlu0 %v4284, 112
        %v4533 = vpop.permute.xlu0 %4532
        %4534 = vrot.lane.b32.xlu0 %v4285, 112
        %v4535 = vpop.permute.xlu0 %4534
        %4536 = vrot.lane.b32.xlu0 %v4286, 112
        %v4537 = vpop.permute.xlu0 %4536
        %4538 = vrot.lane.b32.xlu0 %v4287, 112
        %v4539 = vpop.permute.xlu0 %4538
        %4540 = vrot.lane.b32.xlu0 %v4288, 112
        %v4541 = vpop.permute.xlu0 %4540
        %4542 = vrot.lane.b32.xlu0 %v4289, 112
        %v4543 = vpop.permute.xlu0 %4542
        %4544 = vrot.lane.b32.xlu0 %v4290, 112
        %v4545 = vpop.permute.xlu0 %4544
        %4546 = vrot.lane.b32.xlu0 %v4291, 112
        %v4547 = vpop.permute.xlu0 %4546
        %v4548 = vsel %vm3855, %v4533, %v4535
        %v4549 = vsel %vm3855, %v4537, %v4539
        %v4550 = vsel %vm3855, %v4541, %v4543
        %v4551 = vsel %vm3855, %v4545, %v4547
        %v4560 = vsel %vm3855, %v4535, 0.0
        %v4561 = vsel %vm3855, %v4539, 0.0
        %v4562 = vsel %vm3855, %v4543, 0.0
        %v4563 = vsel %vm3855, %v4547, 0.0
        %4564 = vrot.lane.b32.xlu0 %v4284, 111
        %v4565 = vpop.permute.xlu0 %4564
        %4566 = vrot.lane.b32.xlu0 %v4285, 111
        %v4567 = vpop.permute.xlu0 %4566
        %4568 = vrot.lane.b32.xlu0 %v4286, 111
        %v4569 = vpop.permute.xlu0 %4568
        %4570 = vrot.lane.b32.xlu0 %v4287, 111
        %v4571 = vpop.permute.xlu0 %4570
        %4572 = vrot.lane.b32.xlu0 %v4288, 111
        %v4573 = vpop.permute.xlu0 %4572
        %4574 = vrot.lane.b32.xlu0 %v4289, 111
        %v4575 = vpop.permute.xlu0 %4574
        %4576 = vrot.lane.b32.xlu0 %v4290, 111
        %v4577 = vpop.permute.xlu0 %4576
        %4578 = vrot.lane.b32.xlu0 %v4291, 111
        %v4579 = vpop.permute.xlu0 %4578
        %v4580 = vsel %vm3888, %v4565, %v4567
        %v4581 = vsel %vm3888, %v4569, %v4571
        %v4582 = vsel %vm3888, %v4573, %v4575
        %v4583 = vsel %vm3888, %v4577, %v4579
        %v4592 = vsel %vm3888, %v4567, 0.0
        %v4593 = vsel %vm3888, %v4571, 0.0
        %v4594 = vsel %vm3888, %v4575, 0.0
        %v4595 = vsel %vm3888, %v4579, 0.0
        %v4596 = vmul.f32 %v4580, %v3432
        %v4597 = vmul.f32 %v4592, %v3433
        %v4598 = vmul.f32 %v4581, %v3432
        %v4599 = vmul.f32 %v4593, %v3433
        %v4600 = vmul.f32 %v4582, %v3432
        %v4601 = vmul.f32 %v4594, %v3433
        %v4602 = vmul.f32 %v4583, %v3432
        %v4603 = vmul.f32 %v4595, %v3433
        %v4604 = vpack.c.bf16 %v4334, %v4332
        %v4605 = vpack.c.bf16 %v4335, %v4333
        %v4606 = vpack.c.bf16 %v4338, %v4336
        %v4607 = vpack.c.bf16 %v4339, %v4337
        %v4608 = vpack.c.bf16 %v4369, %v4368
        %v4609 = vpack.c.bf16 %v4357, %v4356
        %v4610 = vpack.c.bf16 %v4371, %v4370
        %v4611 = vpack.c.bf16 %v4359, %v4358
        %v4612 = vpack.c.bf16 %v4406, %v4404
        %v4613 = vpack.c.bf16 %v4407, %v4405
        %v4614 = vpack.c.bf16 %v4410, %v4408
        %v4615 = vpack.c.bf16 %v4411, %v4409
        %v4616 = vpack.c.bf16 %v4446, %v4444
        %v4617 = vpack.c.bf16 %v4447, %v4445
        %v4618 = vpack.c.bf16 %v4450, %v4448
        %v4619 = vpack.c.bf16 %v4451, %v4449
        %v4620 = vpack.c.bf16 %v4286, %v4284
        %v4621 = vpack.c.bf16 %v4287, %v4285
        %v4622 = vpack.c.bf16 %v4290, %v4288
        %v4623 = vpack.c.bf16 %v4291, %v4289
        %v4624 = vpack.c.bf16 %v4486, %v4484
        %v4625 = vpack.c.bf16 %v4487, %v4485
        %v4626 = vpack.c.bf16 %v4490, %v4488
        %v4627 = vpack.c.bf16 %v4491, %v4489
        %v4628 = vpack.c.bf16 %v4526, %v4524
        %v4629 = vpack.c.bf16 %v4527, %v4525
        %v4630 = vpack.c.bf16 %v4530, %v4528
        %v4631 = vpack.c.bf16 %v4531, %v4529
        %v4632 = vpack.c.bf16 %v4549, %v4548
        %v4633 = vpack.c.bf16 %v4561, %v4560
        %v4634 = vpack.c.bf16 %v4551, %v4550
        %v4635 = vpack.c.bf16 %v4563, %v4562
        %v4636 = vpack.c.bf16 %v4598, %v4596
        %v4637 = vpack.c.bf16 %v4599, %v4597
        %v4638 = vpack.c.bf16 %v4602, %v4600
        %v4639 = vpack.c.bf16 %v4603, %v4601
        %v4640 = vld [vmem:[#allocation9] sm:$0xff]
        %v4641 = vld [vmem:[#allocation9 + $0x8] sm:$0xf]
        %v4642 = vld [vmem:[#allocation9 + $0xc] sm:$0xff]
        %v4643 = vld [vmem:[#allocation9 + $0x14] sm:$0xf]
        %v4644 = vld [vmem:[#allocation9 + $0x18] sm:$0xff]
        %v4645 = vld [vmem:[#allocation9 + $0x20] sm:$0xf]
        %v4646 = vld [vmem:[#allocation9 + $0x24] sm:$0xff]
        %v4647 = vld [vmem:[#allocation9 + $0x2c] sm:$0xf]
        %v4648 = vld [vmem:[%s14] sm:$0xff]
        %v4649 = vld [vmem:[%s14 + $0x8] sm:$0xff]
        %v4650 = vld [vmem:[%s14 + $0x10] sm:$0xff]
        %v4651 = vld [vmem:[%s14 + $0x18] sm:$0xff]
        %4653 = vset.pattern.permute.xlu0 0
        %4654 = vperm.xlu0 %4653, %v4648
        %v4655 = vpop.permute.xlu0 %4654
        %4658 = vset.pattern.permute.xlu0 0
        %4659 = vperm.xlu0 %4658, %v4649
        %v4660 = vpop.permute.xlu0 %4659
        %4663 = vset.pattern.permute.xlu0 0
        %4664 = vperm.xlu0 %4663, %v4650
        %v4665 = vpop.permute.xlu0 %4664
        %4668 = vset.pattern.permute.xlu0 0
        %4669 = vperm.xlu0 %4668, %v4651
        %v4670 = vpop.permute.xlu0 %4669
        %v4680 = vunpack.c.l.b16 %v4640
        %v4681 = vunpack.c.h.b16 %v4640
        %v4682 = vunpack.c.l.b16 %v4641
        %v4683 = vunpack.c.l.b16 %v4642
        %v4684 = vunpack.c.h.b16 %v4642
        %v4685 = vunpack.c.l.b16 %v4643
        %v4686 = vunpack.c.l.b16 %v4644
        %v4687 = vunpack.c.h.b16 %v4644
        %v4688 = vunpack.c.l.b16 %v4645
        %v4689 = vunpack.c.l.b16 %v4646
        %v4690 = vunpack.c.h.b16 %v4646
        %v4691 = vunpack.c.l.b16 %v4647
        %v4692 = vpack.c.b16 %v4683, %v4680
        %v4693 = vpack.c.b16 %v4684, %v4681
        %v4694 = vpack.c.b16 %v4685, %v4682
        %v4695 = vpack.c.b16 %v4689, %v4686
        %v4696 = vpack.c.b16 %v4690, %v4687
        %v4697 = vpack.c.b16 %v4691, %v4688
        %v4703 = vsel %vm4011, %v4694, 0
        %v4706 = vsel %vm4011, %v4697, 0
        %4708 = vmatpush.bf16.msra.mxu0 %v4618
        %4709 = vmatpush.bf16.msra.mxu0 %v4616
        %4710 = vmatpush.bf16.msra.mxu0 %v4614
        %4711 = vmatpush.bf16.msra.mxu0 %v4612
        %4712 = vmatpush.bf16.msra.mxu0 %v4610
        %4713 = vmatpush.bf16.msra.mxu0 %v4608
        %4714 = vmatpush.bf16.msra.mxu0 %v4606
        %4715 = vmatpush.bf16.msra.mxu0 %v4604
        %4716 = vmatmul.bf16.gmra.mxu0 %v4692
        %v4717 = vpop.f32.mrf.mxu0
        %v4718 = vadd.f32 %v4655, %v4717
        %v4719 = vpop.f32.mrf.mxu0
        %v4720 = vadd.f32 %v4660, %v4719
        %4721 = vmatmul.bf16.gmra.mxu0 %v4695
        %v4722 = vpop.f32.mrf.mxu0
        %v4723 = vadd.f32 %v4665, %v4722
        %v4724 = vpop.f32.mrf.mxu0
        %v4725 = vadd.f32 %v4670, %v4724
        %4726 = vdwg.mxu0
        %4727 = vmatpush.bf16.msra.mxu0 %v4634
        %4728 = vmatpush.bf16.msra.mxu0 %v4632
        %4729 = vmatpush.bf16.msra.mxu0 %v4630
        %4730 = vmatpush.bf16.msra.mxu0 %v4628
        %4731 = vmatpush.bf16.msra.mxu0 %v4626
        %4732 = vmatpush.bf16.msra.mxu0 %v4624
        %4733 = vmatpush.bf16.msra.mxu0 %v4622
        %4734 = vmatpush.bf16.msra.mxu0 %v4620
        %4735 = vmatmul.bf16.gmra.mxu0 %v4693
        %v4736 = vpop.f32.mrf.mxu0
        %v4737 = vadd.f32 %v4718, %v4736
        %v4738 = vpop.f32.mrf.mxu0
        %v4739 = vadd.f32 %v4720, %v4738
        %4740 = vmatmul.bf16.gmra.mxu0 %v4696
        %v4741 = vpop.f32.mrf.mxu0
        %v4742 = vadd.f32 %v4723, %v4741
        %v4743 = vpop.f32.mrf.mxu0
        %v4744 = vadd.f32 %v4725, %v4743
        %4745 = vdwg.mxu0
        %4746 = vmatpush.bf16.msra.mxu0 0
        %4747 = vmatpush.bf16.msra.mxu0 0
        %4748 = vmatpush.bf16.msra.mxu0 0
        %4749 = vmatpush.bf16.msra.mxu0 0
        %4750 = vmatpush.bf16.msra.mxu0 0
        %4751 = vmatpush.bf16.msra.mxu0 0
        %4752 = vmatpush.bf16.msra.mxu0 %v4638
        %4753 = vmatpush.bf16.msra.mxu0 %v4636
        %4754 = vmatmul.bf16.gmra.mxu0 %v4703
        %v4755 = vpop.f32.mrf.mxu0
        %v4756 = vadd.f32 %v4737, %v4755
        %v4757 = vpop.f32.mrf.mxu0
        %v4758 = vadd.f32 %v4739, %v4757
        %4759 = vmatmul.bf16.gmra.mxu0 %v4706
        %v4760 = vpop.f32.mrf.mxu0
        %v4761 = vadd.f32 %v4742, %v4760
        %v4762 = vpop.f32.mrf.mxu0
        %v4763 = vadd.f32 %v4744, %v4762
        %4764 = vdwg.mxu0
        %4765 = vmatpush.bf16.msra.mxu0 %v4619
        %4766 = vmatpush.bf16.msra.mxu0 %v4617
        %4767 = vmatpush.bf16.msra.mxu0 %v4615
        %4768 = vmatpush.bf16.msra.mxu0 %v4613
        %4769 = vmatpush.bf16.msra.mxu0 %v4611
        %4770 = vmatpush.bf16.msra.mxu0 %v4609
        %4771 = vmatpush.bf16.msra.mxu0 %v4607
        %4772 = vmatpush.bf16.msra.mxu0 %v4605
        %4773 = vmatmul.bf16.gmra.mxu0 %v4692
        %v4774 = vpop.f32.mrf.mxu0
        %v4775 = vadd.f32 %v4655, %v4774
        %v4776 = vpop.f32.mrf.mxu0
        %v4777 = vadd.f32 %v4660, %v4776
        %4778 = vmatmul.bf16.gmra.mxu0 %v4695
        %v4779 = vpop.f32.mrf.mxu0
        %v4780 = vadd.f32 %v4665, %v4779
        %v4781 = vpop.f32.mrf.mxu0
        %v4782 = vadd.f32 %v4670, %v4781
        %4783 = vdwg.mxu0
        %4784 = vmatpush.bf16.msra.mxu0 %v4635
        %4785 = vmatpush.bf16.msra.mxu0 %v4633
        %4786 = vmatpush.bf16.msra.mxu0 %v4631
        %4787 = vmatpush.bf16.msra.mxu0 %v4629
        %4788 = vmatpush.bf16.msra.mxu0 %v4627
        %4789 = vmatpush.bf16.msra.mxu0 %v4625
        %4790 = vmatpush.bf16.msra.mxu0 %v4623
        %4791 = vmatpush.bf16.msra.mxu0 %v4621
        %4792 = vmatmul.bf16.gmra.mxu0 %v4693
        %v4793 = vpop.f32.mrf.mxu0
        %v4794 = vadd.f32 %v4775, %v4793
        %v4795 = vpop.f32.mrf.mxu0
        %v4796 = vadd.f32 %v4777, %v4795
        %4797 = vmatmul.bf16.gmra.mxu0 %v4696
        %v4798 = vpop.f32.mrf.mxu0
        %v4799 = vadd.f32 %v4780, %v4798
        %v4800 = vpop.f32.mrf.mxu0
        %v4801 = vadd.f32 %v4782, %v4800
        %4802 = vdwg.mxu0
        %4803 = vmatpush.bf16.msra.mxu0 0
        %4804 = vmatpush.bf16.msra.mxu0 0
        %4805 = vmatpush.bf16.msra.mxu0 0
        %4806 = vmatpush.bf16.msra.mxu0 0
        %4807 = vmatpush.bf16.msra.mxu0 0
        %4808 = vmatpush.bf16.msra.mxu0 0
        %4809 = vmatpush.bf16.msra.mxu0 %v4639
        %4810 = vmatpush.bf16.msra.mxu0 %v4637
        %4811 = vmatmul.bf16.gmra.mxu0 %v4703
        %v4812 = vpop.f32.mrf.mxu0
        %v4813 = vadd.f32 %v4794, %v4812
        %v4814 = vpop.f32.mrf.mxu0
        %v4815 = vadd.f32 %v4796, %v4814
        %4816 = vmatmul.bf16.gmra.mxu0 %v4706
        %v4817 = vpop.f32.mrf.mxu0
        %v4818 = vadd.f32 %v4799, %v4817
        %v4819 = vpop.f32.mrf.mxu0
        %v4820 = vadd.f32 %v4801, %v4819
        %4821 = vdwg.mxu0
        %v4822 = vadd.f32 %v4756, %v3389
        %v4823 = vadd.f32 %v4813, %v3390
        %v4824 = vadd.f32 %v4758, %v3391
        %v4825 = vadd.f32 %v4815, %v3392
        %v4826 = vadd.f32 %v4761, %v3393
        %v4827 = vadd.f32 %v4818, %v3394
        %v4828 = vadd.f32 %v4763, %v3395
        %v4829 = vadd.f32 %v4820, %v3396
        %v4830 = vld [vmem:[%s15] sm:$0xf]
        %v4831 = vld [vmem:[%s15 + $0x4] sm:$0xf]
        %v4832 = vld [vmem:[%s15 + $0x8] sm:$0xf]
        %v4833 = vld [vmem:[%s15 + $0xc] sm:$0xf]
        %v4834 = vld [vmem:[%s15 + $0x10] sm:$0xf]
        %v4835 = vld [vmem:[%s15 + $0x14] sm:$0xf]
        %v4836 = vld [vmem:[%s15 + $0x18] sm:$0xf]
        %v4837 = vld [vmem:[%s15 + $0x1c] sm:$0xf]
        %v4838 = vpack.c.bf16 %v4824, %v4822
        %v4839 = vpack.c.bf16 %v4825, %v4823
        %v4840 = vpack.c.bf16 %v4828, %v4826
        %v4841 = vpack.c.bf16 %v4829, %v4827
        %v4842 = vld [vmem:[%s16] sm:$0xff]
        %v4843 = vld [vmem:[%s16 + $0x8] sm:$0xff]
        %v4844 = vld [vmem:[%s16 + $0x10] sm:$0xff]
        %v4845 = vld [vmem:[%s16 + $0x18] sm:$0xff]
        %v4846 = vld [vmem:[%s16 + $0x20] sm:$0xff]
        %v4847 = vld [vmem:[%s16 + $0x28] sm:$0xff]
        %v4848 = vld [vmem:[%s16 + $0x30] sm:$0xff]
        %v4849 = vld [vmem:[%s16 + $0x38] sm:$0xff]
        %4851 = vset.pattern.permute.xlu0 0
        %4852 = vperm.xlu0 %4851, %v4842
        %v4853 = vpop.permute.xlu0 %4852
        %4856 = vset.pattern.permute.xlu0 0
        %4857 = vperm.xlu0 %4856, %v4843
        %v4858 = vpop.permute.xlu0 %4857
        %4861 = vset.pattern.permute.xlu0 0
        %4862 = vperm.xlu0 %4861, %v4844
        %v4863 = vpop.permute.xlu0 %4862
        %4866 = vset.pattern.permute.xlu0 0
        %4867 = vperm.xlu0 %4866, %v4845
        %v4868 = vpop.permute.xlu0 %4867
        %4871 = vset.pattern.permute.xlu0 0
        %4872 = vperm.xlu0 %4871, %v4846
        %v4873 = vpop.permute.xlu0 %4872
        %4876 = vset.pattern.permute.xlu0 0
        %4877 = vperm.xlu0 %4876, %v4847
        %v4878 = vpop.permute.xlu0 %4877
        %4881 = vset.pattern.permute.xlu0 0
        %4882 = vperm.xlu0 %4881, %v4848
        %v4883 = vpop.permute.xlu0 %4882
        %4886 = vset.pattern.permute.xlu0 0
        %4887 = vperm.xlu0 %4886, %v4849
        %v4888 = vpop.permute.xlu0 %4887
        %v4898 = vunpack.c.l.b16 %v4830
        %v4899 = vunpack.c.l.b16 %v4831
        %v4900 = vunpack.c.l.b16 %v4832
        %v4901 = vunpack.c.l.b16 %v4833
        %v4902 = vunpack.c.l.b16 %v4834
        %v4903 = vunpack.c.l.b16 %v4835
        %v4904 = vunpack.c.l.b16 %v4836
        %v4905 = vunpack.c.l.b16 %v4837
        %v4906 = vpack.c.b16 %v4899, %v4898
        %v4907 = vpack.c.b16 %v4901, %v4900
        %v4908 = vpack.c.b16 %v4903, %v4902
        %v4909 = vpack.c.b16 %v4905, %v4904
        %v4911 = vsel %vm4011, %v4906, 0
        %v4914 = vsel %vm4011, %v4907, 0
        %v4917 = vsel %vm4011, %v4908, 0
        %v4920 = vsel %vm4011, %v4909, 0
        %4922 = vmatpush.bf16.msra.mxu0 0
        %4923 = vmatpush.bf16.msra.mxu0 0
        %4924 = vmatpush.bf16.msra.mxu0 0
        %4925 = vmatpush.bf16.msra.mxu0 0
        %4926 = vmatpush.bf16.msra.mxu0 0
        %4927 = vmatpush.bf16.msra.mxu0 0
        %4928 = vmatpush.bf16.msra.mxu0 %v4840
        %4929 = vmatpush.bf16.msra.mxu0 %v4838
        %4930 = vmatmul.bf16.gmra.mxu0 %v4911
        %v4931 = vpop.f32.mrf.mxu0
        %v4932 = vadd.f32 %v4853, %v4931
        %v4933 = vpop.f32.mrf.mxu0
        %v4934 = vadd.f32 %v4858, %v4933
        %4935 = vmatmul.bf16.gmra.mxu0 %v4914
        %v4936 = vpop.f32.mrf.mxu0
        %v4937 = vadd.f32 %v4863, %v4936
        %v4938 = vpop.f32.mrf.mxu0
        %v4939 = vadd.f32 %v4868, %v4938
        %4940 = vmatmul.bf16.gmra.mxu0 %v4917
        %v4941 = vpop.f32.mrf.mxu0
        %v4942 = vadd.f32 %v4873, %v4941
        %v4943 = vpop.f32.mrf.mxu0
        %v4944 = vadd.f32 %v4878, %v4943
        %4945 = vmatmul.bf16.gmra.mxu0 %v4920
        %v4946 = vpop.f32.mrf.mxu0
        %v4947 = vadd.f32 %v4883, %v4946
        %v4948 = vpop.f32.mrf.mxu0
        %v4949 = vadd.f32 %v4888, %v4948
        %4950 = vdwg.mxu0
        %4951 = vmatpush.bf16.msra.mxu0 0
        %4952 = vmatpush.bf16.msra.mxu0 0
        %4953 = vmatpush.bf16.msra.mxu0 0
        %4954 = vmatpush.bf16.msra.mxu0 0
        %4955 = vmatpush.bf16.msra.mxu0 0
        %4956 = vmatpush.bf16.msra.mxu0 0
        %4957 = vmatpush.bf16.msra.mxu0 %v4841
        %4958 = vmatpush.bf16.msra.mxu0 %v4839
        %4959 = vmatmul.bf16.gmra.mxu0 %v4911
        %v4960 = vpop.f32.mrf.mxu0
        %v4961 = vadd.f32 %v4853, %v4960
        %v4962 = vpop.f32.mrf.mxu0
        %v4963 = vadd.f32 %v4858, %v4962
        %4964 = vmatmul.bf16.gmra.mxu0 %v4914
        %v4965 = vpop.f32.mrf.mxu0
        %v4966 = vadd.f32 %v4863, %v4965
        %v4967 = vpop.f32.mrf.mxu0
        %v4968 = vadd.f32 %v4868, %v4967
        %4969 = vmatmul.bf16.gmra.mxu0 %v4917
        %v4970 = vpop.f32.mrf.mxu0
        %v4971 = vadd.f32 %v4873, %v4970
        %v4972 = vpop.f32.mrf.mxu0
        %v4973 = vadd.f32 %v4878, %v4972
        %4974 = vmatmul.bf16.gmra.mxu0 %v4920
        %v4975 = vpop.f32.mrf.mxu0
        %v4976 = vadd.f32 %v4883, %v4975
        %v4977 = vpop.f32.mrf.mxu0
        %v4978 = vadd.f32 %v4888, %v4977
        %4979 = vdwg.mxu0
        %v4980 = vld [vmem:[%s17] sm:$0xf]
        %v4981 = vld [vmem:[%s17 + $0x4] sm:$0xf]
        %v4982 = vld [vmem:[%s17 + $0x8] sm:$0xf]
        %v4983 = vld [vmem:[%s17 + $0xc] sm:$0xf]
        %v4984 = vld [vmem:[%s17 + $0x10] sm:$0xf]
        %v4985 = vld [vmem:[%s17 + $0x14] sm:$0xf]
        %v4986 = vld [vmem:[%s17 + $0x18] sm:$0xf]
        %v4987 = vld [vmem:[%s17 + $0x1c] sm:$0xf]
        %v4988 = vpack.c.bf16 %v3391, %v3389
        %v4989 = vpack.c.bf16 %v3392, %v3390
        %v4990 = vpack.c.bf16 %v3395, %v3393
        %v4991 = vpack.c.bf16 %v3396, %v3394
        %v5000 = vunpack.c.l.b16 %v4980
        %v5001 = vunpack.c.l.b16 %v4981
        %v5002 = vunpack.c.l.b16 %v4982
        %v5003 = vunpack.c.l.b16 %v4983
        %v5004 = vunpack.c.l.b16 %v4984
        %v5005 = vunpack.c.l.b16 %v4985
        %v5006 = vunpack.c.l.b16 %v4986
        %v5007 = vunpack.c.l.b16 %v4987
        %v5008 = vpack.c.b16 %v5001, %v5000
        %v5009 = vpack.c.b16 %v5003, %v5002
        %v5010 = vpack.c.b16 %v5005, %v5004
        %v5011 = vpack.c.b16 %v5007, %v5006
        %v5013 = vsel %vm4011, %v5008, 0
        %v5016 = vsel %vm4011, %v5009, 0
        %v5019 = vsel %vm4011, %v5010, 0
        %v5022 = vsel %vm4011, %v5011, 0
        %5024 = vmatpush.bf16.msra.mxu0 0
        %5025 = vmatpush.bf16.msra.mxu0 0
        %5026 = vmatpush.bf16.msra.mxu0 0
        %5027 = vmatpush.bf16.msra.mxu0 0
        %5028 = vmatpush.bf16.msra.mxu0 0
        %5029 = vmatpush.bf16.msra.mxu0 0
        %5030 = vmatpush.bf16.msra.mxu0 %v4990
        %5031 = vmatpush.bf16.msra.mxu0 %v4988
        %5032 = vmatmul.bf16.gmra.mxu0 %v5013
        %v5033 = vpop.f32.mrf.mxu0
        %v5034 = vadd.f32 0.0, %v5033
        %v5035 = vpop.f32.mrf.mxu0
        %v5036 = vadd.f32 0.0, %v5035
        %5037 = vmatmul.bf16.gmra.mxu0 %v5016
        %v5038 = vpop.f32.mrf.mxu0
        %v5039 = vadd.f32 0.0, %v5038
        %v5040 = vpop.f32.mrf.mxu0
        %v5041 = vadd.f32 0.0, %v5040
        %5042 = vmatmul.bf16.gmra.mxu0 %v5019
        %v5043 = vpop.f32.mrf.mxu0
        %v5044 = vadd.f32 0.0, %v5043
        %v5045 = vpop.f32.mrf.mxu0
        %v5046 = vadd.f32 0.0, %v5045
        %5047 = vmatmul.bf16.gmra.mxu0 %v5022
        %v5048 = vpop.f32.mrf.mxu0
        %v5049 = vadd.f32 0.0, %v5048
        %v5050 = vpop.f32.mrf.mxu0
        %v5051 = vadd.f32 0.0, %v5050
        %5052 = vdwg.mxu0
        %5053 = vmatpush.bf16.msra.mxu0 0
        %5054 = vmatpush.bf16.msra.mxu0 0
        %5055 = vmatpush.bf16.msra.mxu0 0
        %5056 = vmatpush.bf16.msra.mxu0 0
        %5057 = vmatpush.bf16.msra.mxu0 0
        %5058 = vmatpush.bf16.msra.mxu0 0
        %5059 = vmatpush.bf16.msra.mxu0 %v4991
        %5060 = vmatpush.bf16.msra.mxu0 %v4989
        %5061 = vmatmul.bf16.gmra.mxu0 %v5013
        %v5062 = vpop.f32.mrf.mxu0
        %v5063 = vadd.f32 0.0, %v5062
        %v5064 = vpop.f32.mrf.mxu0
        %v5065 = vadd.f32 0.0, %v5064
        %5066 = vmatmul.bf16.gmra.mxu0 %v5016
        %v5067 = vpop.f32.mrf.mxu0
        %v5068 = vadd.f32 0.0, %v5067
        %v5069 = vpop.f32.mrf.mxu0
        %v5070 = vadd.f32 0.0, %v5069
        %5071 = vmatmul.bf16.gmra.mxu0 %v5019
        %v5072 = vpop.f32.mrf.mxu0
        %v5073 = vadd.f32 0.0, %v5072
        %v5074 = vpop.f32.mrf.mxu0
        %v5075 = vadd.f32 0.0, %v5074
        %5076 = vmatmul.bf16.gmra.mxu0 %v5022
        %v5077 = vpop.f32.mrf.mxu0
        %v5078 = vadd.f32 0.0, %v5077
        %v5079 = vpop.f32.mrf.mxu0
        %v5080 = vadd.f32 0.0, %v5079
        %5081 = vdwg.mxu0
        %v5082 = vadd.f32 %v4932, %v5034
        %v5083 = vadd.f32 %v4961, %v5063
        %v5084 = vadd.f32 %v4934, %v5036
        %v5085 = vadd.f32 %v4963, %v5065
        %v5086 = vadd.f32 %v4937, %v5039
        %v5087 = vadd.f32 %v4966, %v5068
        %v5088 = vadd.f32 %v4939, %v5041
        %v5089 = vadd.f32 %v4968, %v5070
        %v5090 = vadd.f32 %v4942, %v5044
        %v5091 = vadd.f32 %v4971, %v5073
        %v5092 = vadd.f32 %v4944, %v5046
        %v5093 = vadd.f32 %v4973, %v5075
        %v5094 = vadd.f32 %v4947, %v5049
        %v5095 = vadd.f32 %v4976, %v5078
        %v5096 = vadd.f32 %v4949, %v5051
        %v5097 = vadd.f32 %v4978, %v5080
        %v5098 = vpack.c.bf16 %v5083, %v5082
        %v5099 = vpack.c.bf16 %v5085, %v5084
        %v5100 = vpack.c.bf16 %v5087, %v5086
        %v5101 = vpack.c.bf16 %v5089, %v5088
        %v5102 = vpack.c.bf16 %v5091, %v5090
        %v5103 = vpack.c.bf16 %v5093, %v5092
        %v5104 = vpack.c.bf16 %v5095, %v5094
        %v5105 = vpack.c.bf16 %v5097, %v5096
        %v5106 = vld [vmem:[#allocation10] sm:$0xff]
        %v5107 = vld [vmem:[#allocation10 + $0x8] sm:$0xff]
        %v5108 = vld [vmem:[#allocation10 + $0x10] sm:$0xff]
        %v5109 = vld [vmem:[#allocation10 + $0x18] sm:$0xff]
        %v5110 = vld [vmem:[#allocation10 + $0x20] sm:$0xff]
        %v5111 = vld [vmem:[#allocation10 + $0x28] sm:$0xff]
        %v5112 = vld [vmem:[#allocation10 + $0x30] sm:$0xff]
        %v5113 = vld [vmem:[#allocation10 + $0x38] sm:$0xff]
        %v5114 = vld [vmem:[#allocation10 + $0x40] sm:$0xff]
        %v5115 = vld [vmem:[#allocation10 + $0x48] sm:$0xff]
        %v5116 = vld [vmem:[#allocation10 + $0x50] sm:$0xff]
        %v5117 = vld [vmem:[#allocation10 + $0x58] sm:$0xff]
        %v5118 = vld [vmem:[#allocation10 + $0x60] sm:$0xff]
        %v5119 = vld [vmem:[#allocation10 + $0x68] sm:$0xff]
        %v5120 = vld [vmem:[#allocation10 + $0x70] sm:$0xff]
        %v5121 = vld [vmem:[#allocation10 + $0x78] sm:$0xff]
        %v5122 = vld [vmem:[#allocation10 + $0x80] sm:$0xff]
        %v5123 = vld [vmem:[#allocation10 + $0x88] sm:$0xff]
        %v5124 = vld [vmem:[#allocation10 + $0x90] sm:$0xff]
        %v5125 = vld [vmem:[#allocation10 + $0x98] sm:$0xff]
        %v5126 = vld [vmem:[#allocation10 + $0xa0] sm:$0xff]
        %v5127 = vld [vmem:[#allocation10 + $0xa8] sm:$0xff]
        %v5128 = vld [vmem:[#allocation10 + $0xb0] sm:$0xff]
        %v5129 = vld [vmem:[#allocation10 + $0xb8] sm:$0xff]
        %v5130 = vld [vmem:[#allocation10 + $0xc0] sm:$0xff]
        %v5131 = vld [vmem:[#allocation10 + $0xc8] sm:$0xff]
        %v5132 = vld [vmem:[#allocation10 + $0xd0] sm:$0xff]
        %v5133 = vld [vmem:[#allocation10 + $0xd8] sm:$0xff]
        %v5134 = vld [vmem:[#allocation10 + $0xe0] sm:$0xff]
        %v5135 = vld [vmem:[#allocation10 + $0xe8] sm:$0xff]
        %v5136 = vld [vmem:[#allocation10 + $0xf0] sm:$0xff]
        %v5137 = vld [vmem:[#allocation10 + $0xf8] sm:$0xff]
        %v5138 = vld [vmem:[#allocation10 + $0x100] sm:$0xff]
        %v5139 = vld [vmem:[#allocation10 + $0x108] sm:$0xff]
        %v5140 = vld [vmem:[#allocation10 + $0x110] sm:$0xff]
        %v5141 = vld [vmem:[#allocation10 + $0x118] sm:$0xff]
        %v5142 = vld [vmem:[#allocation10 + $0x120] sm:$0xff]
        %v5143 = vld [vmem:[#allocation10 + $0x128] sm:$0xff]
        %v5144 = vld [vmem:[#allocation10 + $0x130] sm:$0xff]
        %v5145 = vld [vmem:[#allocation10 + $0x138] sm:$0xff]
        %v5146 = vld [vmem:[#allocation10 + $0x140] sm:$0xff]
        %v5147 = vld [vmem:[#allocation10 + $0x148] sm:$0xff]
        %v5148 = vld [vmem:[#allocation10 + $0x150] sm:$0xff]
        %v5149 = vld [vmem:[#allocation10 + $0x158] sm:$0xff]
        %v5150 = vld [vmem:[#allocation10 + $0x160] sm:$0xff]
        %v5151 = vld [vmem:[#allocation10 + $0x168] sm:$0xff]
        %v5152 = vld [vmem:[#allocation10 + $0x170] sm:$0xff]
        %v5153 = vld [vmem:[#allocation10 + $0x178] sm:$0xff]
        %v5154 = vld [vmem:[#allocation10 + $0x180] sm:$0xff]
        %v5155 = vld [vmem:[#allocation10 + $0x188] sm:$0xff]
        %v5156 = vld [vmem:[#allocation10 + $0x190] sm:$0xff]
        %v5157 = vld [vmem:[#allocation10 + $0x198] sm:$0xff]
        %v5158 = vld [vmem:[#allocation10 + $0x1a0] sm:$0xff]
        %v5159 = vld [vmem:[#allocation10 + $0x1a8] sm:$0xff]
        %v5160 = vld [vmem:[#allocation10 + $0x1b0] sm:$0xff]
        %v5161 = vld [vmem:[#allocation10 + $0x1b8] sm:$0xff]
        %v5162 = vld [vmem:[#allocation10 + $0x1c0] sm:$0xff]
        %v5163 = vld [vmem:[#allocation10 + $0x1c8] sm:$0xff]
        %v5164 = vld [vmem:[#allocation10 + $0x1d0] sm:$0xff]
        %v5165 = vld [vmem:[#allocation10 + $0x1d8] sm:$0xff]
        %v5166 = vld [vmem:[#allocation10 + $0x1e0] sm:$0xff]
        %v5167 = vld [vmem:[#allocation10 + $0x1e8] sm:$0xff]
        %v5168 = vld [vmem:[#allocation10 + $0x1f0] sm:$0xff]
        %v5169 = vld [vmem:[#allocation10 + $0x1f8] sm:$0xff]
        %v5170 = vld [vmem:[#allocation10 + $0x200] sm:$0xff]
        %v5171 = vld [vmem:[#allocation10 + $0x208] sm:$0xff]
        %v5172 = vld [vmem:[#allocation10 + $0x210] sm:$0xff]
        %v5173 = vld [vmem:[#allocation10 + $0x218] sm:$0xff]
        %v5174 = vld [vmem:[#allocation10 + $0x220] sm:$0xff]
        %v5175 = vld [vmem:[#allocation10 + $0x228] sm:$0xff]
        %v5176 = vld [vmem:[#allocation10 + $0x230] sm:$0xff]
        %v5177 = vld [vmem:[#allocation10 + $0x238] sm:$0xff]
        %v5178 = vld [vmem:[#allocation10 + $0x240] sm:$0xff]
        %v5179 = vld [vmem:[#allocation10 + $0x248] sm:$0xff]
        %v5180 = vld [vmem:[#allocation10 + $0x250] sm:$0xff]
        %v5181 = vld [vmem:[#allocation10 + $0x258] sm:$0xff]
        %v5182 = vld [vmem:[#allocation10 + $0x260] sm:$0xff]
        %v5183 = vld [vmem:[#allocation10 + $0x268] sm:$0xff]
        %v5184 = vld [vmem:[#allocation10 + $0x270] sm:$0xff]
        %v5185 = vld [vmem:[#allocation10 + $0x278] sm:$0xff]
        %v5186 = vld [vmem:[#allocation10 + $0x280] sm:$0xff]
        %v5187 = vld [vmem:[#allocation10 + $0x288] sm:$0xff]
        %v5188 = vld [vmem:[#allocation10 + $0x290] sm:$0xff]
        %v5189 = vld [vmem:[#allocation10 + $0x298] sm:$0xff]
        %v5190 = vld [vmem:[#allocation10 + $0x2a0] sm:$0xff]
        %v5191 = vld [vmem:[#allocation10 + $0x2a8] sm:$0xff]
        %v5192 = vld [vmem:[#allocation10 + $0x2b0] sm:$0xff]
        %v5193 = vld [vmem:[#allocation10 + $0x2b8] sm:$0xff]
        %v5194 = vld [vmem:[#allocation10 + $0x2c0] sm:$0xff]
        %v5195 = vld [vmem:[#allocation10 + $0x2c8] sm:$0xff]
        %v5196 = vld [vmem:[#allocation10 + $0x2d0] sm:$0xff]
        %v5197 = vld [vmem:[#allocation10 + $0x2d8] sm:$0xff]
        %v5198 = vld [vmem:[#allocation10 + $0x2e0] sm:$0xff]
        %v5199 = vld [vmem:[#allocation10 + $0x2e8] sm:$0xff]
        %v5200 = vld [vmem:[#allocation10 + $0x2f0] sm:$0xff]
        %v5201 = vld [vmem:[#allocation10 + $0x2f8] sm:$0xff]
        %v5202 = vld [vmem:[#allocation10 + $0x300] sm:$0xff]
        %v5203 = vld [vmem:[#allocation10 + $0x308] sm:$0xff]
        %v5204 = vld [vmem:[#allocation10 + $0x310] sm:$0xff]
        %v5205 = vld [vmem:[#allocation10 + $0x318] sm:$0xff]
        %v5206 = vld [vmem:[#allocation10 + $0x320] sm:$0xff]
        %v5207 = vld [vmem:[#allocation10 + $0x328] sm:$0xff]
        %v5208 = vld [vmem:[#allocation10 + $0x330] sm:$0xff]
        %v5209 = vld [vmem:[#allocation10 + $0x338] sm:$0xff]
        %v5210 = vld [vmem:[#allocation10 + $0x340] sm:$0xff]
        %v5211 = vld [vmem:[#allocation10 + $0x348] sm:$0xff]
        %v5212 = vld [vmem:[#allocation10 + $0x350] sm:$0xff]
        %v5213 = vld [vmem:[#allocation10 + $0x358] sm:$0xff]
        %v5214 = vld [vmem:[#allocation10 + $0x360] sm:$0xff]
        %v5215 = vld [vmem:[#allocation10 + $0x368] sm:$0xff]
        %v5216 = vld [vmem:[#allocation10 + $0x370] sm:$0xff]
        %v5217 = vld [vmem:[#allocation10 + $0x378] sm:$0xff]
        %v5218 = vld [vmem:[#allocation10 + $0x380] sm:$0xff]
        %v5219 = vld [vmem:[#allocation10 + $0x388] sm:$0xff]
        %v5220 = vld [vmem:[#allocation10 + $0x390] sm:$0xff]
        %v5221 = vld [vmem:[#allocation10 + $0x398] sm:$0xff]
        %v5222 = vld [vmem:[#allocation10 + $0x3a0] sm:$0xff]
        %v5223 = vld [vmem:[#allocation10 + $0x3a8] sm:$0xff]
        %v5224 = vld [vmem:[#allocation10 + $0x3b0] sm:$0xff]
        %v5225 = vld [vmem:[#allocation10 + $0x3b8] sm:$0xff]
        %v5226 = vld [vmem:[#allocation10 + $0x3c0] sm:$0xff]
        %v5227 = vld [vmem:[#allocation10 + $0x3c8] sm:$0xff]
        %v5228 = vld [vmem:[#allocation10 + $0x3d0] sm:$0xff]
        %v5229 = vld [vmem:[#allocation10 + $0x3d8] sm:$0xff]
        %v5230 = vld [vmem:[#allocation10 + $0x3e0] sm:$0xff]
        %v5231 = vld [vmem:[#allocation10 + $0x3e8] sm:$0xff]
        %v5232 = vld [vmem:[#allocation10 + $0x3f0] sm:$0xff]
        %v5233 = vld [vmem:[#allocation10 + $0x3f8] sm:$0xff]
        %s5234 = scalar_lea.vmem [#allocation10], 1024
        %v5235 = vld [vmem:[%s5234] sm:$0xff]
        %v5236 = vld [vmem:[%s5234 + $0x8] sm:$0xff]
        %v5237 = vld [vmem:[%s5234 + $0x10] sm:$0xff]
        %v5238 = vld [vmem:[%s5234 + $0x18] sm:$0xff]
        %v5239 = vld [vmem:[%s5234 + $0x20] sm:$0xff]
        %v5240 = vld [vmem:[%s5234 + $0x28] sm:$0xff]
        %v5241 = vld [vmem:[%s5234 + $0x30] sm:$0xff]
        %v5242 = vld [vmem:[%s5234 + $0x38] sm:$0xff]
        %v5243 = vld [vmem:[%s5234 + $0x40] sm:$0xff]
        %v5244 = vld [vmem:[%s5234 + $0x48] sm:$0xff]
        %v5245 = vld [vmem:[%s5234 + $0x50] sm:$0xff]
        %v5246 = vld [vmem:[%s5234 + $0x58] sm:$0xff]
        %v5247 = vld [vmem:[%s5234 + $0x60] sm:$0xff]
        %v5248 = vld [vmem:[%s5234 + $0x68] sm:$0xff]
        %v5249 = vld [vmem:[%s5234 + $0x70] sm:$0xff]
        %v5250 = vld [vmem:[%s5234 + $0x78] sm:$0xff]
        %v5251 = vld [vmem:[%s5234 + $0x80] sm:$0xff]
        %v5252 = vld [vmem:[%s5234 + $0x88] sm:$0xff]
        %v5253 = vld [vmem:[%s5234 + $0x90] sm:$0xff]
        %v5254 = vld [vmem:[%s5234 + $0x98] sm:$0xff]
        %v5255 = vld [vmem:[%s5234 + $0xa0] sm:$0xff]
        %v5256 = vld [vmem:[%s5234 + $0xa8] sm:$0xff]
        %v5257 = vld [vmem:[%s5234 + $0xb0] sm:$0xff]
        %v5258 = vld [vmem:[%s5234 + $0xb8] sm:$0xff]
        %v5259 = vld [vmem:[%s5234 + $0xc0] sm:$0xff]
        %v5260 = vld [vmem:[%s5234 + $0xc8] sm:$0xff]
        %v5261 = vld [vmem:[%s5234 + $0xd0] sm:$0xff]
        %v5262 = vld [vmem:[%s5234 + $0xd8] sm:$0xff]
        %v5263 = vld [vmem:[%s5234 + $0xe0] sm:$0xff]
        %v5264 = vld [vmem:[%s5234 + $0xe8] sm:$0xff]
        %v5265 = vld [vmem:[%s5234 + $0xf0] sm:$0xff]
        %v5266 = vld [vmem:[%s5234 + $0xf8] sm:$0xff]
        %v5267 = vld [vmem:[%s5234 + $0x100] sm:$0xff]
        %v5268 = vld [vmem:[%s5234 + $0x108] sm:$0xff]
        %v5269 = vld [vmem:[%s5234 + $0x110] sm:$0xff]
        %v5270 = vld [vmem:[%s5234 + $0x118] sm:$0xff]
        %v5271 = vld [vmem:[%s5234 + $0x120] sm:$0xff]
        %v5272 = vld [vmem:[%s5234 + $0x128] sm:$0xff]
        %v5273 = vld [vmem:[%s5234 + $0x130] sm:$0xff]
        %v5274 = vld [vmem:[%s5234 + $0x138] sm:$0xff]
        %v5275 = vld [vmem:[%s5234 + $0x140] sm:$0xff]
        %v5276 = vld [vmem:[%s5234 + $0x148] sm:$0xff]
        %v5277 = vld [vmem:[%s5234 + $0x150] sm:$0xff]
        %v5278 = vld [vmem:[%s5234 + $0x158] sm:$0xff]
        %v5279 = vld [vmem:[%s5234 + $0x160] sm:$0xff]
        %v5280 = vld [vmem:[%s5234 + $0x168] sm:$0xff]
        %v5281 = vld [vmem:[%s5234 + $0x170] sm:$0xff]
        %v5282 = vld [vmem:[%s5234 + $0x178] sm:$0xff]
        %v5283 = vld [vmem:[%s5234 + $0x180] sm:$0xff]
        %v5284 = vld [vmem:[%s5234 + $0x188] sm:$0xff]
        %v5285 = vld [vmem:[%s5234 + $0x190] sm:$0xff]
        %v5286 = vld [vmem:[%s5234 + $0x198] sm:$0xff]
        %v5287 = vld [vmem:[%s5234 + $0x1a0] sm:$0xff]
        %v5288 = vld [vmem:[%s5234 + $0x1a8] sm:$0xff]
        %v5289 = vld [vmem:[%s5234 + $0x1b0] sm:$0xff]
        %v5290 = vld [vmem:[%s5234 + $0x1b8] sm:$0xff]
        %v5291 = vld [vmem:[%s5234 + $0x1c0] sm:$0xff]
        %v5292 = vld [vmem:[%s5234 + $0x1c8] sm:$0xff]
        %v5293 = vld [vmem:[%s5234 + $0x1d0] sm:$0xff]
        %v5294 = vld [vmem:[%s5234 + $0x1d8] sm:$0xff]
        %v5295 = vld [vmem:[%s5234 + $0x1e0] sm:$0xff]
        %v5296 = vld [vmem:[%s5234 + $0x1e8] sm:$0xff]
        %v5297 = vld [vmem:[%s5234 + $0x1f0] sm:$0xff]
        %v5298 = vld [vmem:[%s5234 + $0x1f8] sm:$0xff]
        %v5299 = vld [vmem:[%s5234 + $0x200] sm:$0xff]
        %v5300 = vld [vmem:[%s5234 + $0x208] sm:$0xff]
        %v5301 = vld [vmem:[%s5234 + $0x210] sm:$0xff]
        %v5302 = vld [vmem:[%s5234 + $0x218] sm:$0xff]
        %v5303 = vld [vmem:[%s5234 + $0x220] sm:$0xff]
        %v5304 = vld [vmem:[%s5234 + $0x228] sm:$0xff]
        %v5305 = vld [vmem:[%s5234 + $0x230] sm:$0xff]
        %v5306 = vld [vmem:[%s5234 + $0x238] sm:$0xff]
        %v5307 = vld [vmem:[%s5234 + $0x240] sm:$0xff]
        %v5308 = vld [vmem:[%s5234 + $0x248] sm:$0xff]
        %v5309 = vld [vmem:[%s5234 + $0x250] sm:$0xff]
        %v5310 = vld [vmem:[%s5234 + $0x258] sm:$0xff]
        %v5311 = vld [vmem:[%s5234 + $0x260] sm:$0xff]
        %v5312 = vld [vmem:[%s5234 + $0x268] sm:$0xff]
        %v5313 = vld [vmem:[%s5234 + $0x270] sm:$0xff]
        %v5314 = vld [vmem:[%s5234 + $0x278] sm:$0xff]
        %v5315 = vld [vmem:[%s5234 + $0x280] sm:$0xff]
        %v5316 = vld [vmem:[%s5234 + $0x288] sm:$0xff]
        %v5317 = vld [vmem:[%s5234 + $0x290] sm:$0xff]
        %v5318 = vld [vmem:[%s5234 + $0x298] sm:$0xff]
        %v5319 = vld [vmem:[%s5234 + $0x2a0] sm:$0xff]
        %v5320 = vld [vmem:[%s5234 + $0x2a8] sm:$0xff]
        %v5321 = vld [vmem:[%s5234 + $0x2b0] sm:$0xff]
        %v5322 = vld [vmem:[%s5234 + $0x2b8] sm:$0xff]
        %v5323 = vld [vmem:[%s5234 + $0x2c0] sm:$0xff]
        %v5324 = vld [vmem:[%s5234 + $0x2c8] sm:$0xff]
        %v5325 = vld [vmem:[%s5234 + $0x2d0] sm:$0xff]
        %v5326 = vld [vmem:[%s5234 + $0x2d8] sm:$0xff]
        %v5327 = vld [vmem:[%s5234 + $0x2e0] sm:$0xff]
        %v5328 = vld [vmem:[%s5234 + $0x2e8] sm:$0xff]
        %v5329 = vld [vmem:[%s5234 + $0x2f0] sm:$0xff]
        %v5330 = vld [vmem:[%s5234 + $0x2f8] sm:$0xff]
        %v5331 = vld [vmem:[%s5234 + $0x300] sm:$0xff]
        %v5332 = vld [vmem:[%s5234 + $0x308] sm:$0xff]
        %v5333 = vld [vmem:[%s5234 + $0x310] sm:$0xff]
        %v5334 = vld [vmem:[%s5234 + $0x318] sm:$0xff]
        %v5335 = vld [vmem:[%s5234 + $0x320] sm:$0xff]
        %v5336 = vld [vmem:[%s5234 + $0x328] sm:$0xff]
        %v5337 = vld [vmem:[%s5234 + $0x330] sm:$0xff]
        %v5338 = vld [vmem:[%s5234 + $0x338] sm:$0xff]
        %v5339 = vld [vmem:[%s5234 + $0x340] sm:$0xff]
        %v5340 = vld [vmem:[%s5234 + $0x348] sm:$0xff]
        %v5341 = vld [vmem:[%s5234 + $0x350] sm:$0xff]
        %v5342 = vld [vmem:[%s5234 + $0x358] sm:$0xff]
        %v5343 = vld [vmem:[%s5234 + $0x360] sm:$0xff]
        %v5344 = vld [vmem:[%s5234 + $0x368] sm:$0xff]
        %v5345 = vld [vmem:[%s5234 + $0x370] sm:$0xff]
        %v5346 = vld [vmem:[%s5234 + $0x378] sm:$0xff]
        %v5347 = vld [vmem:[%s5234 + $0x380] sm:$0xff]
        %v5348 = vld [vmem:[%s5234 + $0x388] sm:$0xff]
        %v5349 = vld [vmem:[%s5234 + $0x390] sm:$0xff]
        %v5350 = vld [vmem:[%s5234 + $0x398] sm:$0xff]
        %v5351 = vld [vmem:[%s5234 + $0x3a0] sm:$0xff]
        %v5352 = vld [vmem:[%s5234 + $0x3a8] sm:$0xff]
        %v5353 = vld [vmem:[%s5234 + $0x3b0] sm:$0xff]
        %v5354 = vld [vmem:[%s5234 + $0x3b8] sm:$0xff]
        %v5355 = vld [vmem:[%s5234 + $0x3c0] sm:$0xff]
        %v5356 = vld [vmem:[%s5234 + $0x3c8] sm:$0xff]
        %v5357 = vld [vmem:[%s5234 + $0x3d0] sm:$0xff]
        %v5358 = vld [vmem:[%s5234 + $0x3d8] sm:$0xff]
        %v5359 = vld [vmem:[%s5234 + $0x3e0] sm:$0xff]
        %v5360 = vld [vmem:[%s5234 + $0x3e8] sm:$0xff]
        %v5361 = vld [vmem:[%s5234 + $0x3f0] sm:$0xff]
        %v5362 = vld [vmem:[%s5234 + $0x3f8] sm:$0xff]
        %v5365 = vunpack.c.l.b16 %v5100
        %v5366 = vunpack.c.h.b16 %v5100
        %v5367 = vunpack.c.l.b16 %v5101
        %v5368 = vunpack.c.h.b16 %v5101
        %v5369 = vpack.c.b16 %v5367, %v5365
        %v5370 = vpack.c.b16 %v5368, %v5366
        %v5501 = vunpack.c.l.b16 %v5235
        %v5502 = vunpack.c.h.b16 %v5235
        %v5503 = vunpack.c.l.b16 %v5236
        %v5504 = vunpack.c.h.b16 %v5236
        %v5505 = vunpack.c.l.b16 %v5237
        %v5506 = vunpack.c.h.b16 %v5237
        %v5507 = vunpack.c.l.b16 %v5238
        %v5508 = vunpack.c.h.b16 %v5238
        %v5509 = vunpack.c.l.b16 %v5239
        %v5510 = vunpack.c.h.b16 %v5239
        %v5511 = vunpack.c.l.b16 %v5240
        %v5512 = vunpack.c.h.b16 %v5240
        %v5513 = vunpack.c.l.b16 %v5241
        %v5514 = vunpack.c.h.b16 %v5241
        %v5515 = vunpack.c.l.b16 %v5242
        %v5516 = vunpack.c.h.b16 %v5242
        %v5517 = vunpack.c.l.b16 %v5243
        %v5518 = vunpack.c.h.b16 %v5243
        %v5519 = vunpack.c.l.b16 %v5244
        %v5520 = vunpack.c.h.b16 %v5244
        %v5521 = vunpack.c.l.b16 %v5245
        %v5522 = vunpack.c.h.b16 %v5245
        %v5523 = vunpack.c.l.b16 %v5246
        %v5524 = vunpack.c.h.b16 %v5246
        %v5525 = vunpack.c.l.b16 %v5247
        %v5526 = vunpack.c.h.b16 %v5247
        %v5527 = vunpack.c.l.b16 %v5248
        %v5528 = vunpack.c.h.b16 %v5248
        %v5529 = vunpack.c.l.b16 %v5249
        %v5530 = vunpack.c.h.b16 %v5249
        %v5531 = vunpack.c.l.b16 %v5250
        %v5532 = vunpack.c.h.b16 %v5250
        %v5533 = vunpack.c.l.b16 %v5251
        %v5534 = vunpack.c.h.b16 %v5251
        %v5535 = vunpack.c.l.b16 %v5252
        %v5536 = vunpack.c.h.b16 %v5252
        %v5537 = vunpack.c.l.b16 %v5253
        %v5538 = vunpack.c.h.b16 %v5253
        %v5539 = vunpack.c.l.b16 %v5254
        %v5540 = vunpack.c.h.b16 %v5254
        %v5541 = vunpack.c.l.b16 %v5255
        %v5542 = vunpack.c.h.b16 %v5255
        %v5543 = vunpack.c.l.b16 %v5256
        %v5544 = vunpack.c.h.b16 %v5256
        %v5545 = vunpack.c.l.b16 %v5257
        %v5546 = vunpack.c.h.b16 %v5257
        %v5547 = vunpack.c.l.b16 %v5258
        %v5548 = vunpack.c.h.b16 %v5258
        %v5549 = vunpack.c.l.b16 %v5259
        %v5550 = vunpack.c.h.b16 %v5259
        %v5551 = vunpack.c.l.b16 %v5260
        %v5552 = vunpack.c.h.b16 %v5260
        %v5553 = vunpack.c.l.b16 %v5261
        %v5554 = vunpack.c.h.b16 %v5261
        %v5555 = vunpack.c.l.b16 %v5262
        %v5556 = vunpack.c.h.b16 %v5262
        %v5557 = vunpack.c.l.b16 %v5263
        %v5558 = vunpack.c.h.b16 %v5263
        %v5559 = vunpack.c.l.b16 %v5264
        %v5560 = vunpack.c.h.b16 %v5264
        %v5561 = vunpack.c.l.b16 %v5265
        %v5562 = vunpack.c.h.b16 %v5265
        %v5563 = vunpack.c.l.b16 %v5266
        %v5564 = vunpack.c.h.b16 %v5266
        %v5565 = vunpack.c.l.b16 %v5267
        %v5566 = vunpack.c.h.b16 %v5267
        %v5567 = vunpack.c.l.b16 %v5268
        %v5568 = vunpack.c.h.b16 %v5268
        %v5569 = vunpack.c.l.b16 %v5269
        %v5570 = vunpack.c.h.b16 %v5269
        %v5571 = vunpack.c.l.b16 %v5270
        %v5572 = vunpack.c.h.b16 %v5270
        %v5573 = vunpack.c.l.b16 %v5271
        %v5574 = vunpack.c.h.b16 %v5271
        %v5575 = vunpack.c.l.b16 %v5272
        %v5576 = vunpack.c.h.b16 %v5272
        %v5577 = vunpack.c.l.b16 %v5273
        %v5578 = vunpack.c.h.b16 %v5273
        %v5579 = vunpack.c.l.b16 %v5274
        %v5580 = vunpack.c.h.b16 %v5274
        %v5581 = vunpack.c.l.b16 %v5275
        %v5582 = vunpack.c.h.b16 %v5275
        %v5583 = vunpack.c.l.b16 %v5276
        %v5584 = vunpack.c.h.b16 %v5276
        %v5585 = vunpack.c.l.b16 %v5277
        %v5586 = vunpack.c.h.b16 %v5277
        %v5587 = vunpack.c.l.b16 %v5278
        %v5588 = vunpack.c.h.b16 %v5278
        %v5589 = vunpack.c.l.b16 %v5279
        %v5590 = vunpack.c.h.b16 %v5279
        %v5591 = vunpack.c.l.b16 %v5280
        %v5592 = vunpack.c.h.b16 %v5280
        %v5593 = vunpack.c.l.b16 %v5281
        %v5594 = vunpack.c.h.b16 %v5281
        %v5595 = vunpack.c.l.b16 %v5282
        %v5596 = vunpack.c.h.b16 %v5282
        %v5597 = vunpack.c.l.b16 %v5283
        %v5598 = vunpack.c.h.b16 %v5283
        %v5599 = vunpack.c.l.b16 %v5284
        %v5600 = vunpack.c.h.b16 %v5284
        %v5601 = vunpack.c.l.b16 %v5285
        %v5602 = vunpack.c.h.b16 %v5285
        %v5603 = vunpack.c.l.b16 %v5286
        %v5604 = vunpack.c.h.b16 %v5286
        %v5605 = vunpack.c.l.b16 %v5287
        %v5606 = vunpack.c.h.b16 %v5287
        %v5607 = vunpack.c.l.b16 %v5288
        %v5608 = vunpack.c.h.b16 %v5288
        %v5609 = vunpack.c.l.b16 %v5289
        %v5610 = vunpack.c.h.b16 %v5289
        %v5611 = vunpack.c.l.b16 %v5290
        %v5612 = vunpack.c.h.b16 %v5290
        %v5613 = vunpack.c.l.b16 %v5291
        %v5614 = vunpack.c.h.b16 %v5291
        %v5615 = vunpack.c.l.b16 %v5292
        %v5616 = vunpack.c.h.b16 %v5292
        %v5617 = vunpack.c.l.b16 %v5293
        %v5618 = vunpack.c.h.b16 %v5293
        %v5619 = vunpack.c.l.b16 %v5294
        %v5620 = vunpack.c.h.b16 %v5294
        %v5621 = vunpack.c.l.b16 %v5295
        %v5622 = vunpack.c.h.b16 %v5295
        %v5623 = vunpack.c.l.b16 %v5296
        %v5624 = vunpack.c.h.b16 %v5296
        %v5625 = vunpack.c.l.b16 %v5297
        %v5626 = vunpack.c.h.b16 %v5297
        %v5627 = vunpack.c.l.b16 %v5298
        %v5628 = vunpack.c.h.b16 %v5298
        %v5629 = vunpack.c.l.b16 %v5299
        %v5630 = vunpack.c.h.b16 %v5299
        %v5631 = vunpack.c.l.b16 %v5300
        %v5632 = vunpack.c.h.b16 %v5300
        %v5633 = vunpack.c.l.b16 %v5301
        %v5634 = vunpack.c.h.b16 %v5301
        %v5635 = vunpack.c.l.b16 %v5302
        %v5636 = vunpack.c.h.b16 %v5302
        %v5637 = vunpack.c.l.b16 %v5303
        %v5638 = vunpack.c.h.b16 %v5303
        %v5639 = vunpack.c.l.b16 %v5304
        %v5640 = vunpack.c.h.b16 %v5304
        %v5641 = vunpack.c.l.b16 %v5305
        %v5642 = vunpack.c.h.b16 %v5305
        %v5643 = vunpack.c.l.b16 %v5306
        %v5644 = vunpack.c.h.b16 %v5306
        %v5645 = vunpack.c.l.b16 %v5307
        %v5646 = vunpack.c.h.b16 %v5307
        %v5647 = vunpack.c.l.b16 %v5308
        %v5648 = vunpack.c.h.b16 %v5308
        %v5649 = vunpack.c.l.b16 %v5309
        %v5650 = vunpack.c.h.b16 %v5309
        %v5651 = vunpack.c.l.b16 %v5310
        %v5652 = vunpack.c.h.b16 %v5310
        %v5653 = vunpack.c.l.b16 %v5311
        %v5654 = vunpack.c.h.b16 %v5311
        %v5655 = vunpack.c.l.b16 %v5312
        %v5656 = vunpack.c.h.b16 %v5312
        %v5657 = vunpack.c.l.b16 %v5313
        %v5658 = vunpack.c.h.b16 %v5313
        %v5659 = vunpack.c.l.b16 %v5314
        %v5660 = vunpack.c.h.b16 %v5314
        %v5661 = vunpack.c.l.b16 %v5315
        %v5662 = vunpack.c.h.b16 %v5315
        %v5663 = vunpack.c.l.b16 %v5316
        %v5664 = vunpack.c.h.b16 %v5316
        %v5665 = vunpack.c.l.b16 %v5317
        %v5666 = vunpack.c.h.b16 %v5317
        %v5667 = vunpack.c.l.b16 %v5318
        %v5668 = vunpack.c.h.b16 %v5318
        %v5669 = vunpack.c.l.b16 %v5319
        %v5670 = vunpack.c.h.b16 %v5319
        %v5671 = vunpack.c.l.b16 %v5320
        %v5672 = vunpack.c.h.b16 %v5320
        %v5673 = vunpack.c.l.b16 %v5321
        %v5674 = vunpack.c.h.b16 %v5321
        %v5675 = vunpack.c.l.b16 %v5322
        %v5676 = vunpack.c.h.b16 %v5322
        %v5677 = vunpack.c.l.b16 %v5323
        %v5678 = vunpack.c.h.b16 %v5323
        %v5679 = vunpack.c.l.b16 %v5324
        %v5680 = vunpack.c.h.b16 %v5324
        %v5681 = vunpack.c.l.b16 %v5325
        %v5682 = vunpack.c.h.b16 %v5325
        %v5683 = vunpack.c.l.b16 %v5326
        %v5684 = vunpack.c.h.b16 %v5326
        %v5685 = vunpack.c.l.b16 %v5327
        %v5686 = vunpack.c.h.b16 %v5327
        %v5687 = vunpack.c.l.b16 %v5328
        %v5688 = vunpack.c.h.b16 %v5328
        %v5689 = vunpack.c.l.b16 %v5329
        %v5690 = vunpack.c.h.b16 %v5329
        %v5691 = vunpack.c.l.b16 %v5330
        %v5692 = vunpack.c.h.b16 %v5330
        %v5693 = vunpack.c.l.b16 %v5331
        %v5694 = vunpack.c.h.b16 %v5331
        %v5695 = vunpack.c.l.b16 %v5332
        %v5696 = vunpack.c.h.b16 %v5332
        %v5697 = vunpack.c.l.b16 %v5333
        %v5698 = vunpack.c.h.b16 %v5333
        %v5699 = vunpack.c.l.b16 %v5334
        %v5700 = vunpack.c.h.b16 %v5334
        %v5701 = vunpack.c.l.b16 %v5335
        %v5702 = vunpack.c.h.b16 %v5335
        %v5703 = vunpack.c.l.b16 %v5336
        %v5704 = vunpack.c.h.b16 %v5336
        %v5705 = vunpack.c.l.b16 %v5337
        %v5706 = vunpack.c.h.b16 %v5337
        %v5707 = vunpack.c.l.b16 %v5338
        %v5708 = vunpack.c.h.b16 %v5338
        %v5709 = vunpack.c.l.b16 %v5339
        %v5710 = vunpack.c.h.b16 %v5339
        %v5711 = vunpack.c.l.b16 %v5340
        %v5712 = vunpack.c.h.b16 %v5340
        %v5713 = vunpack.c.l.b16 %v5341
        %v5714 = vunpack.c.h.b16 %v5341
        %v5715 = vunpack.c.l.b16 %v5342
        %v5716 = vunpack.c.h.b16 %v5342
        %v5717 = vunpack.c.l.b16 %v5343
        %v5718 = vunpack.c.h.b16 %v5343
        %v5719 = vunpack.c.l.b16 %v5344
        %v5720 = vunpack.c.h.b16 %v5344
        %v5721 = vunpack.c.l.b16 %v5345
        %v5722 = vunpack.c.h.b16 %v5345
        %v5723 = vunpack.c.l.b16 %v5346
        %v5724 = vunpack.c.h.b16 %v5346
        %v5725 = vunpack.c.l.b16 %v5347
        %v5726 = vunpack.c.h.b16 %v5347
        %v5727 = vunpack.c.l.b16 %v5348
        %v5728 = vunpack.c.h.b16 %v5348
        %v5729 = vunpack.c.l.b16 %v5349
        %v5730 = vunpack.c.h.b16 %v5349
        %v5731 = vunpack.c.l.b16 %v5350
        %v5732 = vunpack.c.h.b16 %v5350
        %v5733 = vunpack.c.l.b16 %v5351
        %v5734 = vunpack.c.h.b16 %v5351
        %v5735 = vunpack.c.l.b16 %v5352
        %v5736 = vunpack.c.h.b16 %v5352
        %v5737 = vunpack.c.l.b16 %v5353
        %v5738 = vunpack.c.h.b16 %v5353
        %v5739 = vunpack.c.l.b16 %v5354
        %v5740 = vunpack.c.h.b16 %v5354
        %v5741 = vunpack.c.l.b16 %v5355
        %v5742 = vunpack.c.h.b16 %v5355
        %v5743 = vunpack.c.l.b16 %v5356
        %v5744 = vunpack.c.h.b16 %v5356
        %v5745 = vunpack.c.l.b16 %v5357
        %v5746 = vunpack.c.h.b16 %v5357
        %v5747 = vunpack.c.l.b16 %v5358
        %v5748 = vunpack.c.h.b16 %v5358
        %v5749 = vunpack.c.l.b16 %v5359
        %v5750 = vunpack.c.h.b16 %v5359
        %v5751 = vunpack.c.l.b16 %v5360
        %v5752 = vunpack.c.h.b16 %v5360
        %v5753 = vunpack.c.l.b16 %v5361
        %v5754 = vunpack.c.h.b16 %v5361
        %v5755 = vunpack.c.l.b16 %v5362
        %v5756 = vunpack.c.h.b16 %v5362
        %v5757 = vpack.c.b16 %v5509, %v5501
        %v5758 = vpack.c.b16 %v5510, %v5502
        %v5759 = vpack.c.b16 %v5511, %v5503
        %v5760 = vpack.c.b16 %v5512, %v5504
        %v5761 = vpack.c.b16 %v5513, %v5505
        %v5762 = vpack.c.b16 %v5514, %v5506
        %v5763 = vpack.c.b16 %v5515, %v5507
        %v5764 = vpack.c.b16 %v5516, %v5508
        %v5765 = vpack.c.b16 %v5525, %v5517
        %v5766 = vpack.c.b16 %v5526, %v5518
        %v5767 = vpack.c.b16 %v5527, %v5519
        %v5768 = vpack.c.b16 %v5528, %v5520
        %v5769 = vpack.c.b16 %v5529, %v5521
        %v5770 = vpack.c.b16 %v5530, %v5522
        %v5771 = vpack.c.b16 %v5531, %v5523
        %v5772 = vpack.c.b16 %v5532, %v5524
        %v5773 = vpack.c.b16 %v5541, %v5533
        %v5774 = vpack.c.b16 %v5542, %v5534
        %v5775 = vpack.c.b16 %v5543, %v5535
        %v5776 = vpack.c.b16 %v5544, %v5536
        %v5777 = vpack.c.b16 %v5545, %v5537
        %v5778 = vpack.c.b16 %v5546, %v5538
        %v5779 = vpack.c.b16 %v5547, %v5539
        %v5780 = vpack.c.b16 %v5548, %v5540
        %v5781 = vpack.c.b16 %v5557, %v5549
        %v5782 = vpack.c.b16 %v5558, %v5550
        %v5783 = vpack.c.b16 %v5559, %v5551
        %v5784 = vpack.c.b16 %v5560, %v5552
        %v5785 = vpack.c.b16 %v5561, %v5553
        %v5786 = vpack.c.b16 %v5562, %v5554
        %v5787 = vpack.c.b16 %v5563, %v5555
        %v5788 = vpack.c.b16 %v5564, %v5556
        %v5789 = vpack.c.b16 %v5573, %v5565
        %v5790 = vpack.c.b16 %v5574, %v5566
        %v5791 = vpack.c.b16 %v5575, %v5567
        %v5792 = vpack.c.b16 %v5576, %v5568
        %v5793 = vpack.c.b16 %v5577, %v5569
        %v5794 = vpack.c.b16 %v5578, %v5570
        %v5795 = vpack.c.b16 %v5579, %v5571
        %v5796 = vpack.c.b16 %v5580, %v5572
        %v5797 = vpack.c.b16 %v5589, %v5581
        %v5798 = vpack.c.b16 %v5590, %v5582
        %v5799 = vpack.c.b16 %v5591, %v5583
        %v5800 = vpack.c.b16 %v5592, %v5584
        %v5801 = vpack.c.b16 %v5593, %v5585
        %v5802 = vpack.c.b16 %v5594, %v5586
        %v5803 = vpack.c.b16 %v5595, %v5587
        %v5804 = vpack.c.b16 %v5596, %v5588
        %v5805 = vpack.c.b16 %v5605, %v5597
        %v5806 = vpack.c.b16 %v5606, %v5598
        %v5807 = vpack.c.b16 %v5607, %v5599
        %v5808 = vpack.c.b16 %v5608, %v5600
        %v5809 = vpack.c.b16 %v5609, %v5601
        %v5810 = vpack.c.b16 %v5610, %v5602
        %v5811 = vpack.c.b16 %v5611, %v5603
        %v5812 = vpack.c.b16 %v5612, %v5604
        %v5813 = vpack.c.b16 %v5621, %v5613
        %v5814 = vpack.c.b16 %v5622, %v5614
        %v5815 = vpack.c.b16 %v5623, %v5615
        %v5816 = vpack.c.b16 %v5624, %v5616
        %v5817 = vpack.c.b16 %v5625, %v5617
        %v5818 = vpack.c.b16 %v5626, %v5618
        %v5819 = vpack.c.b16 %v5627, %v5619
        %v5820 = vpack.c.b16 %v5628, %v5620
        %v5821 = vpack.c.b16 %v5637, %v5629
        %v5822 = vpack.c.b16 %v5638, %v5630
        %v5823 = vpack.c.b16 %v5639, %v5631
        %v5824 = vpack.c.b16 %v5640, %v5632
        %v5825 = vpack.c.b16 %v5641, %v5633
        %v5826 = vpack.c.b16 %v5642, %v5634
        %v5827 = vpack.c.b16 %v5643, %v5635
        %v5828 = vpack.c.b16 %v5644, %v5636
        %v5829 = vpack.c.b16 %v5653, %v5645
        %v5830 = vpack.c.b16 %v5654, %v5646
        %v5831 = vpack.c.b16 %v5655, %v5647
        %v5832 = vpack.c.b16 %v5656, %v5648
        %v5833 = vpack.c.b16 %v5657, %v5649
        %v5834 = vpack.c.b16 %v5658, %v5650
        %v5835 = vpack.c.b16 %v5659, %v5651
        %v5836 = vpack.c.b16 %v5660, %v5652
        %v5837 = vpack.c.b16 %v5669, %v5661
        %v5838 = vpack.c.b16 %v5670, %v5662
        %v5839 = vpack.c.b16 %v5671, %v5663
        %v5840 = vpack.c.b16 %v5672, %v5664
        %v5841 = vpack.c.b16 %v5673, %v5665
        %v5842 = vpack.c.b16 %v5674, %v5666
        %v5843 = vpack.c.b16 %v5675, %v5667
        %v5844 = vpack.c.b16 %v5676, %v5668
        %v5845 = vpack.c.b16 %v5685, %v5677
        %v5846 = vpack.c.b16 %v5686, %v5678
        %v5847 = vpack.c.b16 %v5687, %v5679
        %v5848 = vpack.c.b16 %v5688, %v5680
        %v5849 = vpack.c.b16 %v5689, %v5681
        %v5850 = vpack.c.b16 %v5690, %v5682
        %v5851 = vpack.c.b16 %v5691, %v5683
        %v5852 = vpack.c.b16 %v5692, %v5684
        %v5853 = vpack.c.b16 %v5701, %v5693
        %v5854 = vpack.c.b16 %v5702, %v5694
        %v5855 = vpack.c.b16 %v5703, %v5695
        %v5856 = vpack.c.b16 %v5704, %v5696
        %v5857 = vpack.c.b16 %v5705, %v5697
        %v5858 = vpack.c.b16 %v5706, %v5698
        %v5859 = vpack.c.b16 %v5707, %v5699
        %v5860 = vpack.c.b16 %v5708, %v5700
        %v5861 = vpack.c.b16 %v5717, %v5709
        %v5862 = vpack.c.b16 %v5718, %v5710
        %v5863 = vpack.c.b16 %v5719, %v5711
        %v5864 = vpack.c.b16 %v5720, %v5712
        %v5865 = vpack.c.b16 %v5721, %v5713
        %v5866 = vpack.c.b16 %v5722, %v5714
        %v5867 = vpack.c.b16 %v5723, %v5715
        %v5868 = vpack.c.b16 %v5724, %v5716
        %v5869 = vpack.c.b16 %v5733, %v5725
        %v5870 = vpack.c.b16 %v5734, %v5726
        %v5871 = vpack.c.b16 %v5735, %v5727
        %v5872 = vpack.c.b16 %v5736, %v5728
        %v5873 = vpack.c.b16 %v5737, %v5729
        %v5874 = vpack.c.b16 %v5738, %v5730
        %v5875 = vpack.c.b16 %v5739, %v5731
        %v5876 = vpack.c.b16 %v5740, %v5732
        %v5877 = vpack.c.b16 %v5749, %v5741
        %v5878 = vpack.c.b16 %v5750, %v5742
        %v5879 = vpack.c.b16 %v5751, %v5743
        %v5880 = vpack.c.b16 %v5752, %v5744
        %v5881 = vpack.c.b16 %v5753, %v5745
        %v5882 = vpack.c.b16 %v5754, %v5746
        %v5883 = vpack.c.b16 %v5755, %v5747
        %v5884 = vpack.c.b16 %v5756, %v5748
        %6013 = vmatpush.bf16.msra.mxu0 %v5813
        %6014 = vmatpush.bf16.msra.mxu0 %v5805
        %6015 = vmatpush.bf16.msra.mxu0 %v5797
        %6016 = vmatpush.bf16.msra.mxu0 %v5789
        %6017 = vmatpush.bf16.msra.mxu0 %v5781
        %6018 = vmatpush.bf16.msra.mxu0 %v5773
        %6019 = vmatpush.bf16.msra.mxu0 %v5765
        %6020 = vmatpush.bf16.msra.mxu0 %v5757
        %6021 = vmatmul.bf16.gmra.mxu0 %v5369
        %v6022 = vpop.f32.mrf.mxu0
        %v6023 = vadd.f32 0.0, %v6022
        %v6024 = vpop.f32.mrf.mxu0
        %v6025 = vadd.f32 0.0, %v6024
        %6026 = vdwg.mxu0
        %6027 = vmatpush.bf16.msra.mxu0 %v5877
        %6028 = vmatpush.bf16.msra.mxu0 %v5869
        %6029 = vmatpush.bf16.msra.mxu0 %v5861
        %6030 = vmatpush.bf16.msra.mxu0 %v5853
        %6031 = vmatpush.bf16.msra.mxu0 %v5845
        %6032 = vmatpush.bf16.msra.mxu0 %v5837
        %6033 = vmatpush.bf16.msra.mxu0 %v5829
        %6034 = vmatpush.bf16.msra.mxu0 %v5821
        %6035 = vmatmul.bf16.gmra.mxu0 %v5370
        %v6036 = vpop.f32.mrf.mxu0
        %v6037 = vadd.f32 %v6023, %v6036
        %v6038 = vpop.f32.mrf.mxu0
        %v6039 = vadd.f32 %v6025, %v6038
        %6040 = vdwg.mxu0
        %6041 = vmatpush.bf16.msra.mxu0 %v5814
        %6042 = vmatpush.bf16.msra.mxu0 %v5806
        %6043 = vmatpush.bf16.msra.mxu0 %v5798
        %6044 = vmatpush.bf16.msra.mxu0 %v5790
        %6045 = vmatpush.bf16.msra.mxu0 %v5782
        %6046 = vmatpush.bf16.msra.mxu0 %v5774
        %6047 = vmatpush.bf16.msra.mxu0 %v5766
        %6048 = vmatpush.bf16.msra.mxu0 %v5758
        %6049 = vmatmul.bf16.gmra.mxu0 %v5369
        %v6050 = vpop.f32.mrf.mxu0
        %v6051 = vadd.f32 0.0, %v6050
        %v6052 = vpop.f32.mrf.mxu0
        %v6053 = vadd.f32 0.0, %v6052
        %6054 = vdwg.mxu0
        %6055 = vmatpush.bf16.msra.mxu0 %v5878
        %6056 = vmatpush.bf16.msra.mxu0 %v5870
        %6057 = vmatpush.bf16.msra.mxu0 %v5862
        %6058 = vmatpush.bf16.msra.mxu0 %v5854
        %6059 = vmatpush.bf16.msra.mxu0 %v5846
        %6060 = vmatpush.bf16.msra.mxu0 %v5838
        %6061 = vmatpush.bf16.msra.mxu0 %v5830
        %6062 = vmatpush.bf16.msra.mxu0 %v5822
        %6063 = vmatmul.bf16.gmra.mxu0 %v5370
        %v6064 = vpop.f32.mrf.mxu0
        %v6065 = vadd.f32 %v6051, %v6064
        %v6066 = vpop.f32.mrf.mxu0
        %v6067 = vadd.f32 %v6053, %v6066
        %6068 = vdwg.mxu0
        %6069 = vmatpush.bf16.msra.mxu0 %v5815
        %6070 = vmatpush.bf16.msra.mxu0 %v5807
        %6071 = vmatpush.bf16.msra.mxu0 %v5799
        %6072 = vmatpush.bf16.msra.mxu0 %v5791
        %6073 = vmatpush.bf16.msra.mxu0 %v5783
        %6074 = vmatpush.bf16.msra.mxu0 %v5775
        %6075 = vmatpush.bf16.msra.mxu0 %v5767
        %6076 = vmatpush.bf16.msra.mxu0 %v5759
        %6077 = vmatmul.bf16.gmra.mxu0 %v5369
        %v6078 = vpop.f32.mrf.mxu0
        %v6079 = vadd.f32 0.0, %v6078
        %v6080 = vpop.f32.mrf.mxu0
        %v6081 = vadd.f32 0.0, %v6080
        %6082 = vdwg.mxu0
        %6083 = vmatpush.bf16.msra.mxu0 %v5879
        %6084 = vmatpush.bf16.msra.mxu0 %v5871
        %6085 = vmatpush.bf16.msra.mxu0 %v5863
        %6086 = vmatpush.bf16.msra.mxu0 %v5855
        %6087 = vmatpush.bf16.msra.mxu0 %v5847
        %6088 = vmatpush.bf16.msra.mxu0 %v5839
        %6089 = vmatpush.bf16.msra.mxu0 %v5831
        %6090 = vmatpush.bf16.msra.mxu0 %v5823
        %6091 = vmatmul.bf16.gmra.mxu0 %v5370
        %v6092 = vpop.f32.mrf.mxu0
        %v6093 = vadd.f32 %v6079, %v6092
        %v6094 = vpop.f32.mrf.mxu0
        %v6095 = vadd.f32 %v6081, %v6094
        %6096 = vdwg.mxu0
        %6097 = vmatpush.bf16.msra.mxu0 %v5816
        %6098 = vmatpush.bf16.msra.mxu0 %v5808
        %6099 = vmatpush.bf16.msra.mxu0 %v5800
        %6100 = vmatpush.bf16.msra.mxu0 %v5792
        %6101 = vmatpush.bf16.msra.mxu0 %v5784
        %6102 = vmatpush.bf16.msra.mxu0 %v5776
        %6103 = vmatpush.bf16.msra.mxu0 %v5768
        %6104 = vmatpush.bf16.msra.mxu0 %v5760
        %6105 = vmatmul.bf16.gmra.mxu0 %v5369
        %v6106 = vpop.f32.mrf.mxu0
        %v6107 = vadd.f32 0.0, %v6106
        %v6108 = vpop.f32.mrf.mxu0
        %v6109 = vadd.f32 0.0, %v6108
        %6110 = vdwg.mxu0
        %6111 = vmatpush.bf16.msra.mxu0 %v5880
        %6112 = vmatpush.bf16.msra.mxu0 %v5872
        %6113 = vmatpush.bf16.msra.mxu0 %v5864
        %6114 = vmatpush.bf16.msra.mxu0 %v5856
        %6115 = vmatpush.bf16.msra.mxu0 %v5848
        %6116 = vmatpush.bf16.msra.mxu0 %v5840
        %6117 = vmatpush.bf16.msra.mxu0 %v5832
        %6118 = vmatpush.bf16.msra.mxu0 %v5824
        %6119 = vmatmul.bf16.gmra.mxu0 %v5370
        %v6120 = vpop.f32.mrf.mxu0
        %v6121 = vadd.f32 %v6107, %v6120
        %v6122 = vpop.f32.mrf.mxu0
        %v6123 = vadd.f32 %v6109, %v6122
        %6124 = vdwg.mxu0
        %6125 = vmatpush.bf16.msra.mxu0 %v5817
        %6126 = vmatpush.bf16.msra.mxu0 %v5809
        %6127 = vmatpush.bf16.msra.mxu0 %v5801
        %6128 = vmatpush.bf16.msra.mxu0 %v5793
        %6129 = vmatpush.bf16.msra.mxu0 %v5785
        %6130 = vmatpush.bf16.msra.mxu0 %v5777
        %6131 = vmatpush.bf16.msra.mxu0 %v5769
        %6132 = vmatpush.bf16.msra.mxu0 %v5761
        %6133 = vmatmul.bf16.gmra.mxu0 %v5369
        %v6134 = vpop.f32.mrf.mxu0
        %v6135 = vadd.f32 0.0, %v6134
        %v6136 = vpop.f32.mrf.mxu0
        %v6137 = vadd.f32 0.0, %v6136
        %6138 = vdwg.mxu0
        %6139 = vmatpush.bf16.msra.mxu0 %v5881
        %6140 = vmatpush.bf16.msra.mxu0 %v5873
        %6141 = vmatpush.bf16.msra.mxu0 %v5865
        %6142 = vmatpush.bf16.msra.mxu0 %v5857
        %6143 = vmatpush.bf16.msra.mxu0 %v5849
        %6144 = vmatpush.bf16.msra.mxu0 %v5841
        %6145 = vmatpush.bf16.msra.mxu0 %v5833
        %6146 = vmatpush.bf16.msra.mxu0 %v5825
        %6147 = vmatmul.bf16.gmra.mxu0 %v5370
        %v6148 = vpop.f32.mrf.mxu0
        %v6149 = vadd.f32 %v6135, %v6148
        %v6150 = vpop.f32.mrf.mxu0
        %v6151 = vadd.f32 %v6137, %v6150
        %6152 = vdwg.mxu0
        %6153 = vmatpush.bf16.msra.mxu0 %v5818
        %6154 = vmatpush.bf16.msra.mxu0 %v5810
        %6155 = vmatpush.bf16.msra.mxu0 %v5802
        %6156 = vmatpush.bf16.msra.mxu0 %v5794
        %6157 = vmatpush.bf16.msra.mxu0 %v5786
        %6158 = vmatpush.bf16.msra.mxu0 %v5778
        %6159 = vmatpush.bf16.msra.mxu0 %v5770
        %6160 = vmatpush.bf16.msra.mxu0 %v5762
        %6161 = vmatmul.bf16.gmra.mxu0 %v5369
        %v6162 = vpop.f32.mrf.mxu0
        %v6163 = vadd.f32 0.0, %v6162
        %v6164 = vpop.f32.mrf.mxu0
        %v6165 = vadd.f32 0.0, %v6164
        %6166 = vdwg.mxu0
        %6167 = vmatpush.bf16.msra.mxu0 %v5882
        %6168 = vmatpush.bf16.msra.mxu0 %v5874
        %6169 = vmatpush.bf16.msra.mxu0 %v5866
        %6170 = vmatpush.bf16.msra.mxu0 %v5858
        %6171 = vmatpush.bf16.msra.mxu0 %v5850
        %6172 = vmatpush.bf16.msra.mxu0 %v5842
        %6173 = vmatpush.bf16.msra.mxu0 %v5834
        %6174 = vmatpush.bf16.msra.mxu0 %v5826
        %6175 = vmatmul.bf16.gmra.mxu0 %v5370
        %v6176 = vpop.f32.mrf.mxu0
        %v6177 = vadd.f32 %v6163, %v6176
        %v6178 = vpop.f32.mrf.mxu0
        %v6179 = vadd.f32 %v6165, %v6178
        %6180 = vdwg.mxu0
        %6181 = vmatpush.bf16.msra.mxu0 %v5819
        %6182 = vmatpush.bf16.msra.mxu0 %v5811
        %6183 = vmatpush.bf16.msra.mxu0 %v5803
        %6184 = vmatpush.bf16.msra.mxu0 %v5795
        %6185 = vmatpush.bf16.msra.mxu0 %v5787
        %6186 = vmatpush.bf16.msra.mxu0 %v5779
        %6187 = vmatpush.bf16.msra.mxu0 %v5771
        %6188 = vmatpush.bf16.msra.mxu0 %v5763
        %6189 = vmatmul.bf16.gmra.mxu0 %v5369
        %v6190 = vpop.f32.mrf.mxu0
        %v6191 = vadd.f32 0.0, %v6190
        %v6192 = vpop.f32.mrf.mxu0
        %v6193 = vadd.f32 0.0, %v6192
        %6194 = vdwg.mxu0
        %6195 = vmatpush.bf16.msra.mxu0 %v5883
        %6196 = vmatpush.bf16.msra.mxu0 %v5875
        %6197 = vmatpush.bf16.msra.mxu0 %v5867
        %6198 = vmatpush.bf16.msra.mxu0 %v5859
        %6199 = vmatpush.bf16.msra.mxu0 %v5851
        %6200 = vmatpush.bf16.msra.mxu0 %v5843
        %6201 = vmatpush.bf16.msra.mxu0 %v5835
        %6202 = vmatpush.bf16.msra.mxu0 %v5827
        %6203 = vmatmul.bf16.gmra.mxu0 %v5370
        %v6204 = vpop.f32.mrf.mxu0
        %v6205 = vadd.f32 %v6191, %v6204
        %v6206 = vpop.f32.mrf.mxu0
        %v6207 = vadd.f32 %v6193, %v6206
        %6208 = vdwg.mxu0
        %6209 = vmatpush.bf16.msra.mxu0 %v5820
        %6210 = vmatpush.bf16.msra.mxu0 %v5812
        %6211 = vmatpush.bf16.msra.mxu0 %v5804
        %6212 = vmatpush.bf16.msra.mxu0 %v5796
        %6213 = vmatpush.bf16.msra.mxu0 %v5788
        %6214 = vmatpush.bf16.msra.mxu0 %v5780
        %6215 = vmatpush.bf16.msra.mxu0 %v5772
        %6216 = vmatpush.bf16.msra.mxu0 %v5764
        %6217 = vmatmul.bf16.gmra.mxu0 %v5369
        %v6218 = vpop.f32.mrf.mxu0
        %v6219 = vadd.f32 0.0, %v6218
        %v6220 = vpop.f32.mrf.mxu0
        %v6221 = vadd.f32 0.0, %v6220
        %6222 = vdwg.mxu0
        %6223 = vmatpush.bf16.msra.mxu0 %v5884
        %6224 = vmatpush.bf16.msra.mxu0 %v5876
        %6225 = vmatpush.bf16.msra.mxu0 %v5868
        %6226 = vmatpush.bf16.msra.mxu0 %v5860
        %6227 = vmatpush.bf16.msra.mxu0 %v5852
        %6228 = vmatpush.bf16.msra.mxu0 %v5844
        %6229 = vmatpush.bf16.msra.mxu0 %v5836
        %6230 = vmatpush.bf16.msra.mxu0 %v5828
        %6231 = vmatmul.bf16.gmra.mxu0 %v5370
        %v6232 = vpop.f32.mrf.mxu0
        %v6233 = vadd.f32 %v6219, %v6232
        %v6234 = vpop.f32.mrf.mxu0
        %v6235 = vadd.f32 %v6221, %v6234
        %6236 = vdwg.mxu0
        %v6239 = vunpack.c.l.b16 %v5098
        %v6240 = vunpack.c.h.b16 %v5098
        %v6241 = vunpack.c.l.b16 %v5099
        %v6242 = vunpack.c.h.b16 %v5099
        %v6243 = vpack.c.b16 %v6241, %v6239
        %v6244 = vpack.c.b16 %v6242, %v6240
        %v6375 = vunpack.c.l.b16 %v5106
        %v6376 = vunpack.c.h.b16 %v5106
        %v6377 = vunpack.c.l.b16 %v5107
        %v6378 = vunpack.c.h.b16 %v5107
        %v6379 = vunpack.c.l.b16 %v5108
        %v6380 = vunpack.c.h.b16 %v5108
        %v6381 = vunpack.c.l.b16 %v5109
        %v6382 = vunpack.c.h.b16 %v5109
        %v6383 = vunpack.c.l.b16 %v5110
        %v6384 = vunpack.c.h.b16 %v5110
        %v6385 = vunpack.c.l.b16 %v5111
        %v6386 = vunpack.c.h.b16 %v5111
        %v6387 = vunpack.c.l.b16 %v5112
        %v6388 = vunpack.c.h.b16 %v5112
        %v6389 = vunpack.c.l.b16 %v5113
        %v6390 = vunpack.c.h.b16 %v5113
        %v6391 = vunpack.c.l.b16 %v5114
        %v6392 = vunpack.c.h.b16 %v5114
        %v6393 = vunpack.c.l.b16 %v5115
        %v6394 = vunpack.c.h.b16 %v5115
        %v6395 = vunpack.c.l.b16 %v5116
        %v6396 = vunpack.c.h.b16 %v5116
        %v6397 = vunpack.c.l.b16 %v5117
        %v6398 = vunpack.c.h.b16 %v5117
        %v6399 = vunpack.c.l.b16 %v5118
        %v6400 = vunpack.c.h.b16 %v5118
        %v6401 = vunpack.c.l.b16 %v5119
        %v6402 = vunpack.c.h.b16 %v5119
        %v6403 = vunpack.c.l.b16 %v5120
        %v6404 = vunpack.c.h.b16 %v5120
        %v6405 = vunpack.c.l.b16 %v5121
        %v6406 = vunpack.c.h.b16 %v5121
        %v6407 = vunpack.c.l.b16 %v5122
        %v6408 = vunpack.c.h.b16 %v5122
        %v6409 = vunpack.c.l.b16 %v5123
        %v6410 = vunpack.c.h.b16 %v5123
        %v6411 = vunpack.c.l.b16 %v5124
        %v6412 = vunpack.c.h.b16 %v5124
        %v6413 = vunpack.c.l.b16 %v5125
        %v6414 = vunpack.c.h.b16 %v5125
        %v6415 = vunpack.c.l.b16 %v5126
        %v6416 = vunpack.c.h.b16 %v5126
        %v6417 = vunpack.c.l.b16 %v5127
        %v6418 = vunpack.c.h.b16 %v5127
        %v6419 = vunpack.c.l.b16 %v5128
        %v6420 = vunpack.c.h.b16 %v5128
        %v6421 = vunpack.c.l.b16 %v5129
        %v6422 = vunpack.c.h.b16 %v5129
        %v6423 = vunpack.c.l.b16 %v5130
        %v6424 = vunpack.c.h.b16 %v5130
        %v6425 = vunpack.c.l.b16 %v5131
        %v6426 = vunpack.c.h.b16 %v5131
        %v6427 = vunpack.c.l.b16 %v5132
        %v6428 = vunpack.c.h.b16 %v5132
        %v6429 = vunpack.c.l.b16 %v5133
        %v6430 = vunpack.c.h.b16 %v5133
        %v6431 = vunpack.c.l.b16 %v5134
        %v6432 = vunpack.c.h.b16 %v5134
        %v6433 = vunpack.c.l.b16 %v5135
        %v6434 = vunpack.c.h.b16 %v5135
        %v6435 = vunpack.c.l.b16 %v5136
        %v6436 = vunpack.c.h.b16 %v5136
        %v6437 = vunpack.c.l.b16 %v5137
        %v6438 = vunpack.c.h.b16 %v5137
        %v6439 = vunpack.c.l.b16 %v5138
        %v6440 = vunpack.c.h.b16 %v5138
        %v6441 = vunpack.c.l.b16 %v5139
        %v6442 = vunpack.c.h.b16 %v5139
        %v6443 = vunpack.c.l.b16 %v5140
        %v6444 = vunpack.c.h.b16 %v5140
        %v6445 = vunpack.c.l.b16 %v5141
        %v6446 = vunpack.c.h.b16 %v5141
        %v6447 = vunpack.c.l.b16 %v5142
        %v6448 = vunpack.c.h.b16 %v5142
        %v6449 = vunpack.c.l.b16 %v5143
        %v6450 = vunpack.c.h.b16 %v5143
        %v6451 = vunpack.c.l.b16 %v5144
        %v6452 = vunpack.c.h.b16 %v5144
        %v6453 = vunpack.c.l.b16 %v5145
        %v6454 = vunpack.c.h.b16 %v5145
        %v6455 = vunpack.c.l.b16 %v5146
        %v6456 = vunpack.c.h.b16 %v5146
        %v6457 = vunpack.c.l.b16 %v5147
        %v6458 = vunpack.c.h.b16 %v5147
        %v6459 = vunpack.c.l.b16 %v5148
        %v6460 = vunpack.c.h.b16 %v5148
        %v6461 = vunpack.c.l.b16 %v5149
        %v6462 = vunpack.c.h.b16 %v5149
        %v6463 = vunpack.c.l.b16 %v5150
        %v6464 = vunpack.c.h.b16 %v5150
        %v6465 = vunpack.c.l.b16 %v5151
        %v6466 = vunpack.c.h.b16 %v5151
        %v6467 = vunpack.c.l.b16 %v5152
        %v6468 = vunpack.c.h.b16 %v5152
        %v6469 = vunpack.c.l.b16 %v5153
        %v6470 = vunpack.c.h.b16 %v5153
        %v6471 = vunpack.c.l.b16 %v5154
        %v6472 = vunpack.c.h.b16 %v5154
        %v6473 = vunpack.c.l.b16 %v5155
        %v6474 = vunpack.c.h.b16 %v5155
        %v6475 = vunpack.c.l.b16 %v5156
        %v6476 = vunpack.c.h.b16 %v5156
        %v6477 = vunpack.c.l.b16 %v5157
        %v6478 = vunpack.c.h.b16 %v5157
        %v6479 = vunpack.c.l.b16 %v5158
        %v6480 = vunpack.c.h.b16 %v5158
        %v6481 = vunpack.c.l.b16 %v5159
        %v6482 = vunpack.c.h.b16 %v5159
        %v6483 = vunpack.c.l.b16 %v5160
        %v6484 = vunpack.c.h.b16 %v5160
        %v6485 = vunpack.c.l.b16 %v5161
        %v6486 = vunpack.c.h.b16 %v5161
        %v6487 = vunpack.c.l.b16 %v5162
        %v6488 = vunpack.c.h.b16 %v5162
        %v6489 = vunpack.c.l.b16 %v5163
        %v6490 = vunpack.c.h.b16 %v5163
        %v6491 = vunpack.c.l.b16 %v5164
        %v6492 = vunpack.c.h.b16 %v5164
        %v6493 = vunpack.c.l.b16 %v5165
        %v6494 = vunpack.c.h.b16 %v5165
        %v6495 = vunpack.c.l.b16 %v5166
        %v6496 = vunpack.c.h.b16 %v5166
        %v6497 = vunpack.c.l.b16 %v5167
        %v6498 = vunpack.c.h.b16 %v5167
        %v6499 = vunpack.c.l.b16 %v5168
        %v6500 = vunpack.c.h.b16 %v5168
        %v6501 = vunpack.c.l.b16 %v5169
        %v6502 = vunpack.c.h.b16 %v5169
        %v6503 = vunpack.c.l.b16 %v5170
        %v6504 = vunpack.c.h.b16 %v5170
        %v6505 = vunpack.c.l.b16 %v5171
        %v6506 = vunpack.c.h.b16 %v5171
        %v6507 = vunpack.c.l.b16 %v5172
        %v6508 = vunpack.c.h.b16 %v5172
        %v6509 = vunpack.c.l.b16 %v5173
        %v6510 = vunpack.c.h.b16 %v5173
        %v6511 = vunpack.c.l.b16 %v5174
        %v6512 = vunpack.c.h.b16 %v5174
        %v6513 = vunpack.c.l.b16 %v5175
        %v6514 = vunpack.c.h.b16 %v5175
        %v6515 = vunpack.c.l.b16 %v5176
        %v6516 = vunpack.c.h.b16 %v5176
        %v6517 = vunpack.c.l.b16 %v5177
        %v6518 = vunpack.c.h.b16 %v5177
        %v6519 = vunpack.c.l.b16 %v5178
        %v6520 = vunpack.c.h.b16 %v5178
        %v6521 = vunpack.c.l.b16 %v5179
        %v6522 = vunpack.c.h.b16 %v5179
        %v6523 = vunpack.c.l.b16 %v5180
        %v6524 = vunpack.c.h.b16 %v5180
        %v6525 = vunpack.c.l.b16 %v5181
        %v6526 = vunpack.c.h.b16 %v5181
        %v6527 = vunpack.c.l.b16 %v5182
        %v6528 = vunpack.c.h.b16 %v5182
        %v6529 = vunpack.c.l.b16 %v5183
        %v6530 = vunpack.c.h.b16 %v5183
        %v6531 = vunpack.c.l.b16 %v5184
        %v6532 = vunpack.c.h.b16 %v5184
        %v6533 = vunpack.c.l.b16 %v5185
        %v6534 = vunpack.c.h.b16 %v5185
        %v6535 = vunpack.c.l.b16 %v5186
        %v6536 = vunpack.c.h.b16 %v5186
        %v6537 = vunpack.c.l.b16 %v5187
        %v6538 = vunpack.c.h.b16 %v5187
        %v6539 = vunpack.c.l.b16 %v5188
        %v6540 = vunpack.c.h.b16 %v5188
        %v6541 = vunpack.c.l.b16 %v5189
        %v6542 = vunpack.c.h.b16 %v5189
        %v6543 = vunpack.c.l.b16 %v5190
        %v6544 = vunpack.c.h.b16 %v5190
        %v6545 = vunpack.c.l.b16 %v5191
        %v6546 = vunpack.c.h.b16 %v5191
        %v6547 = vunpack.c.l.b16 %v5192
        %v6548 = vunpack.c.h.b16 %v5192
        %v6549 = vunpack.c.l.b16 %v5193
        %v6550 = vunpack.c.h.b16 %v5193
        %v6551 = vunpack.c.l.b16 %v5194
        %v6552 = vunpack.c.h.b16 %v5194
        %v6553 = vunpack.c.l.b16 %v5195
        %v6554 = vunpack.c.h.b16 %v5195
        %v6555 = vunpack.c.l.b16 %v5196
        %v6556 = vunpack.c.h.b16 %v5196
        %v6557 = vunpack.c.l.b16 %v5197
        %v6558 = vunpack.c.h.b16 %v5197
        %v6559 = vunpack.c.l.b16 %v5198
        %v6560 = vunpack.c.h.b16 %v5198
        %v6561 = vunpack.c.l.b16 %v5199
        %v6562 = vunpack.c.h.b16 %v5199
        %v6563 = vunpack.c.l.b16 %v5200
        %v6564 = vunpack.c.h.b16 %v5200
        %v6565 = vunpack.c.l.b16 %v5201
        %v6566 = vunpack.c.h.b16 %v5201
        %v6567 = vunpack.c.l.b16 %v5202
        %v6568 = vunpack.c.h.b16 %v5202
        %v6569 = vunpack.c.l.b16 %v5203
        %v6570 = vunpack.c.h.b16 %v5203
        %v6571 = vunpack.c.l.b16 %v5204
        %v6572 = vunpack.c.h.b16 %v5204
        %v6573 = vunpack.c.l.b16 %v5205
        %v6574 = vunpack.c.h.b16 %v5205
        %v6575 = vunpack.c.l.b16 %v5206
        %v6576 = vunpack.c.h.b16 %v5206
        %v6577 = vunpack.c.l.b16 %v5207
        %v6578 = vunpack.c.h.b16 %v5207
        %v6579 = vunpack.c.l.b16 %v5208
        %v6580 = vunpack.c.h.b16 %v5208
        %v6581 = vunpack.c.l.b16 %v5209
        %v6582 = vunpack.c.h.b16 %v5209
        %v6583 = vunpack.c.l.b16 %v5210
        %v6584 = vunpack.c.h.b16 %v5210
        %v6585 = vunpack.c.l.b16 %v5211
        %v6586 = vunpack.c.h.b16 %v5211
        %v6587 = vunpack.c.l.b16 %v5212
        %v6588 = vunpack.c.h.b16 %v5212
        %v6589 = vunpack.c.l.b16 %v5213
        %v6590 = vunpack.c.h.b16 %v5213
        %v6591 = vunpack.c.l.b16 %v5214
        %v6592 = vunpack.c.h.b16 %v5214
        %v6593 = vunpack.c.l.b16 %v5215
        %v6594 = vunpack.c.h.b16 %v5215
        %v6595 = vunpack.c.l.b16 %v5216
        %v6596 = vunpack.c.h.b16 %v5216
        %v6597 = vunpack.c.l.b16 %v5217
        %v6598 = vunpack.c.h.b16 %v5217
        %v6599 = vunpack.c.l.b16 %v5218
        %v6600 = vunpack.c.h.b16 %v5218
        %v6601 = vunpack.c.l.b16 %v5219
        %v6602 = vunpack.c.h.b16 %v5219
        %v6603 = vunpack.c.l.b16 %v5220
        %v6604 = vunpack.c.h.b16 %v5220
        %v6605 = vunpack.c.l.b16 %v5221
        %v6606 = vunpack.c.h.b16 %v5221
        %v6607 = vunpack.c.l.b16 %v5222
        %v6608 = vunpack.c.h.b16 %v5222
        %v6609 = vunpack.c.l.b16 %v5223
        %v6610 = vunpack.c.h.b16 %v5223
        %v6611 = vunpack.c.l.b16 %v5224
        %v6612 = vunpack.c.h.b16 %v5224
        %v6613 = vunpack.c.l.b16 %v5225
        %v6614 = vunpack.c.h.b16 %v5225
        %v6615 = vunpack.c.l.b16 %v5226
        %v6616 = vunpack.c.h.b16 %v5226
        %v6617 = vunpack.c.l.b16 %v5227
        %v6618 = vunpack.c.h.b16 %v5227
        %v6619 = vunpack.c.l.b16 %v5228
        %v6620 = vunpack.c.h.b16 %v5228
        %v6621 = vunpack.c.l.b16 %v5229
        %v6622 = vunpack.c.h.b16 %v5229
        %v6623 = vunpack.c.l.b16 %v5230
        %v6624 = vunpack.c.h.b16 %v5230
        %v6625 = vunpack.c.l.b16 %v5231
        %v6626 = vunpack.c.h.b16 %v5231
        %v6627 = vunpack.c.l.b16 %v5232
        %v6628 = vunpack.c.h.b16 %v5232
        %v6629 = vunpack.c.l.b16 %v5233
        %v6630 = vunpack.c.h.b16 %v5233
        %v6631 = vpack.c.b16 %v6383, %v6375
        %v6632 = vpack.c.b16 %v6384, %v6376
        %v6633 = vpack.c.b16 %v6385, %v6377
        %v6634 = vpack.c.b16 %v6386, %v6378
        %v6635 = vpack.c.b16 %v6387, %v6379
        %v6636 = vpack.c.b16 %v6388, %v6380
        %v6637 = vpack.c.b16 %v6389, %v6381
        %v6638 = vpack.c.b16 %v6390, %v6382
        %v6639 = vpack.c.b16 %v6399, %v6391
        %v6640 = vpack.c.b16 %v6400, %v6392
        %v6641 = vpack.c.b16 %v6401, %v6393
        %v6642 = vpack.c.b16 %v6402, %v6394
        %v6643 = vpack.c.b16 %v6403, %v6395
        %v6644 = vpack.c.b16 %v6404, %v6396
        %v6645 = vpack.c.b16 %v6405, %v6397
        %v6646 = vpack.c.b16 %v6406, %v6398
        %v6647 = vpack.c.b16 %v6415, %v6407
        %v6648 = vpack.c.b16 %v6416, %v6408
        %v6649 = vpack.c.b16 %v6417, %v6409
        %v6650 = vpack.c.b16 %v6418, %v6410
        %v6651 = vpack.c.b16 %v6419, %v6411
        %v6652 = vpack.c.b16 %v6420, %v6412
        %v6653 = vpack.c.b16 %v6421, %v6413
        %v6654 = vpack.c.b16 %v6422, %v6414
        %v6655 = vpack.c.b16 %v6431, %v6423
        %v6656 = vpack.c.b16 %v6432, %v6424
        %v6657 = vpack.c.b16 %v6433, %v6425
        %v6658 = vpack.c.b16 %v6434, %v6426
        %v6659 = vpack.c.b16 %v6435, %v6427
        %v6660 = vpack.c.b16 %v6436, %v6428
        %v6661 = vpack.c.b16 %v6437, %v6429
        %v6662 = vpack.c.b16 %v6438, %v6430
        %v6663 = vpack.c.b16 %v6447, %v6439
        %v6664 = vpack.c.b16 %v6448, %v6440
        %v6665 = vpack.c.b16 %v6449, %v6441
        %v6666 = vpack.c.b16 %v6450, %v6442
        %v6667 = vpack.c.b16 %v6451, %v6443
        %v6668 = vpack.c.b16 %v6452, %v6444
        %v6669 = vpack.c.b16 %v6453, %v6445
        %v6670 = vpack.c.b16 %v6454, %v6446
        %v6671 = vpack.c.b16 %v6463, %v6455
        %v6672 = vpack.c.b16 %v6464, %v6456
        %v6673 = vpack.c.b16 %v6465, %v6457
        %v6674 = vpack.c.b16 %v6466, %v6458
        %v6675 = vpack.c.b16 %v6467, %v6459
        %v6676 = vpack.c.b16 %v6468, %v6460
        %v6677 = vpack.c.b16 %v6469, %v6461
        %v6678 = vpack.c.b16 %v6470, %v6462
        %v6679 = vpack.c.b16 %v6479, %v6471
        %v6680 = vpack.c.b16 %v6480, %v6472
        %v6681 = vpack.c.b16 %v6481, %v6473
        %v6682 = vpack.c.b16 %v6482, %v6474
        %v6683 = vpack.c.b16 %v6483, %v6475
        %v6684 = vpack.c.b16 %v6484, %v6476
        %v6685 = vpack.c.b16 %v6485, %v6477
        %v6686 = vpack.c.b16 %v6486, %v6478
        %v6687 = vpack.c.b16 %v6495, %v6487
        %v6688 = vpack.c.b16 %v6496, %v6488
        %v6689 = vpack.c.b16 %v6497, %v6489
        %v6690 = vpack.c.b16 %v6498, %v6490
        %v6691 = vpack.c.b16 %v6499, %v6491
        %v6692 = vpack.c.b16 %v6500, %v6492
        %v6693 = vpack.c.b16 %v6501, %v6493
        %v6694 = vpack.c.b16 %v6502, %v6494
        %v6695 = vpack.c.b16 %v6511, %v6503
        %v6696 = vpack.c.b16 %v6512, %v6504
        %v6697 = vpack.c.b16 %v6513, %v6505
        %v6698 = vpack.c.b16 %v6514, %v6506
        %v6699 = vpack.c.b16 %v6515, %v6507
        %v6700 = vpack.c.b16 %v6516, %v6508
        %v6701 = vpack.c.b16 %v6517, %v6509
        %v6702 = vpack.c.b16 %v6518, %v6510
        %v6703 = vpack.c.b16 %v6527, %v6519
        %v6704 = vpack.c.b16 %v6528, %v6520
        %v6705 = vpack.c.b16 %v6529, %v6521
        %v6706 = vpack.c.b16 %v6530, %v6522
        %v6707 = vpack.c.b16 %v6531, %v6523
        %v6708 = vpack.c.b16 %v6532, %v6524
        %v6709 = vpack.c.b16 %v6533, %v6525
        %v6710 = vpack.c.b16 %v6534, %v6526
        %v6711 = vpack.c.b16 %v6543, %v6535
        %v6712 = vpack.c.b16 %v6544, %v6536
        %v6713 = vpack.c.b16 %v6545, %v6537
        %v6714 = vpack.c.b16 %v6546, %v6538
        %v6715 = vpack.c.b16 %v6547, %v6539
        %v6716 = vpack.c.b16 %v6548, %v6540
        %v6717 = vpack.c.b16 %v6549, %v6541
        %v6718 = vpack.c.b16 %v6550, %v6542
        %v6719 = vpack.c.b16 %v6559, %v6551
        %v6720 = vpack.c.b16 %v6560, %v6552
        %v6721 = vpack.c.b16 %v6561, %v6553
        %v6722 = vpack.c.b16 %v6562, %v6554
        %v6723 = vpack.c.b16 %v6563, %v6555
        %v6724 = vpack.c.b16 %v6564, %v6556
        %v6725 = vpack.c.b16 %v6565, %v6557
        %v6726 = vpack.c.b16 %v6566, %v6558
        %v6727 = vpack.c.b16 %v6575, %v6567
        %v6728 = vpack.c.b16 %v6576, %v6568
        %v6729 = vpack.c.b16 %v6577, %v6569
        %v6730 = vpack.c.b16 %v6578, %v6570
        %v6731 = vpack.c.b16 %v6579, %v6571
        %v6732 = vpack.c.b16 %v6580, %v6572
        %v6733 = vpack.c.b16 %v6581, %v6573
        %v6734 = vpack.c.b16 %v6582, %v6574
        %v6735 = vpack.c.b16 %v6591, %v6583
        %v6736 = vpack.c.b16 %v6592, %v6584
        %v6737 = vpack.c.b16 %v6593, %v6585
        %v6738 = vpack.c.b16 %v6594, %v6586
        %v6739 = vpack.c.b16 %v6595, %v6587
        %v6740 = vpack.c.b16 %v6596, %v6588
        %v6741 = vpack.c.b16 %v6597, %v6589
        %v6742 = vpack.c.b16 %v6598, %v6590
        %v6743 = vpack.c.b16 %v6607, %v6599
        %v6744 = vpack.c.b16 %v6608, %v6600
        %v6745 = vpack.c.b16 %v6609, %v6601
        %v6746 = vpack.c.b16 %v6610, %v6602
        %v6747 = vpack.c.b16 %v6611, %v6603
        %v6748 = vpack.c.b16 %v6612, %v6604
        %v6749 = vpack.c.b16 %v6613, %v6605
        %v6750 = vpack.c.b16 %v6614, %v6606
        %v6751 = vpack.c.b16 %v6623, %v6615
        %v6752 = vpack.c.b16 %v6624, %v6616
        %v6753 = vpack.c.b16 %v6625, %v6617
        %v6754 = vpack.c.b16 %v6626, %v6618
        %v6755 = vpack.c.b16 %v6627, %v6619
        %v6756 = vpack.c.b16 %v6628, %v6620
        %v6757 = vpack.c.b16 %v6629, %v6621
        %v6758 = vpack.c.b16 %v6630, %v6622
        %6887 = vmatpush.bf16.msra.mxu0 %v6687
        %6888 = vmatpush.bf16.msra.mxu0 %v6679
        %6889 = vmatpush.bf16.msra.mxu0 %v6671
        %6890 = vmatpush.bf16.msra.mxu0 %v6663
        %6891 = vmatpush.bf16.msra.mxu0 %v6655
        %6892 = vmatpush.bf16.msra.mxu0 %v6647
        %6893 = vmatpush.bf16.msra.mxu0 %v6639
        %6894 = vmatpush.bf16.msra.mxu0 %v6631
        %6895 = vmatmul.bf16.gmra.mxu0 %v6243
        %v6896 = vpop.f32.mrf.mxu0
        %v6897 = vadd.f32 %v6037, %v6896
        %v6898 = vpop.f32.mrf.mxu0
        %v6899 = vadd.f32 %v6039, %v6898
        %6900 = vdwg.mxu0
        %6901 = vmatpush.bf16.msra.mxu0 %v6751
        %6902 = vmatpush.bf16.msra.mxu0 %v6743
        %6903 = vmatpush.bf16.msra.mxu0 %v6735
        %6904 = vmatpush.bf16.msra.mxu0 %v6727
        %6905 = vmatpush.bf16.msra.mxu0 %v6719
        %6906 = vmatpush.bf16.msra.mxu0 %v6711
        %6907 = vmatpush.bf16.msra.mxu0 %v6703
        %6908 = vmatpush.bf16.msra.mxu0 %v6695
        %6909 = vmatmul.bf16.gmra.mxu0 %v6244
        %v6910 = vpop.f32.mrf.mxu0
        %v6911 = vadd.f32 %v6897, %v6910
        %v6912 = vpop.f32.mrf.mxu0
        %v6913 = vadd.f32 %v6899, %v6912
        %6914 = vdwg.mxu0
        %6915 = vmatpush.bf16.msra.mxu0 %v6688
        %6916 = vmatpush.bf16.msra.mxu0 %v6680
        %6917 = vmatpush.bf16.msra.mxu0 %v6672
        %6918 = vmatpush.bf16.msra.mxu0 %v6664
        %6919 = vmatpush.bf16.msra.mxu0 %v6656
        %6920 = vmatpush.bf16.msra.mxu0 %v6648
        %6921 = vmatpush.bf16.msra.mxu0 %v6640
        %6922 = vmatpush.bf16.msra.mxu0 %v6632
        %6923 = vmatmul.bf16.gmra.mxu0 %v6243
        %v6924 = vpop.f32.mrf.mxu0
        %v6925 = vadd.f32 %v6065, %v6924
        %v6926 = vpop.f32.mrf.mxu0
        %v6927 = vadd.f32 %v6067, %v6926
        %6928 = vdwg.mxu0
        %6929 = vmatpush.bf16.msra.mxu0 %v6752
        %6930 = vmatpush.bf16.msra.mxu0 %v6744
        %6931 = vmatpush.bf16.msra.mxu0 %v6736
        %6932 = vmatpush.bf16.msra.mxu0 %v6728
        %6933 = vmatpush.bf16.msra.mxu0 %v6720
        %6934 = vmatpush.bf16.msra.mxu0 %v6712
        %6935 = vmatpush.bf16.msra.mxu0 %v6704
        %6936 = vmatpush.bf16.msra.mxu0 %v6696
        %6937 = vmatmul.bf16.gmra.mxu0 %v6244
        %v6938 = vpop.f32.mrf.mxu0
        %v6939 = vadd.f32 %v6925, %v6938
        %v6940 = vpop.f32.mrf.mxu0
        %v6941 = vadd.f32 %v6927, %v6940
        %6942 = vdwg.mxu0
        %6943 = vmatpush.bf16.msra.mxu0 %v6689
        %6944 = vmatpush.bf16.msra.mxu0 %v6681
        %6945 = vmatpush.bf16.msra.mxu0 %v6673
        %6946 = vmatpush.bf16.msra.mxu0 %v6665
        %6947 = vmatpush.bf16.msra.mxu0 %v6657
        %6948 = vmatpush.bf16.msra.mxu0 %v6649
        %6949 = vmatpush.bf16.msra.mxu0 %v6641
        %6950 = vmatpush.bf16.msra.mxu0 %v6633
        %6951 = vmatmul.bf16.gmra.mxu0 %v6243
        %v6952 = vpop.f32.mrf.mxu0
        %v6953 = vadd.f32 %v6093, %v6952
        %v6954 = vpop.f32.mrf.mxu0
        %v6955 = vadd.f32 %v6095, %v6954
        %6956 = vdwg.mxu0
        %6957 = vmatpush.bf16.msra.mxu0 %v6753
        %6958 = vmatpush.bf16.msra.mxu0 %v6745
        %6959 = vmatpush.bf16.msra.mxu0 %v6737
        %6960 = vmatpush.bf16.msra.mxu0 %v6729
        %6961 = vmatpush.bf16.msra.mxu0 %v6721
        %6962 = vmatpush.bf16.msra.mxu0 %v6713
        %6963 = vmatpush.bf16.msra.mxu0 %v6705
        %6964 = vmatpush.bf16.msra.mxu0 %v6697
        %6965 = vmatmul.bf16.gmra.mxu0 %v6244
        %v6966 = vpop.f32.mrf.mxu0
        %v6967 = vadd.f32 %v6953, %v6966
        %v6968 = vpop.f32.mrf.mxu0
        %v6969 = vadd.f32 %v6955, %v6968
        %6970 = vdwg.mxu0
        %6971 = vmatpush.bf16.msra.mxu0 %v6690
        %6972 = vmatpush.bf16.msra.mxu0 %v6682
        %6973 = vmatpush.bf16.msra.mxu0 %v6674
        %6974 = vmatpush.bf16.msra.mxu0 %v6666
        %6975 = vmatpush.bf16.msra.mxu0 %v6658
        %6976 = vmatpush.bf16.msra.mxu0 %v6650
        %6977 = vmatpush.bf16.msra.mxu0 %v6642
        %6978 = vmatpush.bf16.msra.mxu0 %v6634
        %6979 = vmatmul.bf16.gmra.mxu0 %v6243
        %v6980 = vpop.f32.mrf.mxu0
        %v6981 = vadd.f32 %v6121, %v6980
        %v6982 = vpop.f32.mrf.mxu0
        %v6983 = vadd.f32 %v6123, %v6982
        %6984 = vdwg.mxu0
        %6985 = vmatpush.bf16.msra.mxu0 %v6754
        %6986 = vmatpush.bf16.msra.mxu0 %v6746
        %6987 = vmatpush.bf16.msra.mxu0 %v6738
        %6988 = vmatpush.bf16.msra.mxu0 %v6730
        %6989 = vmatpush.bf16.msra.mxu0 %v6722
        %6990 = vmatpush.bf16.msra.mxu0 %v6714
        %6991 = vmatpush.bf16.msra.mxu0 %v6706
        %6992 = vmatpush.bf16.msra.mxu0 %v6698
        %6993 = vmatmul.bf16.gmra.mxu0 %v6244
        %v6994 = vpop.f32.mrf.mxu0
        %v6995 = vadd.f32 %v6981, %v6994
        %v6996 = vpop.f32.mrf.mxu0
        %v6997 = vadd.f32 %v6983, %v6996
        %6998 = vdwg.mxu0
        %6999 = vmatpush.bf16.msra.mxu0 %v6691
        %7000 = vmatpush.bf16.msra.mxu0 %v6683
        %7001 = vmatpush.bf16.msra.mxu0 %v6675
        %7002 = vmatpush.bf16.msra.mxu0 %v6667
        %7003 = vmatpush.bf16.msra.mxu0 %v6659
        %7004 = vmatpush.bf16.msra.mxu0 %v6651
        %7005 = vmatpush.bf16.msra.mxu0 %v6643
        %7006 = vmatpush.bf16.msra.mxu0 %v6635
        %7007 = vmatmul.bf16.gmra.mxu0 %v6243
        %v7008 = vpop.f32.mrf.mxu0
        %v7009 = vadd.f32 %v6149, %v7008
        %v7010 = vpop.f32.mrf.mxu0
        %v7011 = vadd.f32 %v6151, %v7010
        %7012 = vdwg.mxu0
        %7013 = vmatpush.bf16.msra.mxu0 %v6755
        %7014 = vmatpush.bf16.msra.mxu0 %v6747
        %7015 = vmatpush.bf16.msra.mxu0 %v6739
        %7016 = vmatpush.bf16.msra.mxu0 %v6731
        %7017 = vmatpush.bf16.msra.mxu0 %v6723
        %7018 = vmatpush.bf16.msra.mxu0 %v6715
        %7019 = vmatpush.bf16.msra.mxu0 %v6707
        %7020 = vmatpush.bf16.msra.mxu0 %v6699
        %7021 = vmatmul.bf16.gmra.mxu0 %v6244
        %v7022 = vpop.f32.mrf.mxu0
        %v7023 = vadd.f32 %v7009, %v7022
        %v7024 = vpop.f32.mrf.mxu0
        %v7025 = vadd.f32 %v7011, %v7024
        %7026 = vdwg.mxu0
        %7027 = vmatpush.bf16.msra.mxu0 %v6692
        %7028 = vmatpush.bf16.msra.mxu0 %v6684
        %7029 = vmatpush.bf16.msra.mxu0 %v6676
        %7030 = vmatpush.bf16.msra.mxu0 %v6668
        %7031 = vmatpush.bf16.msra.mxu0 %v6660
        %7032 = vmatpush.bf16.msra.mxu0 %v6652
        %7033 = vmatpush.bf16.msra.mxu0 %v6644
        %7034 = vmatpush.bf16.msra.mxu0 %v6636
        %7035 = vmatmul.bf16.gmra.mxu0 %v6243
        %v7036 = vpop.f32.mrf.mxu0
        %v7037 = vadd.f32 %v6177, %v7036
        %v7038 = vpop.f32.mrf.mxu0
        %v7039 = vadd.f32 %v6179, %v7038
        %7040 = vdwg.mxu0
        %7041 = vmatpush.bf16.msra.mxu0 %v6756
        %7042 = vmatpush.bf16.msra.mxu0 %v6748
        %7043 = vmatpush.bf16.msra.mxu0 %v6740
        %7044 = vmatpush.bf16.msra.mxu0 %v6732
        %7045 = vmatpush.bf16.msra.mxu0 %v6724
        %7046 = vmatpush.bf16.msra.mxu0 %v6716
        %7047 = vmatpush.bf16.msra.mxu0 %v6708
        %7048 = vmatpush.bf16.msra.mxu0 %v6700
        %7049 = vmatmul.bf16.gmra.mxu0 %v6244
        %v7050 = vpop.f32.mrf.mxu0
        %v7051 = vadd.f32 %v7037, %v7050
        %v7052 = vpop.f32.mrf.mxu0
        %v7053 = vadd.f32 %v7039, %v7052
        %7054 = vdwg.mxu0
        %7055 = vmatpush.bf16.msra.mxu0 %v6693
        %7056 = vmatpush.bf16.msra.mxu0 %v6685
        %7057 = vmatpush.bf16.msra.mxu0 %v6677
        %7058 = vmatpush.bf16.msra.mxu0 %v6669
        %7059 = vmatpush.bf16.msra.mxu0 %v6661
        %7060 = vmatpush.bf16.msra.mxu0 %v6653
        %7061 = vmatpush.bf16.msra.mxu0 %v6645
        %7062 = vmatpush.bf16.msra.mxu0 %v6637
        %7063 = vmatmul.bf16.gmra.mxu0 %v6243
        %v7064 = vpop.f32.mrf.mxu0
        %v7065 = vadd.f32 %v6205, %v7064
        %v7066 = vpop.f32.mrf.mxu0
        %v7067 = vadd.f32 %v6207, %v7066
        %7068 = vdwg.mxu0
        %7069 = vmatpush.bf16.msra.mxu0 %v6757
        %7070 = vmatpush.bf16.msra.mxu0 %v6749
        %7071 = vmatpush.bf16.msra.mxu0 %v6741
        %7072 = vmatpush.bf16.msra.mxu0 %v6733
        %7073 = vmatpush.bf16.msra.mxu0 %v6725
        %7074 = vmatpush.bf16.msra.mxu0 %v6717
        %7075 = vmatpush.bf16.msra.mxu0 %v6709
        %7076 = vmatpush.bf16.msra.mxu0 %v6701
        %7077 = vmatmul.bf16.gmra.mxu0 %v6244
        %v7078 = vpop.f32.mrf.mxu0
        %v7079 = vadd.f32 %v7065, %v7078
        %v7080 = vpop.f32.mrf.mxu0
        %v7081 = vadd.f32 %v7067, %v7080
        %7082 = vdwg.mxu0
        %7083 = vmatpush.bf16.msra.mxu0 %v6694
        %7084 = vmatpush.bf16.msra.mxu0 %v6686
        %7085 = vmatpush.bf16.msra.mxu0 %v6678
        %7086 = vmatpush.bf16.msra.mxu0 %v6670
        %7087 = vmatpush.bf16.msra.mxu0 %v6662
        %7088 = vmatpush.bf16.msra.mxu0 %v6654
        %7089 = vmatpush.bf16.msra.mxu0 %v6646
        %7090 = vmatpush.bf16.msra.mxu0 %v6638
        %7091 = vmatmul.bf16.gmra.mxu0 %v6243
        %v7092 = vpop.f32.mrf.mxu0
        %v7093 = vadd.f32 %v6233, %v7092
        %v7094 = vpop.f32.mrf.mxu0
        %v7095 = vadd.f32 %v6235, %v7094
        %7096 = vdwg.mxu0
        %7097 = vmatpush.bf16.msra.mxu0 %v6758
        %7098 = vmatpush.bf16.msra.mxu0 %v6750
        %7099 = vmatpush.bf16.msra.mxu0 %v6742
        %7100 = vmatpush.bf16.msra.mxu0 %v6734
        %7101 = vmatpush.bf16.msra.mxu0 %v6726
        %7102 = vmatpush.bf16.msra.mxu0 %v6718
        %7103 = vmatpush.bf16.msra.mxu0 %v6710
        %7104 = vmatpush.bf16.msra.mxu0 %v6702
        %7105 = vmatmul.bf16.gmra.mxu0 %v6244
        %v7106 = vpop.f32.mrf.mxu0
        %v7107 = vadd.f32 %v7093, %v7106
        %v7108 = vpop.f32.mrf.mxu0
        %v7109 = vadd.f32 %v7095, %v7108
        %7110 = vdwg.mxu0
        %s7111 = scalar_lea.vmem [#allocation10], 2048
        %v7112 = vld [vmem:[%s7111] sm:$0xff]
        %v7113 = vld [vmem:[%s7111 + $0x8] sm:$0xff]
        %v7114 = vld [vmem:[%s7111 + $0x10] sm:$0xff]
        %v7115 = vld [vmem:[%s7111 + $0x18] sm:$0xff]
        %v7116 = vld [vmem:[%s7111 + $0x20] sm:$0xff]
        %v7117 = vld [vmem:[%s7111 + $0x28] sm:$0xff]
        %v7118 = vld [vmem:[%s7111 + $0x30] sm:$0xff]
        %v7119 = vld [vmem:[%s7111 + $0x38] sm:$0xff]
        %v7120 = vld [vmem:[%s7111 + $0x40] sm:$0xff]
        %v7121 = vld [vmem:[%s7111 + $0x48] sm:$0xff]
        %v7122 = vld [vmem:[%s7111 + $0x50] sm:$0xff]
        %v7123 = vld [vmem:[%s7111 + $0x58] sm:$0xff]
        %v7124 = vld [vmem:[%s7111 + $0x60] sm:$0xff]
        %v7125 = vld [vmem:[%s7111 + $0x68] sm:$0xff]
        %v7126 = vld [vmem:[%s7111 + $0x70] sm:$0xff]
        %v7127 = vld [vmem:[%s7111 + $0x78] sm:$0xff]
        %v7128 = vld [vmem:[%s7111 + $0x80] sm:$0xff]
        %v7129 = vld [vmem:[%s7111 + $0x88] sm:$0xff]
        %v7130 = vld [vmem:[%s7111 + $0x90] sm:$0xff]
        %v7131 = vld [vmem:[%s7111 + $0x98] sm:$0xff]
        %v7132 = vld [vmem:[%s7111 + $0xa0] sm:$0xff]
        %v7133 = vld [vmem:[%s7111 + $0xa8] sm:$0xff]
        %v7134 = vld [vmem:[%s7111 + $0xb0] sm:$0xff]
        %v7135 = vld [vmem:[%s7111 + $0xb8] sm:$0xff]
        %v7136 = vld [vmem:[%s7111 + $0xc0] sm:$0xff]
        %v7137 = vld [vmem:[%s7111 + $0xc8] sm:$0xff]
        %v7138 = vld [vmem:[%s7111 + $0xd0] sm:$0xff]
        %v7139 = vld [vmem:[%s7111 + $0xd8] sm:$0xff]
        %v7140 = vld [vmem:[%s7111 + $0xe0] sm:$0xff]
        %v7141 = vld [vmem:[%s7111 + $0xe8] sm:$0xff]
        %v7142 = vld [vmem:[%s7111 + $0xf0] sm:$0xff]
        %v7143 = vld [vmem:[%s7111 + $0xf8] sm:$0xff]
        %v7144 = vld [vmem:[%s7111 + $0x100] sm:$0xff]
        %v7145 = vld [vmem:[%s7111 + $0x108] sm:$0xff]
        %v7146 = vld [vmem:[%s7111 + $0x110] sm:$0xff]
        %v7147 = vld [vmem:[%s7111 + $0x118] sm:$0xff]
        %v7148 = vld [vmem:[%s7111 + $0x120] sm:$0xff]
        %v7149 = vld [vmem:[%s7111 + $0x128] sm:$0xff]
        %v7150 = vld [vmem:[%s7111 + $0x130] sm:$0xff]
        %v7151 = vld [vmem:[%s7111 + $0x138] sm:$0xff]
        %v7152 = vld [vmem:[%s7111 + $0x140] sm:$0xff]
        %v7153 = vld [vmem:[%s7111 + $0x148] sm:$0xff]
        %v7154 = vld [vmem:[%s7111 + $0x150] sm:$0xff]
        %v7155 = vld [vmem:[%s7111 + $0x158] sm:$0xff]
        %v7156 = vld [vmem:[%s7111 + $0x160] sm:$0xff]
        %v7157 = vld [vmem:[%s7111 + $0x168] sm:$0xff]
        %v7158 = vld [vmem:[%s7111 + $0x170] sm:$0xff]
        %v7159 = vld [vmem:[%s7111 + $0x178] sm:$0xff]
        %v7160 = vld [vmem:[%s7111 + $0x180] sm:$0xff]
        %v7161 = vld [vmem:[%s7111 + $0x188] sm:$0xff]
        %v7162 = vld [vmem:[%s7111 + $0x190] sm:$0xff]
        %v7163 = vld [vmem:[%s7111 + $0x198] sm:$0xff]
        %v7164 = vld [vmem:[%s7111 + $0x1a0] sm:$0xff]
        %v7165 = vld [vmem:[%s7111 + $0x1a8] sm:$0xff]
        %v7166 = vld [vmem:[%s7111 + $0x1b0] sm:$0xff]
        %v7167 = vld [vmem:[%s7111 + $0x1b8] sm:$0xff]
        %v7168 = vld [vmem:[%s7111 + $0x1c0] sm:$0xff]
        %v7169 = vld [vmem:[%s7111 + $0x1c8] sm:$0xff]
        %v7170 = vld [vmem:[%s7111 + $0x1d0] sm:$0xff]
        %v7171 = vld [vmem:[%s7111 + $0x1d8] sm:$0xff]
        %v7172 = vld [vmem:[%s7111 + $0x1e0] sm:$0xff]
        %v7173 = vld [vmem:[%s7111 + $0x1e8] sm:$0xff]
        %v7174 = vld [vmem:[%s7111 + $0x1f0] sm:$0xff]
        %v7175 = vld [vmem:[%s7111 + $0x1f8] sm:$0xff]
        %v7176 = vld [vmem:[%s7111 + $0x200] sm:$0xff]
        %v7177 = vld [vmem:[%s7111 + $0x208] sm:$0xff]
        %v7178 = vld [vmem:[%s7111 + $0x210] sm:$0xff]
        %v7179 = vld [vmem:[%s7111 + $0x218] sm:$0xff]
        %v7180 = vld [vmem:[%s7111 + $0x220] sm:$0xff]
        %v7181 = vld [vmem:[%s7111 + $0x228] sm:$0xff]
        %v7182 = vld [vmem:[%s7111 + $0x230] sm:$0xff]
        %v7183 = vld [vmem:[%s7111 + $0x238] sm:$0xff]
        %v7184 = vld [vmem:[%s7111 + $0x240] sm:$0xff]
        %v7185 = vld [vmem:[%s7111 + $0x248] sm:$0xff]
        %v7186 = vld [vmem:[%s7111 + $0x250] sm:$0xff]
        %v7187 = vld [vmem:[%s7111 + $0x258] sm:$0xff]
        %v7188 = vld [vmem:[%s7111 + $0x260] sm:$0xff]
        %v7189 = vld [vmem:[%s7111 + $0x268] sm:$0xff]
        %v7190 = vld [vmem:[%s7111 + $0x270] sm:$0xff]
        %v7191 = vld [vmem:[%s7111 + $0x278] sm:$0xff]
        %v7192 = vld [vmem:[%s7111 + $0x280] sm:$0xff]
        %v7193 = vld [vmem:[%s7111 + $0x288] sm:$0xff]
        %v7194 = vld [vmem:[%s7111 + $0x290] sm:$0xff]
        %v7195 = vld [vmem:[%s7111 + $0x298] sm:$0xff]
        %v7196 = vld [vmem:[%s7111 + $0x2a0] sm:$0xff]
        %v7197 = vld [vmem:[%s7111 + $0x2a8] sm:$0xff]
        %v7198 = vld [vmem:[%s7111 + $0x2b0] sm:$0xff]
        %v7199 = vld [vmem:[%s7111 + $0x2b8] sm:$0xff]
        %v7200 = vld [vmem:[%s7111 + $0x2c0] sm:$0xff]
        %v7201 = vld [vmem:[%s7111 + $0x2c8] sm:$0xff]
        %v7202 = vld [vmem:[%s7111 + $0x2d0] sm:$0xff]
        %v7203 = vld [vmem:[%s7111 + $0x2d8] sm:$0xff]
        %v7204 = vld [vmem:[%s7111 + $0x2e0] sm:$0xff]
        %v7205 = vld [vmem:[%s7111 + $0x2e8] sm:$0xff]
        %v7206 = vld [vmem:[%s7111 + $0x2f0] sm:$0xff]
        %v7207 = vld [vmem:[%s7111 + $0x2f8] sm:$0xff]
        %v7208 = vld [vmem:[%s7111 + $0x300] sm:$0xff]
        %v7209 = vld [vmem:[%s7111 + $0x308] sm:$0xff]
        %v7210 = vld [vmem:[%s7111 + $0x310] sm:$0xff]
        %v7211 = vld [vmem:[%s7111 + $0x318] sm:$0xff]
        %v7212 = vld [vmem:[%s7111 + $0x320] sm:$0xff]
        %v7213 = vld [vmem:[%s7111 + $0x328] sm:$0xff]
        %v7214 = vld [vmem:[%s7111 + $0x330] sm:$0xff]
        %v7215 = vld [vmem:[%s7111 + $0x338] sm:$0xff]
        %v7216 = vld [vmem:[%s7111 + $0x340] sm:$0xff]
        %v7217 = vld [vmem:[%s7111 + $0x348] sm:$0xff]
        %v7218 = vld [vmem:[%s7111 + $0x350] sm:$0xff]
        %v7219 = vld [vmem:[%s7111 + $0x358] sm:$0xff]
        %v7220 = vld [vmem:[%s7111 + $0x360] sm:$0xff]
        %v7221 = vld [vmem:[%s7111 + $0x368] sm:$0xff]
        %v7222 = vld [vmem:[%s7111 + $0x370] sm:$0xff]
        %v7223 = vld [vmem:[%s7111 + $0x378] sm:$0xff]
        %v7224 = vld [vmem:[%s7111 + $0x380] sm:$0xff]
        %v7225 = vld [vmem:[%s7111 + $0x388] sm:$0xff]
        %v7226 = vld [vmem:[%s7111 + $0x390] sm:$0xff]
        %v7227 = vld [vmem:[%s7111 + $0x398] sm:$0xff]
        %v7228 = vld [vmem:[%s7111 + $0x3a0] sm:$0xff]
        %v7229 = vld [vmem:[%s7111 + $0x3a8] sm:$0xff]
        %v7230 = vld [vmem:[%s7111 + $0x3b0] sm:$0xff]
        %v7231 = vld [vmem:[%s7111 + $0x3b8] sm:$0xff]
        %v7232 = vld [vmem:[%s7111 + $0x3c0] sm:$0xff]
        %v7233 = vld [vmem:[%s7111 + $0x3c8] sm:$0xff]
        %v7234 = vld [vmem:[%s7111 + $0x3d0] sm:$0xff]
        %v7235 = vld [vmem:[%s7111 + $0x3d8] sm:$0xff]
        %v7236 = vld [vmem:[%s7111 + $0x3e0] sm:$0xff]
        %v7237 = vld [vmem:[%s7111 + $0x3e8] sm:$0xff]
        %v7238 = vld [vmem:[%s7111 + $0x3f0] sm:$0xff]
        %v7239 = vld [vmem:[%s7111 + $0x3f8] sm:$0xff]
        %v7242 = vunpack.c.l.b16 %v5102
        %v7243 = vunpack.c.h.b16 %v5102
        %v7244 = vunpack.c.l.b16 %v5103
        %v7245 = vunpack.c.h.b16 %v5103
        %v7246 = vpack.c.b16 %v7244, %v7242
        %v7247 = vpack.c.b16 %v7245, %v7243
        %v7378 = vunpack.c.l.b16 %v7112
        %v7379 = vunpack.c.h.b16 %v7112
        %v7380 = vunpack.c.l.b16 %v7113
        %v7381 = vunpack.c.h.b16 %v7113
        %v7382 = vunpack.c.l.b16 %v7114
        %v7383 = vunpack.c.h.b16 %v7114
        %v7384 = vunpack.c.l.b16 %v7115
        %v7385 = vunpack.c.h.b16 %v7115
        %v7386 = vunpack.c.l.b16 %v7116
        %v7387 = vunpack.c.h.b16 %v7116
        %v7388 = vunpack.c.l.b16 %v7117
        %v7389 = vunpack.c.h.b16 %v7117
        %v7390 = vunpack.c.l.b16 %v7118
        %v7391 = vunpack.c.h.b16 %v7118
        %v7392 = vunpack.c.l.b16 %v7119
        %v7393 = vunpack.c.h.b16 %v7119
        %v7394 = vunpack.c.l.b16 %v7120
        %v7395 = vunpack.c.h.b16 %v7120
        %v7396 = vunpack.c.l.b16 %v7121
        %v7397 = vunpack.c.h.b16 %v7121
        %v7398 = vunpack.c.l.b16 %v7122
        %v7399 = vunpack.c.h.b16 %v7122
        %v7400 = vunpack.c.l.b16 %v7123
        %v7401 = vunpack.c.h.b16 %v7123
        %v7402 = vunpack.c.l.b16 %v7124
        %v7403 = vunpack.c.h.b16 %v7124
        %v7404 = vunpack.c.l.b16 %v7125
        %v7405 = vunpack.c.h.b16 %v7125
        %v7406 = vunpack.c.l.b16 %v7126
        %v7407 = vunpack.c.h.b16 %v7126
        %v7408 = vunpack.c.l.b16 %v7127
        %v7409 = vunpack.c.h.b16 %v7127
        %v7410 = vunpack.c.l.b16 %v7128
        %v7411 = vunpack.c.h.b16 %v7128
        %v7412 = vunpack.c.l.b16 %v7129
        %v7413 = vunpack.c.h.b16 %v7129
        %v7414 = vunpack.c.l.b16 %v7130
        %v7415 = vunpack.c.h.b16 %v7130
        %v7416 = vunpack.c.l.b16 %v7131
        %v7417 = vunpack.c.h.b16 %v7131
        %v7418 = vunpack.c.l.b16 %v7132
        %v7419 = vunpack.c.h.b16 %v7132
        %v7420 = vunpack.c.l.b16 %v7133
        %v7421 = vunpack.c.h.b16 %v7133
        %v7422 = vunpack.c.l.b16 %v7134
        %v7423 = vunpack.c.h.b16 %v7134
        %v7424 = vunpack.c.l.b16 %v7135
        %v7425 = vunpack.c.h.b16 %v7135
        %v7426 = vunpack.c.l.b16 %v7136
        %v7427 = vunpack.c.h.b16 %v7136
        %v7428 = vunpack.c.l.b16 %v7137
        %v7429 = vunpack.c.h.b16 %v7137
        %v7430 = vunpack.c.l.b16 %v7138
        %v7431 = vunpack.c.h.b16 %v7138
        %v7432 = vunpack.c.l.b16 %v7139
        %v7433 = vunpack.c.h.b16 %v7139
        %v7434 = vunpack.c.l.b16 %v7140
        %v7435 = vunpack.c.h.b16 %v7140
        %v7436 = vunpack.c.l.b16 %v7141
        %v7437 = vunpack.c.h.b16 %v7141
        %v7438 = vunpack.c.l.b16 %v7142
        %v7439 = vunpack.c.h.b16 %v7142
        %v7440 = vunpack.c.l.b16 %v7143
        %v7441 = vunpack.c.h.b16 %v7143
        %v7442 = vunpack.c.l.b16 %v7144
        %v7443 = vunpack.c.h.b16 %v7144
        %v7444 = vunpack.c.l.b16 %v7145
        %v7445 = vunpack.c.h.b16 %v7145
        %v7446 = vunpack.c.l.b16 %v7146
        %v7447 = vunpack.c.h.b16 %v7146
        %v7448 = vunpack.c.l.b16 %v7147
        %v7449 = vunpack.c.h.b16 %v7147
        %v7450 = vunpack.c.l.b16 %v7148
        %v7451 = vunpack.c.h.b16 %v7148
        %v7452 = vunpack.c.l.b16 %v7149
        %v7453 = vunpack.c.h.b16 %v7149
        %v7454 = vunpack.c.l.b16 %v7150
        %v7455 = vunpack.c.h.b16 %v7150
        %v7456 = vunpack.c.l.b16 %v7151
        %v7457 = vunpack.c.h.b16 %v7151
        %v7458 = vunpack.c.l.b16 %v7152
        %v7459 = vunpack.c.h.b16 %v7152
        %v7460 = vunpack.c.l.b16 %v7153
        %v7461 = vunpack.c.h.b16 %v7153
        %v7462 = vunpack.c.l.b16 %v7154
        %v7463 = vunpack.c.h.b16 %v7154
        %v7464 = vunpack.c.l.b16 %v7155
        %v7465 = vunpack.c.h.b16 %v7155
        %v7466 = vunpack.c.l.b16 %v7156
        %v7467 = vunpack.c.h.b16 %v7156
        %v7468 = vunpack.c.l.b16 %v7157
        %v7469 = vunpack.c.h.b16 %v7157
        %v7470 = vunpack.c.l.b16 %v7158
        %v7471 = vunpack.c.h.b16 %v7158
        %v7472 = vunpack.c.l.b16 %v7159
        %v7473 = vunpack.c.h.b16 %v7159
        %v7474 = vunpack.c.l.b16 %v7160
        %v7475 = vunpack.c.h.b16 %v7160
        %v7476 = vunpack.c.l.b16 %v7161
        %v7477 = vunpack.c.h.b16 %v7161
        %v7478 = vunpack.c.l.b16 %v7162
        %v7479 = vunpack.c.h.b16 %v7162
        %v7480 = vunpack.c.l.b16 %v7163
        %v7481 = vunpack.c.h.b16 %v7163
        %v7482 = vunpack.c.l.b16 %v7164
        %v7483 = vunpack.c.h.b16 %v7164
        %v7484 = vunpack.c.l.b16 %v7165
        %v7485 = vunpack.c.h.b16 %v7165
        %v7486 = vunpack.c.l.b16 %v7166
        %v7487 = vunpack.c.h.b16 %v7166
        %v7488 = vunpack.c.l.b16 %v7167
        %v7489 = vunpack.c.h.b16 %v7167
        %v7490 = vunpack.c.l.b16 %v7168
        %v7491 = vunpack.c.h.b16 %v7168
        %v7492 = vunpack.c.l.b16 %v7169
        %v7493 = vunpack.c.h.b16 %v7169
        %v7494 = vunpack.c.l.b16 %v7170
        %v7495 = vunpack.c.h.b16 %v7170
        %v7496 = vunpack.c.l.b16 %v7171
        %v7497 = vunpack.c.h.b16 %v7171
        %v7498 = vunpack.c.l.b16 %v7172
        %v7499 = vunpack.c.h.b16 %v7172
        %v7500 = vunpack.c.l.b16 %v7173
        %v7501 = vunpack.c.h.b16 %v7173
        %v7502 = vunpack.c.l.b16 %v7174
        %v7503 = vunpack.c.h.b16 %v7174
        %v7504 = vunpack.c.l.b16 %v7175
        %v7505 = vunpack.c.h.b16 %v7175
        %v7506 = vunpack.c.l.b16 %v7176
        %v7507 = vunpack.c.h.b16 %v7176
        %v7508 = vunpack.c.l.b16 %v7177
        %v7509 = vunpack.c.h.b16 %v7177
        %v7510 = vunpack.c.l.b16 %v7178
        %v7511 = vunpack.c.h.b16 %v7178
        %v7512 = vunpack.c.l.b16 %v7179
        %v7513 = vunpack.c.h.b16 %v7179
        %v7514 = vunpack.c.l.b16 %v7180
        %v7515 = vunpack.c.h.b16 %v7180
        %v7516 = vunpack.c.l.b16 %v7181
        %v7517 = vunpack.c.h.b16 %v7181
        %v7518 = vunpack.c.l.b16 %v7182
        %v7519 = vunpack.c.h.b16 %v7182
        %v7520 = vunpack.c.l.b16 %v7183
        %v7521 = vunpack.c.h.b16 %v7183
        %v7522 = vunpack.c.l.b16 %v7184
        %v7523 = vunpack.c.h.b16 %v7184
        %v7524 = vunpack.c.l.b16 %v7185
        %v7525 = vunpack.c.h.b16 %v7185
        %v7526 = vunpack.c.l.b16 %v7186
        %v7527 = vunpack.c.h.b16 %v7186
        %v7528 = vunpack.c.l.b16 %v7187
        %v7529 = vunpack.c.h.b16 %v7187
        %v7530 = vunpack.c.l.b16 %v7188
        %v7531 = vunpack.c.h.b16 %v7188
        %v7532 = vunpack.c.l.b16 %v7189
        %v7533 = vunpack.c.h.b16 %v7189
        %v7534 = vunpack.c.l.b16 %v7190
        %v7535 = vunpack.c.h.b16 %v7190
        %v7536 = vunpack.c.l.b16 %v7191
        %v7537 = vunpack.c.h.b16 %v7191
        %v7538 = vunpack.c.l.b16 %v7192
        %v7539 = vunpack.c.h.b16 %v7192
        %v7540 = vunpack.c.l.b16 %v7193
        %v7541 = vunpack.c.h.b16 %v7193
        %v7542 = vunpack.c.l.b16 %v7194
        %v7543 = vunpack.c.h.b16 %v7194
        %v7544 = vunpack.c.l.b16 %v7195
        %v7545 = vunpack.c.h.b16 %v7195
        %v7546 = vunpack.c.l.b16 %v7196
        %v7547 = vunpack.c.h.b16 %v7196
        %v7548 = vunpack.c.l.b16 %v7197
        %v7549 = vunpack.c.h.b16 %v7197
        %v7550 = vunpack.c.l.b16 %v7198
        %v7551 = vunpack.c.h.b16 %v7198
        %v7552 = vunpack.c.l.b16 %v7199
        %v7553 = vunpack.c.h.b16 %v7199
        %v7554 = vunpack.c.l.b16 %v7200
        %v7555 = vunpack.c.h.b16 %v7200
        %v7556 = vunpack.c.l.b16 %v7201
        %v7557 = vunpack.c.h.b16 %v7201
        %v7558 = vunpack.c.l.b16 %v7202
        %v7559 = vunpack.c.h.b16 %v7202
        %v7560 = vunpack.c.l.b16 %v7203
        %v7561 = vunpack.c.h.b16 %v7203
        %v7562 = vunpack.c.l.b16 %v7204
        %v7563 = vunpack.c.h.b16 %v7204
        %v7564 = vunpack.c.l.b16 %v7205
        %v7565 = vunpack.c.h.b16 %v7205
        %v7566 = vunpack.c.l.b16 %v7206
        %v7567 = vunpack.c.h.b16 %v7206
        %v7568 = vunpack.c.l.b16 %v7207
        %v7569 = vunpack.c.h.b16 %v7207
        %v7570 = vunpack.c.l.b16 %v7208
        %v7571 = vunpack.c.h.b16 %v7208
        %v7572 = vunpack.c.l.b16 %v7209
        %v7573 = vunpack.c.h.b16 %v7209
        %v7574 = vunpack.c.l.b16 %v7210
        %v7575 = vunpack.c.h.b16 %v7210
        %v7576 = vunpack.c.l.b16 %v7211
        %v7577 = vunpack.c.h.b16 %v7211
        %v7578 = vunpack.c.l.b16 %v7212
        %v7579 = vunpack.c.h.b16 %v7212
        %v7580 = vunpack.c.l.b16 %v7213
        %v7581 = vunpack.c.h.b16 %v7213
        %v7582 = vunpack.c.l.b16 %v7214
        %v7583 = vunpack.c.h.b16 %v7214
        %v7584 = vunpack.c.l.b16 %v7215
        %v7585 = vunpack.c.h.b16 %v7215
        %v7586 = vunpack.c.l.b16 %v7216
        %v7587 = vunpack.c.h.b16 %v7216
        %v7588 = vunpack.c.l.b16 %v7217
        %v7589 = vunpack.c.h.b16 %v7217
        %v7590 = vunpack.c.l.b16 %v7218
        %v7591 = vunpack.c.h.b16 %v7218
        %v7592 = vunpack.c.l.b16 %v7219
        %v7593 = vunpack.c.h.b16 %v7219
        %v7594 = vunpack.c.l.b16 %v7220
        %v7595 = vunpack.c.h.b16 %v7220
        %v7596 = vunpack.c.l.b16 %v7221
        %v7597 = vunpack.c.h.b16 %v7221
        %v7598 = vunpack.c.l.b16 %v7222
        %v7599 = vunpack.c.h.b16 %v7222
        %v7600 = vunpack.c.l.b16 %v7223
        %v7601 = vunpack.c.h.b16 %v7223
        %v7602 = vunpack.c.l.b16 %v7224
        %v7603 = vunpack.c.h.b16 %v7224
        %v7604 = vunpack.c.l.b16 %v7225
        %v7605 = vunpack.c.h.b16 %v7225
        %v7606 = vunpack.c.l.b16 %v7226
        %v7607 = vunpack.c.h.b16 %v7226
        %v7608 = vunpack.c.l.b16 %v7227
        %v7609 = vunpack.c.h.b16 %v7227
        %v7610 = vunpack.c.l.b16 %v7228
        %v7611 = vunpack.c.h.b16 %v7228
        %v7612 = vunpack.c.l.b16 %v7229
        %v7613 = vunpack.c.h.b16 %v7229
        %v7614 = vunpack.c.l.b16 %v7230
        %v7615 = vunpack.c.h.b16 %v7230
        %v7616 = vunpack.c.l.b16 %v7231
        %v7617 = vunpack.c.h.b16 %v7231
        %v7618 = vunpack.c.l.b16 %v7232
        %v7619 = vunpack.c.h.b16 %v7232
        %v7620 = vunpack.c.l.b16 %v7233
        %v7621 = vunpack.c.h.b16 %v7233
        %v7622 = vunpack.c.l.b16 %v7234
        %v7623 = vunpack.c.h.b16 %v7234
        %v7624 = vunpack.c.l.b16 %v7235
        %v7625 = vunpack.c.h.b16 %v7235
        %v7626 = vunpack.c.l.b16 %v7236
        %v7627 = vunpack.c.h.b16 %v7236
        %v7628 = vunpack.c.l.b16 %v7237
        %v7629 = vunpack.c.h.b16 %v7237
        %v7630 = vunpack.c.l.b16 %v7238
        %v7631 = vunpack.c.h.b16 %v7238
        %v7632 = vunpack.c.l.b16 %v7239
        %v7633 = vunpack.c.h.b16 %v7239
        %v7634 = vpack.c.b16 %v7386, %v7378
        %v7635 = vpack.c.b16 %v7387, %v7379
        %v7636 = vpack.c.b16 %v7388, %v7380
        %v7637 = vpack.c.b16 %v7389, %v7381
        %v7638 = vpack.c.b16 %v7390, %v7382
        %v7639 = vpack.c.b16 %v7391, %v7383
        %v7640 = vpack.c.b16 %v7392, %v7384
        %v7641 = vpack.c.b16 %v7393, %v7385
        %v7642 = vpack.c.b16 %v7402, %v7394
        %v7643 = vpack.c.b16 %v7403, %v7395
        %v7644 = vpack.c.b16 %v7404, %v7396
        %v7645 = vpack.c.b16 %v7405, %v7397
        %v7646 = vpack.c.b16 %v7406, %v7398
        %v7647 = vpack.c.b16 %v7407, %v7399
        %v7648 = vpack.c.b16 %v7408, %v7400
        %v7649 = vpack.c.b16 %v7409, %v7401
        %v7650 = vpack.c.b16 %v7418, %v7410
        %v7651 = vpack.c.b16 %v7419, %v7411
        %v7652 = vpack.c.b16 %v7420, %v7412
        %v7653 = vpack.c.b16 %v7421, %v7413
        %v7654 = vpack.c.b16 %v7422, %v7414
        %v7655 = vpack.c.b16 %v7423, %v7415
        %v7656 = vpack.c.b16 %v7424, %v7416
        %v7657 = vpack.c.b16 %v7425, %v7417
        %v7658 = vpack.c.b16 %v7434, %v7426
        %v7659 = vpack.c.b16 %v7435, %v7427
        %v7660 = vpack.c.b16 %v7436, %v7428
        %v7661 = vpack.c.b16 %v7437, %v7429
        %v7662 = vpack.c.b16 %v7438, %v7430
        %v7663 = vpack.c.b16 %v7439, %v7431
        %v7664 = vpack.c.b16 %v7440, %v7432
        %v7665 = vpack.c.b16 %v7441, %v7433
        %v7666 = vpack.c.b16 %v7450, %v7442
        %v7667 = vpack.c.b16 %v7451, %v7443
        %v7668 = vpack.c.b16 %v7452, %v7444
        %v7669 = vpack.c.b16 %v7453, %v7445
        %v7670 = vpack.c.b16 %v7454, %v7446
        %v7671 = vpack.c.b16 %v7455, %v7447
        %v7672 = vpack.c.b16 %v7456, %v7448
        %v7673 = vpack.c.b16 %v7457, %v7449
        %v7674 = vpack.c.b16 %v7466, %v7458
        %v7675 = vpack.c.b16 %v7467, %v7459
        %v7676 = vpack.c.b16 %v7468, %v7460
        %v7677 = vpack.c.b16 %v7469, %v7461
        %v7678 = vpack.c.b16 %v7470, %v7462
        %v7679 = vpack.c.b16 %v7471, %v7463
        %v7680 = vpack.c.b16 %v7472, %v7464
        %v7681 = vpack.c.b16 %v7473, %v7465
        %v7682 = vpack.c.b16 %v7482, %v7474
        %v7683 = vpack.c.b16 %v7483, %v7475
        %v7684 = vpack.c.b16 %v7484, %v7476
        %v7685 = vpack.c.b16 %v7485, %v7477
        %v7686 = vpack.c.b16 %v7486, %v7478
        %v7687 = vpack.c.b16 %v7487, %v7479
        %v7688 = vpack.c.b16 %v7488, %v7480
        %v7689 = vpack.c.b16 %v7489, %v7481
        %v7690 = vpack.c.b16 %v7498, %v7490
        %v7691 = vpack.c.b16 %v7499, %v7491
        %v7692 = vpack.c.b16 %v7500, %v7492
        %v7693 = vpack.c.b16 %v7501, %v7493
        %v7694 = vpack.c.b16 %v7502, %v7494
        %v7695 = vpack.c.b16 %v7503, %v7495
        %v7696 = vpack.c.b16 %v7504, %v7496
        %v7697 = vpack.c.b16 %v7505, %v7497
        %v7698 = vpack.c.b16 %v7514, %v7506
        %v7699 = vpack.c.b16 %v7515, %v7507
        %v7700 = vpack.c.b16 %v7516, %v7508
        %v7701 = vpack.c.b16 %v7517, %v7509
        %v7702 = vpack.c.b16 %v7518, %v7510
        %v7703 = vpack.c.b16 %v7519, %v7511
        %v7704 = vpack.c.b16 %v7520, %v7512
        %v7705 = vpack.c.b16 %v7521, %v7513
        %v7706 = vpack.c.b16 %v7530, %v7522
        %v7707 = vpack.c.b16 %v7531, %v7523
        %v7708 = vpack.c.b16 %v7532, %v7524
        %v7709 = vpack.c.b16 %v7533, %v7525
        %v7710 = vpack.c.b16 %v7534, %v7526
        %v7711 = vpack.c.b16 %v7535, %v7527
        %v7712 = vpack.c.b16 %v7536, %v7528
        %v7713 = vpack.c.b16 %v7537, %v7529
        %v7714 = vpack.c.b16 %v7546, %v7538
        %v7715 = vpack.c.b16 %v7547, %v7539
        %v7716 = vpack.c.b16 %v7548, %v7540
        %v7717 = vpack.c.b16 %v7549, %v7541
        %v7718 = vpack.c.b16 %v7550, %v7542
        %v7719 = vpack.c.b16 %v7551, %v7543
        %v7720 = vpack.c.b16 %v7552, %v7544
        %v7721 = vpack.c.b16 %v7553, %v7545
        %v7722 = vpack.c.b16 %v7562, %v7554
        %v7723 = vpack.c.b16 %v7563, %v7555
        %v7724 = vpack.c.b16 %v7564, %v7556
        %v7725 = vpack.c.b16 %v7565, %v7557
        %v7726 = vpack.c.b16 %v7566, %v7558
        %v7727 = vpack.c.b16 %v7567, %v7559
        %v7728 = vpack.c.b16 %v7568, %v7560
        %v7729 = vpack.c.b16 %v7569, %v7561
        %v7730 = vpack.c.b16 %v7578, %v7570
        %v7731 = vpack.c.b16 %v7579, %v7571
        %v7732 = vpack.c.b16 %v7580, %v7572
        %v7733 = vpack.c.b16 %v7581, %v7573
        %v7734 = vpack.c.b16 %v7582, %v7574
        %v7735 = vpack.c.b16 %v7583, %v7575
        %v7736 = vpack.c.b16 %v7584, %v7576
        %v7737 = vpack.c.b16 %v7585, %v7577
        %v7738 = vpack.c.b16 %v7594, %v7586
        %v7739 = vpack.c.b16 %v7595, %v7587
        %v7740 = vpack.c.b16 %v7596, %v7588
        %v7741 = vpack.c.b16 %v7597, %v7589
        %v7742 = vpack.c.b16 %v7598, %v7590
        %v7743 = vpack.c.b16 %v7599, %v7591
        %v7744 = vpack.c.b16 %v7600, %v7592
        %v7745 = vpack.c.b16 %v7601, %v7593
        %v7746 = vpack.c.b16 %v7610, %v7602
        %v7747 = vpack.c.b16 %v7611, %v7603
        %v7748 = vpack.c.b16 %v7612, %v7604
        %v7749 = vpack.c.b16 %v7613, %v7605
        %v7750 = vpack.c.b16 %v7614, %v7606
        %v7751 = vpack.c.b16 %v7615, %v7607
        %v7752 = vpack.c.b16 %v7616, %v7608
        %v7753 = vpack.c.b16 %v7617, %v7609
        %v7754 = vpack.c.b16 %v7626, %v7618
        %v7755 = vpack.c.b16 %v7627, %v7619
        %v7756 = vpack.c.b16 %v7628, %v7620
        %v7757 = vpack.c.b16 %v7629, %v7621
        %v7758 = vpack.c.b16 %v7630, %v7622
        %v7759 = vpack.c.b16 %v7631, %v7623
        %v7760 = vpack.c.b16 %v7632, %v7624
        %v7761 = vpack.c.b16 %v7633, %v7625
        %7890 = vmatpush.bf16.msra.mxu0 %v7690
        %7891 = vmatpush.bf16.msra.mxu0 %v7682
        %7892 = vmatpush.bf16.msra.mxu0 %v7674
        %7893 = vmatpush.bf16.msra.mxu0 %v7666
        %7894 = vmatpush.bf16.msra.mxu0 %v7658
        %7895 = vmatpush.bf16.msra.mxu0 %v7650
        %7896 = vmatpush.bf16.msra.mxu0 %v7642
        %7897 = vmatpush.bf16.msra.mxu0 %v7634
        %7898 = vmatmul.bf16.gmra.mxu0 %v7246
        %v7899 = vpop.f32.mrf.mxu0
        %v7900 = vadd.f32 0.0, %v7899
        %v7901 = vpop.f32.mrf.mxu0
        %v7902 = vadd.f32 0.0, %v7901
        %7903 = vdwg.mxu0
        %7904 = vmatpush.bf16.msra.mxu0 %v7754
        %7905 = vmatpush.bf16.msra.mxu0 %v7746
        %7906 = vmatpush.bf16.msra.mxu0 %v7738
        %7907 = vmatpush.bf16.msra.mxu0 %v7730
        %7908 = vmatpush.bf16.msra.mxu0 %v7722
        %7909 = vmatpush.bf16.msra.mxu0 %v7714
        %7910 = vmatpush.bf16.msra.mxu0 %v7706
        %7911 = vmatpush.bf16.msra.mxu0 %v7698
        %7912 = vmatmul.bf16.gmra.mxu0 %v7247
        %v7913 = vpop.f32.mrf.mxu0
        %v7914 = vadd.f32 %v7900, %v7913
        %v7915 = vpop.f32.mrf.mxu0
        %v7916 = vadd.f32 %v7902, %v7915
        %7917 = vdwg.mxu0
        %7918 = vmatpush.bf16.msra.mxu0 %v7691
        %7919 = vmatpush.bf16.msra.mxu0 %v7683
        %7920 = vmatpush.bf16.msra.mxu0 %v7675
        %7921 = vmatpush.bf16.msra.mxu0 %v7667
        %7922 = vmatpush.bf16.msra.mxu0 %v7659
        %7923 = vmatpush.bf16.msra.mxu0 %v7651
        %7924 = vmatpush.bf16.msra.mxu0 %v7643
        %7925 = vmatpush.bf16.msra.mxu0 %v7635
        %7926 = vmatmul.bf16.gmra.mxu0 %v7246
        %v7927 = vpop.f32.mrf.mxu0
        %v7928 = vadd.f32 0.0, %v7927
        %v7929 = vpop.f32.mrf.mxu0
        %v7930 = vadd.f32 0.0, %v7929
        %7931 = vdwg.mxu0
        %7932 = vmatpush.bf16.msra.mxu0 %v7755
        %7933 = vmatpush.bf16.msra.mxu0 %v7747
        %7934 = vmatpush.bf16.msra.mxu0 %v7739
        %7935 = vmatpush.bf16.msra.mxu0 %v7731
        %7936 = vmatpush.bf16.msra.mxu0 %v7723
        %7937 = vmatpush.bf16.msra.mxu0 %v7715
        %7938 = vmatpush.bf16.msra.mxu0 %v7707
        %7939 = vmatpush.bf16.msra.mxu0 %v7699
        %7940 = vmatmul.bf16.gmra.mxu0 %v7247
        %v7941 = vpop.f32.mrf.mxu0
        %v7942 = vadd.f32 %v7928, %v7941
        %v7943 = vpop.f32.mrf.mxu0
        %v7944 = vadd.f32 %v7930, %v7943
        %7945 = vdwg.mxu0
        %7946 = vmatpush.bf16.msra.mxu0 %v7692
        %7947 = vmatpush.bf16.msra.mxu0 %v7684
        %7948 = vmatpush.bf16.msra.mxu0 %v7676
        %7949 = vmatpush.bf16.msra.mxu0 %v7668
        %7950 = vmatpush.bf16.msra.mxu0 %v7660
        %7951 = vmatpush.bf16.msra.mxu0 %v7652
        %7952 = vmatpush.bf16.msra.mxu0 %v7644
        %7953 = vmatpush.bf16.msra.mxu0 %v7636
        %7954 = vmatmul.bf16.gmra.mxu0 %v7246
        %v7955 = vpop.f32.mrf.mxu0
        %v7956 = vadd.f32 0.0, %v7955
        %v7957 = vpop.f32.mrf.mxu0
        %v7958 = vadd.f32 0.0, %v7957
        %7959 = vdwg.mxu0
        %7960 = vmatpush.bf16.msra.mxu0 %v7756
        %7961 = vmatpush.bf16.msra.mxu0 %v7748
        %7962 = vmatpush.bf16.msra.mxu0 %v7740
        %7963 = vmatpush.bf16.msra.mxu0 %v7732
        %7964 = vmatpush.bf16.msra.mxu0 %v7724
        %7965 = vmatpush.bf16.msra.mxu0 %v7716
        %7966 = vmatpush.bf16.msra.mxu0 %v7708
        %7967 = vmatpush.bf16.msra.mxu0 %v7700
        %7968 = vmatmul.bf16.gmra.mxu0 %v7247
        %v7969 = vpop.f32.mrf.mxu0
        %v7970 = vadd.f32 %v7956, %v7969
        %v7971 = vpop.f32.mrf.mxu0
        %v7972 = vadd.f32 %v7958, %v7971
        %7973 = vdwg.mxu0
        %7974 = vmatpush.bf16.msra.mxu0 %v7693
        %7975 = vmatpush.bf16.msra.mxu0 %v7685
        %7976 = vmatpush.bf16.msra.mxu0 %v7677
        %7977 = vmatpush.bf16.msra.mxu0 %v7669
        %7978 = vmatpush.bf16.msra.mxu0 %v7661
        %7979 = vmatpush.bf16.msra.mxu0 %v7653
        %7980 = vmatpush.bf16.msra.mxu0 %v7645
        %7981 = vmatpush.bf16.msra.mxu0 %v7637
        %7982 = vmatmul.bf16.gmra.mxu0 %v7246
        %v7983 = vpop.f32.mrf.mxu0
        %v7984 = vadd.f32 0.0, %v7983
        %v7985 = vpop.f32.mrf.mxu0
        %v7986 = vadd.f32 0.0, %v7985
        %7987 = vdwg.mxu0
        %7988 = vmatpush.bf16.msra.mxu0 %v7757
        %7989 = vmatpush.bf16.msra.mxu0 %v7749
        %7990 = vmatpush.bf16.msra.mxu0 %v7741
        %7991 = vmatpush.bf16.msra.mxu0 %v7733
        %7992 = vmatpush.bf16.msra.mxu0 %v7725
        %7993 = vmatpush.bf16.msra.mxu0 %v7717
        %7994 = vmatpush.bf16.msra.mxu0 %v7709
        %7995 = vmatpush.bf16.msra.mxu0 %v7701
        %7996 = vmatmul.bf16.gmra.mxu0 %v7247
        %v7997 = vpop.f32.mrf.mxu0
        %v7998 = vadd.f32 %v7984, %v7997
        %v7999 = vpop.f32.mrf.mxu0
        %v8000 = vadd.f32 %v7986, %v7999
        %8001 = vdwg.mxu0
        %8002 = vmatpush.bf16.msra.mxu0 %v7694
        %8003 = vmatpush.bf16.msra.mxu0 %v7686
        %8004 = vmatpush.bf16.msra.mxu0 %v7678
        %8005 = vmatpush.bf16.msra.mxu0 %v7670
        %8006 = vmatpush.bf16.msra.mxu0 %v7662
        %8007 = vmatpush.bf16.msra.mxu0 %v7654
        %8008 = vmatpush.bf16.msra.mxu0 %v7646
        %8009 = vmatpush.bf16.msra.mxu0 %v7638
        %8010 = vmatmul.bf16.gmra.mxu0 %v7246
        %v8011 = vpop.f32.mrf.mxu0
        %v8012 = vadd.f32 0.0, %v8011
        %v8013 = vpop.f32.mrf.mxu0
        %v8014 = vadd.f32 0.0, %v8013
        %8015 = vdwg.mxu0
        %8016 = vmatpush.bf16.msra.mxu0 %v7758
        %8017 = vmatpush.bf16.msra.mxu0 %v7750
        %8018 = vmatpush.bf16.msra.mxu0 %v7742
        %8019 = vmatpush.bf16.msra.mxu0 %v7734
        %8020 = vmatpush.bf16.msra.mxu0 %v7726
        %8021 = vmatpush.bf16.msra.mxu0 %v7718
        %8022 = vmatpush.bf16.msra.mxu0 %v7710
        %8023 = vmatpush.bf16.msra.mxu0 %v7702
        %8024 = vmatmul.bf16.gmra.mxu0 %v7247
        %v8025 = vpop.f32.mrf.mxu0
        %v8026 = vadd.f32 %v8012, %v8025
        %v8027 = vpop.f32.mrf.mxu0
        %v8028 = vadd.f32 %v8014, %v8027
        %8029 = vdwg.mxu0
        %8030 = vmatpush.bf16.msra.mxu0 %v7695
        %8031 = vmatpush.bf16.msra.mxu0 %v7687
        %8032 = vmatpush.bf16.msra.mxu0 %v7679
        %8033 = vmatpush.bf16.msra.mxu0 %v7671
        %8034 = vmatpush.bf16.msra.mxu0 %v7663
        %8035 = vmatpush.bf16.msra.mxu0 %v7655
        %8036 = vmatpush.bf16.msra.mxu0 %v7647
        %8037 = vmatpush.bf16.msra.mxu0 %v7639
        %8038 = vmatmul.bf16.gmra.mxu0 %v7246
        %v8039 = vpop.f32.mrf.mxu0
        %v8040 = vadd.f32 0.0, %v8039
        %v8041 = vpop.f32.mrf.mxu0
        %v8042 = vadd.f32 0.0, %v8041
        %8043 = vdwg.mxu0
        %8044 = vmatpush.bf16.msra.mxu0 %v7759
        %8045 = vmatpush.bf16.msra.mxu0 %v7751
        %8046 = vmatpush.bf16.msra.mxu0 %v7743
        %8047 = vmatpush.bf16.msra.mxu0 %v7735
        %8048 = vmatpush.bf16.msra.mxu0 %v7727
        %8049 = vmatpush.bf16.msra.mxu0 %v7719
        %8050 = vmatpush.bf16.msra.mxu0 %v7711
        %8051 = vmatpush.bf16.msra.mxu0 %v7703
        %8052 = vmatmul.bf16.gmra.mxu0 %v7247
        %v8053 = vpop.f32.mrf.mxu0
        %v8054 = vadd.f32 %v8040, %v8053
        %v8055 = vpop.f32.mrf.mxu0
        %v8056 = vadd.f32 %v8042, %v8055
        %8057 = vdwg.mxu0
        %8058 = vmatpush.bf16.msra.mxu0 %v7696
        %8059 = vmatpush.bf16.msra.mxu0 %v7688
        %8060 = vmatpush.bf16.msra.mxu0 %v7680
        %8061 = vmatpush.bf16.msra.mxu0 %v7672
        %8062 = vmatpush.bf16.msra.mxu0 %v7664
        %8063 = vmatpush.bf16.msra.mxu0 %v7656
        %8064 = vmatpush.bf16.msra.mxu0 %v7648
        %8065 = vmatpush.bf16.msra.mxu0 %v7640
        %8066 = vmatmul.bf16.gmra.mxu0 %v7246
        %v8067 = vpop.f32.mrf.mxu0
        %v8068 = vadd.f32 0.0, %v8067
        %v8069 = vpop.f32.mrf.mxu0
        %v8070 = vadd.f32 0.0, %v8069
        %8071 = vdwg.mxu0
        %8072 = vmatpush.bf16.msra.mxu0 %v7760
        %8073 = vmatpush.bf16.msra.mxu0 %v7752
        %8074 = vmatpush.bf16.msra.mxu0 %v7744
        %8075 = vmatpush.bf16.msra.mxu0 %v7736
        %8076 = vmatpush.bf16.msra.mxu0 %v7728
        %8077 = vmatpush.bf16.msra.mxu0 %v7720
        %8078 = vmatpush.bf16.msra.mxu0 %v7712
        %8079 = vmatpush.bf16.msra.mxu0 %v7704
        %8080 = vmatmul.bf16.gmra.mxu0 %v7247
        %v8081 = vpop.f32.mrf.mxu0
        %v8082 = vadd.f32 %v8068, %v8081
        %v8083 = vpop.f32.mrf.mxu0
        %v8084 = vadd.f32 %v8070, %v8083
        %8085 = vdwg.mxu0
        %8086 = vmatpush.bf16.msra.mxu0 %v7697
        %8087 = vmatpush.bf16.msra.mxu0 %v7689
        %8088 = vmatpush.bf16.msra.mxu0 %v7681
        %8089 = vmatpush.bf16.msra.mxu0 %v7673
        %8090 = vmatpush.bf16.msra.mxu0 %v7665
        %8091 = vmatpush.bf16.msra.mxu0 %v7657
        %8092 = vmatpush.bf16.msra.mxu0 %v7649
        %8093 = vmatpush.bf16.msra.mxu0 %v7641
        %8094 = vmatmul.bf16.gmra.mxu0 %v7246
        %v8095 = vpop.f32.mrf.mxu0
        %v8096 = vadd.f32 0.0, %v8095
        %v8097 = vpop.f32.mrf.mxu0
        %v8098 = vadd.f32 0.0, %v8097
        %8099 = vdwg.mxu0
        %8100 = vmatpush.bf16.msra.mxu0 %v7761
        %8101 = vmatpush.bf16.msra.mxu0 %v7753
        %8102 = vmatpush.bf16.msra.mxu0 %v7745
        %8103 = vmatpush.bf16.msra.mxu0 %v7737
        %8104 = vmatpush.bf16.msra.mxu0 %v7729
        %8105 = vmatpush.bf16.msra.mxu0 %v7721
        %8106 = vmatpush.bf16.msra.mxu0 %v7713
        %8107 = vmatpush.bf16.msra.mxu0 %v7705
        %8108 = vmatmul.bf16.gmra.mxu0 %v7247
        %v8109 = vpop.f32.mrf.mxu0
        %v8110 = vadd.f32 %v8096, %v8109
        %v8111 = vpop.f32.mrf.mxu0
        %v8112 = vadd.f32 %v8098, %v8111
        %8113 = vdwg.mxu0
        %v8114 = vadd.f32 %v6911, %v7914
        %v8115 = vadd.f32 %v6939, %v7942
        %v8116 = vadd.f32 %v6967, %v7970
        %v8117 = vadd.f32 %v6995, %v7998
        %v8118 = vadd.f32 %v7023, %v8026
        %v8119 = vadd.f32 %v7051, %v8054
        %v8120 = vadd.f32 %v7079, %v8082
        %v8121 = vadd.f32 %v7107, %v8110
        %v8122 = vadd.f32 %v6913, %v7916
        %v8123 = vadd.f32 %v6941, %v7944
        %v8124 = vadd.f32 %v6969, %v7972
        %v8125 = vadd.f32 %v6997, %v8000
        %v8126 = vadd.f32 %v7025, %v8028
        %v8127 = vadd.f32 %v7053, %v8056
        %v8128 = vadd.f32 %v7081, %v8084
        %v8129 = vadd.f32 %v7109, %v8112
        %s8130 = scalar_lea.vmem [#allocation10], 3072
        %v8131 = vld [vmem:[%s8130] sm:$0xff]
        %v8132 = vld [vmem:[%s8130 + $0x8] sm:$0xff]
        %v8133 = vld [vmem:[%s8130 + $0x10] sm:$0xff]
        %v8134 = vld [vmem:[%s8130 + $0x18] sm:$0xff]
        %v8135 = vld [vmem:[%s8130 + $0x20] sm:$0xff]
        %v8136 = vld [vmem:[%s8130 + $0x28] sm:$0xff]
        %v8137 = vld [vmem:[%s8130 + $0x30] sm:$0xff]
        %v8138 = vld [vmem:[%s8130 + $0x38] sm:$0xff]
        %v8139 = vld [vmem:[%s8130 + $0x40] sm:$0xff]
        %v8140 = vld [vmem:[%s8130 + $0x48] sm:$0xff]
        %v8141 = vld [vmem:[%s8130 + $0x50] sm:$0xff]
        %v8142 = vld [vmem:[%s8130 + $0x58] sm:$0xff]
        %v8143 = vld [vmem:[%s8130 + $0x60] sm:$0xff]
        %v8144 = vld [vmem:[%s8130 + $0x68] sm:$0xff]
        %v8145 = vld [vmem:[%s8130 + $0x70] sm:$0xff]
        %v8146 = vld [vmem:[%s8130 + $0x78] sm:$0xff]
        %v8147 = vld [vmem:[%s8130 + $0x80] sm:$0xff]
        %v8148 = vld [vmem:[%s8130 + $0x88] sm:$0xff]
        %v8149 = vld [vmem:[%s8130 + $0x90] sm:$0xff]
        %v8150 = vld [vmem:[%s8130 + $0x98] sm:$0xff]
        %v8151 = vld [vmem:[%s8130 + $0xa0] sm:$0xff]
        %v8152 = vld [vmem:[%s8130 + $0xa8] sm:$0xff]
        %v8153 = vld [vmem:[%s8130 + $0xb0] sm:$0xff]
        %v8154 = vld [vmem:[%s8130 + $0xb8] sm:$0xff]
        %v8155 = vld [vmem:[%s8130 + $0xc0] sm:$0xff]
        %v8156 = vld [vmem:[%s8130 + $0xc8] sm:$0xff]
        %v8157 = vld [vmem:[%s8130 + $0xd0] sm:$0xff]
        %v8158 = vld [vmem:[%s8130 + $0xd8] sm:$0xff]
        %v8159 = vld [vmem:[%s8130 + $0xe0] sm:$0xff]
        %v8160 = vld [vmem:[%s8130 + $0xe8] sm:$0xff]
        %v8161 = vld [vmem:[%s8130 + $0xf0] sm:$0xff]
        %v8162 = vld [vmem:[%s8130 + $0xf8] sm:$0xff]
        %v8163 = vld [vmem:[%s8130 + $0x100] sm:$0xff]
        %v8164 = vld [vmem:[%s8130 + $0x108] sm:$0xff]
        %v8165 = vld [vmem:[%s8130 + $0x110] sm:$0xff]
        %v8166 = vld [vmem:[%s8130 + $0x118] sm:$0xff]
        %v8167 = vld [vmem:[%s8130 + $0x120] sm:$0xff]
        %v8168 = vld [vmem:[%s8130 + $0x128] sm:$0xff]
        %v8169 = vld [vmem:[%s8130 + $0x130] sm:$0xff]
        %v8170 = vld [vmem:[%s8130 + $0x138] sm:$0xff]
        %v8171 = vld [vmem:[%s8130 + $0x140] sm:$0xff]
        %v8172 = vld [vmem:[%s8130 + $0x148] sm:$0xff]
        %v8173 = vld [vmem:[%s8130 + $0x150] sm:$0xff]
        %v8174 = vld [vmem:[%s8130 + $0x158] sm:$0xff]
        %v8175 = vld [vmem:[%s8130 + $0x160] sm:$0xff]
        %v8176 = vld [vmem:[%s8130 + $0x168] sm:$0xff]
        %v8177 = vld [vmem:[%s8130 + $0x170] sm:$0xff]
        %v8178 = vld [vmem:[%s8130 + $0x178] sm:$0xff]
        %v8179 = vld [vmem:[%s8130 + $0x180] sm:$0xff]
        %v8180 = vld [vmem:[%s8130 + $0x188] sm:$0xff]
        %v8181 = vld [vmem:[%s8130 + $0x190] sm:$0xff]
        %v8182 = vld [vmem:[%s8130 + $0x198] sm:$0xff]
        %v8183 = vld [vmem:[%s8130 + $0x1a0] sm:$0xff]
        %v8184 = vld [vmem:[%s8130 + $0x1a8] sm:$0xff]
        %v8185 = vld [vmem:[%s8130 + $0x1b0] sm:$0xff]
        %v8186 = vld [vmem:[%s8130 + $0x1b8] sm:$0xff]
        %v8187 = vld [vmem:[%s8130 + $0x1c0] sm:$0xff]
        %v8188 = vld [vmem:[%s8130 + $0x1c8] sm:$0xff]
        %v8189 = vld [vmem:[%s8130 + $0x1d0] sm:$0xff]
        %v8190 = vld [vmem:[%s8130 + $0x1d8] sm:$0xff]
        %v8191 = vld [vmem:[%s8130 + $0x1e0] sm:$0xff]
        %v8192 = vld [vmem:[%s8130 + $0x1e8] sm:$0xff]
        %v8193 = vld [vmem:[%s8130 + $0x1f0] sm:$0xff]
        %v8194 = vld [vmem:[%s8130 + $0x1f8] sm:$0xff]
        %v8195 = vld [vmem:[%s8130 + $0x200] sm:$0xff]
        %v8196 = vld [vmem:[%s8130 + $0x208] sm:$0xff]
        %v8197 = vld [vmem:[%s8130 + $0x210] sm:$0xff]
        %v8198 = vld [vmem:[%s8130 + $0x218] sm:$0xff]
        %v8199 = vld [vmem:[%s8130 + $0x220] sm:$0xff]
        %v8200 = vld [vmem:[%s8130 + $0x228] sm:$0xff]
        %v8201 = vld [vmem:[%s8130 + $0x230] sm:$0xff]
        %v8202 = vld [vmem:[%s8130 + $0x238] sm:$0xff]
        %v8203 = vld [vmem:[%s8130 + $0x240] sm:$0xff]
        %v8204 = vld [vmem:[%s8130 + $0x248] sm:$0xff]
        %v8205 = vld [vmem:[%s8130 + $0x250] sm:$0xff]
        %v8206 = vld [vmem:[%s8130 + $0x258] sm:$0xff]
        %v8207 = vld [vmem:[%s8130 + $0x260] sm:$0xff]
        %v8208 = vld [vmem:[%s8130 + $0x268] sm:$0xff]
        %v8209 = vld [vmem:[%s8130 + $0x270] sm:$0xff]
        %v8210 = vld [vmem:[%s8130 + $0x278] sm:$0xff]
        %v8211 = vld [vmem:[%s8130 + $0x280] sm:$0xff]
        %v8212 = vld [vmem:[%s8130 + $0x288] sm:$0xff]
        %v8213 = vld [vmem:[%s8130 + $0x290] sm:$0xff]
        %v8214 = vld [vmem:[%s8130 + $0x298] sm:$0xff]
        %v8215 = vld [vmem:[%s8130 + $0x2a0] sm:$0xff]
        %v8216 = vld [vmem:[%s8130 + $0x2a8] sm:$0xff]
        %v8217 = vld [vmem:[%s8130 + $0x2b0] sm:$0xff]
        %v8218 = vld [vmem:[%s8130 + $0x2b8] sm:$0xff]
        %v8219 = vld [vmem:[%s8130 + $0x2c0] sm:$0xff]
        %v8220 = vld [vmem:[%s8130 + $0x2c8] sm:$0xff]
        %v8221 = vld [vmem:[%s8130 + $0x2d0] sm:$0xff]
        %v8222 = vld [vmem:[%s8130 + $0x2d8] sm:$0xff]
        %v8223 = vld [vmem:[%s8130 + $0x2e0] sm:$0xff]
        %v8224 = vld [vmem:[%s8130 + $0x2e8] sm:$0xff]
        %v8225 = vld [vmem:[%s8130 + $0x2f0] sm:$0xff]
        %v8226 = vld [vmem:[%s8130 + $0x2f8] sm:$0xff]
        %v8227 = vld [vmem:[%s8130 + $0x300] sm:$0xff]
        %v8228 = vld [vmem:[%s8130 + $0x308] sm:$0xff]
        %v8229 = vld [vmem:[%s8130 + $0x310] sm:$0xff]
        %v8230 = vld [vmem:[%s8130 + $0x318] sm:$0xff]
        %v8231 = vld [vmem:[%s8130 + $0x320] sm:$0xff]
        %v8232 = vld [vmem:[%s8130 + $0x328] sm:$0xff]
        %v8233 = vld [vmem:[%s8130 + $0x330] sm:$0xff]
        %v8234 = vld [vmem:[%s8130 + $0x338] sm:$0xff]
        %v8235 = vld [vmem:[%s8130 + $0x340] sm:$0xff]
        %v8236 = vld [vmem:[%s8130 + $0x348] sm:$0xff]
        %v8237 = vld [vmem:[%s8130 + $0x350] sm:$0xff]
        %v8238 = vld [vmem:[%s8130 + $0x358] sm:$0xff]
        %v8239 = vld [vmem:[%s8130 + $0x360] sm:$0xff]
        %v8240 = vld [vmem:[%s8130 + $0x368] sm:$0xff]
        %v8241 = vld [vmem:[%s8130 + $0x370] sm:$0xff]
        %v8242 = vld [vmem:[%s8130 + $0x378] sm:$0xff]
        %v8243 = vld [vmem:[%s8130 + $0x380] sm:$0xff]
        %v8244 = vld [vmem:[%s8130 + $0x388] sm:$0xff]
        %v8245 = vld [vmem:[%s8130 + $0x390] sm:$0xff]
        %v8246 = vld [vmem:[%s8130 + $0x398] sm:$0xff]
        %v8247 = vld [vmem:[%s8130 + $0x3a0] sm:$0xff]
        %v8248 = vld [vmem:[%s8130 + $0x3a8] sm:$0xff]
        %v8249 = vld [vmem:[%s8130 + $0x3b0] sm:$0xff]
        %v8250 = vld [vmem:[%s8130 + $0x3b8] sm:$0xff]
        %v8251 = vld [vmem:[%s8130 + $0x3c0] sm:$0xff]
        %v8252 = vld [vmem:[%s8130 + $0x3c8] sm:$0xff]
        %v8253 = vld [vmem:[%s8130 + $0x3d0] sm:$0xff]
        %v8254 = vld [vmem:[%s8130 + $0x3d8] sm:$0xff]
        %v8255 = vld [vmem:[%s8130 + $0x3e0] sm:$0xff]
        %v8256 = vld [vmem:[%s8130 + $0x3e8] sm:$0xff]
        %v8257 = vld [vmem:[%s8130 + $0x3f0] sm:$0xff]
        %v8258 = vld [vmem:[%s8130 + $0x3f8] sm:$0xff]
        %v8261 = vunpack.c.l.b16 %v5104
        %v8262 = vunpack.c.h.b16 %v5104
        %v8263 = vunpack.c.l.b16 %v5105
        %v8264 = vunpack.c.h.b16 %v5105
        %v8265 = vpack.c.b16 %v8263, %v8261
        %v8266 = vpack.c.b16 %v8264, %v8262
        %v8397 = vunpack.c.l.b16 %v8131
        %v8398 = vunpack.c.h.b16 %v8131
        %v8399 = vunpack.c.l.b16 %v8132
        %v8400 = vunpack.c.h.b16 %v8132
        %v8401 = vunpack.c.l.b16 %v8133
        %v8402 = vunpack.c.h.b16 %v8133
        %v8403 = vunpack.c.l.b16 %v8134
        %v8404 = vunpack.c.h.b16 %v8134
        %v8405 = vunpack.c.l.b16 %v8135
        %v8406 = vunpack.c.h.b16 %v8135
        %v8407 = vunpack.c.l.b16 %v8136
        %v8408 = vunpack.c.h.b16 %v8136
        %v8409 = vunpack.c.l.b16 %v8137
        %v8410 = vunpack.c.h.b16 %v8137
        %v8411 = vunpack.c.l.b16 %v8138
        %v8412 = vunpack.c.h.b16 %v8138
        %v8413 = vunpack.c.l.b16 %v8139
        %v8414 = vunpack.c.h.b16 %v8139
        %v8415 = vunpack.c.l.b16 %v8140
        %v8416 = vunpack.c.h.b16 %v8140
        %v8417 = vunpack.c.l.b16 %v8141
        %v8418 = vunpack.c.h.b16 %v8141
        %v8419 = vunpack.c.l.b16 %v8142
        %v8420 = vunpack.c.h.b16 %v8142
        %v8421 = vunpack.c.l.b16 %v8143
        %v8422 = vunpack.c.h.b16 %v8143
        %v8423 = vunpack.c.l.b16 %v8144
        %v8424 = vunpack.c.h.b16 %v8144
        %v8425 = vunpack.c.l.b16 %v8145
        %v8426 = vunpack.c.h.b16 %v8145
        %v8427 = vunpack.c.l.b16 %v8146
        %v8428 = vunpack.c.h.b16 %v8146
        %v8429 = vunpack.c.l.b16 %v8147
        %v8430 = vunpack.c.h.b16 %v8147
        %v8431 = vunpack.c.l.b16 %v8148
        %v8432 = vunpack.c.h.b16 %v8148
        %v8433 = vunpack.c.l.b16 %v8149
        %v8434 = vunpack.c.h.b16 %v8149
        %v8435 = vunpack.c.l.b16 %v8150
        %v8436 = vunpack.c.h.b16 %v8150
        %v8437 = vunpack.c.l.b16 %v8151
        %v8438 = vunpack.c.h.b16 %v8151
        %v8439 = vunpack.c.l.b16 %v8152
        %v8440 = vunpack.c.h.b16 %v8152
        %v8441 = vunpack.c.l.b16 %v8153
        %v8442 = vunpack.c.h.b16 %v8153
        %v8443 = vunpack.c.l.b16 %v8154
        %v8444 = vunpack.c.h.b16 %v8154
        %v8445 = vunpack.c.l.b16 %v8155
        %v8446 = vunpack.c.h.b16 %v8155
        %v8447 = vunpack.c.l.b16 %v8156
        %v8448 = vunpack.c.h.b16 %v8156
        %v8449 = vunpack.c.l.b16 %v8157
        %v8450 = vunpack.c.h.b16 %v8157
        %v8451 = vunpack.c.l.b16 %v8158
        %v8452 = vunpack.c.h.b16 %v8158
        %v8453 = vunpack.c.l.b16 %v8159
        %v8454 = vunpack.c.h.b16 %v8159
        %v8455 = vunpack.c.l.b16 %v8160
        %v8456 = vunpack.c.h.b16 %v8160
        %v8457 = vunpack.c.l.b16 %v8161
        %v8458 = vunpack.c.h.b16 %v8161
        %v8459 = vunpack.c.l.b16 %v8162
        %v8460 = vunpack.c.h.b16 %v8162
        %v8461 = vunpack.c.l.b16 %v8163
        %v8462 = vunpack.c.h.b16 %v8163
        %v8463 = vunpack.c.l.b16 %v8164
        %v8464 = vunpack.c.h.b16 %v8164
        %v8465 = vunpack.c.l.b16 %v8165
        %v8466 = vunpack.c.h.b16 %v8165
        %v8467 = vunpack.c.l.b16 %v8166
        %v8468 = vunpack.c.h.b16 %v8166
        %v8469 = vunpack.c.l.b16 %v8167
        %v8470 = vunpack.c.h.b16 %v8167
        %v8471 = vunpack.c.l.b16 %v8168
        %v8472 = vunpack.c.h.b16 %v8168
        %v8473 = vunpack.c.l.b16 %v8169
        %v8474 = vunpack.c.h.b16 %v8169
        %v8475 = vunpack.c.l.b16 %v8170
        %v8476 = vunpack.c.h.b16 %v8170
        %v8477 = vunpack.c.l.b16 %v8171
        %v8478 = vunpack.c.h.b16 %v8171
        %v8479 = vunpack.c.l.b16 %v8172
        %v8480 = vunpack.c.h.b16 %v8172
        %v8481 = vunpack.c.l.b16 %v8173
        %v8482 = vunpack.c.h.b16 %v8173
        %v8483 = vunpack.c.l.b16 %v8174
        %v8484 = vunpack.c.h.b16 %v8174
        %v8485 = vunpack.c.l.b16 %v8175
        %v8486 = vunpack.c.h.b16 %v8175
        %v8487 = vunpack.c.l.b16 %v8176
        %v8488 = vunpack.c.h.b16 %v8176
        %v8489 = vunpack.c.l.b16 %v8177
        %v8490 = vunpack.c.h.b16 %v8177
        %v8491 = vunpack.c.l.b16 %v8178
        %v8492 = vunpack.c.h.b16 %v8178
        %v8493 = vunpack.c.l.b16 %v8179
        %v8494 = vunpack.c.h.b16 %v8179
        %v8495 = vunpack.c.l.b16 %v8180
        %v8496 = vunpack.c.h.b16 %v8180
        %v8497 = vunpack.c.l.b16 %v8181
        %v8498 = vunpack.c.h.b16 %v8181
        %v8499 = vunpack.c.l.b16 %v8182
        %v8500 = vunpack.c.h.b16 %v8182
        %v8501 = vunpack.c.l.b16 %v8183
        %v8502 = vunpack.c.h.b16 %v8183
        %v8503 = vunpack.c.l.b16 %v8184
        %v8504 = vunpack.c.h.b16 %v8184
        %v8505 = vunpack.c.l.b16 %v8185
        %v8506 = vunpack.c.h.b16 %v8185
        %v8507 = vunpack.c.l.b16 %v8186
        %v8508 = vunpack.c.h.b16 %v8186
        %v8509 = vunpack.c.l.b16 %v8187
        %v8510 = vunpack.c.h.b16 %v8187
        %v8511 = vunpack.c.l.b16 %v8188
        %v8512 = vunpack.c.h.b16 %v8188
        %v8513 = vunpack.c.l.b16 %v8189
        %v8514 = vunpack.c.h.b16 %v8189
        %v8515 = vunpack.c.l.b16 %v8190
        %v8516 = vunpack.c.h.b16 %v8190
        %v8517 = vunpack.c.l.b16 %v8191
        %v8518 = vunpack.c.h.b16 %v8191
        %v8519 = vunpack.c.l.b16 %v8192
        %v8520 = vunpack.c.h.b16 %v8192
        %v8521 = vunpack.c.l.b16 %v8193
        %v8522 = vunpack.c.h.b16 %v8193
        %v8523 = vunpack.c.l.b16 %v8194
        %v8524 = vunpack.c.h.b16 %v8194
        %v8525 = vunpack.c.l.b16 %v8195
        %v8526 = vunpack.c.h.b16 %v8195
        %v8527 = vunpack.c.l.b16 %v8196
        %v8528 = vunpack.c.h.b16 %v8196
        %v8529 = vunpack.c.l.b16 %v8197
        %v8530 = vunpack.c.h.b16 %v8197
        %v8531 = vunpack.c.l.b16 %v8198
        %v8532 = vunpack.c.h.b16 %v8198
        %v8533 = vunpack.c.l.b16 %v8199
        %v8534 = vunpack.c.h.b16 %v8199
        %v8535 = vunpack.c.l.b16 %v8200
        %v8536 = vunpack.c.h.b16 %v8200
        %v8537 = vunpack.c.l.b16 %v8201
        %v8538 = vunpack.c.h.b16 %v8201
        %v8539 = vunpack.c.l.b16 %v8202
        %v8540 = vunpack.c.h.b16 %v8202
        %v8541 = vunpack.c.l.b16 %v8203
        %v8542 = vunpack.c.h.b16 %v8203
        %v8543 = vunpack.c.l.b16 %v8204
        %v8544 = vunpack.c.h.b16 %v8204
        %v8545 = vunpack.c.l.b16 %v8205
        %v8546 = vunpack.c.h.b16 %v8205
        %v8547 = vunpack.c.l.b16 %v8206
        %v8548 = vunpack.c.h.b16 %v8206
        %v8549 = vunpack.c.l.b16 %v8207
        %v8550 = vunpack.c.h.b16 %v8207
        %v8551 = vunpack.c.l.b16 %v8208
        %v8552 = vunpack.c.h.b16 %v8208
        %v8553 = vunpack.c.l.b16 %v8209
        %v8554 = vunpack.c.h.b16 %v8209
        %v8555 = vunpack.c.l.b16 %v8210
        %v8556 = vunpack.c.h.b16 %v8210
        %v8557 = vunpack.c.l.b16 %v8211
        %v8558 = vunpack.c.h.b16 %v8211
        %v8559 = vunpack.c.l.b16 %v8212
        %v8560 = vunpack.c.h.b16 %v8212
        %v8561 = vunpack.c.l.b16 %v8213
        %v8562 = vunpack.c.h.b16 %v8213
        %v8563 = vunpack.c.l.b16 %v8214
        %v8564 = vunpack.c.h.b16 %v8214
        %v8565 = vunpack.c.l.b16 %v8215
        %v8566 = vunpack.c.h.b16 %v8215
        %v8567 = vunpack.c.l.b16 %v8216
        %v8568 = vunpack.c.h.b16 %v8216
        %v8569 = vunpack.c.l.b16 %v8217
        %v8570 = vunpack.c.h.b16 %v8217
        %v8571 = vunpack.c.l.b16 %v8218
        %v8572 = vunpack.c.h.b16 %v8218
        %v8573 = vunpack.c.l.b16 %v8219
        %v8574 = vunpack.c.h.b16 %v8219
        %v8575 = vunpack.c.l.b16 %v8220
        %v8576 = vunpack.c.h.b16 %v8220
        %v8577 = vunpack.c.l.b16 %v8221
        %v8578 = vunpack.c.h.b16 %v8221
        %v8579 = vunpack.c.l.b16 %v8222
        %v8580 = vunpack.c.h.b16 %v8222
        %v8581 = vunpack.c.l.b16 %v8223
        %v8582 = vunpack.c.h.b16 %v8223
        %v8583 = vunpack.c.l.b16 %v8224
        %v8584 = vunpack.c.h.b16 %v8224
        %v8585 = vunpack.c.l.b16 %v8225
        %v8586 = vunpack.c.h.b16 %v8225
        %v8587 = vunpack.c.l.b16 %v8226
        %v8588 = vunpack.c.h.b16 %v8226
        %v8589 = vunpack.c.l.b16 %v8227
        %v8590 = vunpack.c.h.b16 %v8227
        %v8591 = vunpack.c.l.b16 %v8228
        %v8592 = vunpack.c.h.b16 %v8228
        %v8593 = vunpack.c.l.b16 %v8229
        %v8594 = vunpack.c.h.b16 %v8229
        %v8595 = vunpack.c.l.b16 %v8230
        %v8596 = vunpack.c.h.b16 %v8230
        %v8597 = vunpack.c.l.b16 %v8231
        %v8598 = vunpack.c.h.b16 %v8231
        %v8599 = vunpack.c.l.b16 %v8232
        %v8600 = vunpack.c.h.b16 %v8232
        %v8601 = vunpack.c.l.b16 %v8233
        %v8602 = vunpack.c.h.b16 %v8233
        %v8603 = vunpack.c.l.b16 %v8234
        %v8604 = vunpack.c.h.b16 %v8234
        %v8605 = vunpack.c.l.b16 %v8235
        %v8606 = vunpack.c.h.b16 %v8235
        %v8607 = vunpack.c.l.b16 %v8236
        %v8608 = vunpack.c.h.b16 %v8236
        %v8609 = vunpack.c.l.b16 %v8237
        %v8610 = vunpack.c.h.b16 %v8237
        %v8611 = vunpack.c.l.b16 %v8238
        %v8612 = vunpack.c.h.b16 %v8238
        %v8613 = vunpack.c.l.b16 %v8239
        %v8614 = vunpack.c.h.b16 %v8239
        %v8615 = vunpack.c.l.b16 %v8240
        %v8616 = vunpack.c.h.b16 %v8240
        %v8617 = vunpack.c.l.b16 %v8241
        %v8618 = vunpack.c.h.b16 %v8241
        %v8619 = vunpack.c.l.b16 %v8242
        %v8620 = vunpack.c.h.b16 %v8242
        %v8621 = vunpack.c.l.b16 %v8243
        %v8622 = vunpack.c.h.b16 %v8243
        %v8623 = vunpack.c.l.b16 %v8244
        %v8624 = vunpack.c.h.b16 %v8244
        %v8625 = vunpack.c.l.b16 %v8245
        %v8626 = vunpack.c.h.b16 %v8245
        %v8627 = vunpack.c.l.b16 %v8246
        %v8628 = vunpack.c.h.b16 %v8246
        %v8629 = vunpack.c.l.b16 %v8247
        %v8630 = vunpack.c.h.b16 %v8247
        %v8631 = vunpack.c.l.b16 %v8248
        %v8632 = vunpack.c.h.b16 %v8248
        %v8633 = vunpack.c.l.b16 %v8249
        %v8634 = vunpack.c.h.b16 %v8249
        %v8635 = vunpack.c.l.b16 %v8250
        %v8636 = vunpack.c.h.b16 %v8250
        %v8637 = vunpack.c.l.b16 %v8251
        %v8638 = vunpack.c.h.b16 %v8251
        %v8639 = vunpack.c.l.b16 %v8252
        %v8640 = vunpack.c.h.b16 %v8252
        %v8641 = vunpack.c.l.b16 %v8253
        %v8642 = vunpack.c.h.b16 %v8253
        %v8643 = vunpack.c.l.b16 %v8254
        %v8644 = vunpack.c.h.b16 %v8254
        %v8645 = vunpack.c.l.b16 %v8255
        %v8646 = vunpack.c.h.b16 %v8255
        %v8647 = vunpack.c.l.b16 %v8256
        %v8648 = vunpack.c.h.b16 %v8256
        %v8649 = vunpack.c.l.b16 %v8257
        %v8650 = vunpack.c.h.b16 %v8257
        %v8651 = vunpack.c.l.b16 %v8258
        %v8652 = vunpack.c.h.b16 %v8258
        %v8653 = vpack.c.b16 %v8405, %v8397
        %v8654 = vpack.c.b16 %v8406, %v8398
        %v8655 = vpack.c.b16 %v8407, %v8399
        %v8656 = vpack.c.b16 %v8408, %v8400
        %v8657 = vpack.c.b16 %v8409, %v8401
        %v8658 = vpack.c.b16 %v8410, %v8402
        %v8659 = vpack.c.b16 %v8411, %v8403
        %v8660 = vpack.c.b16 %v8412, %v8404
        %v8661 = vpack.c.b16 %v8421, %v8413
        %v8662 = vpack.c.b16 %v8422, %v8414
        %v8663 = vpack.c.b16 %v8423, %v8415
        %v8664 = vpack.c.b16 %v8424, %v8416
        %v8665 = vpack.c.b16 %v8425, %v8417
        %v8666 = vpack.c.b16 %v8426, %v8418
        %v8667 = vpack.c.b16 %v8427, %v8419
        %v8668 = vpack.c.b16 %v8428, %v8420
        %v8669 = vpack.c.b16 %v8437, %v8429
        %v8670 = vpack.c.b16 %v8438, %v8430
        %v8671 = vpack.c.b16 %v8439, %v8431
        %v8672 = vpack.c.b16 %v8440, %v8432
        %v8673 = vpack.c.b16 %v8441, %v8433
        %v8674 = vpack.c.b16 %v8442, %v8434
        %v8675 = vpack.c.b16 %v8443, %v8435
        %v8676 = vpack.c.b16 %v8444, %v8436
        %v8677 = vpack.c.b16 %v8453, %v8445
        %v8678 = vpack.c.b16 %v8454, %v8446
        %v8679 = vpack.c.b16 %v8455, %v8447
        %v8680 = vpack.c.b16 %v8456, %v8448
        %v8681 = vpack.c.b16 %v8457, %v8449
        %v8682 = vpack.c.b16 %v8458, %v8450
        %v8683 = vpack.c.b16 %v8459, %v8451
        %v8684 = vpack.c.b16 %v8460, %v8452
        %v8685 = vpack.c.b16 %v8469, %v8461
        %v8686 = vpack.c.b16 %v8470, %v8462
        %v8687 = vpack.c.b16 %v8471, %v8463
        %v8688 = vpack.c.b16 %v8472, %v8464
        %v8689 = vpack.c.b16 %v8473, %v8465
        %v8690 = vpack.c.b16 %v8474, %v8466
        %v8691 = vpack.c.b16 %v8475, %v8467
        %v8692 = vpack.c.b16 %v8476, %v8468
        %v8693 = vpack.c.b16 %v8485, %v8477
        %v8694 = vpack.c.b16 %v8486, %v8478
        %v8695 = vpack.c.b16 %v8487, %v8479
        %v8696 = vpack.c.b16 %v8488, %v8480
        %v8697 = vpack.c.b16 %v8489, %v8481
        %v8698 = vpack.c.b16 %v8490, %v8482
        %v8699 = vpack.c.b16 %v8491, %v8483
        %v8700 = vpack.c.b16 %v8492, %v8484
        %v8701 = vpack.c.b16 %v8501, %v8493
        %v8702 = vpack.c.b16 %v8502, %v8494
        %v8703 = vpack.c.b16 %v8503, %v8495
        %v8704 = vpack.c.b16 %v8504, %v8496
        %v8705 = vpack.c.b16 %v8505, %v8497
        %v8706 = vpack.c.b16 %v8506, %v8498
        %v8707 = vpack.c.b16 %v8507, %v8499
        %v8708 = vpack.c.b16 %v8508, %v8500
        %v8709 = vpack.c.b16 %v8517, %v8509
        %v8710 = vpack.c.b16 %v8518, %v8510
        %v8711 = vpack.c.b16 %v8519, %v8511
        %v8712 = vpack.c.b16 %v8520, %v8512
        %v8713 = vpack.c.b16 %v8521, %v8513
        %v8714 = vpack.c.b16 %v8522, %v8514
        %v8715 = vpack.c.b16 %v8523, %v8515
        %v8716 = vpack.c.b16 %v8524, %v8516
        %v8717 = vpack.c.b16 %v8533, %v8525
        %v8718 = vpack.c.b16 %v8534, %v8526
        %v8719 = vpack.c.b16 %v8535, %v8527
        %v8720 = vpack.c.b16 %v8536, %v8528
        %v8721 = vpack.c.b16 %v8537, %v8529
        %v8722 = vpack.c.b16 %v8538, %v8530
        %v8723 = vpack.c.b16 %v8539, %v8531
        %v8724 = vpack.c.b16 %v8540, %v8532
        %v8725 = vpack.c.b16 %v8549, %v8541
        %v8726 = vpack.c.b16 %v8550, %v8542
        %v8727 = vpack.c.b16 %v8551, %v8543
        %v8728 = vpack.c.b16 %v8552, %v8544
        %v8729 = vpack.c.b16 %v8553, %v8545
        %v8730 = vpack.c.b16 %v8554, %v8546
        %v8731 = vpack.c.b16 %v8555, %v8547
        %v8732 = vpack.c.b16 %v8556, %v8548
        %v8733 = vpack.c.b16 %v8565, %v8557
        %v8734 = vpack.c.b16 %v8566, %v8558
        %v8735 = vpack.c.b16 %v8567, %v8559
        %v8736 = vpack.c.b16 %v8568, %v8560
        %v8737 = vpack.c.b16 %v8569, %v8561
        %v8738 = vpack.c.b16 %v8570, %v8562
        %v8739 = vpack.c.b16 %v8571, %v8563
        %v8740 = vpack.c.b16 %v8572, %v8564
        %v8741 = vpack.c.b16 %v8581, %v8573
        %v8742 = vpack.c.b16 %v8582, %v8574
        %v8743 = vpack.c.b16 %v8583, %v8575
        %v8744 = vpack.c.b16 %v8584, %v8576
        %v8745 = vpack.c.b16 %v8585, %v8577
        %v8746 = vpack.c.b16 %v8586, %v8578
        %v8747 = vpack.c.b16 %v8587, %v8579
        %v8748 = vpack.c.b16 %v8588, %v8580
        %v8749 = vpack.c.b16 %v8597, %v8589
        %v8750 = vpack.c.b16 %v8598, %v8590
        %v8751 = vpack.c.b16 %v8599, %v8591
        %v8752 = vpack.c.b16 %v8600, %v8592
        %v8753 = vpack.c.b16 %v8601, %v8593
        %v8754 = vpack.c.b16 %v8602, %v8594
        %v8755 = vpack.c.b16 %v8603, %v8595
        %v8756 = vpack.c.b16 %v8604, %v8596
        %v8757 = vpack.c.b16 %v8613, %v8605
        %v8758 = vpack.c.b16 %v8614, %v8606
        %v8759 = vpack.c.b16 %v8615, %v8607
        %v8760 = vpack.c.b16 %v8616, %v8608
        %v8761 = vpack.c.b16 %v8617, %v8609
        %v8762 = vpack.c.b16 %v8618, %v8610
        %v8763 = vpack.c.b16 %v8619, %v8611
        %v8764 = vpack.c.b16 %v8620, %v8612
        %v8765 = vpack.c.b16 %v8629, %v8621
        %v8766 = vpack.c.b16 %v8630, %v8622
        %v8767 = vpack.c.b16 %v8631, %v8623
        %v8768 = vpack.c.b16 %v8632, %v8624
        %v8769 = vpack.c.b16 %v8633, %v8625
        %v8770 = vpack.c.b16 %v8634, %v8626
        %v8771 = vpack.c.b16 %v8635, %v8627
        %v8772 = vpack.c.b16 %v8636, %v8628
        %v8773 = vpack.c.b16 %v8645, %v8637
        %v8774 = vpack.c.b16 %v8646, %v8638
        %v8775 = vpack.c.b16 %v8647, %v8639
        %v8776 = vpack.c.b16 %v8648, %v8640
        %v8777 = vpack.c.b16 %v8649, %v8641
        %v8778 = vpack.c.b16 %v8650, %v8642
        %v8779 = vpack.c.b16 %v8651, %v8643
        %v8780 = vpack.c.b16 %v8652, %v8644
        %8909 = vmatpush.bf16.msra.mxu0 %v8709
        %8910 = vmatpush.bf16.msra.mxu0 %v8701
        %8911 = vmatpush.bf16.msra.mxu0 %v8693
        %8912 = vmatpush.bf16.msra.mxu0 %v8685
        %8913 = vmatpush.bf16.msra.mxu0 %v8677
        %8914 = vmatpush.bf16.msra.mxu0 %v8669
        %8915 = vmatpush.bf16.msra.mxu0 %v8661
        %8916 = vmatpush.bf16.msra.mxu0 %v8653
        %8917 = vmatmul.bf16.gmra.mxu0 %v8265
        %v8918 = vpop.f32.mrf.mxu0
        %v8919 = vadd.f32 0.0, %v8918
        %v8920 = vpop.f32.mrf.mxu0
        %v8921 = vadd.f32 0.0, %v8920
        %8922 = vdwg.mxu0
        %8923 = vmatpush.bf16.msra.mxu0 %v8773
        %8924 = vmatpush.bf16.msra.mxu0 %v8765
        %8925 = vmatpush.bf16.msra.mxu0 %v8757
        %8926 = vmatpush.bf16.msra.mxu0 %v8749
        %8927 = vmatpush.bf16.msra.mxu0 %v8741
        %8928 = vmatpush.bf16.msra.mxu0 %v8733
        %8929 = vmatpush.bf16.msra.mxu0 %v8725
        %8930 = vmatpush.bf16.msra.mxu0 %v8717
        %8931 = vmatmul.bf16.gmra.mxu0 %v8266
        %v8932 = vpop.f32.mrf.mxu0
        %v8933 = vadd.f32 %v8919, %v8932
        %v8934 = vpop.f32.mrf.mxu0
        %v8935 = vadd.f32 %v8921, %v8934
        %8936 = vdwg.mxu0
        %8937 = vmatpush.bf16.msra.mxu0 %v8710
        %8938 = vmatpush.bf16.msra.mxu0 %v8702
        %8939 = vmatpush.bf16.msra.mxu0 %v8694
        %8940 = vmatpush.bf16.msra.mxu0 %v8686
        %8941 = vmatpush.bf16.msra.mxu0 %v8678
        %8942 = vmatpush.bf16.msra.mxu0 %v8670
        %8943 = vmatpush.bf16.msra.mxu0 %v8662
        %8944 = vmatpush.bf16.msra.mxu0 %v8654
        %8945 = vmatmul.bf16.gmra.mxu0 %v8265
        %v8946 = vpop.f32.mrf.mxu0
        %v8947 = vadd.f32 0.0, %v8946
        %v8948 = vpop.f32.mrf.mxu0
        %v8949 = vadd.f32 0.0, %v8948
        %8950 = vdwg.mxu0
        %8951 = vmatpush.bf16.msra.mxu0 %v8774
        %8952 = vmatpush.bf16.msra.mxu0 %v8766
        %8953 = vmatpush.bf16.msra.mxu0 %v8758
        %8954 = vmatpush.bf16.msra.mxu0 %v8750
        %8955 = vmatpush.bf16.msra.mxu0 %v8742
        %8956 = vmatpush.bf16.msra.mxu0 %v8734
        %8957 = vmatpush.bf16.msra.mxu0 %v8726
        %8958 = vmatpush.bf16.msra.mxu0 %v8718
        %8959 = vmatmul.bf16.gmra.mxu0 %v8266
        %v8960 = vpop.f32.mrf.mxu0
        %v8961 = vadd.f32 %v8947, %v8960
        %v8962 = vpop.f32.mrf.mxu0
        %v8963 = vadd.f32 %v8949, %v8962
        %8964 = vdwg.mxu0
        %8965 = vmatpush.bf16.msra.mxu0 %v8711
        %8966 = vmatpush.bf16.msra.mxu0 %v8703
        %8967 = vmatpush.bf16.msra.mxu0 %v8695
        %8968 = vmatpush.bf16.msra.mxu0 %v8687
        %8969 = vmatpush.bf16.msra.mxu0 %v8679
        %8970 = vmatpush.bf16.msra.mxu0 %v8671
        %8971 = vmatpush.bf16.msra.mxu0 %v8663
        %8972 = vmatpush.bf16.msra.mxu0 %v8655
        %8973 = vmatmul.bf16.gmra.mxu0 %v8265
        %v8974 = vpop.f32.mrf.mxu0
        %v8975 = vadd.f32 0.0, %v8974
        %v8976 = vpop.f32.mrf.mxu0
        %v8977 = vadd.f32 0.0, %v8976
        %8978 = vdwg.mxu0
        %8979 = vmatpush.bf16.msra.mxu0 %v8775
        %8980 = vmatpush.bf16.msra.mxu0 %v8767
        %8981 = vmatpush.bf16.msra.mxu0 %v8759
        %8982 = vmatpush.bf16.msra.mxu0 %v8751
        %8983 = vmatpush.bf16.msra.mxu0 %v8743
        %8984 = vmatpush.bf16.msra.mxu0 %v8735
        %8985 = vmatpush.bf16.msra.mxu0 %v8727
        %8986 = vmatpush.bf16.msra.mxu0 %v8719
        %8987 = vmatmul.bf16.gmra.mxu0 %v8266
        %v8988 = vpop.f32.mrf.mxu0
        %v8989 = vadd.f32 %v8975, %v8988
        %v8990 = vpop.f32.mrf.mxu0
        %v8991 = vadd.f32 %v8977, %v8990
        %8992 = vdwg.mxu0
        %8993 = vmatpush.bf16.msra.mxu0 %v8712
        %8994 = vmatpush.bf16.msra.mxu0 %v8704
        %8995 = vmatpush.bf16.msra.mxu0 %v8696
        %8996 = vmatpush.bf16.msra.mxu0 %v8688
        %8997 = vmatpush.bf16.msra.mxu0 %v8680
        %8998 = vmatpush.bf16.msra.mxu0 %v8672
        %8999 = vmatpush.bf16.msra.mxu0 %v8664
        %9000 = vmatpush.bf16.msra.mxu0 %v8656
        %9001 = vmatmul.bf16.gmra.mxu0 %v8265
        %v9002 = vpop.f32.mrf.mxu0
        %v9003 = vadd.f32 0.0, %v9002
        %v9004 = vpop.f32.mrf.mxu0
        %v9005 = vadd.f32 0.0, %v9004
        %9006 = vdwg.mxu0
        %9007 = vmatpush.bf16.msra.mxu0 %v8776
        %9008 = vmatpush.bf16.msra.mxu0 %v8768
        %9009 = vmatpush.bf16.msra.mxu0 %v8760
        %9010 = vmatpush.bf16.msra.mxu0 %v8752
        %9011 = vmatpush.bf16.msra.mxu0 %v8744
        %9012 = vmatpush.bf16.msra.mxu0 %v8736
        %9013 = vmatpush.bf16.msra.mxu0 %v8728
        %9014 = vmatpush.bf16.msra.mxu0 %v8720
        %9015 = vmatmul.bf16.gmra.mxu0 %v8266
        %v9016 = vpop.f32.mrf.mxu0
        %v9017 = vadd.f32 %v9003, %v9016
        %v9018 = vpop.f32.mrf.mxu0
        %v9019 = vadd.f32 %v9005, %v9018
        %9020 = vdwg.mxu0
        %9021 = vmatpush.bf16.msra.mxu0 %v8713
        %9022 = vmatpush.bf16.msra.mxu0 %v8705
        %9023 = vmatpush.bf16.msra.mxu0 %v8697
        %9024 = vmatpush.bf16.msra.mxu0 %v8689
        %9025 = vmatpush.bf16.msra.mxu0 %v8681
        %9026 = vmatpush.bf16.msra.mxu0 %v8673
        %9027 = vmatpush.bf16.msra.mxu0 %v8665
        %9028 = vmatpush.bf16.msra.mxu0 %v8657
        %9029 = vmatmul.bf16.gmra.mxu0 %v8265
        %v9030 = vpop.f32.mrf.mxu0
        %v9031 = vadd.f32 0.0, %v9030
        %v9032 = vpop.f32.mrf.mxu0
        %v9033 = vadd.f32 0.0, %v9032
        %9034 = vdwg.mxu0
        %9035 = vmatpush.bf16.msra.mxu0 %v8777
        %9036 = vmatpush.bf16.msra.mxu0 %v8769
        %9037 = vmatpush.bf16.msra.mxu0 %v8761
        %9038 = vmatpush.bf16.msra.mxu0 %v8753
        %9039 = vmatpush.bf16.msra.mxu0 %v8745
        %9040 = vmatpush.bf16.msra.mxu0 %v8737
        %9041 = vmatpush.bf16.msra.mxu0 %v8729
        %9042 = vmatpush.bf16.msra.mxu0 %v8721
        %9043 = vmatmul.bf16.gmra.mxu0 %v8266
        %v9044 = vpop.f32.mrf.mxu0
        %v9045 = vadd.f32 %v9031, %v9044
        %v9046 = vpop.f32.mrf.mxu0
        %v9047 = vadd.f32 %v9033, %v9046
        %9048 = vdwg.mxu0
        %9049 = vmatpush.bf16.msra.mxu0 %v8714
        %9050 = vmatpush.bf16.msra.mxu0 %v8706
        %9051 = vmatpush.bf16.msra.mxu0 %v8698
        %9052 = vmatpush.bf16.msra.mxu0 %v8690
        %9053 = vmatpush.bf16.msra.mxu0 %v8682
        %9054 = vmatpush.bf16.msra.mxu0 %v8674
        %9055 = vmatpush.bf16.msra.mxu0 %v8666
        %9056 = vmatpush.bf16.msra.mxu0 %v8658
        %9057 = vmatmul.bf16.gmra.mxu0 %v8265
        %v9058 = vpop.f32.mrf.mxu0
        %v9059 = vadd.f32 0.0, %v9058
        %v9060 = vpop.f32.mrf.mxu0
        %v9061 = vadd.f32 0.0, %v9060
        %9062 = vdwg.mxu0
        %9063 = vmatpush.bf16.msra.mxu0 %v8778
        %9064 = vmatpush.bf16.msra.mxu0 %v8770
        %9065 = vmatpush.bf16.msra.mxu0 %v8762
        %9066 = vmatpush.bf16.msra.mxu0 %v8754
        %9067 = vmatpush.bf16.msra.mxu0 %v8746
        %9068 = vmatpush.bf16.msra.mxu0 %v8738
        %9069 = vmatpush.bf16.msra.mxu0 %v8730
        %9070 = vmatpush.bf16.msra.mxu0 %v8722
        %9071 = vmatmul.bf16.gmra.mxu0 %v8266
        %v9072 = vpop.f32.mrf.mxu0
        %v9073 = vadd.f32 %v9059, %v9072
        %v9074 = vpop.f32.mrf.mxu0
        %v9075 = vadd.f32 %v9061, %v9074
        %9076 = vdwg.mxu0
        %9077 = vmatpush.bf16.msra.mxu0 %v8715
        %9078 = vmatpush.bf16.msra.mxu0 %v8707
        %9079 = vmatpush.bf16.msra.mxu0 %v8699
        %9080 = vmatpush.bf16.msra.mxu0 %v8691
        %9081 = vmatpush.bf16.msra.mxu0 %v8683
        %9082 = vmatpush.bf16.msra.mxu0 %v8675
        %9083 = vmatpush.bf16.msra.mxu0 %v8667
        %9084 = vmatpush.bf16.msra.mxu0 %v8659
        %9085 = vmatmul.bf16.gmra.mxu0 %v8265
        %v9086 = vpop.f32.mrf.mxu0
        %v9087 = vadd.f32 0.0, %v9086
        %v9088 = vpop.f32.mrf.mxu0
        %v9089 = vadd.f32 0.0, %v9088
        %9090 = vdwg.mxu0
        %9091 = vmatpush.bf16.msra.mxu0 %v8779
        %9092 = vmatpush.bf16.msra.mxu0 %v8771
        %9093 = vmatpush.bf16.msra.mxu0 %v8763
        %9094 = vmatpush.bf16.msra.mxu0 %v8755
        %9095 = vmatpush.bf16.msra.mxu0 %v8747
        %9096 = vmatpush.bf16.msra.mxu0 %v8739
        %9097 = vmatpush.bf16.msra.mxu0 %v8731
        %9098 = vmatpush.bf16.msra.mxu0 %v8723
        %9099 = vmatmul.bf16.gmra.mxu0 %v8266
        %v9100 = vpop.f32.mrf.mxu0
        %v9101 = vadd.f32 %v9087, %v9100
        %v9102 = vpop.f32.mrf.mxu0
        %v9103 = vadd.f32 %v9089, %v9102
        %9104 = vdwg.mxu0
        %9105 = vmatpush.bf16.msra.mxu0 %v8716
        %9106 = vmatpush.bf16.msra.mxu0 %v8708
        %9107 = vmatpush.bf16.msra.mxu0 %v8700
        %9108 = vmatpush.bf16.msra.mxu0 %v8692
        %9109 = vmatpush.bf16.msra.mxu0 %v8684
        %9110 = vmatpush.bf16.msra.mxu0 %v8676
        %9111 = vmatpush.bf16.msra.mxu0 %v8668
        %9112 = vmatpush.bf16.msra.mxu0 %v8660
        %9113 = vmatmul.bf16.gmra.mxu0 %v8265
        %v9114 = vpop.f32.mrf.mxu0
        %v9115 = vadd.f32 0.0, %v9114
        %v9116 = vpop.f32.mrf.mxu0
        %v9117 = vadd.f32 0.0, %v9116
        %9118 = vdwg.mxu0
        %9119 = vmatpush.bf16.msra.mxu0 %v8780
        %9120 = vmatpush.bf16.msra.mxu0 %v8772
        %9121 = vmatpush.bf16.msra.mxu0 %v8764
        %9122 = vmatpush.bf16.msra.mxu0 %v8756
        %9123 = vmatpush.bf16.msra.mxu0 %v8748
        %9124 = vmatpush.bf16.msra.mxu0 %v8740
        %9125 = vmatpush.bf16.msra.mxu0 %v8732
        %9126 = vmatpush.bf16.msra.mxu0 %v8724
        %9127 = vmatmul.bf16.gmra.mxu0 %v8266
        %v9128 = vpop.f32.mrf.mxu0
        %v9129 = vadd.f32 %v9115, %v9128
        %v9130 = vpop.f32.mrf.mxu0
        %v9131 = vadd.f32 %v9117, %v9130
        %9132 = vdwg.mxu0
        %v9133 = vadd.f32 %v8114, %v8933
        %v9134 = vadd.f32 %v8115, %v8961
        %v9135 = vadd.f32 %v8116, %v8989
        %v9136 = vadd.f32 %v8117, %v9017
        %v9137 = vadd.f32 %v8118, %v9045
        %v9138 = vadd.f32 %v8119, %v9073
        %v9139 = vadd.f32 %v8120, %v9101
        %v9140 = vadd.f32 %v8121, %v9129
        %v9141 = vadd.f32 %v8122, %v8935
        %v9142 = vadd.f32 %v8123, %v8963
        %v9143 = vadd.f32 %v8124, %v8991
        %v9144 = vadd.f32 %v8125, %v9019
        %v9145 = vadd.f32 %v8126, %v9047
        %v9146 = vadd.f32 %v8127, %v9075
        %v9147 = vadd.f32 %v8128, %v9103
        %v9148 = vadd.f32 %v8129, %v9131
        %v9149 = vadd.s32 %v867, 256
        %v9150 = vadd.s32 %v867, 384
        %v9151 = vadd.s32 %v867, 512
        %v9152 = vadd.s32 %v867, 640
        %v9153 = vadd.s32 %v867, 768
        %v9154 = vadd.s32 %v867, 896
        %vm9155 = vcmp.lt.s32.totalorder %v867, 0
        %v9156 = vsub.s32 0, %v867
        %v9157 = vsel %vm9155, %v9156, %v867
        %v9158 = vshrl.u32 %v9157, 5
        %v9159 = vand.u32 %v9157, 31
        %v9160 = vsub.s32 0, %v9159
        %v9161 = vsel %vm9155, %v9160, %v9159
        %vm9162 = vcmp.lt.s32.totalorder %v3397, 0
        %v9163 = vsub.s32 0, %v3397
        %v9164 = vsel %vm9162, %v9163, %v3397
        %v9165 = vshrl.u32 %v9164, 5
        %v9166 = vand.u32 %v9164, 31
        %v9167 = vsub.s32 0, %v9166
        %v9168 = vsel %vm9162, %v9167, %v9166
        %vm9169 = vcmp.lt.s32.totalorder %v9149, 0
        %v9170 = vsub.s32 0, %v9149
        %v9171 = vsel %vm9169, %v9170, %v9149
        %v9172 = vshrl.u32 %v9171, 5
        %v9173 = vand.u32 %v9171, 31
        %v9174 = vsub.s32 0, %v9173
        %v9175 = vsel %vm9169, %v9174, %v9173
        %vm9176 = vcmp.lt.s32.totalorder %v9150, 0
        %v9177 = vsub.s32 0, %v9150
        %v9178 = vsel %vm9176, %v9177, %v9150
        %v9179 = vshrl.u32 %v9178, 5
        %v9180 = vand.u32 %v9178, 31
        %v9181 = vsub.s32 0, %v9180
        %v9182 = vsel %vm9176, %v9181, %v9180
        %vm9183 = vcmp.lt.s32.totalorder %v9151, 0
        %v9184 = vsub.s32 0, %v9151
        %v9185 = vsel %vm9183, %v9184, %v9151
        %v9186 = vshrl.u32 %v9185, 5
        %v9187 = vand.u32 %v9185, 31
        %v9188 = vsub.s32 0, %v9187
        %v9189 = vsel %vm9183, %v9188, %v9187
        %vm9190 = vcmp.lt.s32.totalorder %v9152, 0
        %v9191 = vsub.s32 0, %v9152
        %v9192 = vsel %vm9190, %v9191, %v9152
        %v9193 = vshrl.u32 %v9192, 5
        %v9194 = vand.u32 %v9192, 31
        %v9195 = vsub.s32 0, %v9194
        %v9196 = vsel %vm9190, %v9195, %v9194
        %vm9197 = vcmp.lt.s32.totalorder %v9153, 0
        %v9198 = vsub.s32 0, %v9153
        %v9199 = vsel %vm9197, %v9198, %v9153
        %v9200 = vshrl.u32 %v9199, 5
        %v9201 = vand.u32 %v9199, 31
        %v9202 = vsub.s32 0, %v9201
        %v9203 = vsel %vm9197, %v9202, %v9201
        %vm9204 = vcmp.lt.s32.totalorder %v9154, 0
        %v9205 = vsub.s32 0, %v9154
        %v9206 = vsel %vm9204, %v9205, %v9154
        %v9207 = vshrl.u32 %v9206, 5
        %v9208 = vand.u32 %v9206, 31
        %v9209 = vsub.s32 0, %v9208
        %v9210 = vsel %vm9204, %v9209, %v9208
        %vm9211 = vcmp.ne.s32.totalorder %v9161, 0
        %vm9212 = vcmp.ne.s32.totalorder %v9168, 0
        %vm9213 = vcmp.ne.s32.totalorder %v9175, 0
        %vm9214 = vcmp.ne.s32.totalorder %v9182, 0
        %vm9215 = vcmp.ne.s32.totalorder %v9189, 0
        %vm9216 = vcmp.ne.s32.totalorder %v9196, 0
        %vm9217 = vcmp.ne.s32.totalorder %v9203, 0
        %vm9218 = vcmp.ne.s32.totalorder %v9210, 0
        %vm9219 = vcmp.lt.s32.totalorder %v9161, 0
        %vm9220 = vcmp.lt.s32.totalorder %v9168, 0
        %vm9221 = vcmp.lt.s32.totalorder %v9175, 0
        %vm9222 = vcmp.lt.s32.totalorder %v9182, 0
        %vm9223 = vcmp.lt.s32.totalorder %v9189, 0
        %vm9224 = vcmp.lt.s32.totalorder %v9196, 0
        %vm9225 = vcmp.lt.s32.totalorder %v9203, 0
        %vm9226 = vcmp.lt.s32.totalorder %v9210, 0
        %vm9227 = vmand %vm9219, %vm9211
        %vm9228 = vmand %vm9220, %vm9212
        %vm9229 = vmand %vm9221, %vm9213
        %vm9230 = vmand %vm9222, %vm9214
        %vm9231 = vmand %vm9223, %vm9215
        %vm9232 = vmand %vm9224, %vm9216
        %vm9233 = vmand %vm9225, %vm9217
        %vm9234 = vmand %vm9226, %vm9218
        %v9235 = vadd.s32 %v9161, 32
        %v9236 = vadd.s32 %v9168, 32
        %v9237 = vadd.s32 %v9175, 32
        %v9238 = vadd.s32 %v9182, 32
        %v9239 = vadd.s32 %v9189, 32
        %v9240 = vadd.s32 %v9196, 32
        %v9241 = vadd.s32 %v9203, 32
        %v9242 = vadd.s32 %v9210, 32
        %v9243 = vsel %vm9227, %v9235, %v9161
        %v9244 = vsel %vm9228, %v9236, %v9168
        %v9245 = vsel %vm9229, %v9237, %v9175
        %v9246 = vsel %vm9230, %v9238, %v9182
        %v9247 = vsel %vm9231, %v9239, %v9189
        %v9248 = vsel %vm9232, %v9240, %v9196
        %v9249 = vsel %vm9233, %v9241, %v9203
        %v9250 = vsel %vm9234, %v9242, %v9210
        %vm9251 = vcmp.ne.s32.totalorder %v9243, 0
        %vm9252 = vcmp.ne.s32.totalorder %v9244, 0
        %vm9253 = vcmp.ne.s32.totalorder %v9245, 0
        %vm9254 = vcmp.ne.s32.totalorder %v9246, 0
        %vm9255 = vcmp.ne.s32.totalorder %v9247, 0
        %vm9256 = vcmp.ne.s32.totalorder %v9248, 0
        %vm9257 = vcmp.ne.s32.totalorder %v9249, 0
        %vm9258 = vcmp.ne.s32.totalorder %v9250, 0
        %v9259 = vsel %vm9251, 1, 0
        %v9260 = vsel %vm9252, 1, 0
        %v9261 = vsel %vm9253, 1, 0
        %v9262 = vsel %vm9254, 1, 0
        %v9263 = vsel %vm9255, 1, 0
        %v9264 = vsel %vm9256, 1, 0
        %v9265 = vsel %vm9257, 1, 0
        %v9266 = vsel %vm9258, 1, 0
        %v9267 = vcvt.s32.f32 %v9259
        %v9268 = vcvt.s32.f32 %v9260
        %v9269 = vcvt.s32.f32 %v9261
        %v9270 = vcvt.s32.f32 %v9262
        %v9271 = vcvt.s32.f32 %v9263
        %v9272 = vcvt.s32.f32 %v9264
        %v9273 = vcvt.s32.f32 %v9265
        %v9274 = vcvt.s32.f32 %v9266
        %vm9275 = vcmp.ne.s32.totalorder %v9243, 31
        %vm9276 = vcmp.ne.s32.totalorder %v9244, 31
        %vm9277 = vcmp.ne.s32.totalorder %v9245, 31
        %vm9278 = vcmp.ne.s32.totalorder %v9246, 31
        %vm9279 = vcmp.ne.s32.totalorder %v9247, 31
        %vm9280 = vcmp.ne.s32.totalorder %v9248, 31
        %vm9281 = vcmp.ne.s32.totalorder %v9249, 31
        %vm9282 = vcmp.ne.s32.totalorder %v9250, 31
        %v9283 = vsel %vm9275, 1, 0
        %v9284 = vsel %vm9276, 1, 0
        %v9285 = vsel %vm9277, 1, 0
        %v9286 = vsel %vm9278, 1, 0
        %v9287 = vsel %vm9279, 1, 0
        %v9288 = vsel %vm9280, 1, 0
        %v9289 = vsel %vm9281, 1, 0
        %v9290 = vsel %vm9282, 1, 0
        %v9291 = vcvt.s32.f32 %v9283
        %v9292 = vcvt.s32.f32 %v9284
        %v9293 = vcvt.s32.f32 %v9285
        %v9294 = vcvt.s32.f32 %v9286
        %v9295 = vcvt.s32.f32 %v9287
        %v9296 = vcvt.s32.f32 %v9288
        %v9297 = vcvt.s32.f32 %v9289
        %v9298 = vcvt.s32.f32 %v9290
        %v9299 = vxor.u32 %v9133, 2147483648
        %v9300 = vxor.u32 %v9134, 2147483648
        %v9301 = vxor.u32 %v9135, 2147483648
        %v9302 = vxor.u32 %v9136, 2147483648
        %v9303 = vxor.u32 %v9137, 2147483648
        %v9304 = vxor.u32 %v9138, 2147483648
        %v9305 = vxor.u32 %v9139, 2147483648
        %v9306 = vxor.u32 %v9140, 2147483648
        %v9307 = vxor.u32 %v9141, 2147483648
        %v9308 = vxor.u32 %v9142, 2147483648
        %v9309 = vxor.u32 %v9143, 2147483648
        %v9310 = vxor.u32 %v9144, 2147483648
        %v9311 = vxor.u32 %v9145, 2147483648
        %v9312 = vxor.u32 %v9146, 2147483648
        %v9313 = vxor.u32 %v9147, 2147483648
        %v9314 = vxor.u32 %v9148, 2147483648
        %v9315 = vmul.f32 %v9299, 1.442695
        %v9316 = vpow.pop %v9315
        %v9317 = vmul.f32 %v9300, 1.442695
        %v9318 = vpow.pop %v9317
        %v9319 = vmul.f32 %v9301, 1.442695
        %v9320 = vpow.pop %v9319
        %v9321 = vmul.f32 %v9302, 1.442695
        %v9322 = vpow.pop %v9321
        %v9323 = vmul.f32 %v9303, 1.442695
        %v9324 = vpow.pop %v9323
        %v9325 = vmul.f32 %v9304, 1.442695
        %v9326 = vpow.pop %v9325
        %v9327 = vmul.f32 %v9305, 1.442695
        %v9328 = vpow.pop %v9327
        %v9329 = vmul.f32 %v9306, 1.442695
        %v9330 = vpow.pop %v9329
        %v9331 = vmul.f32 %v9307, 1.442695
        %v9332 = vpow.pop %v9331
        %v9333 = vmul.f32 %v9308, 1.442695
        %v9334 = vpow.pop %v9333
        %v9335 = vmul.f32 %v9309, 1.442695
        %v9336 = vpow.pop %v9335
        %v9337 = vmul.f32 %v9310, 1.442695
        %v9338 = vpow.pop %v9337
        %v9339 = vmul.f32 %v9311, 1.442695
        %v9340 = vpow.pop %v9339
        %v9341 = vmul.f32 %v9312, 1.442695
        %v9342 = vpow.pop %v9341
        %v9343 = vmul.f32 %v9313, 1.442695
        %v9344 = vpow.pop %v9343
        %v9345 = vmul.f32 %v9314, 1.442695
        %v9346 = vpow.pop %v9345
        %v9347 = vadd.f32 %v9316, 1.0
        %v9348 = vadd.f32 %v9318, 1.0
        %v9349 = vadd.f32 %v9320, 1.0
        %v9350 = vadd.f32 %v9322, 1.0
        %v9351 = vadd.f32 %v9324, 1.0
        %v9352 = vadd.f32 %v9326, 1.0
        %v9353 = vadd.f32 %v9328, 1.0
        %v9354 = vadd.f32 %v9330, 1.0
        %v9355 = vadd.f32 %v9332, 1.0
        %v9356 = vadd.f32 %v9334, 1.0
        %v9357 = vadd.f32 %v9336, 1.0
        %v9358 = vadd.f32 %v9338, 1.0
        %v9359 = vadd.f32 %v9340, 1.0
        %v9360 = vadd.f32 %v9342, 1.0
        %v9361 = vadd.f32 %v9344, 1.0
        %v9362 = vadd.f32 %v9346, 1.0
        %v9363 = vrcp.pop %v9347
        %v9364 = vmul.f32 %v9347, %v9363
        %v9365 = vsub.f32 1.0, %v9364
        %v9366 = vmul.f32 %v9363, %v9365
        %v9367 = vadd.f32 %v9363, %v9366
        %vm9368 = vweird.f32 %v9347
        %vm9369 = vweird.f32 %v9363
        %vm9370 = vmor %vm9368, %vm9369
        %v9371 = vsel %vm9370, %v9363, %v9367
        %v9372 = vand.u32 2147483647, %v9347
        %vm9373 = vcmp.eq.f32.partialorder %v9372, 8.507059e+37
        %v9374 = vand.u32 %v9347, 2147483648
        %v9375 = vor.u32 1.1754944e-38, %v9374
        %v9376 = vsel %vm9373, %v9375, %v9371
        %v9377 = vmul.f32 1.0, %v9376
        %v9378 = vrcp.pop %v9348
        %v9379 = vmul.f32 %v9348, %v9378
        %v9380 = vsub.f32 1.0, %v9379
        %v9381 = vmul.f32 %v9378, %v9380
        %v9382 = vadd.f32 %v9378, %v9381
        %vm9383 = vweird.f32 %v9348
        %vm9384 = vweird.f32 %v9378
        %vm9385 = vmor %vm9383, %vm9384
        %v9386 = vsel %vm9385, %v9378, %v9382
        %v9387 = vand.u32 2147483647, %v9348
        %vm9388 = vcmp.eq.f32.partialorder %v9387, 8.507059e+37
        %v9389 = vand.u32 %v9348, 2147483648
        %v9390 = vor.u32 1.1754944e-38, %v9389
        %v9391 = vsel %vm9388, %v9390, %v9386
        %v9392 = vmul.f32 1.0, %v9391
        %v9393 = vrcp.pop %v9349
        %v9394 = vmul.f32 %v9349, %v9393
        %v9395 = vsub.f32 1.0, %v9394
        %v9396 = vmul.f32 %v9393, %v9395
        %v9397 = vadd.f32 %v9393, %v9396
        %vm9398 = vweird.f32 %v9349
        %vm9399 = vweird.f32 %v9393
        %vm9400 = vmor %vm9398, %vm9399
        %v9401 = vsel %vm9400, %v9393, %v9397
        %v9402 = vand.u32 2147483647, %v9349
        %vm9403 = vcmp.eq.f32.partialorder %v9402, 8.507059e+37
        %v9404 = vand.u32 %v9349, 2147483648
        %v9405 = vor.u32 1.1754944e-38, %v9404
        %v9406 = vsel %vm9403, %v9405, %v9401
        %v9407 = vmul.f32 1.0, %v9406
        %v9408 = vrcp.pop %v9350
        %v9409 = vmul.f32 %v9350, %v9408
        %v9410 = vsub.f32 1.0, %v9409
        %v9411 = vmul.f32 %v9408, %v9410
        %v9412 = vadd.f32 %v9408, %v9411
        %vm9413 = vweird.f32 %v9350
        %vm9414 = vweird.f32 %v9408
        %vm9415 = vmor %vm9413, %vm9414
        %v9416 = vsel %vm9415, %v9408, %v9412
        %v9417 = vand.u32 2147483647, %v9350
        %vm9418 = vcmp.eq.f32.partialorder %v9417, 8.507059e+37
        %v9419 = vand.u32 %v9350, 2147483648
        %v9420 = vor.u32 1.1754944e-38, %v9419
        %v9421 = vsel %vm9418, %v9420, %v9416
        %v9422 = vmul.f32 1.0, %v9421
        %v9423 = vrcp.pop %v9351
        %v9424 = vmul.f32 %v9351, %v9423
        %v9425 = vsub.f32 1.0, %v9424
        %v9426 = vmul.f32 %v9423, %v9425
        %v9427 = vadd.f32 %v9423, %v9426
        %vm9428 = vweird.f32 %v9351
        %vm9429 = vweird.f32 %v9423
        %vm9430 = vmor %vm9428, %vm9429
        %v9431 = vsel %vm9430, %v9423, %v9427
        %v9432 = vand.u32 2147483647, %v9351
        %vm9433 = vcmp.eq.f32.partialorder %v9432, 8.507059e+37
        %v9434 = vand.u32 %v9351, 2147483648
        %v9435 = vor.u32 1.1754944e-38, %v9434
        %v9436 = vsel %vm9433, %v9435, %v9431
        %v9437 = vmul.f32 1.0, %v9436
        %v9438 = vrcp.pop %v9352
        %v9439 = vmul.f32 %v9352, %v9438
        %v9440 = vsub.f32 1.0, %v9439
        %v9441 = vmul.f32 %v9438, %v9440
        %v9442 = vadd.f32 %v9438, %v9441
        %vm9443 = vweird.f32 %v9352
        %vm9444 = vweird.f32 %v9438
        %vm9445 = vmor %vm9443, %vm9444
        %v9446 = vsel %vm9445, %v9438, %v9442
        %v9447 = vand.u32 2147483647, %v9352
        %vm9448 = vcmp.eq.f32.partialorder %v9447, 8.507059e+37
        %v9449 = vand.u32 %v9352, 2147483648
        %v9450 = vor.u32 1.1754944e-38, %v9449
        %v9451 = vsel %vm9448, %v9450, %v9446
        %v9452 = vmul.f32 1.0, %v9451
        %v9453 = vrcp.pop %v9353
        %v9454 = vmul.f32 %v9353, %v9453
        %v9455 = vsub.f32 1.0, %v9454
        %v9456 = vmul.f32 %v9453, %v9455
        %v9457 = vadd.f32 %v9453, %v9456
        %vm9458 = vweird.f32 %v9353
        %vm9459 = vweird.f32 %v9453
        %vm9460 = vmor %vm9458, %vm9459
        %v9461 = vsel %vm9460, %v9453, %v9457
        %v9462 = vand.u32 2147483647, %v9353
        %vm9463 = vcmp.eq.f32.partialorder %v9462, 8.507059e+37
        %v9464 = vand.u32 %v9353, 2147483648
        %v9465 = vor.u32 1.1754944e-38, %v9464
        %v9466 = vsel %vm9463, %v9465, %v9461
        %v9467 = vmul.f32 1.0, %v9466
        %v9468 = vrcp.pop %v9354
        %v9469 = vmul.f32 %v9354, %v9468
        %v9470 = vsub.f32 1.0, %v9469
        %v9471 = vmul.f32 %v9468, %v9470
        %v9472 = vadd.f32 %v9468, %v9471
        %vm9473 = vweird.f32 %v9354
        %vm9474 = vweird.f32 %v9468
        %vm9475 = vmor %vm9473, %vm9474
        %v9476 = vsel %vm9475, %v9468, %v9472
        %v9477 = vand.u32 2147483647, %v9354
        %vm9478 = vcmp.eq.f32.partialorder %v9477, 8.507059e+37
        %v9479 = vand.u32 %v9354, 2147483648
        %v9480 = vor.u32 1.1754944e-38, %v9479
        %v9481 = vsel %vm9478, %v9480, %v9476
        %v9482 = vmul.f32 1.0, %v9481
        %v9483 = vrcp.pop %v9355
        %v9484 = vmul.f32 %v9355, %v9483
        %v9485 = vsub.f32 1.0, %v9484
        %v9486 = vmul.f32 %v9483, %v9485
        %v9487 = vadd.f32 %v9483, %v9486
        %vm9488 = vweird.f32 %v9355
        %vm9489 = vweird.f32 %v9483
        %vm9490 = vmor %vm9488, %vm9489
        %v9491 = vsel %vm9490, %v9483, %v9487
        %v9492 = vand.u32 2147483647, %v9355
        %vm9493 = vcmp.eq.f32.partialorder %v9492, 8.507059e+37
        %v9494 = vand.u32 %v9355, 2147483648
        %v9495 = vor.u32 1.1754944e-38, %v9494
        %v9496 = vsel %vm9493, %v9495, %v9491
        %v9497 = vmul.f32 1.0, %v9496
        %v9498 = vrcp.pop %v9356
        %v9499 = vmul.f32 %v9356, %v9498
        %v9500 = vsub.f32 1.0, %v9499
        %v9501 = vmul.f32 %v9498, %v9500
        %v9502 = vadd.f32 %v9498, %v9501
        %vm9503 = vweird.f32 %v9356
        %vm9504 = vweird.f32 %v9498
        %vm9505 = vmor %vm9503, %vm9504
        %v9506 = vsel %vm9505, %v9498, %v9502
        %v9507 = vand.u32 2147483647, %v9356
        %vm9508 = vcmp.eq.f32.partialorder %v9507, 8.507059e+37
        %v9509 = vand.u32 %v9356, 2147483648
        %v9510 = vor.u32 1.1754944e-38, %v9509
        %v9511 = vsel %vm9508, %v9510, %v9506
        %v9512 = vmul.f32 1.0, %v9511
        %v9513 = vrcp.pop %v9357
        %v9514 = vmul.f32 %v9357, %v9513
        %v9515 = vsub.f32 1.0, %v9514
        %v9516 = vmul.f32 %v9513, %v9515
        %v9517 = vadd.f32 %v9513, %v9516
        %vm9518 = vweird.f32 %v9357
        %vm9519 = vweird.f32 %v9513
        %vm9520 = vmor %vm9518, %vm9519
        %v9521 = vsel %vm9520, %v9513, %v9517
        %v9522 = vand.u32 2147483647, %v9357
        %vm9523 = vcmp.eq.f32.partialorder %v9522, 8.507059e+37
        %v9524 = vand.u32 %v9357, 2147483648
        %v9525 = vor.u32 1.1754944e-38, %v9524
        %v9526 = vsel %vm9523, %v9525, %v9521
        %v9527 = vmul.f32 1.0, %v9526
        %v9528 = vrcp.pop %v9358
        %v9529 = vmul.f32 %v9358, %v9528
        %v9530 = vsub.f32 1.0, %v9529
        %v9531 = vmul.f32 %v9528, %v9530
        %v9532 = vadd.f32 %v9528, %v9531
        %vm9533 = vweird.f32 %v9358
        %vm9534 = vweird.f32 %v9528
        %vm9535 = vmor %vm9533, %vm9534
        %v9536 = vsel %vm9535, %v9528, %v9532
        %v9537 = vand.u32 2147483647, %v9358
        %vm9538 = vcmp.eq.f32.partialorder %v9537, 8.507059e+37
        %v9539 = vand.u32 %v9358, 2147483648
        %v9540 = vor.u32 1.1754944e-38, %v9539
        %v9541 = vsel %vm9538, %v9540, %v9536
        %v9542 = vmul.f32 1.0, %v9541
        %v9543 = vrcp.pop %v9359
        %v9544 = vmul.f32 %v9359, %v9543
        %v9545 = vsub.f32 1.0, %v9544
        %v9546 = vmul.f32 %v9543, %v9545
        %v9547 = vadd.f32 %v9543, %v9546
        %vm9548 = vweird.f32 %v9359
        %vm9549 = vweird.f32 %v9543
        %vm9550 = vmor %vm9548, %vm9549
        %v9551 = vsel %vm9550, %v9543, %v9547
        %v9552 = vand.u32 2147483647, %v9359
        %vm9553 = vcmp.eq.f32.partialorder %v9552, 8.507059e+37
        %v9554 = vand.u32 %v9359, 2147483648
        %v9555 = vor.u32 1.1754944e-38, %v9554
        %v9556 = vsel %vm9553, %v9555, %v9551
        %v9557 = vmul.f32 1.0, %v9556
        %v9558 = vrcp.pop %v9360
        %v9559 = vmul.f32 %v9360, %v9558
        %v9560 = vsub.f32 1.0, %v9559
        %v9561 = vmul.f32 %v9558, %v9560
        %v9562 = vadd.f32 %v9558, %v9561
        %vm9563 = vweird.f32 %v9360
        %vm9564 = vweird.f32 %v9558
        %vm9565 = vmor %vm9563, %vm9564
        %v9566 = vsel %vm9565, %v9558, %v9562
        %v9567 = vand.u32 2147483647, %v9360
        %vm9568 = vcmp.eq.f32.partialorder %v9567, 8.507059e+37
        %v9569 = vand.u32 %v9360, 2147483648
        %v9570 = vor.u32 1.1754944e-38, %v9569
        %v9571 = vsel %vm9568, %v9570, %v9566
        %v9572 = vmul.f32 1.0, %v9571
        %v9573 = vrcp.pop %v9361
        %v9574 = vmul.f32 %v9361, %v9573
        %v9575 = vsub.f32 1.0, %v9574
        %v9576 = vmul.f32 %v9573, %v9575
        %v9577 = vadd.f32 %v9573, %v9576
        %vm9578 = vweird.f32 %v9361
        %vm9579 = vweird.f32 %v9573
        %vm9580 = vmor %vm9578, %vm9579
        %v9581 = vsel %vm9580, %v9573, %v9577
        %v9582 = vand.u32 2147483647, %v9361
        %vm9583 = vcmp.eq.f32.partialorder %v9582, 8.507059e+37
        %v9584 = vand.u32 %v9361, 2147483648
        %v9585 = vor.u32 1.1754944e-38, %v9584
        %v9586 = vsel %vm9583, %v9585, %v9581
        %v9587 = vmul.f32 1.0, %v9586
        %v9588 = vrcp.pop %v9362
        %v9589 = vmul.f32 %v9362, %v9588
        %v9590 = vsub.f32 1.0, %v9589
        %v9591 = vmul.f32 %v9588, %v9590
        %v9592 = vadd.f32 %v9588, %v9591
        %vm9593 = vweird.f32 %v9362
        %vm9594 = vweird.f32 %v9588
        %vm9595 = vmor %vm9593, %vm9594
        %v9596 = vsel %vm9595, %v9588, %v9592
        %v9597 = vand.u32 2147483647, %v9362
        %vm9598 = vcmp.eq.f32.partialorder %v9597, 8.507059e+37
        %v9599 = vand.u32 %v9362, 2147483648
        %v9600 = vor.u32 1.1754944e-38, %v9599
        %v9601 = vsel %vm9598, %v9600, %v9596
        %v9602 = vmul.f32 1.0, %v9601
        %v9603 = vmul.f32 %v9133, %v9377
        %v9604 = vmul.f32 %v9134, %v9392
        %v9605 = vmul.f32 %v9135, %v9407
        %v9606 = vmul.f32 %v9136, %v9422
        %v9607 = vmul.f32 %v9137, %v9437
        %v9608 = vmul.f32 %v9138, %v9452
        %v9609 = vmul.f32 %v9139, %v9467
        %v9610 = vmul.f32 %v9140, %v9482
        %v9611 = vmul.f32 %v9141, %v9497
        %v9612 = vmul.f32 %v9142, %v9512
        %v9613 = vmul.f32 %v9143, %v9527
        %v9614 = vmul.f32 %v9144, %v9542
        %v9615 = vmul.f32 %v9145, %v9557
        %v9616 = vmul.f32 %v9146, %v9572
        %v9617 = vmul.f32 %v9147, %v9587
        %v9618 = vmul.f32 %v9148, %v9602
        %9635 = vrot.lane.b32.xlu0 %v9603, 33
        %v9636 = vpop.permute.xlu0 %9635
        %9637 = vrot.lane.b32.xlu0 %v9604, 33
        %v9638 = vpop.permute.xlu0 %9637
        %9639 = vrot.lane.b32.xlu0 %v9605, 33
        %v9640 = vpop.permute.xlu0 %9639
        %9641 = vrot.lane.b32.xlu0 %v9606, 33
        %v9642 = vpop.permute.xlu0 %9641
        %9643 = vrot.lane.b32.xlu0 %v9607, 33
        %v9644 = vpop.permute.xlu0 %9643
        %9645 = vrot.lane.b32.xlu0 %v9608, 33
        %v9646 = vpop.permute.xlu0 %9645
        %9647 = vrot.lane.b32.xlu0 %v9609, 33
        %v9648 = vpop.permute.xlu0 %9647
        %9649 = vrot.lane.b32.xlu0 %v9610, 33
        %v9650 = vpop.permute.xlu0 %9649
        %9651 = vrot.lane.b32.xlu0 %v9611, 33
        %v9652 = vpop.permute.xlu0 %9651
        %9653 = vrot.lane.b32.xlu0 %v9612, 33
        %v9654 = vpop.permute.xlu0 %9653
        %9655 = vrot.lane.b32.xlu0 %v9613, 33
        %v9656 = vpop.permute.xlu0 %9655
        %9657 = vrot.lane.b32.xlu0 %v9614, 33
        %v9658 = vpop.permute.xlu0 %9657
        %9659 = vrot.lane.b32.xlu0 %v9615, 33
        %v9660 = vpop.permute.xlu0 %9659
        %9661 = vrot.lane.b32.xlu0 %v9616, 33
        %v9662 = vpop.permute.xlu0 %9661
        %9663 = vrot.lane.b32.xlu0 %v9617, 33
        %v9664 = vpop.permute.xlu0 %9663
        %9665 = vrot.lane.b32.xlu0 %v9618, 33
        %v9666 = vpop.permute.xlu0 %9665
        %vm9667 = vcmask 269312
        %v9668 = vsel %vm9667, %v9636, %v9638
        %v9669 = vsel %vm9667, %v9638, %v9640
        %v9670 = vsel %vm9667, %v9640, %v9642
        %v9671 = vsel %vm9667, %v9642, %v9644
        %v9672 = vsel %vm9667, %v9644, %v9646
        %v9673 = vsel %vm9667, %v9646, %v9648
        %v9674 = vsel %vm9667, %v9648, %v9650
        %v9675 = vsel %vm9667, %v9652, %v9654
        %v9676 = vsel %vm9667, %v9654, %v9656
        %v9677 = vsel %vm9667, %v9656, %v9658
        %v9678 = vsel %vm9667, %v9658, %v9660
        %v9679 = vsel %vm9667, %v9660, %v9662
        %v9680 = vsel %vm9667, %v9662, %v9664
        %v9681 = vsel %vm9667, %v9664, %v9666
        %v9698 = vsel %vm9667, 0.0, %v9636
        %v9699 = vsel %vm9667, 0.0, %v9652
        %v9700 = vmul.f32 %v9698, %v9267
        %v9701 = vmul.f32 %v9668, %v9268
        %v9702 = vmul.f32 %v9669, %v9269
        %v9703 = vmul.f32 %v9670, %v9270
        %v9704 = vmul.f32 %v9671, %v9271
        %v9705 = vmul.f32 %v9672, %v9272
        %v9706 = vmul.f32 %v9673, %v9273
        %v9707 = vmul.f32 %v9674, %v9274
        %v9708 = vmul.f32 %v9699, %v9267
        %v9709 = vmul.f32 %v9675, %v9268
        %v9710 = vmul.f32 %v9676, %v9269
        %v9711 = vmul.f32 %v9677, %v9270
        %v9712 = vmul.f32 %v9678, %v9271
        %v9713 = vmul.f32 %v9679, %v9272
        %v9714 = vmul.f32 %v9680, %v9273
        %v9715 = vmul.f32 %v9681, %v9274
        %9716 = vrot.lane.b32.xlu0 %v9603, 32
        %v9717 = vpop.permute.xlu0 %9716
        %9718 = vrot.lane.b32.xlu0 %v9604, 32
        %v9719 = vpop.permute.xlu0 %9718
        %9720 = vrot.lane.b32.xlu0 %v9605, 32
        %v9721 = vpop.permute.xlu0 %9720
        %9722 = vrot.lane.b32.xlu0 %v9606, 32
        %v9723 = vpop.permute.xlu0 %9722
        %9724 = vrot.lane.b32.xlu0 %v9607, 32
        %v9725 = vpop.permute.xlu0 %9724
        %9726 = vrot.lane.b32.xlu0 %v9608, 32
        %v9727 = vpop.permute.xlu0 %9726
        %9728 = vrot.lane.b32.xlu0 %v9609, 32
        %v9729 = vpop.permute.xlu0 %9728
        %9730 = vrot.lane.b32.xlu0 %v9610, 32
        %v9731 = vpop.permute.xlu0 %9730
        %9732 = vrot.lane.b32.xlu0 %v9611, 32
        %v9733 = vpop.permute.xlu0 %9732
        %9734 = vrot.lane.b32.xlu0 %v9612, 32
        %v9735 = vpop.permute.xlu0 %9734
        %9736 = vrot.lane.b32.xlu0 %v9613, 32
        %v9737 = vpop.permute.xlu0 %9736
        %9738 = vrot.lane.b32.xlu0 %v9614, 32
        %v9739 = vpop.permute.xlu0 %9738
        %9740 = vrot.lane.b32.xlu0 %v9615, 32
        %v9741 = vpop.permute.xlu0 %9740
        %9742 = vrot.lane.b32.xlu0 %v9616, 32
        %v9743 = vpop.permute.xlu0 %9742
        %9744 = vrot.lane.b32.xlu0 %v9617, 32
        %v9745 = vpop.permute.xlu0 %9744
        %9746 = vrot.lane.b32.xlu0 %v9618, 32
        %v9747 = vpop.permute.xlu0 %9746
        %v9748 = vsel %vm4011, %v9717, %v9719
        %v9749 = vsel %vm4011, %v9719, %v9721
        %v9750 = vsel %vm4011, %v9721, %v9723
        %v9751 = vsel %vm4011, %v9723, %v9725
        %v9752 = vsel %vm4011, %v9725, %v9727
        %v9753 = vsel %vm4011, %v9727, %v9729
        %v9754 = vsel %vm4011, %v9729, %v9731
        %v9755 = vsel %vm4011, %v9733, %v9735
        %v9756 = vsel %vm4011, %v9735, %v9737
        %v9757 = vsel %vm4011, %v9737, %v9739
        %v9758 = vsel %vm4011, %v9739, %v9741
        %v9759 = vsel %vm4011, %v9741, %v9743
        %v9760 = vsel %vm4011, %v9743, %v9745
        %v9761 = vsel %vm4011, %v9745, %v9747
        %v9778 = vsel %vm4011, 0.0, %v9717
        %v9779 = vsel %vm4011, 0.0, %v9733
        %9780 = vrot.lane.b32.xlu0 %v9603, 31
        %v9781 = vpop.permute.xlu0 %9780
        %9782 = vrot.lane.b32.xlu0 %v9604, 31
        %v9783 = vpop.permute.xlu0 %9782
        %9784 = vrot.lane.b32.xlu0 %v9605, 31
        %v9785 = vpop.permute.xlu0 %9784
        %9786 = vrot.lane.b32.xlu0 %v9606, 31
        %v9787 = vpop.permute.xlu0 %9786
        %9788 = vrot.lane.b32.xlu0 %v9607, 31
        %v9789 = vpop.permute.xlu0 %9788
        %9790 = vrot.lane.b32.xlu0 %v9608, 31
        %v9791 = vpop.permute.xlu0 %9790
        %9792 = vrot.lane.b32.xlu0 %v9609, 31
        %v9793 = vpop.permute.xlu0 %9792
        %9794 = vrot.lane.b32.xlu0 %v9610, 31
        %v9795 = vpop.permute.xlu0 %9794
        %9796 = vrot.lane.b32.xlu0 %v9611, 31
        %v9797 = vpop.permute.xlu0 %9796
        %9798 = vrot.lane.b32.xlu0 %v9612, 31
        %v9799 = vpop.permute.xlu0 %9798
        %9800 = vrot.lane.b32.xlu0 %v9613, 31
        %v9801 = vpop.permute.xlu0 %9800
        %9802 = vrot.lane.b32.xlu0 %v9614, 31
        %v9803 = vpop.permute.xlu0 %9802
        %9804 = vrot.lane.b32.xlu0 %v9615, 31
        %v9805 = vpop.permute.xlu0 %9804
        %9806 = vrot.lane.b32.xlu0 %v9616, 31
        %v9807 = vpop.permute.xlu0 %9806
        %9808 = vrot.lane.b32.xlu0 %v9617, 31
        %v9809 = vpop.permute.xlu0 %9808
        %9810 = vrot.lane.b32.xlu0 %v9618, 31
        %v9811 = vpop.permute.xlu0 %9810
        %vm9812 = vcmask 252928
        %v9813 = vsel %vm9812, %v9781, %v9783
        %v9814 = vsel %vm9812, %v9783, %v9785
        %v9815 = vsel %vm9812, %v9785, %v9787
        %v9816 = vsel %vm9812, %v9787, %v9789
        %v9817 = vsel %vm9812, %v9789, %v9791
        %v9818 = vsel %vm9812, %v9791, %v9793
        %v9819 = vsel %vm9812, %v9793, %v9795
        %v9820 = vsel %vm9812, %v9797, %v9799
        %v9821 = vsel %vm9812, %v9799, %v9801
        %v9822 = vsel %vm9812, %v9801, %v9803
        %v9823 = vsel %vm9812, %v9803, %v9805
        %v9824 = vsel %vm9812, %v9805, %v9807
        %v9825 = vsel %vm9812, %v9807, %v9809
        %v9826 = vsel %vm9812, %v9809, %v9811
        %v9843 = vsel %vm9812, 0.0, %v9781
        %v9844 = vsel %vm9812, 0.0, %v9797
        %v9845 = vmul.f32 %v9843, %v9291
        %v9846 = vmul.f32 %v9813, %v9292
        %v9847 = vmul.f32 %v9814, %v9293
        %v9848 = vmul.f32 %v9815, %v9294
        %v9849 = vmul.f32 %v9816, %v9295
        %v9850 = vmul.f32 %v9817, %v9296
        %v9851 = vmul.f32 %v9818, %v9297
        %v9852 = vmul.f32 %v9819, %v9298
        %v9853 = vmul.f32 %v9844, %v9291
        %v9854 = vmul.f32 %v9820, %v9292
        %v9855 = vmul.f32 %v9821, %v9293
        %v9856 = vmul.f32 %v9822, %v9294
        %v9857 = vmul.f32 %v9823, %v9295
        %v9858 = vmul.f32 %v9824, %v9296
        %v9859 = vmul.f32 %v9825, %v9297
        %v9860 = vmul.f32 %v9826, %v9298
        %9861 = vrot.lane.b32.xlu0 %v9603, 1
        %v9862 = vpop.permute.xlu0 %9861
        %9863 = vrot.lane.b32.xlu0 %v9604, 1
        %v9864 = vpop.permute.xlu0 %9863
        %9865 = vrot.lane.b32.xlu0 %v9605, 1
        %v9866 = vpop.permute.xlu0 %9865
        %9867 = vrot.lane.b32.xlu0 %v9606, 1
        %v9868 = vpop.permute.xlu0 %9867
        %9869 = vrot.lane.b32.xlu0 %v9607, 1
        %v9870 = vpop.permute.xlu0 %9869
        %9871 = vrot.lane.b32.xlu0 %v9608, 1
        %v9872 = vpop.permute.xlu0 %9871
        %9873 = vrot.lane.b32.xlu0 %v9609, 1
        %v9874 = vpop.permute.xlu0 %9873
        %9875 = vrot.lane.b32.xlu0 %v9610, 1
        %v9876 = vpop.permute.xlu0 %9875
        %9877 = vrot.lane.b32.xlu0 %v9611, 1
        %v9878 = vpop.permute.xlu0 %9877
        %9879 = vrot.lane.b32.xlu0 %v9612, 1
        %v9880 = vpop.permute.xlu0 %9879
        %9881 = vrot.lane.b32.xlu0 %v9613, 1
        %v9882 = vpop.permute.xlu0 %9881
        %9883 = vrot.lane.b32.xlu0 %v9614, 1
        %v9884 = vpop.permute.xlu0 %9883
        %9885 = vrot.lane.b32.xlu0 %v9615, 1
        %v9886 = vpop.permute.xlu0 %9885
        %9887 = vrot.lane.b32.xlu0 %v9616, 1
        %v9888 = vpop.permute.xlu0 %9887
        %9889 = vrot.lane.b32.xlu0 %v9617, 1
        %v9890 = vpop.permute.xlu0 %9889
        %9891 = vrot.lane.b32.xlu0 %v9618, 1
        %v9892 = vpop.permute.xlu0 %9891
        %v9893 = vsel %vm1192, %v9862, %v9864
        %v9894 = vsel %vm1192, %v9864, %v9866
        %v9895 = vsel %vm1192, %v9866, %v9868
        %v9896 = vsel %vm1192, %v9868, %v9870
        %v9897 = vsel %vm1192, %v9870, %v9872
        %v9898 = vsel %vm1192, %v9872, %v9874
        %v9899 = vsel %vm1192, %v9874, %v9876
        %v9900 = vsel %vm1192, %v9878, %v9880
        %v9901 = vsel %vm1192, %v9880, %v9882
        %v9902 = vsel %vm1192, %v9882, %v9884
        %v9903 = vsel %vm1192, %v9884, %v9886
        %v9904 = vsel %vm1192, %v9886, %v9888
        %v9905 = vsel %vm1192, %v9888, %v9890
        %v9906 = vsel %vm1192, %v9890, %v9892
        %v9923 = vsel %vm1192, 0.0, %v9862
        %v9924 = vsel %vm1192, 0.0, %v9878
        %v9925 = vmul.f32 %v9923, %v9267
        %v9926 = vmul.f32 %v9893, %v9268
        %v9927 = vmul.f32 %v9894, %v9269
        %v9928 = vmul.f32 %v9895, %v9270
        %v9929 = vmul.f32 %v9896, %v9271
        %v9930 = vmul.f32 %v9897, %v9272
        %v9931 = vmul.f32 %v9898, %v9273
        %v9932 = vmul.f32 %v9899, %v9274
        %v9933 = vmul.f32 %v9924, %v9267
        %v9934 = vmul.f32 %v9900, %v9268
        %v9935 = vmul.f32 %v9901, %v9269
        %v9936 = vmul.f32 %v9902, %v9270
        %v9937 = vmul.f32 %v9903, %v9271
        %v9938 = vmul.f32 %v9904, %v9272
        %v9939 = vmul.f32 %v9905, %v9273
        %v9940 = vmul.f32 %v9906, %v9274
        %9941 = vrot.lane.b32.xlu0 %v9603, 127
        %v9942 = vpop.permute.xlu0 %9941
        %9943 = vrot.lane.b32.xlu0 %v9604, 127
        %v9944 = vpop.permute.xlu0 %9943
        %9945 = vrot.lane.b32.xlu0 %v9605, 127
        %v9946 = vpop.permute.xlu0 %9945
        %9947 = vrot.lane.b32.xlu0 %v9606, 127
        %v9948 = vpop.permute.xlu0 %9947
        %9949 = vrot.lane.b32.xlu0 %v9607, 127
        %v9950 = vpop.permute.xlu0 %9949
        %9951 = vrot.lane.b32.xlu0 %v9608, 127
        %v9952 = vpop.permute.xlu0 %9951
        %9953 = vrot.lane.b32.xlu0 %v9609, 127
        %v9954 = vpop.permute.xlu0 %9953
        %9955 = vrot.lane.b32.xlu0 %v9610, 127
        %v9956 = vpop.permute.xlu0 %9955
        %9957 = vrot.lane.b32.xlu0 %v9611, 127
        %v9958 = vpop.permute.xlu0 %9957
        %9959 = vrot.lane.b32.xlu0 %v9612, 127
        %v9960 = vpop.permute.xlu0 %9959
        %9961 = vrot.lane.b32.xlu0 %v9613, 127
        %v9962 = vpop.permute.xlu0 %9961
        %9963 = vrot.lane.b32.xlu0 %v9614, 127
        %v9964 = vpop.permute.xlu0 %9963
        %9965 = vrot.lane.b32.xlu0 %v9615, 127
        %v9966 = vpop.permute.xlu0 %9965
        %9967 = vrot.lane.b32.xlu0 %v9616, 127
        %v9968 = vpop.permute.xlu0 %9967
        %9969 = vrot.lane.b32.xlu0 %v9617, 127
        %v9970 = vpop.permute.xlu0 %9969
        %9971 = vrot.lane.b32.xlu0 %v9618, 127
        %v9972 = vpop.permute.xlu0 %9971
        %v9973 = vsel %vm3773, %v9942, %v9944
        %v9974 = vsel %vm3773, %v9944, %v9946
        %v9975 = vsel %vm3773, %v9946, %v9948
        %v9976 = vsel %vm3773, %v9948, %v9950
        %v9977 = vsel %vm3773, %v9950, %v9952
        %v9978 = vsel %vm3773, %v9952, %v9954
        %v9979 = vsel %vm3773, %v9954, %v9956
        %v9980 = vsel %vm3773, %v9958, %v9960
        %v9981 = vsel %vm3773, %v9960, %v9962
        %v9982 = vsel %vm3773, %v9962, %v9964
        %v9983 = vsel %vm3773, %v9964, %v9966
        %v9984 = vsel %vm3773, %v9966, %v9968
        %v9985 = vsel %vm3773, %v9968, %v9970
        %v9986 = vsel %vm3773, %v9970, %v9972
        %v10003 = vsel %vm3773, %v9956, 0.0
        %v10004 = vsel %vm3773, %v9972, 0.0
        %v10005 = vmul.f32 %v9973, %v9291
        %v10006 = vmul.f32 %v9974, %v9292
        %v10007 = vmul.f32 %v9975, %v9293
        %v10008 = vmul.f32 %v9976, %v9294
        %v10009 = vmul.f32 %v9977, %v9295
        %v10010 = vmul.f32 %v9978, %v9296
        %v10011 = vmul.f32 %v9979, %v9297
        %v10012 = vmul.f32 %v10003, %v9298
        %v10013 = vmul.f32 %v9980, %v9291
        %v10014 = vmul.f32 %v9981, %v9292
        %v10015 = vmul.f32 %v9982, %v9293
        %v10016 = vmul.f32 %v9983, %v9294
        %v10017 = vmul.f32 %v9984, %v9295
        %v10018 = vmul.f32 %v9985, %v9296
        %v10019 = vmul.f32 %v9986, %v9297
        %v10020 = vmul.f32 %v10004, %v9298
        %10021 = vrot.lane.b32.xlu0 %v9603, 97
        %v10022 = vpop.permute.xlu0 %10021
        %10023 = vrot.lane.b32.xlu0 %v9604, 97
        %v10024 = vpop.permute.xlu0 %10023
        %10025 = vrot.lane.b32.xlu0 %v9605, 97
        %v10026 = vpop.permute.xlu0 %10025
        %10027 = vrot.lane.b32.xlu0 %v9606, 97
        %v10028 = vpop.permute.xlu0 %10027
        %10029 = vrot.lane.b32.xlu0 %v9607, 97
        %v10030 = vpop.permute.xlu0 %10029
        %10031 = vrot.lane.b32.xlu0 %v9608, 97
        %v10032 = vpop.permute.xlu0 %10031
        %10033 = vrot.lane.b32.xlu0 %v9609, 97
        %v10034 = vpop.permute.xlu0 %10033
        %10035 = vrot.lane.b32.xlu0 %v9610, 97
        %v10036 = vpop.permute.xlu0 %10035
        %10037 = vrot.lane.b32.xlu0 %v9611, 97
        %v10038 = vpop.permute.xlu0 %10037
        %10039 = vrot.lane.b32.xlu0 %v9612, 97
        %v10040 = vpop.permute.xlu0 %10039
        %10041 = vrot.lane.b32.xlu0 %v9613, 97
        %v10042 = vpop.permute.xlu0 %10041
        %10043 = vrot.lane.b32.xlu0 %v9614, 97
        %v10044 = vpop.permute.xlu0 %10043
        %10045 = vrot.lane.b32.xlu0 %v9615, 97
        %v10046 = vpop.permute.xlu0 %10045
        %10047 = vrot.lane.b32.xlu0 %v9616, 97
        %v10048 = vpop.permute.xlu0 %10047
        %10049 = vrot.lane.b32.xlu0 %v9617, 97
        %v10050 = vpop.permute.xlu0 %10049
        %10051 = vrot.lane.b32.xlu0 %v9618, 97
        %v10052 = vpop.permute.xlu0 %10051
        %vm10053 = vcmask 793600
        %v10054 = vsel %vm10053, %v10022, %v10024
        %v10055 = vsel %vm10053, %v10024, %v10026
        %v10056 = vsel %vm10053, %v10026, %v10028
        %v10057 = vsel %vm10053, %v10028, %v10030
        %v10058 = vsel %vm10053, %v10030, %v10032
        %v10059 = vsel %vm10053, %v10032, %v10034
        %v10060 = vsel %vm10053, %v10034, %v10036
        %v10061 = vsel %vm10053, %v10038, %v10040
        %v10062 = vsel %vm10053, %v10040, %v10042
        %v10063 = vsel %vm10053, %v10042, %v10044
        %v10064 = vsel %vm10053, %v10044, %v10046
        %v10065 = vsel %vm10053, %v10046, %v10048
        %v10066 = vsel %vm10053, %v10048, %v10050
        %v10067 = vsel %vm10053, %v10050, %v10052
        %v10084 = vsel %vm10053, %v10036, 0.0
        %v10085 = vsel %vm10053, %v10052, 0.0
        %v10086 = vmul.f32 %v10054, %v9267
        %v10087 = vmul.f32 %v10055, %v9268
        %v10088 = vmul.f32 %v10056, %v9269
        %v10089 = vmul.f32 %v10057, %v9270
        %v10090 = vmul.f32 %v10058, %v9271
        %v10091 = vmul.f32 %v10059, %v9272
        %v10092 = vmul.f32 %v10060, %v9273
        %v10093 = vmul.f32 %v10084, %v9274
        %v10094 = vmul.f32 %v10061, %v9267
        %v10095 = vmul.f32 %v10062, %v9268
        %v10096 = vmul.f32 %v10063, %v9269
        %v10097 = vmul.f32 %v10064, %v9270
        %v10098 = vmul.f32 %v10065, %v9271
        %v10099 = vmul.f32 %v10066, %v9272
        %v10100 = vmul.f32 %v10067, %v9273
        %v10101 = vmul.f32 %v10085, %v9274
        %10102 = vrot.lane.b32.xlu0 %v9603, 96
        %v10103 = vpop.permute.xlu0 %10102
        %10104 = vrot.lane.b32.xlu0 %v9604, 96
        %v10105 = vpop.permute.xlu0 %10104
        %10106 = vrot.lane.b32.xlu0 %v9605, 96
        %v10107 = vpop.permute.xlu0 %10106
        %10108 = vrot.lane.b32.xlu0 %v9606, 96
        %v10109 = vpop.permute.xlu0 %10108
        %10110 = vrot.lane.b32.xlu0 %v9607, 96
        %v10111 = vpop.permute.xlu0 %10110
        %10112 = vrot.lane.b32.xlu0 %v9608, 96
        %v10113 = vpop.permute.xlu0 %10112
        %10114 = vrot.lane.b32.xlu0 %v9609, 96
        %v10115 = vpop.permute.xlu0 %10114
        %10116 = vrot.lane.b32.xlu0 %v9610, 96
        %v10117 = vpop.permute.xlu0 %10116
        %10118 = vrot.lane.b32.xlu0 %v9611, 96
        %v10119 = vpop.permute.xlu0 %10118
        %10120 = vrot.lane.b32.xlu0 %v9612, 96
        %v10121 = vpop.permute.xlu0 %10120
        %10122 = vrot.lane.b32.xlu0 %v9613, 96
        %v10123 = vpop.permute.xlu0 %10122
        %10124 = vrot.lane.b32.xlu0 %v9614, 96
        %v10125 = vpop.permute.xlu0 %10124
        %10126 = vrot.lane.b32.xlu0 %v9615, 96
        %v10127 = vpop.permute.xlu0 %10126
        %10128 = vrot.lane.b32.xlu0 %v9616, 96
        %v10129 = vpop.permute.xlu0 %10128
        %10130 = vrot.lane.b32.xlu0 %v9617, 96
        %v10131 = vpop.permute.xlu0 %10130
        %10132 = vrot.lane.b32.xlu0 %v9618, 96
        %v10133 = vpop.permute.xlu0 %10132
        %vm10134 = vcmask 785408
        %v10135 = vsel %vm10134, %v10103, %v10105
        %v10136 = vsel %vm10134, %v10105, %v10107
        %v10137 = vsel %vm10134, %v10107, %v10109
        %v10138 = vsel %vm10134, %v10109, %v10111
        %v10139 = vsel %vm10134, %v10111, %v10113
        %v10140 = vsel %vm10134, %v10113, %v10115
        %v10141 = vsel %vm10134, %v10115, %v10117
        %v10142 = vsel %vm10134, %v10119, %v10121
        %v10143 = vsel %vm10134, %v10121, %v10123
        %v10144 = vsel %vm10134, %v10123, %v10125
        %v10145 = vsel %vm10134, %v10125, %v10127
        %v10146 = vsel %vm10134, %v10127, %v10129
        %v10147 = vsel %vm10134, %v10129, %v10131
        %v10148 = vsel %vm10134, %v10131, %v10133
        %v10165 = vsel %vm10134, %v10117, 0.0
        %v10166 = vsel %vm10134, %v10133, 0.0
        %10167 = vrot.lane.b32.xlu0 %v9603, 95
        %v10168 = vpop.permute.xlu0 %10167
        %10169 = vrot.lane.b32.xlu0 %v9604, 95
        %v10170 = vpop.permute.xlu0 %10169
        %10171 = vrot.lane.b32.xlu0 %v9605, 95
        %v10172 = vpop.permute.xlu0 %10171
        %10173 = vrot.lane.b32.xlu0 %v9606, 95
        %v10174 = vpop.permute.xlu0 %10173
        %10175 = vrot.lane.b32.xlu0 %v9607, 95
        %v10176 = vpop.permute.xlu0 %10175
        %10177 = vrot.lane.b32.xlu0 %v9608, 95
        %v10178 = vpop.permute.xlu0 %10177
        %10179 = vrot.lane.b32.xlu0 %v9609, 95
        %v10180 = vpop.permute.xlu0 %10179
        %10181 = vrot.lane.b32.xlu0 %v9610, 95
        %v10182 = vpop.permute.xlu0 %10181
        %10183 = vrot.lane.b32.xlu0 %v9611, 95
        %v10184 = vpop.permute.xlu0 %10183
        %10185 = vrot.lane.b32.xlu0 %v9612, 95
        %v10186 = vpop.permute.xlu0 %10185
        %10187 = vrot.lane.b32.xlu0 %v9613, 95
        %v10188 = vpop.permute.xlu0 %10187
        %10189 = vrot.lane.b32.xlu0 %v9614, 95
        %v10190 = vpop.permute.xlu0 %10189
        %10191 = vrot.lane.b32.xlu0 %v9615, 95
        %v10192 = vpop.permute.xlu0 %10191
        %10193 = vrot.lane.b32.xlu0 %v9616, 95
        %v10194 = vpop.permute.xlu0 %10193
        %10195 = vrot.lane.b32.xlu0 %v9617, 95
        %v10196 = vpop.permute.xlu0 %10195
        %10197 = vrot.lane.b32.xlu0 %v9618, 95
        %v10198 = vpop.permute.xlu0 %10197
        %vm10199 = vcmask 777216
        %v10200 = vsel %vm10199, %v10168, %v10170
        %v10201 = vsel %vm10199, %v10170, %v10172
        %v10202 = vsel %vm10199, %v10172, %v10174
        %v10203 = vsel %vm10199, %v10174, %v10176
        %v10204 = vsel %vm10199, %v10176, %v10178
        %v10205 = vsel %vm10199, %v10178, %v10180
        %v10206 = vsel %vm10199, %v10180, %v10182
        %v10207 = vsel %vm10199, %v10184, %v10186
        %v10208 = vsel %vm10199, %v10186, %v10188
        %v10209 = vsel %vm10199, %v10188, %v10190
        %v10210 = vsel %vm10199, %v10190, %v10192
        %v10211 = vsel %vm10199, %v10192, %v10194
        %v10212 = vsel %vm10199, %v10194, %v10196
        %v10213 = vsel %vm10199, %v10196, %v10198
        %v10230 = vsel %vm10199, %v10182, 0.0
        %v10231 = vsel %vm10199, %v10198, 0.0
        %v10232 = vmul.f32 %v10200, %v9291
        %v10233 = vmul.f32 %v10201, %v9292
        %v10234 = vmul.f32 %v10202, %v9293
        %v10235 = vmul.f32 %v10203, %v9294
        %v10236 = vmul.f32 %v10204, %v9295
        %v10237 = vmul.f32 %v10205, %v9296
        %v10238 = vmul.f32 %v10206, %v9297
        %v10239 = vmul.f32 %v10230, %v9298
        %v10240 = vmul.f32 %v10207, %v9291
        %v10241 = vmul.f32 %v10208, %v9292
        %v10242 = vmul.f32 %v10209, %v9293
        %v10243 = vmul.f32 %v10210, %v9294
        %v10244 = vmul.f32 %v10211, %v9295
        %v10245 = vmul.f32 %v10212, %v9296
        %v10246 = vmul.f32 %v10213, %v9297
        %v10247 = vmul.f32 %v10231, %v9298
        %v10248 = vpack.c.bf16 %v9708, %v9700
        %v10249 = vpack.c.bf16 %v9709, %v9701
        %v10250 = vpack.c.bf16 %v9710, %v9702
        %v10251 = vpack.c.bf16 %v9711, %v9703
        %v10252 = vpack.c.bf16 %v9712, %v9704
        %v10253 = vpack.c.bf16 %v9713, %v9705
        %v10254 = vpack.c.bf16 %v9714, %v9706
        %v10255 = vpack.c.bf16 %v9715, %v9707
        %v10256 = vpack.c.bf16 %v9779, %v9778
        %v10257 = vpack.c.bf16 %v9755, %v9748
        %v10258 = vpack.c.bf16 %v9756, %v9749
        %v10259 = vpack.c.bf16 %v9757, %v9750
        %v10260 = vpack.c.bf16 %v9758, %v9751
        %v10261 = vpack.c.bf16 %v9759, %v9752
        %v10262 = vpack.c.bf16 %v9760, %v9753
        %v10263 = vpack.c.bf16 %v9761, %v9754
        %v10264 = vpack.c.bf16 %v9853, %v9845
        %v10265 = vpack.c.bf16 %v9854, %v9846
        %v10266 = vpack.c.bf16 %v9855, %v9847
        %v10267 = vpack.c.bf16 %v9856, %v9848
        %v10268 = vpack.c.bf16 %v9857, %v9849
        %v10269 = vpack.c.bf16 %v9858, %v9850
        %v10270 = vpack.c.bf16 %v9859, %v9851
        %v10271 = vpack.c.bf16 %v9860, %v9852
        %v10272 = vpack.c.bf16 %v9933, %v9925
        %v10273 = vpack.c.bf16 %v9934, %v9926
        %v10274 = vpack.c.bf16 %v9935, %v9927
        %v10275 = vpack.c.bf16 %v9936, %v9928
        %v10276 = vpack.c.bf16 %v9937, %v9929
        %v10277 = vpack.c.bf16 %v9938, %v9930
        %v10278 = vpack.c.bf16 %v9939, %v9931
        %v10279 = vpack.c.bf16 %v9940, %v9932
        %v10280 = vpack.c.bf16 %v9611, %v9603
        %v10281 = vpack.c.bf16 %v9612, %v9604
        %v10282 = vpack.c.bf16 %v9613, %v9605
        %v10283 = vpack.c.bf16 %v9614, %v9606
        %v10284 = vpack.c.bf16 %v9615, %v9607
        %v10285 = vpack.c.bf16 %v9616, %v9608
        %v10286 = vpack.c.bf16 %v9617, %v9609
        %v10287 = vpack.c.bf16 %v9618, %v9610
        %v10288 = vpack.c.bf16 %v10013, %v10005
        %v10289 = vpack.c.bf16 %v10014, %v10006
        %v10290 = vpack.c.bf16 %v10015, %v10007
        %v10291 = vpack.c.bf16 %v10016, %v10008
        %v10292 = vpack.c.bf16 %v10017, %v10009
        %v10293 = vpack.c.bf16 %v10018, %v10010
        %v10294 = vpack.c.bf16 %v10019, %v10011
        %v10295 = vpack.c.bf16 %v10020, %v10012
        %v10296 = vpack.c.bf16 %v10094, %v10086
        %v10297 = vpack.c.bf16 %v10095, %v10087
        %v10298 = vpack.c.bf16 %v10096, %v10088
        %v10299 = vpack.c.bf16 %v10097, %v10089
        %v10300 = vpack.c.bf16 %v10098, %v10090
        %v10301 = vpack.c.bf16 %v10099, %v10091
        %v10302 = vpack.c.bf16 %v10100, %v10092
        %v10303 = vpack.c.bf16 %v10101, %v10093
        %v10304 = vpack.c.bf16 %v10142, %v10135
        %v10305 = vpack.c.bf16 %v10143, %v10136
        %v10306 = vpack.c.bf16 %v10144, %v10137
        %v10307 = vpack.c.bf16 %v10145, %v10138
        %v10308 = vpack.c.bf16 %v10146, %v10139
        %v10309 = vpack.c.bf16 %v10147, %v10140
        %v10310 = vpack.c.bf16 %v10148, %v10141
        %v10311 = vpack.c.bf16 %v10166, %v10165
        %v10312 = vpack.c.bf16 %v10240, %v10232
        %v10313 = vpack.c.bf16 %v10241, %v10233
        %v10314 = vpack.c.bf16 %v10242, %v10234
        %v10315 = vpack.c.bf16 %v10243, %v10235
        %v10316 = vpack.c.bf16 %v10244, %v10236
        %v10317 = vpack.c.bf16 %v10245, %v10237
        %v10318 = vpack.c.bf16 %v10246, %v10238
        %v10319 = vpack.c.bf16 %v10247, %v10239
        %v10320 = vld [vmem:[#allocation12] sm:$0xf]
        %10322 = vst [vmem:[#allocation1] ss:$4 sm:$0xff] %v10320
        %v10323 = vld.sshfl [vmem:[#allocation1] sm:$0xff pattern:$0x73625140]
        %v10324 = vld.sshfl [vmem:[#allocation1 + $0x8] sm:$0xff pattern:$0x73625140]
        %v10326 = vsel %vm3659, %v10324, 0
        %10328 = vmatpush.bf16.msra.mxu0 %v10304
        %10329 = vmatpush.bf16.msra.mxu0 %v10296
        %10330 = vmatpush.bf16.msra.mxu0 %v10288
        %10331 = vmatpush.bf16.msra.mxu0 %v10280
        %10332 = vmatpush.bf16.msra.mxu0 %v10272
        %10333 = vmatpush.bf16.msra.mxu0 %v10264
        %10334 = vmatpush.bf16.msra.mxu0 %v10256
        %10335 = vmatpush.bf16.msra.mxu0 %v10248
        %10336 = vmatmul.bf16.gmra.mxu0 %v10323
        %v10337 = vpop.f32.mrf.mxu0
        %v10338 = vadd.f32 0.0, %v10337
        %v10339 = vpop.f32.mrf.mxu0
        %10340 = vdwg.mxu0
        %10341 = vmatpush.bf16.msra.mxu0 0
        %10342 = vmatpush.bf16.msra.mxu0 0
        %10343 = vmatpush.bf16.msra.mxu0 0
        %10344 = vmatpush.bf16.msra.mxu0 0
        %10345 = vmatpush.bf16.msra.mxu0 0
        %10346 = vmatpush.bf16.msra.mxu0 0
        %10347 = vmatpush.bf16.msra.mxu0 0
        %10348 = vmatpush.bf16.msra.mxu0 %v10312
        %10349 = vmatmul.bf16.gmra.mxu0 %v10326
        %v10350 = vpop.f32.mrf.mxu0
        %v10351 = vadd.f32 %v10338, %v10350
        %v10352 = vpop.f32.mrf.mxu0
        %10353 = vdwg.mxu0
        %10354 = vmatpush.bf16.msra.mxu0 %v10305
        %10355 = vmatpush.bf16.msra.mxu0 %v10297
        %10356 = vmatpush.bf16.msra.mxu0 %v10289
        %10357 = vmatpush.bf16.msra.mxu0 %v10281
        %10358 = vmatpush.bf16.msra.mxu0 %v10273
        %10359 = vmatpush.bf16.msra.mxu0 %v10265
        %10360 = vmatpush.bf16.msra.mxu0 %v10257
        %10361 = vmatpush.bf16.msra.mxu0 %v10249
        %10362 = vmatmul.bf16.gmra.mxu0 %v10323
        %v10363 = vpop.f32.mrf.mxu0
        %v10364 = vadd.f32 0.0, %v10363
        %v10365 = vpop.f32.mrf.mxu0
        %10366 = vdwg.mxu0
        %10367 = vmatpush.bf16.msra.mxu0 0
        %10368 = vmatpush.bf16.msra.mxu0 0
        %10369 = vmatpush.bf16.msra.mxu0 0
        %10370 = vmatpush.bf16.msra.mxu0 0
        %10371 = vmatpush.bf16.msra.mxu0 0
        %10372 = vmatpush.bf16.msra.mxu0 0
        %10373 = vmatpush.bf16.msra.mxu0 0
        %10374 = vmatpush.bf16.msra.mxu0 %v10313
        %10375 = vmatmul.bf16.gmra.mxu0 %v10326
        %v10376 = vpop.f32.mrf.mxu0
        %v10377 = vadd.f32 %v10364, %v10376
        %v10378 = vpop.f32.mrf.mxu0
        %10379 = vdwg.mxu0
        %10380 = vmatpush.bf16.msra.mxu0 %v10306
        %10381 = vmatpush.bf16.msra.mxu0 %v10298
        %10382 = vmatpush.bf16.msra.mxu0 %v10290
        %10383 = vmatpush.bf16.msra.mxu0 %v10282
        %10384 = vmatpush.bf16.msra.mxu0 %v10274
        %10385 = vmatpush.bf16.msra.mxu0 %v10266
        %10386 = vmatpush.bf16.msra.mxu0 %v10258
        %10387 = vmatpush.bf16.msra.mxu0 %v10250
        %10388 = vmatmul.bf16.gmra.mxu0 %v10323
        %v10389 = vpop.f32.mrf.mxu0
        %v10390 = vadd.f32 0.0, %v10389
        %v10391 = vpop.f32.mrf.mxu0
        %10392 = vdwg.mxu0
        %10393 = vmatpush.bf16.msra.mxu0 0
        %10394 = vmatpush.bf16.msra.mxu0 0
        %10395 = vmatpush.bf16.msra.mxu0 0
        %10396 = vmatpush.bf16.msra.mxu0 0
        %10397 = vmatpush.bf16.msra.mxu0 0
        %10398 = vmatpush.bf16.msra.mxu0 0
        %10399 = vmatpush.bf16.msra.mxu0 0
        %10400 = vmatpush.bf16.msra.mxu0 %v10314
        %10401 = vmatmul.bf16.gmra.mxu0 %v10326
        %v10402 = vpop.f32.mrf.mxu0
        %v10403 = vadd.f32 %v10390, %v10402
        %v10404 = vpop.f32.mrf.mxu0
        %10405 = vdwg.mxu0
        %10406 = vmatpush.bf16.msra.mxu0 %v10307
        %10407 = vmatpush.bf16.msra.mxu0 %v10299
        %10408 = vmatpush.bf16.msra.mxu0 %v10291
        %10409 = vmatpush.bf16.msra.mxu0 %v10283
        %10410 = vmatpush.bf16.msra.mxu0 %v10275
        %10411 = vmatpush.bf16.msra.mxu0 %v10267
        %10412 = vmatpush.bf16.msra.mxu0 %v10259
        %10413 = vmatpush.bf16.msra.mxu0 %v10251
        %10414 = vmatmul.bf16.gmra.mxu0 %v10323
        %v10415 = vpop.f32.mrf.mxu0
        %v10416 = vadd.f32 0.0, %v10415
        %v10417 = vpop.f32.mrf.mxu0
        %10418 = vdwg.mxu0
        %10419 = vmatpush.bf16.msra.mxu0 0
        %10420 = vmatpush.bf16.msra.mxu0 0
        %10421 = vmatpush.bf16.msra.mxu0 0
        %10422 = vmatpush.bf16.msra.mxu0 0
        %10423 = vmatpush.bf16.msra.mxu0 0
        %10424 = vmatpush.bf16.msra.mxu0 0
        %10425 = vmatpush.bf16.msra.mxu0 0
        %10426 = vmatpush.bf16.msra.mxu0 %v10315
        %10427 = vmatmul.bf16.gmra.mxu0 %v10326
        %v10428 = vpop.f32.mrf.mxu0
        %v10429 = vadd.f32 %v10416, %v10428
        %v10430 = vpop.f32.mrf.mxu0
        %10431 = vdwg.mxu0
        %10432 = vmatpush.bf16.msra.mxu0 %v10308
        %10433 = vmatpush.bf16.msra.mxu0 %v10300
        %10434 = vmatpush.bf16.msra.mxu0 %v10292
        %10435 = vmatpush.bf16.msra.mxu0 %v10284
        %10436 = vmatpush.bf16.msra.mxu0 %v10276
        %10437 = vmatpush.bf16.msra.mxu0 %v10268
        %10438 = vmatpush.bf16.msra.mxu0 %v10260
        %10439 = vmatpush.bf16.msra.mxu0 %v10252
        %10440 = vmatmul.bf16.gmra.mxu0 %v10323
        %v10441 = vpop.f32.mrf.mxu0
        %v10442 = vadd.f32 0.0, %v10441
        %v10443 = vpop.f32.mrf.mxu0
        %10444 = vdwg.mxu0
        %10445 = vmatpush.bf16.msra.mxu0 0
        %10446 = vmatpush.bf16.msra.mxu0 0
        %10447 = vmatpush.bf16.msra.mxu0 0
        %10448 = vmatpush.bf16.msra.mxu0 0
        %10449 = vmatpush.bf16.msra.mxu0 0
        %10450 = vmatpush.bf16.msra.mxu0 0
        %10451 = vmatpush.bf16.msra.mxu0 0
        %10452 = vmatpush.bf16.msra.mxu0 %v10316
        %10453 = vmatmul.bf16.gmra.mxu0 %v10326
        %v10454 = vpop.f32.mrf.mxu0
        %v10455 = vadd.f32 %v10442, %v10454
        %v10456 = vpop.f32.mrf.mxu0
        %10457 = vdwg.mxu0
        %10458 = vmatpush.bf16.msra.mxu0 %v10309
        %10459 = vmatpush.bf16.msra.mxu0 %v10301
        %10460 = vmatpush.bf16.msra.mxu0 %v10293
        %10461 = vmatpush.bf16.msra.mxu0 %v10285
        %10462 = vmatpush.bf16.msra.mxu0 %v10277
        %10463 = vmatpush.bf16.msra.mxu0 %v10269
        %10464 = vmatpush.bf16.msra.mxu0 %v10261
        %10465 = vmatpush.bf16.msra.mxu0 %v10253
        %10466 = vmatmul.bf16.gmra.mxu0 %v10323
        %v10467 = vpop.f32.mrf.mxu0
        %v10468 = vadd.f32 0.0, %v10467
        %v10469 = vpop.f32.mrf.mxu0
        %10470 = vdwg.mxu0
        %10471 = vmatpush.bf16.msra.mxu0 0
        %10472 = vmatpush.bf16.msra.mxu0 0
        %10473 = vmatpush.bf16.msra.mxu0 0
        %10474 = vmatpush.bf16.msra.mxu0 0
        %10475 = vmatpush.bf16.msra.mxu0 0
        %10476 = vmatpush.bf16.msra.mxu0 0
        %10477 = vmatpush.bf16.msra.mxu0 0
        %10478 = vmatpush.bf16.msra.mxu0 %v10317
        %10479 = vmatmul.bf16.gmra.mxu0 %v10326
        %v10480 = vpop.f32.mrf.mxu0
        %v10481 = vadd.f32 %v10468, %v10480
        %v10482 = vpop.f32.mrf.mxu0
        %10483 = vdwg.mxu0
        %10484 = vmatpush.bf16.msra.mxu0 %v10310
        %10485 = vmatpush.bf16.msra.mxu0 %v10302
        %10486 = vmatpush.bf16.msra.mxu0 %v10294
        %10487 = vmatpush.bf16.msra.mxu0 %v10286
        %10488 = vmatpush.bf16.msra.mxu0 %v10278
        %10489 = vmatpush.bf16.msra.mxu0 %v10270
        %10490 = vmatpush.bf16.msra.mxu0 %v10262
        %10491 = vmatpush.bf16.msra.mxu0 %v10254
        %10492 = vmatmul.bf16.gmra.mxu0 %v10323
        %v10493 = vpop.f32.mrf.mxu0
        %v10494 = vadd.f32 0.0, %v10493
        %v10495 = vpop.f32.mrf.mxu0
        %10496 = vdwg.mxu0
        %10497 = vmatpush.bf16.msra.mxu0 0
        %10498 = vmatpush.bf16.msra.mxu0 0
        %10499 = vmatpush.bf16.msra.mxu0 0
        %10500 = vmatpush.bf16.msra.mxu0 0
        %10501 = vmatpush.bf16.msra.mxu0 0
        %10502 = vmatpush.bf16.msra.mxu0 0
        %10503 = vmatpush.bf16.msra.mxu0 0
        %10504 = vmatpush.bf16.msra.mxu0 %v10318
        %10505 = vmatmul.bf16.gmra.mxu0 %v10326
        %v10506 = vpop.f32.mrf.mxu0
        %v10507 = vadd.f32 %v10494, %v10506
        %v10508 = vpop.f32.mrf.mxu0
        %10509 = vdwg.mxu0
        %10510 = vmatpush.bf16.msra.mxu0 %v10311
        %10511 = vmatpush.bf16.msra.mxu0 %v10303
        %10512 = vmatpush.bf16.msra.mxu0 %v10295
        %10513 = vmatpush.bf16.msra.mxu0 %v10287
        %10514 = vmatpush.bf16.msra.mxu0 %v10279
        %10515 = vmatpush.bf16.msra.mxu0 %v10271
        %10516 = vmatpush.bf16.msra.mxu0 %v10263
        %10517 = vmatpush.bf16.msra.mxu0 %v10255
        %10518 = vmatmul.bf16.gmra.mxu0 %v10323
        %v10519 = vpop.f32.mrf.mxu0
        %v10520 = vadd.f32 0.0, %v10519
        %v10521 = vpop.f32.mrf.mxu0
        %10522 = vdwg.mxu0
        %10523 = vmatpush.bf16.msra.mxu0 0
        %10524 = vmatpush.bf16.msra.mxu0 0
        %10525 = vmatpush.bf16.msra.mxu0 0
        %10526 = vmatpush.bf16.msra.mxu0 0
        %10527 = vmatpush.bf16.msra.mxu0 0
        %10528 = vmatpush.bf16.msra.mxu0 0
        %10529 = vmatpush.bf16.msra.mxu0 0
        %10530 = vmatpush.bf16.msra.mxu0 %v10319
        %10531 = vmatmul.bf16.gmra.mxu0 %v10326
        %v10532 = vpop.f32.mrf.mxu0
        %v10533 = vadd.f32 %v10520, %v10532
        %v10534 = vpop.f32.mrf.mxu0
        %10535 = vdwg.mxu0
        %v10544 = vrot.slane %v10377, 4
        %v10545 = vrot.slane %v10429, 4
        %v10546 = vrot.slane %v10481, 4
        %v10547 = vrot.slane %v10533, 4
        %v10548 = vsel %vm833, %v10351, %v10544
        %v10549 = vsel %vm833, %v10403, %v10545
        %v10550 = vsel %vm833, %v10455, %v10546
        %v10551 = vsel %vm833, %v10507, %v10547
        %10556 = vst [vmem:[%s740] sm:$0x77] %v10548
        %10557 = vst [vmem:[%s740 + $0x8] sm:$0x77] %v10549
        %10558 = vst [vmem:[%s740 + $0x10] sm:$0x77] %v10550
        %10559 = vst [vmem:[%s740 + $0x18] sm:$0x77] %v10551
        %p10560 = scmp.lt.s32.totalorder %s35, 1
        %s10561 = scalar_select %p10560, %s35, 1
        %s10562 = smul.addr %s10561, 8
        %s10563 = smul.addr %s10562, 4
        %s10564 = scalar_lea.vmem %s20, %s10563
        // Predicated region
        $region129: #{decoder_forward.1} parent=99 // pred_check
          %p10565 = pneg %p478
        $region130: #{decoder_forward.1} parent=99 // pred_check_branch
          %10567 = sbr.rel (%p10565) target = $region132
        $region131: #{decoder_forward.1} parent=99 // pred_region
          _
        $region132: #{decoder_forward.1} parent=99 // pred_fallthru
          _
      $region100: #{decoder_forward.1} parent=5 // pred_fallthru
        _
      %p10568 = scmp.le.s32.totalorder 2, %s30
      // Predicated region
      $region133: #{decoder_forward.1} parent=5 // pred_check
        %p10569 = pneg %p10568
      $region134: #{decoder_forward.1} parent=5 // pred_check_branch
        %10571 = sbr.rel (%p10569) target = $region136
      $region135: #{decoder_forward.1} parent=5 // pred_region
        %s10572 = ssub.s32 %s30, 2
        // Predicated region
        $region137: #{decoder_forward.1} parent=135 // pred_check
          %p10573 = pneg %p484
        $region138: #{decoder_forward.1} parent=135 // pred_check_branch
          %10575 = sbr.rel (%p10573) target = $region140
        $region139: #{decoder_forward.1} parent=135 // pred_region
          %p10576 = scmp.lt.s32.totalorder %s36, 1
          %s10577 = scalar_select %p10576, %s36, 1
          %s10578 = smul.addr %s10577, 8
          %s10579 = smul.addr %s10578, 4
          %s10580 = scalar_lea.vmem %s20, %s10579
        $region140: #{decoder_forward.1} parent=135 // pred_fallthru
          _
      $region136: #{decoder_forward.1} parent=5 // pred_fallthru
        _
    $region6: #{decoder_forward.1} parent=1 // loop_footer
      %s34 = sadd.s32 1, %s30
    $region7: #{decoder_forward.1} parent=1 // loop_footer_branch
      %29 = sbr.rel target = $region3
    $region8: #{decoder_forward.1} parent=1 // loop_exit
      _
    %10581 = vsyncpa [#allocation3], 1
    %s10582 = scalar_lea.sflag [#allocation3], 1
    %10583 = vsyncpa %s10582, 1
    %10584 = vsyncpa [#allocation5], 1
    %10585 = vsyncpa [#allocation8], 1
    %10586 = vsyncpa [#allocation11], 1

</llo_original>
